<compile_context>
chip_gen: v6e
topology: v6e:2x2x1
jax: 0.10.0
libtpu: 0.0.40
codegen_flags: <defaults>
</compile_context>

<pallas_src>
import functools

import jax
import jax.numpy as jnp
from jax import lax
from jax.experimental import pallas as pl
from jax.experimental.pallas import tpu as pltpu

NEG = -1e9  # additive mask sentinel (finite even when causal + padding stack)


# ---------------------------------------------------------------------------
# In-kernel building blocks (operate on one batch element's (T, D) slab)
# ---------------------------------------------------------------------------
def _layernorm(x, g, b):
    mean = jnp.mean(x, axis=-1, keepdims=True)
    var = jnp.mean((x - mean) ** 2, axis=-1, keepdims=True)
    return (x - mean) * lax.rsqrt(var + 1e-5) * g + b  # PyTorch LayerNorm eps


def _mha(xq, xkv, wqkv_ref, bqkv_ref, wo_ref, bo_ref, mask_add, num_heads):
    """Multi-head attention for one batch element, entirely in VMEM/vregs.

    xq: (Tq, D) f32 query source; xkv: (Tk, D) f32 key/value source.
    wqkv_ref: (3, H, D, Dh) bf16   q/k/v projections (pre-transposed, per head)
    bqkv_ref: (3, H, 1, Dh) f32
    wo_ref:   (H, Dh, D)    bf16   out-projection rows belonging to head h
    bo_ref:   (1, D)        f32
    mask_add: (Tq, Tk) f32 additive mask, or None.
    """
    Dh = wqkv_ref.shape[-1]
    scale = 1.0 / (Dh ** 0.5)
    xq_b = xq.astype(jnp.bfloat16)
    xkv_b = xkv.astype(jnp.bfloat16)

    out = None
    for h in range(num_heads):  # static unroll; heads never leave VMEM
        qh = jnp.dot(xq_b, wqkv_ref[0, h], preferred_element_type=jnp.float32) + bqkv_ref[0, h]
        kh = jnp.dot(xkv_b, wqkv_ref[1, h], preferred_element_type=jnp.float32) + bqkv_ref[1, h]
        vh = jnp.dot(xkv_b, wqkv_ref[2, h], preferred_element_type=jnp.float32) + bqkv_ref[2, h]
        # scores: contract head dim of q and k without an explicit transpose
        s = lax.dot_general(qh.astype(jnp.bfloat16), kh.astype(jnp.bfloat16),
                            (((1,), (1,)), ((), ())),
                            preferred_element_type=jnp.float32) * scale
        if mask_add is not None:
            s = s + mask_add
        s = s - jnp.max(s, axis=-1, keepdims=True)
        p = jnp.exp(s)
        p = p * pl.reciprocal(jnp.sum(p, axis=-1, keepdims=True), approx=True)
        oh = jnp.dot(p.astype(jnp.bfloat16), vh.astype(jnp.bfloat16),
                     preferred_element_type=jnp.float32)          # (Tq, Dh)
        proj = jnp.dot(oh.astype(jnp.bfloat16), wo_ref[h],
                       preferred_element_type=jnp.float32)         # (Tq, D)
        out = proj if out is None else out + proj
    return out + bo_ref[...]


def _ffn(x, w1, b1, w2, b2):
    h = jnp.dot(x.astype(jnp.bfloat16), w1, preferred_element_type=jnp.float32) + b1
    h = jnp.maximum(h, 0.0)  # ReLU (nn.Transformer default activation)
    return jnp.dot(h.astype(jnp.bfloat16), w2, preferred_element_type=jnp.float32) + b2


# ---------------------------------------------------------------------------
# Fused layer kernels
# ---------------------------------------------------------------------------
def _encoder_layer_kernel(num_heads, apply_final_norm,
                          x_ref, wqkv_ref, bqkv_ref, wo_ref, bo_ref,
                          n1w_ref, n1b_ref, w1_ref, b1_ref, w2_ref, b2_ref,
                          n2w_ref, n2b_ref, fnw_ref, fnb_ref, o_ref):
    x = x_ref[0]                                                    # (T, D) f32
    sa = _mha(x, x, wqkv_ref, bqkv_ref, wo_ref, bo_ref, None, num_heads)
    y = _layernorm(x + sa, n1w_ref[...], n1b_ref[...])
    ff = _ffn(y, w1_ref[...], b1_ref[...], w2_ref[...], b2_ref[...])
    out = _layernorm(y + ff, n2w_ref[...], n2b_ref[...])
    if apply_final_norm:  # fused nn.TransformerEncoder final LayerNorm
        out = _layernorm(out, fnw_ref[...], fnb_ref[...])
    o_ref[0] = out


def _decoder_layer_kernel(num_heads,
                          x_ref, mem_ref, kpm_ref,
                          s_wqkv_ref, s_bqkv_ref, s_wo_ref, s_bo_ref, n1w_ref, n1b_ref,
                          c_wqkv_ref, c_bqkv_ref, c_wo_ref, c_bo_ref, n2w_ref, n2b_ref,
                          w1_ref, b1_ref, w2_ref, b2_ref, n3w_ref, n3b_ref, o_ref):
    x = x_ref[0]          # (T, D) target activations
    mem = mem_ref[0]      # (T, D) encoder memory
    kpm = kpm_ref[0]      # (1, T) f32, 1.0 where tgt key token is padding
    T = x.shape[0]

    # Additive self-attention mask built in-kernel: strict-upper causal + key padding.
    row = lax.broadcasted_iota(jnp.int32, (T, T), 0)
    col = lax.broadcasted_iota(jnp.int32, (T, T), 1)
    mask = jnp.where(col > row, NEG, 0.0) + kpm * NEG               # (T, T)
    # NOTE: a fully-masked row yields uniform attention here (PyTorch yields NaN).

    sa = _mha(x, x, s_wqkv_ref, s_bqkv_ref, s_wo_ref, s_bo_ref, mask, num_heads)
    y = _layernorm(x + sa, n1w_ref[...], n1b_ref[...])
    ca = _mha(y, mem, c_wqkv_ref, c_bqkv_ref, c_wo_ref, c_bo_ref, None, num_heads)
    z = _layernorm(y + ca, n2w_ref[...], n2b_ref[...])
    ff = _ffn(z, w1_ref[...], b1_ref[...], w2_ref[...], b2_ref[...])
    o_ref[0] = _layernorm(z + ff, n3w_ref[...], n3b_ref[...])


def _final_kernel(x_ref, nw_ref, nb_ref, w_ref, b_ref, o_ref):
    # Decoder final LayerNorm fused with the output vocabulary projection.
    x = _layernorm(x_ref[0], nw_ref[...], nb_ref[...])
    o_ref[0] = (jnp.dot(x.astype(jnp.bfloat16), w_ref[...],
                        preferred_element_type=jnp.float32) + b_ref[...])


# ---------------------------------------------------------------------------
# pallas_call wrappers (grid over batch, "parallel" for multi-TC sharding)
# ---------------------------------------------------------------------------
def _batch_spec(arr):
    nd = arr.ndim
    return pl.BlockSpec((1,) + tuple(arr.shape[1:]),
                        lambda b, nd=nd: (b,) + (0,) * (nd - 1))


def _rep_spec(arr):
    nd = arr.ndim
    return pl.BlockSpec(tuple(arr.shape), lambda b, nd=nd: (0,) * nd)


def _call_per_batch(kernel, batched_args, shared_args, out_shape):
    B = batched_args[0].shape[0]
    nd = len(out_shape)
    in_specs = ([_batch_spec(a) for a in batched_args]
                + [_rep_spec(a) for a in shared_args])
    return pl.pallas_call(
        kernel,
        out_shape=jax.ShapeDtypeStruct(out_shape, jnp.float32),
        grid=(B,),
        in_specs=in_specs,
        out_specs=pl.BlockSpec((1,) + tuple(out_shape[1:]),
                               lambda b, nd=nd: (b,) + (0,) * (nd - 1)),
        compiler_params=pltpu.CompilerParams(dimension_semantics=("parallel",)),
    )(*batched_args, *shared_args)


def encoder_layer(x, p, enc_norm_w, enc_norm_b, num_heads, apply_final_norm):
    B, T, D = x.shape
    kernel = functools.partial(_encoder_layer_kernel, num_heads, apply_final_norm)
    shared = (p["wqkv"], p["bqkv"], p["wo"], p["bo"],
              p["n1w"], p["n1b"], p["w1"], p["b1"], p["w2"], p["b2"],
              p["n2w"], p["n2b"], enc_norm_w, enc_norm_b)
    return _call_per_batch(kernel, (x,), shared, (B, T, D))


def decoder_layer(x, memory, kpm, p, num_heads):
    B, T, D = x.shape
    kernel = functools.partial(_decoder_layer_kernel, num_heads)
    shared = (p["sa_wqkv"], p["sa_bqkv"], p["sa_wo"], p["sa_bo"], p["n1w"], p["n1b"],
              p["ca_wqkv"], p["ca_bqkv"], p["ca_wo"], p["ca_bo"], p["n2w"], p["n2b"],
              p["w1"], p["b1"], p["w2"], p["b2"], p["n3w"], p["n3b"])
    return _call_per_batch(kernel, (x, memory, kpm), shared, (B, T, D))


def final_projection(y, nw, nb, w, b):
    B, T, D = y.shape
    V = w.shape[1]
    return _call_per_batch(_final_kernel, (y,), (nw, nb, w, b), (B, T, V))


# ---------------------------------------------------------------------------
# Forward pass (embedding gathers / token shifting are glue around kernels)
# ---------------------------------------------------------------------------
def add_start_token(tgt, start_token=2):
    """Mirror of FullTransformerTranslator.add_start_token (batch-wide gate)."""
    has_two_sos = jnp.all(tgt[:, :2] == start_token)
    shifted = jnp.concatenate(
        [jnp.full((tgt.shape[0], 1), start_token, tgt.dtype), tgt[:, :-1]], axis=1)
    return jnp.where(has_two_sos, tgt, shifted)


def forward(params, src, tgt, *, num_heads, pad_idx=1, start_token=2):
    tgt = add_start_token(tgt, start_token)
    N, T = src.shape
    pos = jnp.arange(T)

    src_emb = (jnp.take(params["src_emb"], src, axis=0)
               + jnp.take(params["src_pos"], pos, axis=0)[None])
    tgt_emb = (jnp.take(params["tgt_emb"], tgt, axis=0)
               + jnp.take(params["tgt_pos"], pos, axis=0)[None])

    # tgt key-padding mask, shaped (N, 1, T) so its per-batch block equals the
    # full trailing dims; 1.0 marks padded keys.
    tgt_kpm = (tgt == pad_idx).astype(jnp.float32)[:, None, :]

    # Encoder (post-norm layers; final encoder LayerNorm fused into last layer).
    x = src_emb
    n_enc = len(params["enc_layers"])
    for li, lp in enumerate(params["enc_layers"]):
        x = encoder_layer(x, lp, params["enc_norm_w"], params["enc_norm_b"],
                          num_heads, apply_final_norm=(li == n_enc - 1))
    memory = x

    # Decoder (post-norm layers). Cross-attention carries no memory padding mask,
    # matching the reference call (no memory_key_padding_mask passed).
    y = tgt_emb
    for lp in params["dec_layers"]:
        y = decoder_layer(y, memory, tgt_kpm, lp, num_heads)

    # Final decoder LayerNorm + output linear fused in one kernel.
    return final_projection(y, params["dec_norm_w"], params["dec_norm_b"],
                            params["final_w"], params["final_b"])


# ---------------------------------------------------------------------------
# Deterministic parameter initialization (same logical shapes as the module,
# but stored pre-transposed / per-head / bf16 so the jitted forward never
# re-materializes weights).
# ---------------------------------------------------------------------------
def init_params(key, input_size, output_size, D, num_heads, FF, n_enc, n_dec, max_length):
    keys = iter(jax.random.split(key, 256))
    Dh = D // num_heads

    def w(shape, scale=0.05):
        # matmul weights: (K, Nout)-style layout, pre-cast to bf16 once
        return (scale * jax.random.normal(next(keys), shape, jnp.float32)).astype(jnp.bfloat16)

    def f32(shape, scale=0.05):
        return scale * jax.random.normal(next(keys), shape, jnp.float32)

    ones = lambda n: jnp.ones((1, n), jnp.float32)
    zeros = lambda n: jnp.zeros((1, n), jnp.float32)

    def mha_p(prefix=""):
        return {
            prefix + "wqkv": w((3, num_heads, D, Dh)),
            prefix + "bqkv": jnp.zeros((3, num_heads, 1, Dh), jnp.float32),
            prefix + "wo": w((num_heads, Dh, D)),
            prefix + "bo": zeros(D),
        }

    def enc_layer_p():
        p = mha_p()
        p.update({"w1": w((D, FF)), "b1": zeros(FF),
                  "w2": w((FF, D)), "b2": zeros(D),
                  "n1w": ones(D), "n1b": zeros(D),
                  "n2w": ones(D), "n2b": zeros(D)})
        return p

    def dec_layer_p():
        p = {}
        p.update(mha_p("sa_"))
        p.update(mha_p("ca_"))
        p.update({"w1": w((D, FF)), "b1": zeros(FF),
                  "w2": w((FF, D)), "b2": zeros(D),
                  "n1w": ones(D), "n1b": zeros(D),
                  "n2w": ones(D), "n2b": zeros(D),
                  "n3w": ones(D), "n3b": zeros(D)})
        return p

    return {
        "src_emb": f32((input_size, D)),
        "tgt_emb": f32((input_size, D)),
        "src_pos": f32((max_length, D)),
        "tgt_pos": f32((max_length, D)),
        "enc_layers": [enc_layer_p() for _ in range(n_enc)],
        "enc_norm_w": ones(D), "enc_norm_b": zeros(D),
        "dec_layers": [dec_layer_p() for _ in range(n_dec)],
        "dec_norm_w": ones(D), "dec_norm_b": zeros(D),
        "final_w": w((D, output_size)),
        "final_b": zeros(output_size),
    }


if __name__ == "__main__":
    # Small shapes consistent with the module's forward: src/tgt are (N, T) token ids.
    B, T = 2, 8
    INPUT_SIZE, OUTPUT_SIZE = 50, 48
    HIDDEN, HEADS, FFN, MAX_LEN = 32, 2, 64, 43
    N_ENC, N_DEC = 2, 2

    key = jax.random.PRNGKey(0)
    k_param, k_src, k_tgt = jax.random.split(key, 3)

    params = init_params(k_param, INPUT_SIZE, OUTPUT_SIZE, HIDDEN, HEADS, FFN,
                         N_ENC, N_DEC, MAX_LEN)
    # tokens in [3, vocab) so no pad (=1) tokens; start-token handling still exercised
    src = jax.random.randint(k_src, (B, T), 3, INPUT_SIZE, dtype=jnp.int32)
    tgt = jax.random.randint(k_tgt, (B, T), 3, INPUT_SIZE, dtype=jnp.int32)

    fwd = jax.jit(functools.partial(forward, num_heads=HEADS, pad_idx=1, start_token=2))
    out = jax.block_until_ready(fwd(params, src, tgt))

    assert out.shape == (B, T, OUTPUT_SIZE), out.shape
    assert bool(jnp.all(jnp.isfinite(out)))
    # TODO(synk): dropout (p=0.2) is identity here (eval-mode); PyTorch training-mode
    # RNG dropout has no deterministic Pallas equivalent.
    print("KERNEL_OK")
</pallas_src>

<mosaic_0001>
module attributes {stable_mosaic.version = 11 : i64} {
  func.func @_encoder_layer_kernel(%arg0: i32, %arg1: memref<1x8x32xf32, #tpu.memory_space<vmem>>, %arg2: memref<3x2x32x16xbf16, #tpu.memory_space<vmem>>, %arg3: memref<3x2x1x16xf32, #tpu.memory_space<vmem>>, %arg4: memref<2x16x32xbf16, #tpu.memory_space<vmem>>, %arg5: memref<1x32xf32, #tpu.memory_space<vmem>>, %arg6: memref<1x32xf32, #tpu.memory_space<vmem>>, %arg7: memref<1x32xf32, #tpu.memory_space<vmem>>, %arg8: memref<32x64xbf16, #tpu.memory_space<vmem>>, %arg9: memref<1x64xf32, #tpu.memory_space<vmem>>, %arg10: memref<64x32xbf16, #tpu.memory_space<vmem>>, %arg11: memref<1x32xf32, #tpu.memory_space<vmem>>, %arg12: memref<1x32xf32, #tpu.memory_space<vmem>>, %arg13: memref<1x32xf32, #tpu.memory_space<vmem>>, %arg14: memref<1x32xf32, #tpu.memory_space<vmem>>, %arg15: memref<1x32xf32, #tpu.memory_space<vmem>>, %arg16: memref<1x8x32xf32, #tpu.memory_space<vmem>>) attributes {dimension_semantics = [#tpu.dimension_semantics<parallel>], iteration_bounds = array<i64: 2>, scalar_prefetch = 0 : i64, scratch_operands = 0 : i64, tpu.core_type = #tpu.core_type<tc>, window_params = [{transform_indices = @transform_0, window_bounds = array<i64: 1, 8, 32>}, {pipeline_mode = #tpu.pipeline_mode<synchronous>, transform_indices = @transform_1, window_bounds = array<i64: 3, 2, 32, 16>}, {pipeline_mode = #tpu.pipeline_mode<synchronous>, transform_indices = @transform_2, window_bounds = array<i64: 3, 2, 1, 16>}, {pipeline_mode = #tpu.pipeline_mode<synchronous>, transform_indices = @transform_3, window_bounds = array<i64: 2, 16, 32>}, {pipeline_mode = #tpu.pipeline_mode<synchronous>, transform_indices = @transform_4, window_bounds = array<i64: 1, 32>}, {pipeline_mode = #tpu.pipeline_mode<synchronous>, transform_indices = @transform_5, window_bounds = array<i64: 1, 32>}, {pipeline_mode = #tpu.pipeline_mode<synchronous>, transform_indices = @transform_6, window_bounds = array<i64: 1, 32>}, {pipeline_mode = #tpu.pipeline_mode<synchronous>, transform_indices = @transform_7, window_bounds = array<i64: 32, 64>}, {pipeline_mode = #tpu.pipeline_mode<synchronous>, transform_indices = @transform_8, window_bounds = array<i64: 1, 64>}, {pipeline_mode = #tpu.pipeline_mode<synchronous>, transform_indices = @transform_9, window_bounds = array<i64: 64, 32>}, {pipeline_mode = #tpu.pipeline_mode<synchronous>, transform_indices = @transform_10, window_bounds = array<i64: 1, 32>}, {pipeline_mode = #tpu.pipeline_mode<synchronous>, transform_indices = @transform_11, window_bounds = array<i64: 1, 32>}, {pipeline_mode = #tpu.pipeline_mode<synchronous>, transform_indices = @transform_12, window_bounds = array<i64: 1, 32>}, {pipeline_mode = #tpu.pipeline_mode<synchronous>, transform_indices = @transform_13, window_bounds = array<i64: 1, 32>}, {pipeline_mode = #tpu.pipeline_mode<synchronous>, transform_indices = @transform_14, window_bounds = array<i64: 1, 32>}, {transform_indices = @transform_15, window_bounds = array<i64: 1, 8, 32>}]} {
    %c0 = arith.constant 0 : index
    %c0_0 = arith.constant 0 : index
    %c0_1 = arith.constant 0 : index
    %0 = vector.load %arg1[%c0, %c0_0, %c0_1] : memref<1x8x32xf32, #tpu.memory_space<vmem>>, vector<1x8x32xf32>
    %1 = vector.shape_cast %0 : vector<1x8x32xf32> to vector<8x32xf32>
    %2 = arith.truncf %1 : vector<8x32xf32> to vector<8x32xbf16>
    %3 = arith.truncf %1 : vector<8x32xf32> to vector<8x32xbf16>
    %c0_2 = arith.constant 0 : index
    %c0_3 = arith.constant 0 : index
    %c0_4 = arith.constant 0 : index
    %c0_5 = arith.constant 0 : index
    %4 = vector.load %arg2[%c0_2, %c0_3, %c0_4, %c0_5] : memref<3x2x32x16xbf16, #tpu.memory_space<vmem>>, vector<1x1x32x16xbf16>
    %5 = vector.shape_cast %4 : vector<1x1x32x16xbf16> to vector<32x16xbf16>
    %cst = arith.constant dense<0.000000e+00> : vector<8x16xf32>
    %6 = tpu.matmul %2, %5, %cst {dimension_numbers = #tpu.dot_dimension_numbers<[1], [0], [0], [1], [0, 0, 1, 1], [], []>} : vector<8x32xbf16>, vector<32x16xbf16>, vector<8x16xf32> -> vector<8x16xf32>
    %c0_6 = arith.constant 0 : index
    %c0_7 = arith.constant 0 : index
    %c0_8 = arith.constant 0 : index
    %c0_9 = arith.constant 0 : index
    %7 = vector.load %arg3[%c0_6, %c0_7, %c0_8, %c0_9] : memref<3x2x1x16xf32, #tpu.memory_space<vmem>>, vector<1x1x1x16xf32>
    %8 = vector.shape_cast %7 : vector<1x1x1x16xf32> to vector<1x16xf32>
    %9 = vector.broadcast %8 : vector<1x16xf32> to vector<8x16xf32>
    %10 = arith.addf %6, %9 : vector<8x16xf32>
    %c1 = arith.constant 1 : index
    %c0_10 = arith.constant 0 : index
    %c0_11 = arith.constant 0 : index
    %c0_12 = arith.constant 0 : index
    %11 = vector.load %arg2[%c1, %c0_10, %c0_11, %c0_12] : memref<3x2x32x16xbf16, #tpu.memory_space<vmem>>, vector<1x1x32x16xbf16>
    %12 = vector.shape_cast %11 : vector<1x1x32x16xbf16> to vector<32x16xbf16>
    %cst_13 = arith.constant dense<0.000000e+00> : vector<8x16xf32>
    %13 = tpu.matmul %3, %12, %cst_13 {dimension_numbers = #tpu.dot_dimension_numbers<[1], [0], [0], [1], [0, 0, 1, 1], [], []>} : vector<8x32xbf16>, vector<32x16xbf16>, vector<8x16xf32> -> vector<8x16xf32>
    %c1_14 = arith.constant 1 : index
    %c0_15 = arith.constant 0 : index
    %c0_16 = arith.constant 0 : index
    %c0_17 = arith.constant 0 : index
    %14 = vector.load %arg3[%c1_14, %c0_15, %c0_16, %c0_17] : memref<3x2x1x16xf32, #tpu.memory_space<vmem>>, vector<1x1x1x16xf32>
    %15 = vector.shape_cast %14 : vector<1x1x1x16xf32> to vector<1x16xf32>
    %16 = vector.broadcast %15 : vector<1x16xf32> to vector<8x16xf32>
    %17 = arith.addf %13, %16 : vector<8x16xf32>
    %c2 = arith.constant 2 : index
    %c0_18 = arith.constant 0 : index
    %c0_19 = arith.constant 0 : index
    %c0_20 = arith.constant 0 : index
    %18 = vector.load %arg2[%c2, %c0_18, %c0_19, %c0_20] : memref<3x2x32x16xbf16, #tpu.memory_space<vmem>>, vector<1x1x32x16xbf16>
    %19 = vector.shape_cast %18 : vector<1x1x32x16xbf16> to vector<32x16xbf16>
    %cst_21 = arith.constant dense<0.000000e+00> : vector<8x16xf32>
    %20 = tpu.matmul %3, %19, %cst_21 {dimension_numbers = #tpu.dot_dimension_numbers<[1], [0], [0], [1], [0, 0, 1, 1], [], []>} : vector<8x32xbf16>, vector<32x16xbf16>, vector<8x16xf32> -> vector<8x16xf32>
    %c2_22 = arith.constant 2 : index
    %c0_23 = arith.constant 0 : index
    %c0_24 = arith.constant 0 : index
    %c0_25 = arith.constant 0 : index
    %21 = vector.load %arg3[%c2_22, %c0_23, %c0_24, %c0_25] : memref<3x2x1x16xf32, #tpu.memory_space<vmem>>, vector<1x1x1x16xf32>
    %22 = vector.shape_cast %21 : vector<1x1x1x16xf32> to vector<1x16xf32>
    %23 = vector.broadcast %22 : vector<1x16xf32> to vector<8x16xf32>
    %24 = arith.addf %20, %23 : vector<8x16xf32>
    %25 = arith.truncf %10 : vector<8x16xf32> to vector<8x16xbf16>
    %26 = arith.truncf %17 : vector<8x16xf32> to vector<8x16xbf16>
    %cst_26 = arith.constant dense<0.000000e+00> : vector<8x8xf32>
    %27 = tpu.matmul %25, %26, %cst_26 {dimension_numbers = #tpu.dot_dimension_numbers<[1], [1], [0], [0], [0, 0, 1, 0], [], []>} : vector<8x16xbf16>, vector<8x16xbf16>, vector<8x8xf32> -> vector<8x8xf32>
    %cst_27 = arith.constant 2.500000e-01 : f32
    %28 = vector.broadcast %cst_27 : f32 to vector<8x8xf32>
    %29 = arith.mulf %27, %28 : vector<8x8xf32>
    %cst_28 = arith.constant dense<0xFF800000> : vector<8xf32>
    %30 = vector.multi_reduction <maximumf>, %29, %cst_28 [1] : vector<8x8xf32> to vector<8xf32>
    %31 = vector.shape_cast %30 : vector<8xf32> to vector<8x1xf32>
    %32 = vector.broadcast %31 : vector<8x1xf32> to vector<8x8xf32>
    %33 = arith.subf %29, %32 : vector<8x8xf32>
    %34 = math.exp %33 : vector<8x8xf32>
    %cst_29 = arith.constant dense<0.000000e+00> : vector<8xf32>
    %35 = vector.multi_reduction <add>, %34, %cst_29 [1] : vector<8x8xf32> to vector<8xf32>
    %36 = vector.shape_cast %35 : vector<8xf32> to vector<8x1xf32>
    %37 = tpu.reciprocal %36 {approx = true} : vector<8x1xf32> -> vector<8x1xf32>
    %38 = vector.broadcast %37 : vector<8x1xf32> to vector<8x8xf32>
    %39 = arith.mulf %34, %38 : vector<8x8xf32>
    %40 = arith.truncf %39 : vector<8x8xf32> to vector<8x8xbf16>
    %41 = arith.truncf %24 : vector<8x16xf32> to vector<8x16xbf16>
    %cst_30 = arith.constant dense<0.000000e+00> : vector<8x16xf32>
    %42 = tpu.matmul %40, %41, %cst_30 {dimension_numbers = #tpu.dot_dimension_numbers<[1], [0], [0], [1], [0, 0, 1, 1], [], []>} : vector<8x8xbf16>, vector<8x16xbf16>, vector<8x16xf32> -> vector<8x16xf32>
    %43 = arith.truncf %42 : vector<8x16xf32> to vector<8x16xbf16>
    %c0_31 = arith.constant 0 : index
    %c0_32 = arith.constant 0 : index
    %c0_33 = arith.constant 0 : index
    %44 = vector.load %arg4[%c0_31, %c0_32, %c0_33] : memref<2x16x32xbf16, #tpu.memory_space<vmem>>, vector<1x16x32xbf16>
    %45 = vector.shape_cast %44 : vector<1x16x32xbf16> to vector<16x32xbf16>
    %cst_34 = arith.constant dense<0.000000e+00> : vector<8x32xf32>
    %46 = tpu.matmul %43, %45, %cst_34 {dimension_numbers = #tpu.dot_dimension_numbers<[1], [0], [0], [1], [0, 0, 1, 1], [], []>} : vector<8x16xbf16>, vector<16x32xbf16>, vector<8x32xf32> -> vector<8x32xf32>
    %c0_35 = arith.constant 0 : index
    %c1_36 = arith.constant 1 : index
    %c0_37 = arith.constant 0 : index
    %c0_38 = arith.constant 0 : index
    %47 = vector.load %arg2[%c0_35, %c1_36, %c0_37, %c0_38] : memref<3x2x32x16xbf16, #tpu.memory_space<vmem>>, vector<1x1x32x16xbf16>
    %48 = vector.shape_cast %47 : vector<1x1x32x16xbf16> to vector<32x16xbf16>
    %cst_39 = arith.constant dense<0.000000e+00> : vector<8x16xf32>
    %49 = tpu.matmul %2, %48, %cst_39 {dimension_numbers = #tpu.dot_dimension_numbers<[1], [0], [0], [1], [0, 0, 1, 1], [], []>} : vector<8x32xbf16>, vector<32x16xbf16>, vector<8x16xf32> -> vector<8x16xf32>
    %c0_40 = arith.constant 0 : index
    %c1_41 = arith.constant 1 : index
    %c0_42 = arith.constant 0 : index
    %c0_43 = arith.constant 0 : index
    %50 = vector.load %arg3[%c0_40, %c1_41, %c0_42, %c0_43] : memref<3x2x1x16xf32, #tpu.memory_space<vmem>>, vector<1x1x1x16xf32>
    %51 = vector.shape_cast %50 : vector<1x1x1x16xf32> to vector<1x16xf32>
    %52 = vector.broadcast %51 : vector<1x16xf32> to vector<8x16xf32>
    %53 = arith.addf %49, %52 : vector<8x16xf32>
    %c1_44 = arith.constant 1 : index
    %c1_45 = arith.constant 1 : index
    %c0_46 = arith.constant 0 : index
    %c0_47 = arith.constant 0 : index
    %54 = vector.load %arg2[%c1_44, %c1_45, %c0_46, %c0_47] : memref<3x2x32x16xbf16, #tpu.memory_space<vmem>>, vector<1x1x32x16xbf16>
    %55 = vector.shape_cast %54 : vector<1x1x32x16xbf16> to vector<32x16xbf16>
    %cst_48 = arith.constant dense<0.000000e+00> : vector<8x16xf32>
    %56 = tpu.matmul %3, %55, %cst_48 {dimension_numbers = #tpu.dot_dimension_numbers<[1], [0], [0], [1], [0, 0, 1, 1], [], []>} : vector<8x32xbf16>, vector<32x16xbf16>, vector<8x16xf32> -> vector<8x16xf32>
    %c1_49 = arith.constant 1 : index
    %c1_50 = arith.constant 1 : index
    %c0_51 = arith.constant 0 : index
    %c0_52 = arith.constant 0 : index
    %57 = vector.load %arg3[%c1_49, %c1_50, %c0_51, %c0_52] : memref<3x2x1x16xf32, #tpu.memory_space<vmem>>, vector<1x1x1x16xf32>
    %58 = vector.shape_cast %57 : vector<1x1x1x16xf32> to vector<1x16xf32>
    %59 = vector.broadcast %58 : vector<1x16xf32> to vector<8x16xf32>
    %60 = arith.addf %56, %59 : vector<8x16xf32>
    %c2_53 = arith.constant 2 : index
    %c1_54 = arith.constant 1 : index
    %c0_55 = arith.constant 0 : index
    %c0_56 = arith.constant 0 : index
    %61 = vector.load %arg2[%c2_53, %c1_54, %c0_55, %c0_56] : memref<3x2x32x16xbf16, #tpu.memory_space<vmem>>, vector<1x1x32x16xbf16>
    %62 = vector.shape_cast %61 : vector<1x1x32x16xbf16> to vector<32x16xbf16>
    %cst_57 = arith.constant dense<0.000000e+00> : vector<8x16xf32>
    %63 = tpu.matmul %3, %62, %cst_57 {dimension_numbers = #tpu.dot_dimension_numbers<[1], [0], [0], [1], [0, 0, 1, 1], [], []>} : vector<8x32xbf16>, vector<32x16xbf16>, vector<8x16xf32> -> vector<8x16xf32>
    %c2_58 = arith.constant 2 : index
    %c1_59 = arith.constant 1 : index
    %c0_60 = arith.constant 0 : index
    %c0_61 = arith.constant 0 : index
    %64 = vector.load %arg3[%c2_58, %c1_59, %c0_60, %c0_61] : memref<3x2x1x16xf32, #tpu.memory_space<vmem>>, vector<1x1x1x16xf32>
    %65 = vector.shape_cast %64 : vector<1x1x1x16xf32> to vector<1x16xf32>
    %66 = vector.broadcast %65 : vector<1x16xf32> to vector<8x16xf32>
    %67 = arith.addf %63, %66 : vector<8x16xf32>
    %68 = arith.truncf %53 : vector<8x16xf32> to vector<8x16xbf16>
    %69 = arith.truncf %60 : vector<8x16xf32> to vector<8x16xbf16>
    %cst_62 = arith.constant dense<0.000000e+00> : vector<8x8xf32>
    %70 = tpu.matmul %68, %69, %cst_62 {dimension_numbers = #tpu.dot_dimension_numbers<[1], [1], [0], [0], [0, 0, 1, 0], [], []>} : vector<8x16xbf16>, vector<8x16xbf16>, vector<8x8xf32> -> vector<8x8xf32>
    %cst_63 = arith.constant 2.500000e-01 : f32
    %71 = vector.broadcast %cst_63 : f32 to vector<8x8xf32>
    %72 = arith.mulf %70, %71 : vector<8x8xf32>
    %cst_64 = arith.constant dense<0xFF800000> : vector<8xf32>
    %73 = vector.multi_reduction <maximumf>, %72, %cst_64 [1] : vector<8x8xf32> to vector<8xf32>
    %74 = vector.shape_cast %73 : vector<8xf32> to vector<8x1xf32>
    %75 = vector.broadcast %74 : vector<8x1xf32> to vector<8x8xf32>
    %76 = arith.subf %72, %75 : vector<8x8xf32>
    %77 = math.exp %76 : vector<8x8xf32>
    %cst_65 = arith.constant dense<0.000000e+00> : vector<8xf32>
    %78 = vector.multi_reduction <add>, %77, %cst_65 [1] : vector<8x8xf32> to vector<8xf32>
    %79 = vector.shape_cast %78 : vector<8xf32> to vector<8x1xf32>
    %80 = tpu.reciprocal %79 {approx = true} : vector<8x1xf32> -> vector<8x1xf32>
    %81 = vector.broadcast %80 : vector<8x1xf32> to vector<8x8xf32>
    %82 = arith.mulf %77, %81 : vector<8x8xf32>
    %83 = arith.truncf %82 : vector<8x8xf32> to vector<8x8xbf16>
    %84 = arith.truncf %67 : vector<8x16xf32> to vector<8x16xbf16>
    %cst_66 = arith.constant dense<0.000000e+00> : vector<8x16xf32>
    %85 = tpu.matmul %83, %84, %cst_66 {dimension_numbers = #tpu.dot_dimension_numbers<[1], [0], [0], [1], [0, 0, 1, 1], [], []>} : vector<8x8xbf16>, vector<8x16xbf16>, vector<8x16xf32> -> vector<8x16xf32>
    %86 = arith.truncf %85 : vector<8x16xf32> to vector<8x16xbf16>
    %c1_67 = arith.constant 1 : index
    %c0_68 = arith.constant 0 : index
    %c0_69 = arith.constant 0 : index
    %87 = vector.load %arg4[%c1_67, %c0_68, %c0_69] : memref<2x16x32xbf16, #tpu.memory_space<vmem>>, vector<1x16x32xbf16>
    %88 = vector.shape_cast %87 : vector<1x16x32xbf16> to vector<16x32xbf16>
    %cst_70 = arith.constant dense<0.000000e+00> : vector<8x32xf32>
    %89 = tpu.matmul %86, %88, %cst_70 {dimension_numbers = #tpu.dot_dimension_numbers<[1], [0], [0], [1], [0, 0, 1, 1], [], []>} : vector<8x16xbf16>, vector<16x32xbf16>, vector<8x32xf32> -> vector<8x32xf32>
    %90 = arith.addf %46, %89 : vector<8x32xf32>
    %c0_71 = arith.constant 0 : index
    %c0_72 = arith.constant 0 : index
    %91 = vector.load %arg5[%c0_71, %c0_72] : memref<1x32xf32, #tpu.memory_space<vmem>>, vector<1x32xf32>
    %92 = vector.broadcast %91 : vector<1x32xf32> to vector<8x32xf32>
    %93 = arith.addf %90, %92 : vector<8x32xf32>
    %94 = arith.addf %1, %93 : vector<8x32xf32>
    %c0_73 = arith.constant 0 : index
    %c0_74 = arith.constant 0 : index
    %95 = vector.load %arg6[%c0_73, %c0_74] : memref<1x32xf32, #tpu.memory_space<vmem>>, vector<1x32xf32>
    %c0_75 = arith.constant 0 : index
    %c0_76 = arith.constant 0 : index
    %96 = vector.load %arg7[%c0_75, %c0_76] : memref<1x32xf32, #tpu.memory_space<vmem>>, vector<1x32xf32>
    %cst_77 = arith.constant dense<0.000000e+00> : vector<8xf32>
    %97 = vector.multi_reduction <add>, %94, %cst_77 [1] : vector<8x32xf32> to vector<8xf32>
    %98 = vector.shape_cast %97 : vector<8xf32> to vector<8x1xf32>
    %cst_78 = arith.constant 3.200000e+01 : f32
    %99 = vector.broadcast %cst_78 : f32 to vector<8x1xf32>
    %100 = arith.divf %98, %99 : vector<8x1xf32>
    %101 = vector.broadcast %100 : vector<8x1xf32> to vector<8x32xf32>
    %102 = arith.subf %94, %101 : vector<8x32xf32>
    %103 = arith.mulf %102, %102 : vector<8x32xf32>
    %cst_79 = arith.constant dense<0.000000e+00> : vector<8xf32>
    %104 = vector.multi_reduction <add>, %103, %cst_79 [1] : vector<8x32xf32> to vector<8xf32>
    %105 = vector.shape_cast %104 : vector<8xf32> to vector<8x1xf32>
    %cst_80 = arith.constant 3.200000e+01 : f32
    %106 = vector.broadcast %cst_80 : f32 to vector<8x1xf32>
    %107 = arith.divf %105, %106 : vector<8x1xf32>
    %108 = vector.broadcast %100 : vector<8x1xf32> to vector<8x32xf32>
    %109 = arith.subf %94, %108 : vector<8x32xf32>
    %cst_81 = arith.constant 9.99999974E-6 : f32
    %110 = vector.broadcast %cst_81 : f32 to vector<8x1xf32>
    %111 = arith.addf %107, %110 : vector<8x1xf32>
    %112 = math.rsqrt %111 : vector<8x1xf32>
    %113 = vector.broadcast %112 : vector<8x1xf32> to vector<8x32xf32>
    %114 = arith.mulf %109, %113 : vector<8x32xf32>
    %115 = vector.broadcast %95 : vector<1x32xf32> to vector<8x32xf32>
    %116 = arith.mulf %114, %115 : vector<8x32xf32>
    %117 = vector.broadcast %96 : vector<1x32xf32> to vector<8x32xf32>
    %118 = arith.addf %116, %117 : vector<8x32xf32>
    %c0_82 = arith.constant 0 : index
    %c0_83 = arith.constant 0 : index
    %119 = vector.load %arg8[%c0_82, %c0_83] : memref<32x64xbf16, #tpu.memory_space<vmem>>, vector<32x64xbf16>
    %c0_84 = arith.constant 0 : index
    %c0_85 = arith.constant 0 : index
    %120 = vector.load %arg9[%c0_84, %c0_85] : memref<1x64xf32, #tpu.memory_space<vmem>>, vector<1x64xf32>
    %c0_86 = arith.constant 0 : index
    %c0_87 = arith.constant 0 : index
    %121 = vector.load %arg10[%c0_86, %c0_87] : memref<64x32xbf16, #tpu.memory_space<vmem>>, vector<64x32xbf16>
    %c0_88 = arith.constant 0 : index
    %c0_89 = arith.constant 0 : index
    %122 = vector.load %arg11[%c0_88, %c0_89] : memref<1x32xf32, #tpu.memory_space<vmem>>, vector<1x32xf32>
    %123 = arith.truncf %118 : vector<8x32xf32> to vector<8x32xbf16>
    %cst_90 = arith.constant dense<0.000000e+00> : vector<8x64xf32>
    %124 = tpu.matmul %123, %119, %cst_90 {dimension_numbers = #tpu.dot_dimension_numbers<[1], [0], [0], [1], [0, 0, 1, 1], [], []>} : vector<8x32xbf16>, vector<32x64xbf16>, vector<8x64xf32> -> vector<8x64xf32>
    %125 = vector.broadcast %120 : vector<1x64xf32> to vector<8x64xf32>
    %126 = arith.addf %124, %125 : vector<8x64xf32>
    %cst_91 = arith.constant 0.000000e+00 : f32
    %127 = vector.broadcast %cst_91 : f32 to vector<8x64xf32>
    %128 = arith.maximumf %126, %127 : vector<8x64xf32>
    %129 = arith.truncf %128 : vector<8x64xf32> to vector<8x64xbf16>
    %cst_92 = arith.constant dense<0.000000e+00> : vector<8x32xf32>
    %130 = tpu.matmul %129, %121, %cst_92 {dimension_numbers = #tpu.dot_dimension_numbers<[1], [0], [0], [1], [0, 0, 1, 1], [], []>} : vector<8x64xbf16>, vector<64x32xbf16>, vector<8x32xf32> -> vector<8x32xf32>
    %131 = vector.broadcast %122 : vector<1x32xf32> to vector<8x32xf32>
    %132 = arith.addf %130, %131 : vector<8x32xf32>
    %133 = arith.addf %118, %132 : vector<8x32xf32>
    %c0_93 = arith.constant 0 : index
    %c0_94 = arith.constant 0 : index
    %134 = vector.load %arg12[%c0_93, %c0_94] : memref<1x32xf32, #tpu.memory_space<vmem>>, vector<1x32xf32>
    %c0_95 = arith.constant 0 : index
    %c0_96 = arith.constant 0 : index
    %135 = vector.load %arg13[%c0_95, %c0_96] : memref<1x32xf32, #tpu.memory_space<vmem>>, vector<1x32xf32>
    %cst_97 = arith.constant dense<0.000000e+00> : vector<8xf32>
    %136 = vector.multi_reduction <add>, %133, %cst_97 [1] : vector<8x32xf32> to vector<8xf32>
    %137 = vector.shape_cast %136 : vector<8xf32> to vector<8x1xf32>
    %cst_98 = arith.constant 3.200000e+01 : f32
    %138 = vector.broadcast %cst_98 : f32 to vector<8x1xf32>
    %139 = arith.divf %137, %138 : vector<8x1xf32>
    %140 = vector.broadcast %139 : vector<8x1xf32> to vector<8x32xf32>
    %141 = arith.subf %133, %140 : vector<8x32xf32>
    %142 = arith.mulf %141, %141 : vector<8x32xf32>
    %cst_99 = arith.constant dense<0.000000e+00> : vector<8xf32>
    %143 = vector.multi_reduction <add>, %142, %cst_99 [1] : vector<8x32xf32> to vector<8xf32>
    %144 = vector.shape_cast %143 : vector<8xf32> to vector<8x1xf32>
    %cst_100 = arith.constant 3.200000e+01 : f32
    %145 = vector.broadcast %cst_100 : f32 to vector<8x1xf32>
    %146 = arith.divf %144, %145 : vector<8x1xf32>
    %147 = vector.broadcast %139 : vector<8x1xf32> to vector<8x32xf32>
    %148 = arith.subf %133, %147 : vector<8x32xf32>
    %cst_101 = arith.constant 9.99999974E-6 : f32
    %149 = vector.broadcast %cst_101 : f32 to vector<8x1xf32>
    %150 = arith.addf %146, %149 : vector<8x1xf32>
    %151 = math.rsqrt %150 : vector<8x1xf32>
    %152 = vector.broadcast %151 : vector<8x1xf32> to vector<8x32xf32>
    %153 = arith.mulf %148, %152 : vector<8x32xf32>
    %154 = vector.broadcast %134 : vector<1x32xf32> to vector<8x32xf32>
    %155 = arith.mulf %153, %154 : vector<8x32xf32>
    %156 = vector.broadcast %135 : vector<1x32xf32> to vector<8x32xf32>
    %157 = arith.addf %155, %156 : vector<8x32xf32>
    %c0_102 = arith.constant 0 : index
    %c0_103 = arith.constant 0 : index
    %c0_104 = arith.constant 0 : index
    %158 = vector.load %arg16[%c0_102, %c0_103, %c0_104] : memref<1x8x32xf32, #tpu.memory_space<vmem>>, vector<1x8x32xf32>
    %159 = vector.shape_cast %158 : vector<1x8x32xf32> to vector<8x32xf32>
    %160 = vector.shape_cast %157 : vector<8x32xf32> to vector<1x8x32xf32>
    tpu.vector_store %arg16[%c0_102, %c0_103, %c0_104], %160 {strides = array<i32>} : memref<1x8x32xf32, #tpu.memory_space<vmem>>, vector<1x8x32xf32>,
    return
  }
  func.func @transform_0(%arg0: i32) -> (i32, i32, i32) {
    %c0_i32 = arith.constant 0 : i32
    %c0_i32_0 = arith.constant 0 : i32
    %c0_i32_1 = arith.constant 0 : i32
    return %arg0, %c0_i32, %c0_i32_0 : i32, i32, i32
  }
  func.func @transform_1(%arg0: i32) -> (i32, i32, i32, i32) {
    %c0_i32 = arith.constant 0 : i32
    %c0_i32_0 = arith.constant 0 : i32
    %c0_i32_1 = arith.constant 0 : i32
    %c0_i32_2 = arith.constant 0 : i32
    %c0_i32_3 = arith.constant 0 : i32
    return %c0_i32, %c0_i32_0, %c0_i32_1, %c0_i32_2 : i32, i32, i32, i32
  }
  func.func @transform_2(%arg0: i32) -> (i32, i32, i32, i32) {
    %c0_i32 = arith.constant 0 : i32
    %c0_i32_0 = arith.constant 0 : i32
    %c0_i32_1 = arith.constant 0 : i32
    %c0_i32_2 = arith.constant 0 : i32
    %c0_i32_3 = arith.constant 0 : i32
    return %c0_i32, %c0_i32_0, %c0_i32_1, %c0_i32_2 : i32, i32, i32, i32
  }
  func.func @transform_3(%arg0: i32) -> (i32, i32, i32) {
    %c0_i32 = arith.constant 0 : i32
    %c0_i32_0 = arith.constant 0 : i32
    %c0_i32_1 = arith.constant 0 : i32
    %c0_i32_2 = arith.constant 0 : i32
    return %c0_i32, %c0_i32_0, %c0_i32_1 : i32, i32, i32
  }
  func.func @transform_4(%arg0: i32) -> (i32, i32) {
    %c0_i32 = arith.constant 0 : i32
    %c0_i32_0 = arith.constant 0 : i32
    %c0_i32_1 = arith.constant 0 : i32
    return %c0_i32, %c0_i32_0 : i32, i32
  }
  func.func @transform_5(%arg0: i32) -> (i32, i32) {
    %c0_i32 = arith.constant 0 : i32
    %c0_i32_0 = arith.constant 0 : i32
    %c0_i32_1 = arith.constant 0 : i32
    return %c0_i32, %c0_i32_0 : i32, i32
  }
  func.func @transform_6(%arg0: i32) -> (i32, i32) {
    %c0_i32 = arith.constant 0 : i32
    %c0_i32_0 = arith.constant 0 : i32
    %c0_i32_1 = arith.constant 0 : i32
    return %c0_i32, %c0_i32_0 : i32, i32
  }
  func.func @transform_7(%arg0: i32) -> (i32, i32) {
    %c0_i32 = arith.constant 0 : i32
    %c0_i32_0 = arith.constant 0 : i32
    %c0_i32_1 = arith.constant 0 : i32
    return %c0_i32, %c0_i32_0 : i32, i32
  }
  func.func @transform_8(%arg0: i32) -> (i32, i32) {
    %c0_i32 = arith.constant 0 : i32
    %c0_i32_0 = arith.constant 0 : i32
    %c0_i32_1 = arith.constant 0 : i32
    return %c0_i32, %c0_i32_0 : i32, i32
  }
  func.func @transform_9(%arg0: i32) -> (i32, i32) {
    %c0_i32 = arith.constant 0 : i32
    %c0_i32_0 = arith.constant 0 : i32
    %c0_i32_1 = arith.constant 0 : i32
    return %c0_i32, %c0_i32_0 : i32, i32
  }
  func.func @transform_10(%arg0: i32) -> (i32, i32) {
    %c0_i32 = arith.constant 0 : i32
    %c0_i32_0 = arith.constant 0 : i32
    %c0_i32_1 = arith.constant 0 : i32
    return %c0_i32, %c0_i32_0 : i32, i32
  }
  func.func @transform_11(%arg0: i32) -> (i32, i32) {
    %c0_i32 = arith.constant 0 : i32
    %c0_i32_0 = arith.constant 0 : i32
    %c0_i32_1 = arith.constant 0 : i32
    return %c0_i32, %c0_i32_0 : i32, i32
  }
  func.func @transform_12(%arg0: i32) -> (i32, i32) {
    %c0_i32 = arith.constant 0 : i32
    %c0_i32_0 = arith.constant 0 : i32
    %c0_i32_1 = arith.constant 0 : i32
    return %c0_i32, %c0_i32_0 : i32, i32
  }
  func.func @transform_13(%arg0: i32) -> (i32, i32) {
    %c0_i32 = arith.constant 0 : i32
    %c0_i32_0 = arith.constant 0 : i32
    %c0_i32_1 = arith.constant 0 : i32
    return %c0_i32, %c0_i32_0 : i32, i32
  }
  func.func @transform_14(%arg0: i32) -> (i32, i32) {
    %c0_i32 = arith.constant 0 : i32
    %c0_i32_0 = arith.constant 0 : i32
    %c0_i32_1 = arith.constant 0 : i32
    return %c0_i32, %c0_i32_0 : i32, i32
  }
  func.func @transform_15(%arg0: i32) -> (i32, i32, i32) {
    %c0_i32 = arith.constant 0 : i32
    %c0_i32_0 = arith.constant 0 : i32
    %c0_i32_1 = arith.constant 0 : i32
    return %arg0, %c0_i32, %c0_i32_0 : i32, i32, i32
  }
}

module attributes {stable_mosaic.version = 11 : i64} {
  func.func @_final_kernel(%arg0: i32, %arg1: memref<1x8x32xf32, #tpu.memory_space<vmem>>, %arg2: memref<1x32xf32, #tpu.memory_space<vmem>>, %arg3: memref<1x32xf32, #tpu.memory_space<vmem>>, %arg4: memref<32x48xbf16, #tpu.memory_space<vmem>>, %arg5: memref<1x48xf32, #tpu.memory_space<vmem>>, %arg6: memref<1x8x48xf32, #tpu.memory_space<vmem>>) attributes {dimension_semantics = [#tpu.dimension_semantics<parallel>], iteration_bounds = array<i64: 2>, scalar_prefetch = 0 : i64, scratch_operands = 0 : i64, tpu.core_type = #tpu.core_type<tc>, window_params = [{transform_indices = @transform_0, window_bounds = array<i64: 1, 8, 32>}, {pipeline_mode = #tpu.pipeline_mode<synchronous>, transform_indices = @transform_1, window_bounds = array<i64: 1, 32>}, {pipeline_mode = #tpu.pipeline_mode<synchronous>, transform_indices = @transform_2, window_bounds = array<i64: 1, 32>}, {pipeline_mode = #tpu.pipeline_mode<synchronous>, transform_indices = @transform_3, window_bounds = array<i64: 32, 48>}, {pipeline_mode = #tpu.pipeline_mode<synchronous>, transform_indices = @transform_4, window_bounds = array<i64: 1, 48>}, {transform_indices = @transform_5, window_bounds = array<i64: 1, 8, 48>}]} {
    %c0 = arith.constant 0 : index
    %c0_0 = arith.constant 0 : index
    %c0_1 = arith.constant 0 : index
    %0 = vector.load %arg1[%c0, %c0_0, %c0_1] : memref<1x8x32xf32, #tpu.memory_space<vmem>>, vector<1x8x32xf32>
    %1 = vector.shape_cast %0 : vector<1x8x32xf32> to vector<8x32xf32>
    %c0_2 = arith.constant 0 : index
    %c0_3 = arith.constant 0 : index
    %2 = vector.load %arg2[%c0_2, %c0_3] : memref<1x32xf32, #tpu.memory_space<vmem>>, vector<1x32xf32>
    %c0_4 = arith.constant 0 : index
    %c0_5 = arith.constant 0 : index
    %3 = vector.load %arg3[%c0_4, %c0_5] : memref<1x32xf32, #tpu.memory_space<vmem>>, vector<1x32xf32>
    %cst = arith.constant dense<0.000000e+00> : vector<8xf32>
    %4 = vector.multi_reduction <add>, %1, %cst [1] : vector<8x32xf32> to vector<8xf32>
    %5 = vector.shape_cast %4 : vector<8xf32> to vector<8x1xf32>
    %cst_6 = arith.constant 3.200000e+01 : f32
    %6 = vector.broadcast %cst_6 : f32 to vector<8x1xf32>
    %7 = arith.divf %5, %6 : vector<8x1xf32>
    %8 = vector.broadcast %7 : vector<8x1xf32> to vector<8x32xf32>
    %9 = arith.subf %1, %8 : vector<8x32xf32>
    %10 = arith.mulf %9, %9 : vector<8x32xf32>
    %cst_7 = arith.constant dense<0.000000e+00> : vector<8xf32>
    %11 = vector.multi_reduction <add>, %10, %cst_7 [1] : vector<8x32xf32> to vector<8xf32>
    %12 = vector.shape_cast %11 : vector<8xf32> to vector<8x1xf32>
    %cst_8 = arith.constant 3.200000e+01 : f32
    %13 = vector.broadcast %cst_8 : f32 to vector<8x1xf32>
    %14 = arith.divf %12, %13 : vector<8x1xf32>
    %15 = vector.broadcast %7 : vector<8x1xf32> to vector<8x32xf32>
    %16 = arith.subf %1, %15 : vector<8x32xf32>
    %cst_9 = arith.constant 9.99999974E-6 : f32
    %17 = vector.broadcast %cst_9 : f32 to vector<8x1xf32>
    %18 = arith.addf %14, %17 : vector<8x1xf32>
    %19 = math.rsqrt %18 : vector<8x1xf32>
    %20 = vector.broadcast %19 : vector<8x1xf32> to vector<8x32xf32>
    %21 = arith.mulf %16, %20 : vector<8x32xf32>
    %22 = vector.broadcast %2 : vector<1x32xf32> to vector<8x32xf32>
    %23 = arith.mulf %21, %22 : vector<8x32xf32>
    %24 = vector.broadcast %3 : vector<1x32xf32> to vector<8x32xf32>
    %25 = arith.addf %23, %24 : vector<8x32xf32>
    %26 = arith.truncf %25 : vector<8x32xf32> to vector<8x32xbf16>
    %c0_10 = arith.constant 0 : index
    %c0_11 = arith.constant 0 : index
    %27 = vector.load %arg4[%c0_10, %c0_11] : memref<32x48xbf16, #tpu.memory_space<vmem>>, vector<32x48xbf16>
    %cst_12 = arith.constant dense<0.000000e+00> : vector<8x48xf32>
    %28 = tpu.matmul %26, %27, %cst_12 {dimension_numbers = #tpu.dot_dimension_numbers<[1], [0], [0], [1], [0, 0, 1, 1], [], []>} : vector<8x32xbf16>, vector<32x48xbf16>, vector<8x48xf32> -> vector<8x48xf32>
    %c0_13 = arith.constant 0 : index
    %c0_14 = arith.constant 0 : index
    %29 = vector.load %arg5[%c0_13, %c0_14] : memref<1x48xf32, #tpu.memory_space<vmem>>, vector<1x48xf32>
    %30 = vector.broadcast %29 : vector<1x48xf32> to vector<8x48xf32>
    %31 = arith.addf %28, %30 : vector<8x48xf32>
    %c0_15 = arith.constant 0 : index
    %c0_16 = arith.constant 0 : index
    %c0_17 = arith.constant 0 : index
    %32 = vector.load %arg6[%c0_15, %c0_16, %c0_17] : memref<1x8x48xf32, #tpu.memory_space<vmem>>, vector<1x8x48xf32>
    %33 = vector.shape_cast %32 : vector<1x8x48xf32> to vector<8x48xf32>
    %34 = vector.shape_cast %31 : vector<8x48xf32> to vector<1x8x48xf32>
    tpu.vector_store %arg6[%c0_15, %c0_16, %c0_17], %34 {strides = array<i32>} : memref<1x8x48xf32, #tpu.memory_space<vmem>>, vector<1x8x48xf32>,
    return
  }
  func.func @transform_0(%arg0: i32) -> (i32, i32, i32) {
    %c0_i32 = arith.constant 0 : i32
    %c0_i32_0 = arith.constant 0 : i32
    %c0_i32_1 = arith.constant 0 : i32
    return %arg0, %c0_i32, %c0_i32_0 : i32, i32, i32
  }
  func.func @transform_1(%arg0: i32) -> (i32, i32) {
    %c0_i32 = arith.constant 0 : i32
    %c0_i32_0 = arith.constant 0 : i32
    %c0_i32_1 = arith.constant 0 : i32
    return %c0_i32, %c0_i32_0 : i32, i32
  }
  func.func @transform_2(%arg0: i32) -> (i32, i32) {
    %c0_i32 = arith.constant 0 : i32
    %c0_i32_0 = arith.constant 0 : i32
    %c0_i32_1 = arith.constant 0 : i32
    return %c0_i32, %c0_i32_0 : i32, i32
  }
  func.func @transform_3(%arg0: i32) -> (i32, i32) {
    %c0_i32 = arith.constant 0 : i32
    %c0_i32_0 = arith.constant 0 : i32
    %c0_i32_1 = arith.constant 0 : i32
    return %c0_i32, %c0_i32_0 : i32, i32
  }
  func.func @transform_4(%arg0: i32) -> (i32, i32) {
    %c0_i32 = arith.constant 0 : i32
    %c0_i32_0 = arith.constant 0 : i32
    %c0_i32_1 = arith.constant 0 : i32
    return %c0_i32, %c0_i32_0 : i32, i32
  }
  func.func @transform_5(%arg0: i32) -> (i32, i32, i32) {
    %c0_i32 = arith.constant 0 : i32
    %c0_i32_0 = arith.constant 0 : i32
    %c0_i32_1 = arith.constant 0 : i32
    return %arg0, %c0_i32, %c0_i32_0 : i32, i32, i32
  }
}

module attributes {stable_mosaic.version = 11 : i64} {
  func.func @_decoder_layer_kernel(%arg0: i32, %arg1: memref<1x8x32xf32, #tpu.memory_space<vmem>>, %arg2: memref<1x8x32xf32, #tpu.memory_space<vmem>>, %arg3: memref<1x1x8xf32, #tpu.memory_space<vmem>>, %arg4: memref<3x2x32x16xbf16, #tpu.memory_space<vmem>>, %arg5: memref<3x2x1x16xf32, #tpu.memory_space<vmem>>, %arg6: memref<2x16x32xbf16, #tpu.memory_space<vmem>>, %arg7: memref<1x32xf32, #tpu.memory_space<vmem>>, %arg8: memref<1x32xf32, #tpu.memory_space<vmem>>, %arg9: memref<1x32xf32, #tpu.memory_space<vmem>>, %arg10: memref<3x2x32x16xbf16, #tpu.memory_space<vmem>>, %arg11: memref<3x2x1x16xf32, #tpu.memory_space<vmem>>, %arg12: memref<2x16x32xbf16, #tpu.memory_space<vmem>>, %arg13: memref<1x32xf32, #tpu.memory_space<vmem>>, %arg14: memref<1x32xf32, #tpu.memory_space<vmem>>, %arg15: memref<1x32xf32, #tpu.memory_space<vmem>>, %arg16: memref<32x64xbf16, #tpu.memory_space<vmem>>, %arg17: memref<1x64xf32, #tpu.memory_space<vmem>>, %arg18: memref<64x32xbf16, #tpu.memory_space<vmem>>, %arg19: memref<1x32xf32, #tpu.memory_space<vmem>>, %arg20: memref<1x32xf32, #tpu.memory_space<vmem>>, %arg21: memref<1x32xf32, #tpu.memory_space<vmem>>, %arg22: memref<1x8x32xf32, #tpu.memory_space<vmem>>) attributes {dimension_semantics = [#tpu.dimension_semantics<parallel>], iteration_bounds = array<i64: 2>, scalar_prefetch = 0 : i64, scratch_operands = 0 : i64, tpu.core_type = #tpu.core_type<tc>, window_params = [{transform_indices = @transform_0, window_bounds = array<i64: 1, 8, 32>}, {transform_indices = @transform_1, window_bounds = array<i64: 1, 8, 32>}, {transform_indices = @transform_2, window_bounds = array<i64: 1, 1, 8>}, {pipeline_mode = #tpu.pipeline_mode<synchronous>, transform_indices = @transform_3, window_bounds = array<i64: 3, 2, 32, 16>}, {pipeline_mode = #tpu.pipeline_mode<synchronous>, transform_indices = @transform_4, window_bounds = array<i64: 3, 2, 1, 16>}, {pipeline_mode = #tpu.pipeline_mode<synchronous>, transform_indices = @transform_5, window_bounds = array<i64: 2, 16, 32>}, {pipeline_mode = #tpu.pipeline_mode<synchronous>, transform_indices = @transform_6, window_bounds = array<i64: 1, 32>}, {pipeline_mode = #tpu.pipeline_mode<synchronous>, transform_indices = @transform_7, window_bounds = array<i64: 1, 32>}, {pipeline_mode = #tpu.pipeline_mode<synchronous>, transform_indices = @transform_8, window_bounds = array<i64: 1, 32>}, {pipeline_mode = #tpu.pipeline_mode<synchronous>, transform_indices = @transform_9, window_bounds = array<i64: 3, 2, 32, 16>}, {pipeline_mode = #tpu.pipeline_mode<synchronous>, transform_indices = @transform_10, window_bounds = array<i64: 3, 2, 1, 16>}, {pipeline_mode = #tpu.pipeline_mode<synchronous>, transform_indices = @transform_11, window_bounds = array<i64: 2, 16, 32>}, {pipeline_mode = #tpu.pipeline_mode<synchronous>, transform_indices = @transform_12, window_bounds = array<i64: 1, 32>}, {pipeline_mode = #tpu.pipeline_mode<synchronous>, transform_indices = @transform_13, window_bounds = array<i64: 1, 32>}, {pipeline_mode = #tpu.pipeline_mode<synchronous>, transform_indices = @transform_14, window_bounds = array<i64: 1, 32>}, {pipeline_mode = #tpu.pipeline_mode<synchronous>, transform_indices = @transform_15, window_bounds = array<i64: 32, 64>}, {pipeline_mode = #tpu.pipeline_mode<synchronous>, transform_indices = @transform_16, window_bounds = array<i64: 1, 64>}, {pipeline_mode = #tpu.pipeline_mode<synchronous>, transform_indices = @transform_17, window_bounds = array<i64: 64, 32>}, {pipeline_mode = #tpu.pipeline_mode<synchronous>, transform_indices = @transform_18, window_bounds = array<i64: 1, 32>}, {pipeline_mode = #tpu.pipeline_mode<synchronous>, transform_indices = @transform_19, window_bounds = array<i64: 1, 32>}, {pipeline_mode = #tpu.pipeline_mode<synchronous>, transform_indices = @transform_20, window_bounds = array<i64: 1, 32>}, {transform_indices = @transform_21, window_bounds = array<i64: 1, 8, 32>}]} {
    %c0 = arith.constant 0 : index
    %c0_0 = arith.constant 0 : index
    %c0_1 = arith.constant 0 : index
    %0 = vector.load %arg1[%c0, %c0_0, %c0_1] : memref<1x8x32xf32, #tpu.memory_space<vmem>>, vector<1x8x32xf32>
    %1 = vector.shape_cast %0 : vector<1x8x32xf32> to vector<8x32xf32>
    %c0_2 = arith.constant 0 : index
    %c0_3 = arith.constant 0 : index
    %c0_4 = arith.constant 0 : index
    %2 = vector.load %arg2[%c0_2, %c0_3, %c0_4] : memref<1x8x32xf32, #tpu.memory_space<vmem>>, vector<1x8x32xf32>
    %3 = vector.shape_cast %2 : vector<1x8x32xf32> to vector<8x32xf32>
    %c0_5 = arith.constant 0 : index
    %c0_6 = arith.constant 0 : index
    %c0_7 = arith.constant 0 : index
    %4 = vector.load %arg3[%c0_5, %c0_6, %c0_7] : memref<1x1x8xf32, #tpu.memory_space<vmem>>, vector<1x1x8xf32>
    %5 = vector.shape_cast %4 : vector<1x1x8xf32> to vector<1x8xf32>
    %6 = tpu.iota {dimensions = array<i32: 0>} : vector<8x8xi32>
    %7 = tpu.iota {dimensions = array<i32: 1>} : vector<8x8xi32>
    %8 = arith.cmpi sgt, %7, %6 : vector<8x8xi32>
    %cst = arith.constant -1.000000e+09 : f32
    %cst_8 = arith.constant 0.000000e+00 : f32
    %9 = vector.broadcast %cst : f32 to vector<8x8xf32>
    %10 = vector.broadcast %cst_8 : f32 to vector<8x8xf32>
    %11 = arith.select %8, %9, %10 : vector<8x8xi1>, vector<8x8xf32>
    %cst_9 = arith.constant -1.000000e+09 : f32
    %12 = vector.broadcast %cst_9 : f32 to vector<1x8xf32>
    %13 = arith.mulf %5, %12 : vector<1x8xf32>
    %14 = vector.broadcast %13 : vector<1x8xf32> to vector<8x8xf32>
    %15 = arith.addf %11, %14 : vector<8x8xf32>
    %16 = arith.truncf %1 : vector<8x32xf32> to vector<8x32xbf16>
    %17 = arith.truncf %1 : vector<8x32xf32> to vector<8x32xbf16>
    %c0_10 = arith.constant 0 : index
    %c0_11 = arith.constant 0 : index
    %c0_12 = arith.constant 0 : index
    %c0_13 = arith.constant 0 : index
    %18 = vector.load %arg4[%c0_10, %c0_11, %c0_12, %c0_13] : memref<3x2x32x16xbf16, #tpu.memory_space<vmem>>, vector<1x1x32x16xbf16>
    %19 = vector.shape_cast %18 : vector<1x1x32x16xbf16> to vector<32x16xbf16>
    %cst_14 = arith.constant dense<0.000000e+00> : vector<8x16xf32>
    %20 = tpu.matmul %16, %19, %cst_14 {dimension_numbers = #tpu.dot_dimension_numbers<[1], [0], [0], [1], [0, 0, 1, 1], [], []>} : vector<8x32xbf16>, vector<32x16xbf16>, vector<8x16xf32> -> vector<8x16xf32>
    %c0_15 = arith.constant 0 : index
    %c0_16 = arith.constant 0 : index
    %c0_17 = arith.constant 0 : index
    %c0_18 = arith.constant 0 : index
    %21 = vector.load %arg5[%c0_15, %c0_16, %c0_17, %c0_18] : memref<3x2x1x16xf32, #tpu.memory_space<vmem>>, vector<1x1x1x16xf32>
    %22 = vector.shape_cast %21 : vector<1x1x1x16xf32> to vector<1x16xf32>
    %23 = vector.broadcast %22 : vector<1x16xf32> to vector<8x16xf32>
    %24 = arith.addf %20, %23 : vector<8x16xf32>
    %c1 = arith.constant 1 : index
    %c0_19 = arith.constant 0 : index
    %c0_20 = arith.constant 0 : index
    %c0_21 = arith.constant 0 : index
    %25 = vector.load %arg4[%c1, %c0_19, %c0_20, %c0_21] : memref<3x2x32x16xbf16, #tpu.memory_space<vmem>>, vector<1x1x32x16xbf16>
    %26 = vector.shape_cast %25 : vector<1x1x32x16xbf16> to vector<32x16xbf16>
    %cst_22 = arith.constant dense<0.000000e+00> : vector<8x16xf32>
    %27 = tpu.matmul %17, %26, %cst_22 {dimension_numbers = #tpu.dot_dimension_numbers<[1], [0], [0], [1], [0, 0, 1, 1], [], []>} : vector<8x32xbf16>, vector<32x16xbf16>, vector<8x16xf32> -> vector<8x16xf32>
    %c1_23 = arith.constant 1 : index
    %c0_24 = arith.constant 0 : index
    %c0_25 = arith.constant 0 : index
    %c0_26 = arith.constant 0 : index
    %28 = vector.load %arg5[%c1_23, %c0_24, %c0_25, %c0_26] : memref<3x2x1x16xf32, #tpu.memory_space<vmem>>, vector<1x1x1x16xf32>
    %29 = vector.shape_cast %28 : vector<1x1x1x16xf32> to vector<1x16xf32>
    %30 = vector.broadcast %29 : vector<1x16xf32> to vector<8x16xf32>
    %31 = arith.addf %27, %30 : vector<8x16xf32>
    %c2 = arith.constant 2 : index
    %c0_27 = arith.constant 0 : index
    %c0_28 = arith.constant 0 : index
    %c0_29 = arith.constant 0 : index
    %32 = vector.load %arg4[%c2, %c0_27, %c0_28, %c0_29] : memref<3x2x32x16xbf16, #tpu.memory_space<vmem>>, vector<1x1x32x16xbf16>
    %33 = vector.shape_cast %32 : vector<1x1x32x16xbf16> to vector<32x16xbf16>
    %cst_30 = arith.constant dense<0.000000e+00> : vector<8x16xf32>
    %34 = tpu.matmul %17, %33, %cst_30 {dimension_numbers = #tpu.dot_dimension_numbers<[1], [0], [0], [1], [0, 0, 1, 1], [], []>} : vector<8x32xbf16>, vector<32x16xbf16>, vector<8x16xf32> -> vector<8x16xf32>
    %c2_31 = arith.constant 2 : index
    %c0_32 = arith.constant 0 : index
    %c0_33 = arith.constant 0 : index
    %c0_34 = arith.constant 0 : index
    %35 = vector.load %arg5[%c2_31, %c0_32, %c0_33, %c0_34] : memref<3x2x1x16xf32, #tpu.memory_space<vmem>>, vector<1x1x1x16xf32>
    %36 = vector.shape_cast %35 : vector<1x1x1x16xf32> to vector<1x16xf32>
    %37 = vector.broadcast %36 : vector<1x16xf32> to vector<8x16xf32>
    %38 = arith.addf %34, %37 : vector<8x16xf32>
    %39 = arith.truncf %24 : vector<8x16xf32> to vector<8x16xbf16>
    %40 = arith.truncf %31 : vector<8x16xf32> to vector<8x16xbf16>
    %cst_35 = arith.constant dense<0.000000e+00> : vector<8x8xf32>
    %41 = tpu.matmul %39, %40, %cst_35 {dimension_numbers = #tpu.dot_dimension_numbers<[1], [1], [0], [0], [0, 0, 1, 0], [], []>} : vector<8x16xbf16>, vector<8x16xbf16>, vector<8x8xf32> -> vector<8x8xf32>
    %cst_36 = arith.constant 2.500000e-01 : f32
    %42 = vector.broadcast %cst_36 : f32 to vector<8x8xf32>
    %43 = arith.mulf %41, %42 : vector<8x8xf32>
    %44 = arith.addf %43, %15 : vector<8x8xf32>
    %cst_37 = arith.constant dense<0xFF800000> : vector<8xf32>
    %45 = vector.multi_reduction <maximumf>, %44, %cst_37 [1] : vector<8x8xf32> to vector<8xf32>
    %46 = vector.shape_cast %45 : vector<8xf32> to vector<8x1xf32>
    %47 = vector.broadcast %46 : vector<8x1xf32> to vector<8x8xf32>
    %48 = arith.subf %44, %47 : vector<8x8xf32>
    %49 = math.exp %48 : vector<8x8xf32>
    %cst_38 = arith.constant dense<0.000000e+00> : vector<8xf32>
    %50 = vector.multi_reduction <add>, %49, %cst_38 [1] : vector<8x8xf32> to vector<8xf32>
    %51 = vector.shape_cast %50 : vector<8xf32> to vector<8x1xf32>
    %52 = tpu.reciprocal %51 {approx = true} : vector<8x1xf32> -> vector<8x1xf32>
    %53 = vector.broadcast %52 : vector<8x1xf32> to vector<8x8xf32>
    %54 = arith.mulf %49, %53 : vector<8x8xf32>
    %55 = arith.truncf %54 : vector<8x8xf32> to vector<8x8xbf16>
    %56 = arith.truncf %38 : vector<8x16xf32> to vector<8x16xbf16>
    %cst_39 = arith.constant dense<0.000000e+00> : vector<8x16xf32>
    %57 = tpu.matmul %55, %56, %cst_39 {dimension_numbers = #tpu.dot_dimension_numbers<[1], [0], [0], [1], [0, 0, 1, 1], [], []>} : vector<8x8xbf16>, vector<8x16xbf16>, vector<8x16xf32> -> vector<8x16xf32>
    %58 = arith.truncf %57 : vector<8x16xf32> to vector<8x16xbf16>
    %c0_40 = arith.constant 0 : index
    %c0_41 = arith.constant 0 : index
    %c0_42 = arith.constant 0 : index
    %59 = vector.load %arg6[%c0_40, %c0_41, %c0_42] : memref<2x16x32xbf16, #tpu.memory_space<vmem>>, vector<1x16x32xbf16>
    %60 = vector.shape_cast %59 : vector<1x16x32xbf16> to vector<16x32xbf16>
    %cst_43 = arith.constant dense<0.000000e+00> : vector<8x32xf32>
    %61 = tpu.matmul %58, %60, %cst_43 {dimension_numbers = #tpu.dot_dimension_numbers<[1], [0], [0], [1], [0, 0, 1, 1], [], []>} : vector<8x16xbf16>, vector<16x32xbf16>, vector<8x32xf32> -> vector<8x32xf32>
    %c0_44 = arith.constant 0 : index
    %c1_45 = arith.constant 1 : index
    %c0_46 = arith.constant 0 : index
    %c0_47 = arith.constant 0 : index
    %62 = vector.load %arg4[%c0_44, %c1_45, %c0_46, %c0_47] : memref<3x2x32x16xbf16, #tpu.memory_space<vmem>>, vector<1x1x32x16xbf16>
    %63 = vector.shape_cast %62 : vector<1x1x32x16xbf16> to vector<32x16xbf16>
    %cst_48 = arith.constant dense<0.000000e+00> : vector<8x16xf32>
    %64 = tpu.matmul %16, %63, %cst_48 {dimension_numbers = #tpu.dot_dimension_numbers<[1], [0], [0], [1], [0, 0, 1, 1], [], []>} : vector<8x32xbf16>, vector<32x16xbf16>, vector<8x16xf32> -> vector<8x16xf32>
    %c0_49 = arith.constant 0 : index
    %c1_50 = arith.constant 1 : index
    %c0_51 = arith.constant 0 : index
    %c0_52 = arith.constant 0 : index
    %65 = vector.load %arg5[%c0_49, %c1_50, %c0_51, %c0_52] : memref<3x2x1x16xf32, #tpu.memory_space<vmem>>, vector<1x1x1x16xf32>
    %66 = vector.shape_cast %65 : vector<1x1x1x16xf32> to vector<1x16xf32>
    %67 = vector.broadcast %66 : vector<1x16xf32> to vector<8x16xf32>
    %68 = arith.addf %64, %67 : vector<8x16xf32>
    %c1_53 = arith.constant 1 : index
    %c1_54 = arith.constant 1 : index
    %c0_55 = arith.constant 0 : index
    %c0_56 = arith.constant 0 : index
    %69 = vector.load %arg4[%c1_53, %c1_54, %c0_55, %c0_56] : memref<3x2x32x16xbf16, #tpu.memory_space<vmem>>, vector<1x1x32x16xbf16>
    %70 = vector.shape_cast %69 : vector<1x1x32x16xbf16> to vector<32x16xbf16>
    %cst_57 = arith.constant dense<0.000000e+00> : vector<8x16xf32>
    %71 = tpu.matmul %17, %70, %cst_57 {dimension_numbers = #tpu.dot_dimension_numbers<[1], [0], [0], [1], [0, 0, 1, 1], [], []>} : vector<8x32xbf16>, vector<32x16xbf16>, vector<8x16xf32> -> vector<8x16xf32>
    %c1_58 = arith.constant 1 : index
    %c1_59 = arith.constant 1 : index
    %c0_60 = arith.constant 0 : index
    %c0_61 = arith.constant 0 : index
    %72 = vector.load %arg5[%c1_58, %c1_59, %c0_60, %c0_61] : memref<3x2x1x16xf32, #tpu.memory_space<vmem>>, vector<1x1x1x16xf32>
    %73 = vector.shape_cast %72 : vector<1x1x1x16xf32> to vector<1x16xf32>
    %74 = vector.broadcast %73 : vector<1x16xf32> to vector<8x16xf32>
    %75 = arith.addf %71, %74 : vector<8x16xf32>
    %c2_62 = arith.constant 2 : index
    %c1_63 = arith.constant 1 : index
    %c0_64 = arith.constant 0 : index
    %c0_65 = arith.constant 0 : index
    %76 = vector.load %arg4[%c2_62, %c1_63, %c0_64, %c0_65] : memref<3x2x32x16xbf16, #tpu.memory_space<vmem>>, vector<1x1x32x16xbf16>
    %77 = vector.shape_cast %76 : vector<1x1x32x16xbf16> to vector<32x16xbf16>
    %cst_66 = arith.constant dense<0.000000e+00> : vector<8x16xf32>
    %78 = tpu.matmul %17, %77, %cst_66 {dimension_numbers = #tpu.dot_dimension_numbers<[1], [0], [0], [1], [0, 0, 1, 1], [], []>} : vector<8x32xbf16>, vector<32x16xbf16>, vector<8x16xf32> -> vector<8x16xf32>
    %c2_67 = arith.constant 2 : index
    %c1_68 = arith.constant 1 : index
    %c0_69 = arith.constant 0 : index
    %c0_70 = arith.constant 0 : index
    %79 = vector.load %arg5[%c2_67, %c1_68, %c0_69, %c0_70] : memref<3x2x1x16xf32, #tpu.memory_space<vmem>>, vector<1x1x1x16xf32>
    %80 = vector.shape_cast %79 : vector<1x1x1x16xf32> to vector<1x16xf32>
    %81 = vector.broadcast %80 : vector<1x16xf32> to vector<8x16xf32>
    %82 = arith.addf %78, %81 : vector<8x16xf32>
    %83 = arith.truncf %68 : vector<8x16xf32> to vector<8x16xbf16>
    %84 = arith.truncf %75 : vector<8x16xf32> to vector<8x16xbf16>
    %cst_71 = arith.constant dense<0.000000e+00> : vector<8x8xf32>
    %85 = tpu.matmul %83, %84, %cst_71 {dimension_numbers = #tpu.dot_dimension_numbers<[1], [1], [0], [0], [0, 0, 1, 0], [], []>} : vector<8x16xbf16>, vector<8x16xbf16>, vector<8x8xf32> -> vector<8x8xf32>
    %cst_72 = arith.constant 2.500000e-01 : f32
    %86 = vector.broadcast %cst_72 : f32 to vector<8x8xf32>
    %87 = arith.mulf %85, %86 : vector<8x8xf32>
    %88 = arith.addf %87, %15 : vector<8x8xf32>
    %cst_73 = arith.constant dense<0xFF800000> : vector<8xf32>
    %89 = vector.multi_reduction <maximumf>, %88, %cst_73 [1] : vector<8x8xf32> to vector<8xf32>
    %90 = vector.shape_cast %89 : vector<8xf32> to vector<8x1xf32>
    %91 = vector.broadcast %90 : vector<8x1xf32> to vector<8x8xf32>
    %92 = arith.subf %88, %91 : vector<8x8xf32>
    %93 = math.exp %92 : vector<8x8xf32>
    %cst_74 = arith.constant dense<0.000000e+00> : vector<8xf32>
    %94 = vector.multi_reduction <add>, %93, %cst_74 [1] : vector<8x8xf32> to vector<8xf32>
    %95 = vector.shape_cast %94 : vector<8xf32> to vector<8x1xf32>
    %96 = tpu.reciprocal %95 {approx = true} : vector<8x1xf32> -> vector<8x1xf32>
    %97 = vector.broadcast %96 : vector<8x1xf32> to vector<8x8xf32>
    %98 = arith.mulf %93, %97 : vector<8x8xf32>
    %99 = arith.truncf %98 : vector<8x8xf32> to vector<8x8xbf16>
    %100 = arith.truncf %82 : vector<8x16xf32> to vector<8x16xbf16>
    %cst_75 = arith.constant dense<0.000000e+00> : vector<8x16xf32>
    %101 = tpu.matmul %99, %100, %cst_75 {dimension_numbers = #tpu.dot_dimension_numbers<[1], [0], [0], [1], [0, 0, 1, 1], [], []>} : vector<8x8xbf16>, vector<8x16xbf16>, vector<8x16xf32> -> vector<8x16xf32>
    %102 = arith.truncf %101 : vector<8x16xf32> to vector<8x16xbf16>
    %c1_76 = arith.constant 1 : index
    %c0_77 = arith.constant 0 : index
    %c0_78 = arith.constant 0 : index
    %103 = vector.load %arg6[%c1_76, %c0_77, %c0_78] : memref<2x16x32xbf16, #tpu.memory_space<vmem>>, vector<1x16x32xbf16>
    %104 = vector.shape_cast %103 : vector<1x16x32xbf16> to vector<16x32xbf16>
    %cst_79 = arith.constant dense<0.000000e+00> : vector<8x32xf32>
    %105 = tpu.matmul %102, %104, %cst_79 {dimension_numbers = #tpu.dot_dimension_numbers<[1], [0], [0], [1], [0, 0, 1, 1], [], []>} : vector<8x16xbf16>, vector<16x32xbf16>, vector<8x32xf32> -> vector<8x32xf32>
    %106 = arith.addf %61, %105 : vector<8x32xf32>
    %c0_80 = arith.constant 0 : index
    %c0_81 = arith.constant 0 : index
    %107 = vector.load %arg7[%c0_80, %c0_81] : memref<1x32xf32, #tpu.memory_space<vmem>>, vector<1x32xf32>
    %108 = vector.broadcast %107 : vector<1x32xf32> to vector<8x32xf32>
    %109 = arith.addf %106, %108 : vector<8x32xf32>
    %110 = arith.addf %1, %109 : vector<8x32xf32>
    %c0_82 = arith.constant 0 : index
    %c0_83 = arith.constant 0 : index
    %111 = vector.load %arg8[%c0_82, %c0_83] : memref<1x32xf32, #tpu.memory_space<vmem>>, vector<1x32xf32>
    %c0_84 = arith.constant 0 : index
    %c0_85 = arith.constant 0 : index
    %112 = vector.load %arg9[%c0_84, %c0_85] : memref<1x32xf32, #tpu.memory_space<vmem>>, vector<1x32xf32>
    %cst_86 = arith.constant dense<0.000000e+00> : vector<8xf32>
    %113 = vector.multi_reduction <add>, %110, %cst_86 [1] : vector<8x32xf32> to vector<8xf32>
    %114 = vector.shape_cast %113 : vector<8xf32> to vector<8x1xf32>
    %cst_87 = arith.constant 3.200000e+01 : f32
    %115 = vector.broadcast %cst_87 : f32 to vector<8x1xf32>
    %116 = arith.divf %114, %115 : vector<8x1xf32>
    %117 = vector.broadcast %116 : vector<8x1xf32> to vector<8x32xf32>
    %118 = arith.subf %110, %117 : vector<8x32xf32>
    %119 = arith.mulf %118, %118 : vector<8x32xf32>
    %cst_88 = arith.constant dense<0.000000e+00> : vector<8xf32>
    %120 = vector.multi_reduction <add>, %119, %cst_88 [1] : vector<8x32xf32> to vector<8xf32>
    %121 = vector.shape_cast %120 : vector<8xf32> to vector<8x1xf32>
    %cst_89 = arith.constant 3.200000e+01 : f32
    %122 = vector.broadcast %cst_89 : f32 to vector<8x1xf32>
    %123 = arith.divf %121, %122 : vector<8x1xf32>
    %124 = vector.broadcast %116 : vector<8x1xf32> to vector<8x32xf32>
    %125 = arith.subf %110, %124 : vector<8x32xf32>
    %cst_90 = arith.constant 9.99999974E-6 : f32
    %126 = vector.broadcast %cst_90 : f32 to vector<8x1xf32>
    %127 = arith.addf %123, %126 : vector<8x1xf32>
    %128 = math.rsqrt %127 : vector<8x1xf32>
    %129 = vector.broadcast %128 : vector<8x1xf32> to vector<8x32xf32>
    %130 = arith.mulf %125, %129 : vector<8x32xf32>
    %131 = vector.broadcast %111 : vector<1x32xf32> to vector<8x32xf32>
    %132 = arith.mulf %130, %131 : vector<8x32xf32>
    %133 = vector.broadcast %112 : vector<1x32xf32> to vector<8x32xf32>
    %134 = arith.addf %132, %133 : vector<8x32xf32>
    %135 = arith.truncf %134 : vector<8x32xf32> to vector<8x32xbf16>
    %136 = arith.truncf %3 : vector<8x32xf32> to vector<8x32xbf16>
    %c0_91 = arith.constant 0 : index
    %c0_92 = arith.constant 0 : index
    %c0_93 = arith.constant 0 : index
    %c0_94 = arith.constant 0 : index
    %137 = vector.load %arg10[%c0_91, %c0_92, %c0_93, %c0_94] : memref<3x2x32x16xbf16, #tpu.memory_space<vmem>>, vector<1x1x32x16xbf16>
    %138 = vector.shape_cast %137 : vector<1x1x32x16xbf16> to vector<32x16xbf16>
    %cst_95 = arith.constant dense<0.000000e+00> : vector<8x16xf32>
    %139 = tpu.matmul %135, %138, %cst_95 {dimension_numbers = #tpu.dot_dimension_numbers<[1], [0], [0], [1], [0, 0, 1, 1], [], []>} : vector<8x32xbf16>, vector<32x16xbf16>, vector<8x16xf32> -> vector<8x16xf32>
    %c0_96 = arith.constant 0 : index
    %c0_97 = arith.constant 0 : index
    %c0_98 = arith.constant 0 : index
    %c0_99 = arith.constant 0 : index
    %140 = vector.load %arg11[%c0_96, %c0_97, %c0_98, %c0_99] : memref<3x2x1x16xf32, #tpu.memory_space<vmem>>, vector<1x1x1x16xf32>
    %141 = vector.shape_cast %140 : vector<1x1x1x16xf32> to vector<1x16xf32>
    %142 = vector.broadcast %141 : vector<1x16xf32> to vector<8x16xf32>
    %143 = arith.addf %139, %142 : vector<8x16xf32>
    %c1_100 = arith.constant 1 : index
    %c0_101 = arith.constant 0 : index
    %c0_102 = arith.constant 0 : index
    %c0_103 = arith.constant 0 : index
    %144 = vector.load %arg10[%c1_100, %c0_101, %c0_102, %c0_103] : memref<3x2x32x16xbf16, #tpu.memory_space<vmem>>, vector<1x1x32x16xbf16>
    %145 = vector.shape_cast %144 : vector<1x1x32x16xbf16> to vector<32x16xbf16>
    %cst_104 = arith.constant dense<0.000000e+00> : vector<8x16xf32>
    %146 = tpu.matmul %136, %145, %cst_104 {dimension_numbers = #tpu.dot_dimension_numbers<[1], [0], [0], [1], [0, 0, 1, 1], [], []>} : vector<8x32xbf16>, vector<32x16xbf16>, vector<8x16xf32> -> vector<8x16xf32>
    %c1_105 = arith.constant 1 : index
    %c0_106 = arith.constant 0 : index
    %c0_107 = arith.constant 0 : index
    %c0_108 = arith.constant 0 : index
    %147 = vector.load %arg11[%c1_105, %c0_106, %c0_107, %c0_108] : memref<3x2x1x16xf32, #tpu.memory_space<vmem>>, vector<1x1x1x16xf32>
    %148 = vector.shape_cast %147 : vector<1x1x1x16xf32> to vector<1x16xf32>
    %149 = vector.broadcast %148 : vector<1x16xf32> to vector<8x16xf32>
    %150 = arith.addf %146, %149 : vector<8x16xf32>
    %c2_109 = arith.constant 2 : index
    %c0_110 = arith.constant 0 : index
    %c0_111 = arith.constant 0 : index
    %c0_112 = arith.constant 0 : index
    %151 = vector.load %arg10[%c2_109, %c0_110, %c0_111, %c0_112] : memref<3x2x32x16xbf16, #tpu.memory_space<vmem>>, vector<1x1x32x16xbf16>
    %152 = vector.shape_cast %151 : vector<1x1x32x16xbf16> to vector<32x16xbf16>
    %cst_113 = arith.constant dense<0.000000e+00> : vector<8x16xf32>
    %153 = tpu.matmul %136, %152, %cst_113 {dimension_numbers = #tpu.dot_dimension_numbers<[1], [0], [0], [1], [0, 0, 1, 1], [], []>} : vector<8x32xbf16>, vector<32x16xbf16>, vector<8x16xf32> -> vector<8x16xf32>
    %c2_114 = arith.constant 2 : index
    %c0_115 = arith.constant 0 : index
    %c0_116 = arith.constant 0 : index
    %c0_117 = arith.constant 0 : index
    %154 = vector.load %arg11[%c2_114, %c0_115, %c0_116, %c0_117] : memref<3x2x1x16xf32, #tpu.memory_space<vmem>>, vector<1x1x1x16xf32>
    %155 = vector.shape_cast %154 : vector<1x1x1x16xf32> to vector<1x16xf32>
    %156 = vector.broadcast %155 : vector<1x16xf32> to vector<8x16xf32>
    %157 = arith.addf %153, %156 : vector<8x16xf32>
    %158 = arith.truncf %143 : vector<8x16xf32> to vector<8x16xbf16>
    %159 = arith.truncf %150 : vector<8x16xf32> to vector<8x16xbf16>
    %cst_118 = arith.constant dense<0.000000e+00> : vector<8x8xf32>
    %160 = tpu.matmul %158, %159, %cst_118 {dimension_numbers = #tpu.dot_dimension_numbers<[1], [1], [0], [0], [0, 0, 1, 0], [], []>} : vector<8x16xbf16>, vector<8x16xbf16>, vector<8x8xf32> -> vector<8x8xf32>
    %cst_119 = arith.constant 2.500000e-01 : f32
    %161 = vector.broadcast %cst_119 : f32 to vector<8x8xf32>
    %162 = arith.mulf %160, %161 : vector<8x8xf32>
    %cst_120 = arith.constant dense<0xFF800000> : vector<8xf32>
    %163 = vector.multi_reduction <maximumf>, %162, %cst_120 [1] : vector<8x8xf32> to vector<8xf32>
    %164 = vector.shape_cast %163 : vector<8xf32> to vector<8x1xf32>
    %165 = vector.broadcast %164 : vector<8x1xf32> to vector<8x8xf32>
    %166 = arith.subf %162, %165 : vector<8x8xf32>
    %167 = math.exp %166 : vector<8x8xf32>
    %cst_121 = arith.constant dense<0.000000e+00> : vector<8xf32>
    %168 = vector.multi_reduction <add>, %167, %cst_121 [1] : vector<8x8xf32> to vector<8xf32>
    %169 = vector.shape_cast %168 : vector<8xf32> to vector<8x1xf32>
    %170 = tpu.reciprocal %169 {approx = true} : vector<8x1xf32> -> vector<8x1xf32>
    %171 = vector.broadcast %170 : vector<8x1xf32> to vector<8x8xf32>
    %172 = arith.mulf %167, %171 : vector<8x8xf32>
    %173 = arith.truncf %172 : vector<8x8xf32> to vector<8x8xbf16>
    %174 = arith.truncf %157 : vector<8x16xf32> to vector<8x16xbf16>
    %cst_122 = arith.constant dense<0.000000e+00> : vector<8x16xf32>
    %175 = tpu.matmul %173, %174, %cst_122 {dimension_numbers = #tpu.dot_dimension_numbers<[1], [0], [0], [1], [0, 0, 1, 1], [], []>} : vector<8x8xbf16>, vector<8x16xbf16>, vector<8x16xf32> -> vector<8x16xf32>
    %176 = arith.truncf %175 : vector<8x16xf32> to vector<8x16xbf16>
    %c0_123 = arith.constant 0 : index
    %c0_124 = arith.constant 0 : index
    %c0_125 = arith.constant 0 : index
    %177 = vector.load %arg12[%c0_123, %c0_124, %c0_125] : memref<2x16x32xbf16, #tpu.memory_space<vmem>>, vector<1x16x32xbf16>
    %178 = vector.shape_cast %177 : vector<1x16x32xbf16> to vector<16x32xbf16>
    %cst_126 = arith.constant dense<0.000000e+00> : vector<8x32xf32>
    %179 = tpu.matmul %176, %178, %cst_126 {dimension_numbers = #tpu.dot_dimension_numbers<[1], [0], [0], [1], [0, 0, 1, 1], [], []>} : vector<8x16xbf16>, vector<16x32xbf16>, vector<8x32xf32> -> vector<8x32xf32>
    %c0_127 = arith.constant 0 : index
    %c1_128 = arith.constant 1 : index
    %c0_129 = arith.constant 0 : index
    %c0_130 = arith.constant 0 : index
    %180 = vector.load %arg10[%c0_127, %c1_128, %c0_129, %c0_130] : memref<3x2x32x16xbf16, #tpu.memory_space<vmem>>, vector<1x1x32x16xbf16>
    %181 = vector.shape_cast %180 : vector<1x1x32x16xbf16> to vector<32x16xbf16>
    %cst_131 = arith.constant dense<0.000000e+00> : vector<8x16xf32>
    %182 = tpu.matmul %135, %181, %cst_131 {dimension_numbers = #tpu.dot_dimension_numbers<[1], [0], [0], [1], [0, 0, 1, 1], [], []>} : vector<8x32xbf16>, vector<32x16xbf16>, vector<8x16xf32> -> vector<8x16xf32>
    %c0_132 = arith.constant 0 : index
    %c1_133 = arith.constant 1 : index
    %c0_134 = arith.constant 0 : index
    %c0_135 = arith.constant 0 : index
    %183 = vector.load %arg11[%c0_132, %c1_133, %c0_134, %c0_135] : memref<3x2x1x16xf32, #tpu.memory_space<vmem>>, vector<1x1x1x16xf32>
    %184 = vector.shape_cast %183 : vector<1x1x1x16xf32> to vector<1x16xf32>
    %185 = vector.broadcast %184 : vector<1x16xf32> to vector<8x16xf32>
    %186 = arith.addf %182, %185 : vector<8x16xf32>
    %c1_136 = arith.constant 1 : index
    %c1_137 = arith.constant 1 : index
    %c0_138 = arith.constant 0 : index
    %c0_139 = arith.constant 0 : index
    %187 = vector.load %arg10[%c1_136, %c1_137, %c0_138, %c0_139] : memref<3x2x32x16xbf16, #tpu.memory_space<vmem>>, vector<1x1x32x16xbf16>
    %188 = vector.shape_cast %187 : vector<1x1x32x16xbf16> to vector<32x16xbf16>
    %cst_140 = arith.constant dense<0.000000e+00> : vector<8x16xf32>
    %189 = tpu.matmul %136, %188, %cst_140 {dimension_numbers = #tpu.dot_dimension_numbers<[1], [0], [0], [1], [0, 0, 1, 1], [], []>} : vector<8x32xbf16>, vector<32x16xbf16>, vector<8x16xf32> -> vector<8x16xf32>
    %c1_141 = arith.constant 1 : index
    %c1_142 = arith.constant 1 : index
    %c0_143 = arith.constant 0 : index
    %c0_144 = arith.constant 0 : index
    %190 = vector.load %arg11[%c1_141, %c1_142, %c0_143, %c0_144] : memref<3x2x1x16xf32, #tpu.memory_space<vmem>>, vector<1x1x1x16xf32>
    %191 = vector.shape_cast %190 : vector<1x1x1x16xf32> to vector<1x16xf32>
    %192 = vector.broadcast %191 : vector<1x16xf32> to vector<8x16xf32>
    %193 = arith.addf %189, %192 : vector<8x16xf32>
    %c2_145 = arith.constant 2 : index
    %c1_146 = arith.constant 1 : index
    %c0_147 = arith.constant 0 : index
    %c0_148 = arith.constant 0 : index
    %194 = vector.load %arg10[%c2_145, %c1_146, %c0_147, %c0_148] : memref<3x2x32x16xbf16, #tpu.memory_space<vmem>>, vector<1x1x32x16xbf16>
    %195 = vector.shape_cast %194 : vector<1x1x32x16xbf16> to vector<32x16xbf16>
    %cst_149 = arith.constant dense<0.000000e+00> : vector<8x16xf32>
    %196 = tpu.matmul %136, %195, %cst_149 {dimension_numbers = #tpu.dot_dimension_numbers<[1], [0], [0], [1], [0, 0, 1, 1], [], []>} : vector<8x32xbf16>, vector<32x16xbf16>, vector<8x16xf32> -> vector<8x16xf32>
    %c2_150 = arith.constant 2 : index
    %c1_151 = arith.constant 1 : index
    %c0_152 = arith.constant 0 : index
    %c0_153 = arith.constant 0 : index
    %197 = vector.load %arg11[%c2_150, %c1_151, %c0_152, %c0_153] : memref<3x2x1x16xf32, #tpu.memory_space<vmem>>, vector<1x1x1x16xf32>
    %198 = vector.shape_cast %197 : vector<1x1x1x16xf32> to vector<1x16xf32>
    %199 = vector.broadcast %198 : vector<1x16xf32> to vector<8x16xf32>
    %200 = arith.addf %196, %199 : vector<8x16xf32>
    %201 = arith.truncf %186 : vector<8x16xf32> to vector<8x16xbf16>
    %202 = arith.truncf %193 : vector<8x16xf32> to vector<8x16xbf16>
    %cst_154 = arith.constant dense<0.000000e+00> : vector<8x8xf32>
    %203 = tpu.matmul %201, %202, %cst_154 {dimension_numbers = #tpu.dot_dimension_numbers<[1], [1], [0], [0], [0, 0, 1, 0], [], []>} : vector<8x16xbf16>, vector<8x16xbf16>, vector<8x8xf32> -> vector<8x8xf32>
    %cst_155 = arith.constant 2.500000e-01 : f32
    %204 = vector.broadcast %cst_155 : f32 to vector<8x8xf32>
    %205 = arith.mulf %203, %204 : vector<8x8xf32>
    %cst_156 = arith.constant dense<0xFF800000> : vector<8xf32>
    %206 = vector.multi_reduction <maximumf>, %205, %cst_156 [1] : vector<8x8xf32> to vector<8xf32>
    %207 = vector.shape_cast %206 : vector<8xf32> to vector<8x1xf32>
    %208 = vector.broadcast %207 : vector<8x1xf32> to vector<8x8xf32>
    %209 = arith.subf %205, %208 : vector<8x8xf32>
    %210 = math.exp %209 : vector<8x8xf32>
    %cst_157 = arith.constant dense<0.000000e+00> : vector<8xf32>
    %211 = vector.multi_reduction <add>, %210, %cst_157 [1] : vector<8x8xf32> to vector<8xf32>
    %212 = vector.shape_cast %211 : vector<8xf32> to vector<8x1xf32>
    %213 = tpu.reciprocal %212 {approx = true} : vector<8x1xf32> -> vector<8x1xf32>
    %214 = vector.broadcast %213 : vector<8x1xf32> to vector<8x8xf32>
    %215 = arith.mulf %210, %214 : vector<8x8xf32>
    %216 = arith.truncf %215 : vector<8x8xf32> to vector<8x8xbf16>
    %217 = arith.truncf %200 : vector<8x16xf32> to vector<8x16xbf16>
    %cst_158 = arith.constant dense<0.000000e+00> : vector<8x16xf32>
    %218 = tpu.matmul %216, %217, %cst_158 {dimension_numbers = #tpu.dot_dimension_numbers<[1], [0], [0], [1], [0, 0, 1, 1], [], []>} : vector<8x8xbf16>, vector<8x16xbf16>, vector<8x16xf32> -> vector<8x16xf32>
    %219 = arith.truncf %218 : vector<8x16xf32> to vector<8x16xbf16>
    %c1_159 = arith.constant 1 : index
    %c0_160 = arith.constant 0 : index
    %c0_161 = arith.constant 0 : index
    %220 = vector.load %arg12[%c1_159, %c0_160, %c0_161] : memref<2x16x32xbf16, #tpu.memory_space<vmem>>, vector<1x16x32xbf16>
    %221 = vector.shape_cast %220 : vector<1x16x32xbf16> to vector<16x32xbf16>
    %cst_162 = arith.constant dense<0.000000e+00> : vector<8x32xf32>
    %222 = tpu.matmul %219, %221, %cst_162 {dimension_numbers = #tpu.dot_dimension_numbers<[1], [0], [0], [1], [0, 0, 1, 1], [], []>} : vector<8x16xbf16>, vector<16x32xbf16>, vector<8x32xf32> -> vector<8x32xf32>
    %223 = arith.addf %179, %222 : vector<8x32xf32>
    %c0_163 = arith.constant 0 : index
    %c0_164 = arith.constant 0 : index
    %224 = vector.load %arg13[%c0_163, %c0_164] : memref<1x32xf32, #tpu.memory_space<vmem>>, vector<1x32xf32>
    %225 = vector.broadcast %224 : vector<1x32xf32> to vector<8x32xf32>
    %226 = arith.addf %223, %225 : vector<8x32xf32>
    %227 = arith.addf %134, %226 : vector<8x32xf32>
    %c0_165 = arith.constant 0 : index
    %c0_166 = arith.constant 0 : index
    %228 = vector.load %arg14[%c0_165, %c0_166] : memref<1x32xf32, #tpu.memory_space<vmem>>, vector<1x32xf32>
    %c0_167 = arith.constant 0 : index
    %c0_168 = arith.constant 0 : index
    %229 = vector.load %arg15[%c0_167, %c0_168] : memref<1x32xf32, #tpu.memory_space<vmem>>, vector<1x32xf32>
    %cst_169 = arith.constant dense<0.000000e+00> : vector<8xf32>
    %230 = vector.multi_reduction <add>, %227, %cst_169 [1] : vector<8x32xf32> to vector<8xf32>
    %231 = vector.shape_cast %230 : vector<8xf32> to vector<8x1xf32>
    %cst_170 = arith.constant 3.200000e+01 : f32
    %232 = vector.broadcast %cst_170 : f32 to vector<8x1xf32>
    %233 = arith.divf %231, %232 : vector<8x1xf32>
    %234 = vector.broadcast %233 : vector<8x1xf32> to vector<8x32xf32>
    %235 = arith.subf %227, %234 : vector<8x32xf32>
    %236 = arith.mulf %235, %235 : vector<8x32xf32>
    %cst_171 = arith.constant dense<0.000000e+00> : vector<8xf32>
    %237 = vector.multi_reduction <add>, %236, %cst_171 [1] : vector<8x32xf32> to vector<8xf32>
    %238 = vector.shape_cast %237 : vector<8xf32> to vector<8x1xf32>
    %cst_172 = arith.constant 3.200000e+01 : f32
    %239 = vector.broadcast %cst_172 : f32 to vector<8x1xf32>
    %240 = arith.divf %238, %239 : vector<8x1xf32>
    %241 = vector.broadcast %233 : vector<8x1xf32> to vector<8x32xf32>
    %242 = arith.subf %227, %241 : vector<8x32xf32>
    %cst_173 = arith.constant 9.99999974E-6 : f32
    %243 = vector.broadcast %cst_173 : f32 to vector<8x1xf32>
    %244 = arith.addf %240, %243 : vector<8x1xf32>
    %245 = math.rsqrt %244 : vector<8x1xf32>
    %246 = vector.broadcast %245 : vector<8x1xf32> to vector<8x32xf32>
    %247 = arith.mulf %242, %246 : vector<8x32xf32>
    %248 = vector.broadcast %228 : vector<1x32xf32> to vector<8x32xf32>
    %249 = arith.mulf %247, %248 : vector<8x32xf32>
    %250 = vector.broadcast %229 : vector<1x32xf32> to vector<8x32xf32>
    %251 = arith.addf %249, %250 : vector<8x32xf32>
    %c0_174 = arith.constant 0 : index
    %c0_175 = arith.constant 0 : index
    %252 = vector.load %arg16[%c0_174, %c0_175] : memref<32x64xbf16, #tpu.memory_space<vmem>>, vector<32x64xbf16>
    %c0_176 = arith.constant 0 : index
    %c0_177 = arith.constant 0 : index
    %253 = vector.load %arg17[%c0_176, %c0_177] : memref<1x64xf32, #tpu.memory_space<vmem>>, vector<1x64xf32>
    %c0_178 = arith.constant 0 : index
    %c0_179 = arith.constant 0 : index
    %254 = vector.load %arg18[%c0_178, %c0_179] : memref<64x32xbf16, #tpu.memory_space<vmem>>, vector<64x32xbf16>
    %c0_180 = arith.constant 0 : index
    %c0_181 = arith.constant 0 : index
    %255 = vector.load %arg19[%c0_180, %c0_181] : memref<1x32xf32, #tpu.memory_space<vmem>>, vector<1x32xf32>
    %256 = arith.truncf %251 : vector<8x32xf32> to vector<8x32xbf16>
    %cst_182 = arith.constant dense<0.000000e+00> : vector<8x64xf32>
    %257 = tpu.matmul %256, %252, %cst_182 {dimension_numbers = #tpu.dot_dimension_numbers<[1], [0], [0], [1], [0, 0, 1, 1], [], []>} : vector<8x32xbf16>, vector<32x64xbf16>, vector<8x64xf32> -> vector<8x64xf32>
    %258 = vector.broadcast %253 : vector<1x64xf32> to vector<8x64xf32>
    %259 = arith.addf %257, %258 : vector<8x64xf32>
    %cst_183 = arith.constant 0.000000e+00 : f32
    %260 = vector.broadcast %cst_183 : f32 to vector<8x64xf32>
    %261 = arith.maximumf %259, %260 : vector<8x64xf32>
    %262 = arith.truncf %261 : vector<8x64xf32> to vector<8x64xbf16>
    %cst_184 = arith.constant dense<0.000000e+00> : vector<8x32xf32>
    %263 = tpu.matmul %262, %254, %cst_184 {dimension_numbers = #tpu.dot_dimension_numbers<[1], [0], [0], [1], [0, 0, 1, 1], [], []>} : vector<8x64xbf16>, vector<64x32xbf16>, vector<8x32xf32> -> vector<8x32xf32>
    %264 = vector.broadcast %255 : vector<1x32xf32> to vector<8x32xf32>
    %265 = arith.addf %263, %264 : vector<8x32xf32>
    %266 = arith.addf %251, %265 : vector<8x32xf32>
    %c0_185 = arith.constant 0 : index
    %c0_186 = arith.constant 0 : index
    %267 = vector.load %arg20[%c0_185, %c0_186] : memref<1x32xf32, #tpu.memory_space<vmem>>, vector<1x32xf32>
    %c0_187 = arith.constant 0 : index
    %c0_188 = arith.constant 0 : index
    %268 = vector.load %arg21[%c0_187, %c0_188] : memref<1x32xf32, #tpu.memory_space<vmem>>, vector<1x32xf32>
    %cst_189 = arith.constant dense<0.000000e+00> : vector<8xf32>
    %269 = vector.multi_reduction <add>, %266, %cst_189 [1] : vector<8x32xf32> to vector<8xf32>
    %270 = vector.shape_cast %269 : vector<8xf32> to vector<8x1xf32>
    %cst_190 = arith.constant 3.200000e+01 : f32
    %271 = vector.broadcast %cst_190 : f32 to vector<8x1xf32>
    %272 = arith.divf %270, %271 : vector<8x1xf32>
    %273 = vector.broadcast %272 : vector<8x1xf32> to vector<8x32xf32>
    %274 = arith.subf %266, %273 : vector<8x32xf32>
    %275 = arith.mulf %274, %274 : vector<8x32xf32>
    %cst_191 = arith.constant dense<0.000000e+00> : vector<8xf32>
    %276 = vector.multi_reduction <add>, %275, %cst_191 [1] : vector<8x32xf32> to vector<8xf32>
    %277 = vector.shape_cast %276 : vector<8xf32> to vector<8x1xf32>
    %cst_192 = arith.constant 3.200000e+01 : f32
    %278 = vector.broadcast %cst_192 : f32 to vector<8x1xf32>
    %279 = arith.divf %277, %278 : vector<8x1xf32>
    %280 = vector.broadcast %272 : vector<8x1xf32> to vector<8x32xf32>
    %281 = arith.subf %266, %280 : vector<8x32xf32>
    %cst_193 = arith.constant 9.99999974E-6 : f32
    %282 = vector.broadcast %cst_193 : f32 to vector<8x1xf32>
    %283 = arith.addf %279, %282 : vector<8x1xf32>
    %284 = math.rsqrt %283 : vector<8x1xf32>
    %285 = vector.broadcast %284 : vector<8x1xf32> to vector<8x32xf32>
    %286 = arith.mulf %281, %285 : vector<8x32xf32>
    %287 = vector.broadcast %267 : vector<1x32xf32> to vector<8x32xf32>
    %288 = arith.mulf %286, %287 : vector<8x32xf32>
    %289 = vector.broadcast %268 : vector<1x32xf32> to vector<8x32xf32>
    %290 = arith.addf %288, %289 : vector<8x32xf32>
    %c0_194 = arith.constant 0 : index
    %c0_195 = arith.constant 0 : index
    %c0_196 = arith.constant 0 : index
    %291 = vector.load %arg22[%c0_194, %c0_195, %c0_196] : memref<1x8x32xf32, #tpu.memory_space<vmem>>, vector<1x8x32xf32>
    %292 = vector.shape_cast %291 : vector<1x8x32xf32> to vector<8x32xf32>
    %293 = vector.shape_cast %290 : vector<8x32xf32> to vector<1x8x32xf32>
    tpu.vector_store %arg22[%c0_194, %c0_195, %c0_196], %293 {strides = array<i32>} : memref<1x8x32xf32, #tpu.memory_space<vmem>>, vector<1x8x32xf32>,
    return
  }
  func.func @transform_0(%arg0: i32) -> (i32, i32, i32) {
    %c0_i32 = arith.constant 0 : i32
    %c0_i32_0 = arith.constant 0 : i32
    %c0_i32_1 = arith.constant 0 : i32
    return %arg0, %c0_i32, %c0_i32_0 : i32, i32, i32
  }
  func.func @transform_1(%arg0: i32) -> (i32, i32, i32) {
    %c0_i32 = arith.constant 0 : i32
    %c0_i32_0 = arith.constant 0 : i32
    %c0_i32_1 = arith.constant 0 : i32
    return %arg0, %c0_i32, %c0_i32_0 : i32, i32, i32
  }
  func.func @transform_2(%arg0: i32) -> (i32, i32, i32) {
    %c0_i32 = arith.constant 0 : i32
    %c0_i32_0 = arith.constant 0 : i32
    %c0_i32_1 = arith.constant 0 : i32
    return %arg0, %c0_i32, %c0_i32_0 : i32, i32, i32
  }
  func.func @transform_3(%arg0: i32) -> (i32, i32, i32, i32) {
    %c0_i32 = arith.constant 0 : i32
    %c0_i32_0 = arith.constant 0 : i32
    %c0_i32_1 = arith.constant 0 : i32
    %c0_i32_2 = arith.constant 0 : i32
    %c0_i32_3 = arith.constant 0 : i32
    return %c0_i32, %c0_i32_0, %c0_i32_1, %c0_i32_2 : i32, i32, i32, i32
  }
  func.func @transform_4(%arg0: i32) -> (i32, i32, i32, i32) {
    %c0_i32 = arith.constant 0 : i32
    %c0_i32_0 = arith.constant 0 : i32
    %c0_i32_1 = arith.constant 0 : i32
    %c0_i32_2 = arith.constant 0 : i32
    %c0_i32_3 = arith.constant 0 : i32
    return %c0_i32, %c0_i32_0, %c0_i32_1, %c0_i32_2 : i32, i32, i32, i32
  }
  func.func @transform_5(%arg0: i32) -> (i32, i32, i32) {
    %c0_i32 = arith.constant 0 : i32
    %c0_i32_0 = arith.constant 0 : i32
    %c0_i32_1 = arith.constant 0 : i32
    %c0_i32_2 = arith.constant 0 : i32
    return %c0_i32, %c0_i32_0, %c0_i32_1 : i32, i32, i32
  }
  func.func @transform_6(%arg0: i32) -> (i32, i32) {
    %c0_i32 = arith.constant 0 : i32
    %c0_i32_0 = arith.constant 0 : i32
    %c0_i32_1 = arith.constant 0 : i32
    return %c0_i32, %c0_i32_0 : i32, i32
  }
  func.func @transform_7(%arg0: i32) -> (i32, i32) {
    %c0_i32 = arith.constant 0 : i32
    %c0_i32_0 = arith.constant 0 : i32
    %c0_i32_1 = arith.constant 0 : i32
    return %c0_i32, %c0_i32_0 : i32, i32
  }
  func.func @transform_8(%arg0: i32) -> (i32, i32) {
    %c0_i32 = arith.constant 0 : i32
    %c0_i32_0 = arith.constant 0 : i32
    %c0_i32_1 = arith.constant 0 : i32
    return %c0_i32, %c0_i32_0 : i32, i32
  }
  func.func @transform_9(%arg0: i32) -> (i32, i32, i32, i32) {
    %c0_i32 = arith.constant 0 : i32
    %c0_i32_0 = arith.constant 0 : i32
    %c0_i32_1 = arith.constant 0 : i32
    %c0_i32_2 = arith.constant 0 : i32
    %c0_i32_3 = arith.constant 0 : i32
    return %c0_i32, %c0_i32_0, %c0_i32_1, %c0_i32_2 : i32, i32, i32, i32
  }
  func.func @transform_10(%arg0: i32) -> (i32, i32, i32, i32) {
    %c0_i32 = arith.constant 0 : i32
    %c0_i32_0 = arith.constant 0 : i32
    %c0_i32_1 = arith.constant 0 : i32
    %c0_i32_2 = arith.constant 0 : i32
    %c0_i32_3 = arith.constant 0 : i32
    return %c0_i32, %c0_i32_0, %c0_i32_1, %c0_i32_2 : i32, i32, i32, i32
  }
  func.func @transform_11(%arg0: i32) -> (i32, i32, i32) {
    %c0_i32 = arith.constant 0 : i32
    %c0_i32_0 = arith.constant 0 : i32
    %c0_i32_1 = arith.constant 0 : i32
    %c0_i32_2 = arith.constant 0 : i32
    return %c0_i32, %c0_i32_0, %c0_i32_1 : i32, i32, i32
  }
  func.func @transform_12(%arg0: i32) -> (i32, i32) {
    %c0_i32 = arith.constant 0 : i32
    %c0_i32_0 = arith.constant 0 : i32
    %c0_i32_1 = arith.constant 0 : i32
    return %c0_i32, %c0_i32_0 : i32, i32
  }
  func.func @transform_13(%arg0: i32) -> (i32, i32) {
    %c0_i32 = arith.constant 0 : i32
    %c0_i32_0 = arith.constant 0 : i32
    %c0_i32_1 = arith.constant 0 : i32
    return %c0_i32, %c0_i32_0 : i32, i32
  }
  func.func @transform_14(%arg0: i32) -> (i32, i32) {
    %c0_i32 = arith.constant 0 : i32
    %c0_i32_0 = arith.constant 0 : i32
    %c0_i32_1 = arith.constant 0 : i32
    return %c0_i32, %c0_i32_0 : i32, i32
  }
  func.func @transform_15(%arg0: i32) -> (i32, i32) {
    %c0_i32 = arith.constant 0 : i32
    %c0_i32_0 = arith.constant 0 : i32
    %c0_i32_1 = arith.constant 0 : i32
    return %c0_i32, %c0_i32_0 : i32, i32
  }
  func.func @transform_16(%arg0: i32) -> (i32, i32) {
    %c0_i32 = arith.constant 0 : i32
    %c0_i32_0 = arith.constant 0 : i32
    %c0_i32_1 = arith.constant 0 : i32
    return %c0_i32, %c0_i32_0 : i32, i32
  }
  func.func @transform_17(%arg0: i32) -> (i32, i32) {
    %c0_i32 = arith.constant 0 : i32
    %c0_i32_0 = arith.constant 0 : i32
    %c0_i32_1 = arith.constant 0 : i32
    return %c0_i32, %c0_i32_0 : i32, i32
  }
  func.func @transform_18(%arg0: i32) -> (i32, i32) {
    %c0_i32 = arith.constant 0 : i32
    %c0_i32_0 = arith.constant 0 : i32
    %c0_i32_1 = arith.constant 0 : i32
    return %c0_i32, %c0_i32_0 : i32, i32
  }
  func.func @transform_19(%arg0: i32) -> (i32, i32) {
    %c0_i32 = arith.constant 0 : i32
    %c0_i32_0 = arith.constant 0 : i32
    %c0_i32_1 = arith.constant 0 : i32
    return %c0_i32, %c0_i32_0 : i32, i32
  }
  func.func @transform_20(%arg0: i32) -> (i32, i32) {
    %c0_i32 = arith.constant 0 : i32
    %c0_i32_0 = arith.constant 0 : i32
    %c0_i32_1 = arith.constant 0 : i32
    return %c0_i32, %c0_i32_0 : i32, i32
  }
  func.func @transform_21(%arg0: i32) -> (i32, i32, i32) {
    %c0_i32 = arith.constant 0 : i32
    %c0_i32_0 = arith.constant 0 : i32
    %c0_i32_1 = arith.constant 0 : i32
    return %arg0, %c0_i32, %c0_i32_0 : i32, i32, i32
  }
}

module attributes {stable_mosaic.version = 11 : i64} {
  func.func @_encoder_layer_kernel(%arg0: i32, %arg1: memref<1x8x32xf32, #tpu.memory_space<vmem>>, %arg2: memref<3x2x32x16xbf16, #tpu.memory_space<vmem>>, %arg3: memref<3x2x1x16xf32, #tpu.memory_space<vmem>>, %arg4: memref<2x16x32xbf16, #tpu.memory_space<vmem>>, %arg5: memref<1x32xf32, #tpu.memory_space<vmem>>, %arg6: memref<1x32xf32, #tpu.memory_space<vmem>>, %arg7: memref<1x32xf32, #tpu.memory_space<vmem>>, %arg8: memref<32x64xbf16, #tpu.memory_space<vmem>>, %arg9: memref<1x64xf32, #tpu.memory_space<vmem>>, %arg10: memref<64x32xbf16, #tpu.memory_space<vmem>>, %arg11: memref<1x32xf32, #tpu.memory_space<vmem>>, %arg12: memref<1x32xf32, #tpu.memory_space<vmem>>, %arg13: memref<1x32xf32, #tpu.memory_space<vmem>>, %arg14: memref<1x32xf32, #tpu.memory_space<vmem>>, %arg15: memref<1x32xf32, #tpu.memory_space<vmem>>, %arg16: memref<1x8x32xf32, #tpu.memory_space<vmem>>) attributes {dimension_semantics = [#tpu.dimension_semantics<parallel>], iteration_bounds = array<i64: 2>, scalar_prefetch = 0 : i64, scratch_operands = 0 : i64, tpu.core_type = #tpu.core_type<tc>, window_params = [{transform_indices = @transform_0, window_bounds = array<i64: 1, 8, 32>}, {pipeline_mode = #tpu.pipeline_mode<synchronous>, transform_indices = @transform_1, window_bounds = array<i64: 3, 2, 32, 16>}, {pipeline_mode = #tpu.pipeline_mode<synchronous>, transform_indices = @transform_2, window_bounds = array<i64: 3, 2, 1, 16>}, {pipeline_mode = #tpu.pipeline_mode<synchronous>, transform_indices = @transform_3, window_bounds = array<i64: 2, 16, 32>}, {pipeline_mode = #tpu.pipeline_mode<synchronous>, transform_indices = @transform_4, window_bounds = array<i64: 1, 32>}, {pipeline_mode = #tpu.pipeline_mode<synchronous>, transform_indices = @transform_5, window_bounds = array<i64: 1, 32>}, {pipeline_mode = #tpu.pipeline_mode<synchronous>, transform_indices = @transform_6, window_bounds = array<i64: 1, 32>}, {pipeline_mode = #tpu.pipeline_mode<synchronous>, transform_indices = @transform_7, window_bounds = array<i64: 32, 64>}, {pipeline_mode = #tpu.pipeline_mode<synchronous>, transform_indices = @transform_8, window_bounds = array<i64: 1, 64>}, {pipeline_mode = #tpu.pipeline_mode<synchronous>, transform_indices = @transform_9, window_bounds = array<i64: 64, 32>}, {pipeline_mode = #tpu.pipeline_mode<synchronous>, transform_indices = @transform_10, window_bounds = array<i64: 1, 32>}, {pipeline_mode = #tpu.pipeline_mode<synchronous>, transform_indices = @transform_11, window_bounds = array<i64: 1, 32>}, {pipeline_mode = #tpu.pipeline_mode<synchronous>, transform_indices = @transform_12, window_bounds = array<i64: 1, 32>}, {pipeline_mode = #tpu.pipeline_mode<synchronous>, transform_indices = @transform_13, window_bounds = array<i64: 1, 32>}, {pipeline_mode = #tpu.pipeline_mode<synchronous>, transform_indices = @transform_14, window_bounds = array<i64: 1, 32>}, {transform_indices = @transform_15, window_bounds = array<i64: 1, 8, 32>}]} {
    %c0 = arith.constant 0 : index
    %c0_0 = arith.constant 0 : index
    %c0_1 = arith.constant 0 : index
    %0 = vector.load %arg1[%c0, %c0_0, %c0_1] : memref<1x8x32xf32, #tpu.memory_space<vmem>>, vector<1x8x32xf32>
    %1 = vector.shape_cast %0 : vector<1x8x32xf32> to vector<8x32xf32>
    %2 = arith.truncf %1 : vector<8x32xf32> to vector<8x32xbf16>
    %3 = arith.truncf %1 : vector<8x32xf32> to vector<8x32xbf16>
    %c0_2 = arith.constant 0 : index
    %c0_3 = arith.constant 0 : index
    %c0_4 = arith.constant 0 : index
    %c0_5 = arith.constant 0 : index
    %4 = vector.load %arg2[%c0_2, %c0_3, %c0_4, %c0_5] : memref<3x2x32x16xbf16, #tpu.memory_space<vmem>>, vector<1x1x32x16xbf16>
    %5 = vector.shape_cast %4 : vector<1x1x32x16xbf16> to vector<32x16xbf16>
    %cst = arith.constant dense<0.000000e+00> : vector<8x16xf32>
    %6 = tpu.matmul %2, %5, %cst {dimension_numbers = #tpu.dot_dimension_numbers<[1], [0], [0], [1], [0, 0, 1, 1], [], []>} : vector<8x32xbf16>, vector<32x16xbf16>, vector<8x16xf32> -> vector<8x16xf32>
    %c0_6 = arith.constant 0 : index
    %c0_7 = arith.constant 0 : index
    %c0_8 = arith.constant 0 : index
    %c0_9 = arith.constant 0 : index
    %7 = vector.load %arg3[%c0_6, %c0_7, %c0_8, %c0_9] : memref<3x2x1x16xf32, #tpu.memory_space<vmem>>, vector<1x1x1x16xf32>
    %8 = vector.shape_cast %7 : vector<1x1x1x16xf32> to vector<1x16xf32>
    %9 = vector.broadcast %8 : vector<1x16xf32> to vector<8x16xf32>
    %10 = arith.addf %6, %9 : vector<8x16xf32>
    %c1 = arith.constant 1 : index
    %c0_10 = arith.constant 0 : index
    %c0_11 = arith.constant 0 : index
    %c0_12 = arith.constant 0 : index
    %11 = vector.load %arg2[%c1, %c0_10, %c0_11, %c0_12] : memref<3x2x32x16xbf16, #tpu.memory_space<vmem>>, vector<1x1x32x16xbf16>
    %12 = vector.shape_cast %11 : vector<1x1x32x16xbf16> to vector<32x16xbf16>
    %cst_13 = arith.constant dense<0.000000e+00> : vector<8x16xf32>
    %13 = tpu.matmul %3, %12, %cst_13 {dimension_numbers = #tpu.dot_dimension_numbers<[1], [0], [0], [1], [0, 0, 1, 1], [], []>} : vector<8x32xbf16>, vector<32x16xbf16>, vector<8x16xf32> -> vector<8x16xf32>
    %c1_14 = arith.constant 1 : index
    %c0_15 = arith.constant 0 : index
    %c0_16 = arith.constant 0 : index
    %c0_17 = arith.constant 0 : index
    %14 = vector.load %arg3[%c1_14, %c0_15, %c0_16, %c0_17] : memref<3x2x1x16xf32, #tpu.memory_space<vmem>>, vector<1x1x1x16xf32>
    %15 = vector.shape_cast %14 : vector<1x1x1x16xf32> to vector<1x16xf32>
    %16 = vector.broadcast %15 : vector<1x16xf32> to vector<8x16xf32>
    %17 = arith.addf %13, %16 : vector<8x16xf32>
    %c2 = arith.constant 2 : index
    %c0_18 = arith.constant 0 : index
    %c0_19 = arith.constant 0 : index
    %c0_20 = arith.constant 0 : index
    %18 = vector.load %arg2[%c2, %c0_18, %c0_19, %c0_20] : memref<3x2x32x16xbf16, #tpu.memory_space<vmem>>, vector<1x1x32x16xbf16>
    %19 = vector.shape_cast %18 : vector<1x1x32x16xbf16> to vector<32x16xbf16>
    %cst_21 = arith.constant dense<0.000000e+00> : vector<8x16xf32>
    %20 = tpu.matmul %3, %19, %cst_21 {dimension_numbers = #tpu.dot_dimension_numbers<[1], [0], [0], [1], [0, 0, 1, 1], [], []>} : vector<8x32xbf16>, vector<32x16xbf16>, vector<8x16xf32> -> vector<8x16xf32>
    %c2_22 = arith.constant 2 : index
    %c0_23 = arith.constant 0 : index
    %c0_24 = arith.constant 0 : index
    %c0_25 = arith.constant 0 : index
    %21 = vector.load %arg3[%c2_22, %c0_23, %c0_24, %c0_25] : memref<3x2x1x16xf32, #tpu.memory_space<vmem>>, vector<1x1x1x16xf32>
    %22 = vector.shape_cast %21 : vector<1x1x1x16xf32> to vector<1x16xf32>
    %23 = vector.broadcast %22 : vector<1x16xf32> to vector<8x16xf32>
    %24 = arith.addf %20, %23 : vector<8x16xf32>
    %25 = arith.truncf %10 : vector<8x16xf32> to vector<8x16xbf16>
    %26 = arith.truncf %17 : vector<8x16xf32> to vector<8x16xbf16>
    %cst_26 = arith.constant dense<0.000000e+00> : vector<8x8xf32>
    %27 = tpu.matmul %25, %26, %cst_26 {dimension_numbers = #tpu.dot_dimension_numbers<[1], [1], [0], [0], [0, 0, 1, 0], [], []>} : vector<8x16xbf16>, vector<8x16xbf16>, vector<8x8xf32> -> vector<8x8xf32>
    %cst_27 = arith.constant 2.500000e-01 : f32
    %28 = vector.broadcast %cst_27 : f32 to vector<8x8xf32>
    %29 = arith.mulf %27, %28 : vector<8x8xf32>
    %cst_28 = arith.constant dense<0xFF800000> : vector<8xf32>
    %30 = vector.multi_reduction <maximumf>, %29, %cst_28 [1] : vector<8x8xf32> to vector<8xf32>
    %31 = vector.shape_cast %30 : vector<8xf32> to vector<8x1xf32>
    %32 = vector.broadcast %31 : vector<8x1xf32> to vector<8x8xf32>
    %33 = arith.subf %29, %32 : vector<8x8xf32>
    %34 = math.exp %33 : vector<8x8xf32>
    %cst_29 = arith.constant dense<0.000000e+00> : vector<8xf32>
    %35 = vector.multi_reduction <add>, %34, %cst_29 [1] : vector<8x8xf32> to vector<8xf32>
    %36 = vector.shape_cast %35 : vector<8xf32> to vector<8x1xf32>
    %37 = tpu.reciprocal %36 {approx = true} : vector<8x1xf32> -> vector<8x1xf32>
    %38 = vector.broadcast %37 : vector<8x1xf32> to vector<8x8xf32>
    %39 = arith.mulf %34, %38 : vector<8x8xf32>
    %40 = arith.truncf %39 : vector<8x8xf32> to vector<8x8xbf16>
    %41 = arith.truncf %24 : vector<8x16xf32> to vector<8x16xbf16>
    %cst_30 = arith.constant dense<0.000000e+00> : vector<8x16xf32>
    %42 = tpu.matmul %40, %41, %cst_30 {dimension_numbers = #tpu.dot_dimension_numbers<[1], [0], [0], [1], [0, 0, 1, 1], [], []>} : vector<8x8xbf16>, vector<8x16xbf16>, vector<8x16xf32> -> vector<8x16xf32>
    %43 = arith.truncf %42 : vector<8x16xf32> to vector<8x16xbf16>
    %c0_31 = arith.constant 0 : index
    %c0_32 = arith.constant 0 : index
    %c0_33 = arith.constant 0 : index
    %44 = vector.load %arg4[%c0_31, %c0_32, %c0_33] : memref<2x16x32xbf16, #tpu.memory_space<vmem>>, vector<1x16x32xbf16>
    %45 = vector.shape_cast %44 : vector<1x16x32xbf16> to vector<16x32xbf16>
    %cst_34 = arith.constant dense<0.000000e+00> : vector<8x32xf32>
    %46 = tpu.matmul %43, %45, %cst_34 {dimension_numbers = #tpu.dot_dimension_numbers<[1], [0], [0], [1], [0, 0, 1, 1], [], []>} : vector<8x16xbf16>, vector<16x32xbf16>, vector<8x32xf32> -> vector<8x32xf32>
    %c0_35 = arith.constant 0 : index
    %c1_36 = arith.constant 1 : index
    %c0_37 = arith.constant 0 : index
    %c0_38 = arith.constant 0 : index
    %47 = vector.load %arg2[%c0_35, %c1_36, %c0_37, %c0_38] : memref<3x2x32x16xbf16, #tpu.memory_space<vmem>>, vector<1x1x32x16xbf16>
    %48 = vector.shape_cast %47 : vector<1x1x32x16xbf16> to vector<32x16xbf16>
    %cst_39 = arith.constant dense<0.000000e+00> : vector<8x16xf32>
    %49 = tpu.matmul %2, %48, %cst_39 {dimension_numbers = #tpu.dot_dimension_numbers<[1], [0], [0], [1], [0, 0, 1, 1], [], []>} : vector<8x32xbf16>, vector<32x16xbf16>, vector<8x16xf32> -> vector<8x16xf32>
    %c0_40 = arith.constant 0 : index
    %c1_41 = arith.constant 1 : index
    %c0_42 = arith.constant 0 : index
    %c0_43 = arith.constant 0 : index
    %50 = vector.load %arg3[%c0_40, %c1_41, %c0_42, %c0_43] : memref<3x2x1x16xf32, #tpu.memory_space<vmem>>, vector<1x1x1x16xf32>
    %51 = vector.shape_cast %50 : vector<1x1x1x16xf32> to vector<1x16xf32>
    %52 = vector.broadcast %51 : vector<1x16xf32> to vector<8x16xf32>
    %53 = arith.addf %49, %52 : vector<8x16xf32>
    %c1_44 = arith.constant 1 : index
    %c1_45 = arith.constant 1 : index
    %c0_46 = arith.constant 0 : index
    %c0_47 = arith.constant 0 : index
    %54 = vector.load %arg2[%c1_44, %c1_45, %c0_46, %c0_47] : memref<3x2x32x16xbf16, #tpu.memory_space<vmem>>, vector<1x1x32x16xbf16>
    %55 = vector.shape_cast %54 : vector<1x1x32x16xbf16> to vector<32x16xbf16>
    %cst_48 = arith.constant dense<0.000000e+00> : vector<8x16xf32>
    %56 = tpu.matmul %3, %55, %cst_48 {dimension_numbers = #tpu.dot_dimension_numbers<[1], [0], [0], [1], [0, 0, 1, 1], [], []>} : vector<8x32xbf16>, vector<32x16xbf16>, vector<8x16xf32> -> vector<8x16xf32>
    %c1_49 = arith.constant 1 : index
    %c1_50 = arith.constant 1 : index
    %c0_51 = arith.constant 0 : index
    %c0_52 = arith.constant 0 : index
    %57 = vector.load %arg3[%c1_49, %c1_50, %c0_51, %c0_52] : memref<3x2x1x16xf32, #tpu.memory_space<vmem>>, vector<1x1x1x16xf32>
    %58 = vector.shape_cast %57 : vector<1x1x1x16xf32> to vector<1x16xf32>
    %59 = vector.broadcast %58 : vector<1x16xf32> to vector<8x16xf32>
    %60 = arith.addf %56, %59 : vector<8x16xf32>
    %c2_53 = arith.constant 2 : index
    %c1_54 = arith.constant 1 : index
    %c0_55 = arith.constant 0 : index
    %c0_56 = arith.constant 0 : index
    %61 = vector.load %arg2[%c2_53, %c1_54, %c0_55, %c0_56] : memref<3x2x32x16xbf16, #tpu.memory_space<vmem>>, vector<1x1x32x16xbf16>
    %62 = vector.shape_cast %61 : vector<1x1x32x16xbf16> to vector<32x16xbf16>
    %cst_57 = arith.constant dense<0.000000e+00> : vector<8x16xf32>
    %63 = tpu.matmul %3, %62, %cst_57 {dimension_numbers = #tpu.dot_dimension_numbers<[1], [0], [0], [1], [0, 0, 1, 1], [], []>} : vector<8x32xbf16>, vector<32x16xbf16>, vector<8x16xf32> -> vector<8x16xf32>
    %c2_58 = arith.constant 2 : index
    %c1_59 = arith.constant 1 : index
    %c0_60 = arith.constant 0 : index
    %c0_61 = arith.constant 0 : index
    %64 = vector.load %arg3[%c2_58, %c1_59, %c0_60, %c0_61] : memref<3x2x1x16xf32, #tpu.memory_space<vmem>>, vector<1x1x1x16xf32>
    %65 = vector.shape_cast %64 : vector<1x1x1x16xf32> to vector<1x16xf32>
    %66 = vector.broadcast %65 : vector<1x16xf32> to vector<8x16xf32>
    %67 = arith.addf %63, %66 : vector<8x16xf32>
    %68 = arith.truncf %53 : vector<8x16xf32> to vector<8x16xbf16>
    %69 = arith.truncf %60 : vector<8x16xf32> to vector<8x16xbf16>
    %cst_62 = arith.constant dense<0.000000e+00> : vector<8x8xf32>
    %70 = tpu.matmul %68, %69, %cst_62 {dimension_numbers = #tpu.dot_dimension_numbers<[1], [1], [0], [0], [0, 0, 1, 0], [], []>} : vector<8x16xbf16>, vector<8x16xbf16>, vector<8x8xf32> -> vector<8x8xf32>
    %cst_63 = arith.constant 2.500000e-01 : f32
    %71 = vector.broadcast %cst_63 : f32 to vector<8x8xf32>
    %72 = arith.mulf %70, %71 : vector<8x8xf32>
    %cst_64 = arith.constant dense<0xFF800000> : vector<8xf32>
    %73 = vector.multi_reduction <maximumf>, %72, %cst_64 [1] : vector<8x8xf32> to vector<8xf32>
    %74 = vector.shape_cast %73 : vector<8xf32> to vector<8x1xf32>
    %75 = vector.broadcast %74 : vector<8x1xf32> to vector<8x8xf32>
    %76 = arith.subf %72, %75 : vector<8x8xf32>
    %77 = math.exp %76 : vector<8x8xf32>
    %cst_65 = arith.constant dense<0.000000e+00> : vector<8xf32>
    %78 = vector.multi_reduction <add>, %77, %cst_65 [1] : vector<8x8xf32> to vector<8xf32>
    %79 = vector.shape_cast %78 : vector<8xf32> to vector<8x1xf32>
    %80 = tpu.reciprocal %79 {approx = true} : vector<8x1xf32> -> vector<8x1xf32>
    %81 = vector.broadcast %80 : vector<8x1xf32> to vector<8x8xf32>
    %82 = arith.mulf %77, %81 : vector<8x8xf32>
    %83 = arith.truncf %82 : vector<8x8xf32> to vector<8x8xbf16>
    %84 = arith.truncf %67 : vector<8x16xf32> to vector<8x16xbf16>
    %cst_66 = arith.constant dense<0.000000e+00> : vector<8x16xf32>
    %85 = tpu.matmul %83, %84, %cst_66 {dimension_numbers = #tpu.dot_dimension_numbers<[1], [0], [0], [1], [0, 0, 1, 1], [], []>} : vector<8x8xbf16>, vector<8x16xbf16>, vector<8x16xf32> -> vector<8x16xf32>
    %86 = arith.truncf %85 : vector<8x16xf32> to vector<8x16xbf16>
    %c1_67 = arith.constant 1 : index
    %c0_68 = arith.constant 0 : index
    %c0_69 = arith.constant 0 : index
    %87 = vector.load %arg4[%c1_67, %c0_68, %c0_69] : memref<2x16x32xbf16, #tpu.memory_space<vmem>>, vector<1x16x32xbf16>
    %88 = vector.shape_cast %87 : vector<1x16x32xbf16> to vector<16x32xbf16>
    %cst_70 = arith.constant dense<0.000000e+00> : vector<8x32xf32>
    %89 = tpu.matmul %86, %88, %cst_70 {dimension_numbers = #tpu.dot_dimension_numbers<[1], [0], [0], [1], [0, 0, 1, 1], [], []>} : vector<8x16xbf16>, vector<16x32xbf16>, vector<8x32xf32> -> vector<8x32xf32>
    %90 = arith.addf %46, %89 : vector<8x32xf32>
    %c0_71 = arith.constant 0 : index
    %c0_72 = arith.constant 0 : index
    %91 = vector.load %arg5[%c0_71, %c0_72] : memref<1x32xf32, #tpu.memory_space<vmem>>, vector<1x32xf32>
    %92 = vector.broadcast %91 : vector<1x32xf32> to vector<8x32xf32>
    %93 = arith.addf %90, %92 : vector<8x32xf32>
    %94 = arith.addf %1, %93 : vector<8x32xf32>
    %c0_73 = arith.constant 0 : index
    %c0_74 = arith.constant 0 : index
    %95 = vector.load %arg6[%c0_73, %c0_74] : memref<1x32xf32, #tpu.memory_space<vmem>>, vector<1x32xf32>
    %c0_75 = arith.constant 0 : index
    %c0_76 = arith.constant 0 : index
    %96 = vector.load %arg7[%c0_75, %c0_76] : memref<1x32xf32, #tpu.memory_space<vmem>>, vector<1x32xf32>
    %cst_77 = arith.constant dense<0.000000e+00> : vector<8xf32>
    %97 = vector.multi_reduction <add>, %94, %cst_77 [1] : vector<8x32xf32> to vector<8xf32>
    %98 = vector.shape_cast %97 : vector<8xf32> to vector<8x1xf32>
    %cst_78 = arith.constant 3.200000e+01 : f32
    %99 = vector.broadcast %cst_78 : f32 to vector<8x1xf32>
    %100 = arith.divf %98, %99 : vector<8x1xf32>
    %101 = vector.broadcast %100 : vector<8x1xf32> to vector<8x32xf32>
    %102 = arith.subf %94, %101 : vector<8x32xf32>
    %103 = arith.mulf %102, %102 : vector<8x32xf32>
    %cst_79 = arith.constant dense<0.000000e+00> : vector<8xf32>
    %104 = vector.multi_reduction <add>, %103, %cst_79 [1] : vector<8x32xf32> to vector<8xf32>
    %105 = vector.shape_cast %104 : vector<8xf32> to vector<8x1xf32>
    %cst_80 = arith.constant 3.200000e+01 : f32
    %106 = vector.broadcast %cst_80 : f32 to vector<8x1xf32>
    %107 = arith.divf %105, %106 : vector<8x1xf32>
    %108 = vector.broadcast %100 : vector<8x1xf32> to vector<8x32xf32>
    %109 = arith.subf %94, %108 : vector<8x32xf32>
    %cst_81 = arith.constant 9.99999974E-6 : f32
    %110 = vector.broadcast %cst_81 : f32 to vector<8x1xf32>
    %111 = arith.addf %107, %110 : vector<8x1xf32>
    %112 = math.rsqrt %111 : vector<8x1xf32>
    %113 = vector.broadcast %112 : vector<8x1xf32> to vector<8x32xf32>
    %114 = arith.mulf %109, %113 : vector<8x32xf32>
    %115 = vector.broadcast %95 : vector<1x32xf32> to vector<8x32xf32>
    %116 = arith.mulf %114, %115 : vector<8x32xf32>
    %117 = vector.broadcast %96 : vector<1x32xf32> to vector<8x32xf32>
    %118 = arith.addf %116, %117 : vector<8x32xf32>
    %c0_82 = arith.constant 0 : index
    %c0_83 = arith.constant 0 : index
    %119 = vector.load %arg8[%c0_82, %c0_83] : memref<32x64xbf16, #tpu.memory_space<vmem>>, vector<32x64xbf16>
    %c0_84 = arith.constant 0 : index
    %c0_85 = arith.constant 0 : index
    %120 = vector.load %arg9[%c0_84, %c0_85] : memref<1x64xf32, #tpu.memory_space<vmem>>, vector<1x64xf32>
    %c0_86 = arith.constant 0 : index
    %c0_87 = arith.constant 0 : index
    %121 = vector.load %arg10[%c0_86, %c0_87] : memref<64x32xbf16, #tpu.memory_space<vmem>>, vector<64x32xbf16>
    %c0_88 = arith.constant 0 : index
    %c0_89 = arith.constant 0 : index
    %122 = vector.load %arg11[%c0_88, %c0_89] : memref<1x32xf32, #tpu.memory_space<vmem>>, vector<1x32xf32>
    %123 = arith.truncf %118 : vector<8x32xf32> to vector<8x32xbf16>
    %cst_90 = arith.constant dense<0.000000e+00> : vector<8x64xf32>
    %124 = tpu.matmul %123, %119, %cst_90 {dimension_numbers = #tpu.dot_dimension_numbers<[1], [0], [0], [1], [0, 0, 1, 1], [], []>} : vector<8x32xbf16>, vector<32x64xbf16>, vector<8x64xf32> -> vector<8x64xf32>
    %125 = vector.broadcast %120 : vector<1x64xf32> to vector<8x64xf32>
    %126 = arith.addf %124, %125 : vector<8x64xf32>
    %cst_91 = arith.constant 0.000000e+00 : f32
    %127 = vector.broadcast %cst_91 : f32 to vector<8x64xf32>
    %128 = arith.maximumf %126, %127 : vector<8x64xf32>
    %129 = arith.truncf %128 : vector<8x64xf32> to vector<8x64xbf16>
    %cst_92 = arith.constant dense<0.000000e+00> : vector<8x32xf32>
    %130 = tpu.matmul %129, %121, %cst_92 {dimension_numbers = #tpu.dot_dimension_numbers<[1], [0], [0], [1], [0, 0, 1, 1], [], []>} : vector<8x64xbf16>, vector<64x32xbf16>, vector<8x32xf32> -> vector<8x32xf32>
    %131 = vector.broadcast %122 : vector<1x32xf32> to vector<8x32xf32>
    %132 = arith.addf %130, %131 : vector<8x32xf32>
    %133 = arith.addf %118, %132 : vector<8x32xf32>
    %c0_93 = arith.constant 0 : index
    %c0_94 = arith.constant 0 : index
    %134 = vector.load %arg12[%c0_93, %c0_94] : memref<1x32xf32, #tpu.memory_space<vmem>>, vector<1x32xf32>
    %c0_95 = arith.constant 0 : index
    %c0_96 = arith.constant 0 : index
    %135 = vector.load %arg13[%c0_95, %c0_96] : memref<1x32xf32, #tpu.memory_space<vmem>>, vector<1x32xf32>
    %cst_97 = arith.constant dense<0.000000e+00> : vector<8xf32>
    %136 = vector.multi_reduction <add>, %133, %cst_97 [1] : vector<8x32xf32> to vector<8xf32>
    %137 = vector.shape_cast %136 : vector<8xf32> to vector<8x1xf32>
    %cst_98 = arith.constant 3.200000e+01 : f32
    %138 = vector.broadcast %cst_98 : f32 to vector<8x1xf32>
    %139 = arith.divf %137, %138 : vector<8x1xf32>
    %140 = vector.broadcast %139 : vector<8x1xf32> to vector<8x32xf32>
    %141 = arith.subf %133, %140 : vector<8x32xf32>
    %142 = arith.mulf %141, %141 : vector<8x32xf32>
    %cst_99 = arith.constant dense<0.000000e+00> : vector<8xf32>
    %143 = vector.multi_reduction <add>, %142, %cst_99 [1] : vector<8x32xf32> to vector<8xf32>
    %144 = vector.shape_cast %143 : vector<8xf32> to vector<8x1xf32>
    %cst_100 = arith.constant 3.200000e+01 : f32
    %145 = vector.broadcast %cst_100 : f32 to vector<8x1xf32>
    %146 = arith.divf %144, %145 : vector<8x1xf32>
    %147 = vector.broadcast %139 : vector<8x1xf32> to vector<8x32xf32>
    %148 = arith.subf %133, %147 : vector<8x32xf32>
    %cst_101 = arith.constant 9.99999974E-6 : f32
    %149 = vector.broadcast %cst_101 : f32 to vector<8x1xf32>
    %150 = arith.addf %146, %149 : vector<8x1xf32>
    %151 = math.rsqrt %150 : vector<8x1xf32>
    %152 = vector.broadcast %151 : vector<8x1xf32> to vector<8x32xf32>
    %153 = arith.mulf %148, %152 : vector<8x32xf32>
    %154 = vector.broadcast %134 : vector<1x32xf32> to vector<8x32xf32>
    %155 = arith.mulf %153, %154 : vector<8x32xf32>
    %156 = vector.broadcast %135 : vector<1x32xf32> to vector<8x32xf32>
    %157 = arith.addf %155, %156 : vector<8x32xf32>
    %c0_102 = arith.constant 0 : index
    %c0_103 = arith.constant 0 : index
    %158 = vector.load %arg14[%c0_102, %c0_103] : memref<1x32xf32, #tpu.memory_space<vmem>>, vector<1x32xf32>
    %c0_104 = arith.constant 0 : index
    %c0_105 = arith.constant 0 : index
    %159 = vector.load %arg15[%c0_104, %c0_105] : memref<1x32xf32, #tpu.memory_space<vmem>>, vector<1x32xf32>
    %cst_106 = arith.constant dense<0.000000e+00> : vector<8xf32>
    %160 = vector.multi_reduction <add>, %157, %cst_106 [1] : vector<8x32xf32> to vector<8xf32>
    %161 = vector.shape_cast %160 : vector<8xf32> to vector<8x1xf32>
    %cst_107 = arith.constant 3.200000e+01 : f32
    %162 = vector.broadcast %cst_107 : f32 to vector<8x1xf32>
    %163 = arith.divf %161, %162 : vector<8x1xf32>
    %164 = vector.broadcast %163 : vector<8x1xf32> to vector<8x32xf32>
    %165 = arith.subf %157, %164 : vector<8x32xf32>
    %166 = arith.mulf %165, %165 : vector<8x32xf32>
    %cst_108 = arith.constant dense<0.000000e+00> : vector<8xf32>
    %167 = vector.multi_reduction <add>, %166, %cst_108 [1] : vector<8x32xf32> to vector<8xf32>
    %168 = vector.shape_cast %167 : vector<8xf32> to vector<8x1xf32>
    %cst_109 = arith.constant 3.200000e+01 : f32
    %169 = vector.broadcast %cst_109 : f32 to vector<8x1xf32>
    %170 = arith.divf %168, %169 : vector<8x1xf32>
    %171 = vector.broadcast %163 : vector<8x1xf32> to vector<8x32xf32>
    %172 = arith.subf %157, %171 : vector<8x32xf32>
    %cst_110 = arith.constant 9.99999974E-6 : f32
    %173 = vector.broadcast %cst_110 : f32 to vector<8x1xf32>
    %174 = arith.addf %170, %173 : vector<8x1xf32>
    %175 = math.rsqrt %174 : vector<8x1xf32>
    %176 = vector.broadcast %175 : vector<8x1xf32> to vector<8x32xf32>
    %177 = arith.mulf %172, %176 : vector<8x32xf32>
    %178 = vector.broadcast %158 : vector<1x32xf32> to vector<8x32xf32>
    %179 = arith.mulf %177, %178 : vector<8x32xf32>
    %180 = vector.broadcast %159 : vector<1x32xf32> to vector<8x32xf32>
    %181 = arith.addf %179, %180 : vector<8x32xf32>
    %c0_111 = arith.constant 0 : index
    %c0_112 = arith.constant 0 : index
    %c0_113 = arith.constant 0 : index
    %182 = vector.load %arg16[%c0_111, %c0_112, %c0_113] : memref<1x8x32xf32, #tpu.memory_space<vmem>>, vector<1x8x32xf32>
    %183 = vector.shape_cast %182 : vector<1x8x32xf32> to vector<8x32xf32>
    %184 = vector.shape_cast %181 : vector<8x32xf32> to vector<1x8x32xf32>
    tpu.vector_store %arg16[%c0_111, %c0_112, %c0_113], %184 {strides = array<i32>} : memref<1x8x32xf32, #tpu.memory_space<vmem>>, vector<1x8x32xf32>,
    return
  }
  func.func @transform_0(%arg0: i32) -> (i32, i32, i32) {
    %c0_i32 = arith.constant 0 : i32
    %c0_i32_0 = arith.constant 0 : i32
    %c0_i32_1 = arith.constant 0 : i32
    return %arg0, %c0_i32, %c0_i32_0 : i32, i32, i32
  }
  func.func @transform_1(%arg0: i32) -> (i32, i32, i32, i32) {
    %c0_i32 = arith.constant 0 : i32
    %c0_i32_0 = arith.constant 0 : i32
    %c0_i32_1 = arith.constant 0 : i32
    %c0_i32_2 = arith.constant 0 : i32
    %c0_i32_3 = arith.constant 0 : i32
    return %c0_i32, %c0_i32_0, %c0_i32_1, %c0_i32_2 : i32, i32, i32, i32
  }
  func.func @transform_2(%arg0: i32) -> (i32, i32, i32, i32) {
    %c0_i32 = arith.constant 0 : i32
    %c0_i32_0 = arith.constant 0 : i32
    %c0_i32_1 = arith.constant 0 : i32
    %c0_i32_2 = arith.constant 0 : i32
    %c0_i32_3 = arith.constant 0 : i32
    return %c0_i32, %c0_i32_0, %c0_i32_1, %c0_i32_2 : i32, i32, i32, i32
  }
  func.func @transform_3(%arg0: i32) -> (i32, i32, i32) {
    %c0_i32 = arith.constant 0 : i32
    %c0_i32_0 = arith.constant 0 : i32
    %c0_i32_1 = arith.constant 0 : i32
    %c0_i32_2 = arith.constant 0 : i32
    return %c0_i32, %c0_i32_0, %c0_i32_1 : i32, i32, i32
  }
  func.func @transform_4(%arg0: i32) -> (i32, i32) {
    %c0_i32 = arith.constant 0 : i32
    %c0_i32_0 = arith.constant 0 : i32
    %c0_i32_1 = arith.constant 0 : i32
    return %c0_i32, %c0_i32_0 : i32, i32
  }
  func.func @transform_5(%arg0: i32) -> (i32, i32) {
    %c0_i32 = arith.constant 0 : i32
    %c0_i32_0 = arith.constant 0 : i32
    %c0_i32_1 = arith.constant 0 : i32
    return %c0_i32, %c0_i32_0 : i32, i32
  }
  func.func @transform_6(%arg0: i32) -> (i32, i32) {
    %c0_i32 = arith.constant 0 : i32
    %c0_i32_0 = arith.constant 0 : i32
    %c0_i32_1 = arith.constant 0 : i32
    return %c0_i32, %c0_i32_0 : i32, i32
  }
  func.func @transform_7(%arg0: i32) -> (i32, i32) {
    %c0_i32 = arith.constant 0 : i32
    %c0_i32_0 = arith.constant 0 : i32
    %c0_i32_1 = arith.constant 0 : i32
    return %c0_i32, %c0_i32_0 : i32, i32
  }
  func.func @transform_8(%arg0: i32) -> (i32, i32) {
    %c0_i32 = arith.constant 0 : i32
    %c0_i32_0 = arith.constant 0 : i32
    %c0_i32_1 = arith.constant 0 : i32
    return %c0_i32, %c0_i32_0 : i32, i32
  }
  func.func @transform_9(%arg0: i32) -> (i32, i32) {
    %c0_i32 = arith.constant 0 : i32
    %c0_i32_0 = arith.constant 0 : i32
    %c0_i32_1 = arith.constant 0 : i32
    return %c0_i32, %c0_i32_0 : i32, i32
  }
  func.func @transform_10(%arg0: i32) -> (i32, i32) {
    %c0_i32 = arith.constant 0 : i32
    %c0_i32_0 = arith.constant 0 : i32
    %c0_i32_1 = arith.constant 0 : i32
    return %c0_i32, %c0_i32_0 : i32, i32
  }
  func.func @transform_11(%arg0: i32) -> (i32, i32) {
    %c0_i32 = arith.constant 0 : i32
    %c0_i32_0 = arith.constant 0 : i32
    %c0_i32_1 = arith.constant 0 : i32
    return %c0_i32, %c0_i32_0 : i32, i32
  }
  func.func @transform_12(%arg0: i32) -> (i32, i32) {
    %c0_i32 = arith.constant 0 : i32
    %c0_i32_0 = arith.constant 0 : i32
    %c0_i32_1 = arith.constant 0 : i32
    return %c0_i32, %c0_i32_0 : i32, i32
  }
  func.func @transform_13(%arg0: i32) -> (i32, i32) {
    %c0_i32 = arith.constant 0 : i32
    %c0_i32_0 = arith.constant 0 : i32
    %c0_i32_1 = arith.constant 0 : i32
    return %c0_i32, %c0_i32_0 : i32, i32
  }
  func.func @transform_14(%arg0: i32) -> (i32, i32) {
    %c0_i32 = arith.constant 0 : i32
    %c0_i32_0 = arith.constant 0 : i32
    %c0_i32_1 = arith.constant 0 : i32
    return %c0_i32, %c0_i32_0 : i32, i32
  }
  func.func @transform_15(%arg0: i32) -> (i32, i32, i32) {
    %c0_i32 = arith.constant 0 : i32
    %c0_i32_0 = arith.constant 0 : i32
    %c0_i32_1 = arith.constant 0 : i32
    return %arg0, %c0_i32, %c0_i32_0 : i32, i32, i32
  }
}

</mosaic_0001>

<llo_original>
// kernel: forward.9
$region0: #{forward.9}
  #allocation0 [shape = 'u32[]', space=smem, size = 0x4, offset = 0x4, fixed_abs, tag = 'smem constant byte address 0x4 - core index']
  #allocation1 [shape = 'u32[144,128]{1,0:T(1,128)}', space=vmem, size = 0x12000, scoped, tag = 'internal scratch']
  %s0 = inlined_call_operand.vmem [shape: f32[2,8,32], index: 0, kind: input, shape index: {}]
  %s1 = inlined_call_operand.vmem [shape: f32[1,32], index: 1, kind: input, shape index: {}]
  %s2 = inlined_call_operand.vmem [shape: f32[1,32], index: 2, kind: input, shape index: {}]
  %s3 = inlined_call_operand.vmem [shape: bf16[32,48], index: 3, kind: input, shape index: {}]
  %s4 = inlined_call_operand.vmem [shape: f32[1,48], index: 4, kind: input, shape index: {}]
  %s5 = inlined_call_operand.hbm [shape: f32[2,8,48], index: 5, kind: output, shape index: {}]
  %s6 = sld [smem:[#allocation0]]
  $region53: #{forward.9} parent=0
    _
  %s8 = ssub.s32 1, %s6
  %s9 = scalar_select 0, %s8, %s6
  $region1: #{forward.9} parent=0
    #allocation2 [shape = 'u8[8192]{0}', space=vmem, size = 0x2000, scoped, tag = 'output window, operand 0']
    #allocation3 [shape = 's32[2]{0}', space=sflag, size = 0x8, scoped, tag = 'scoped memory for forward.9']
    %10 = vsyncpa [#allocation3], 0
    %s11 = scalar_lea.sflag [#allocation3], 1
    %12 = vsyncpa %s11, 0
    loop: start=0, step=1, limit=4
    $region2: #{forward.9} parent=1 // loop_pre_header
      _
    $region3: #{forward.9} parent=1 // loop_header
      %s14 = sphi 0, %s18
      %p15 = scmp.ge.s32.totalorder %s14, 4
      %s24 = sphi 0, %s26
      %s27 = sphi 0, %s24
      %s28 = sphi 0, %s27
      %s44 = sphi 0, %s28
      %s48 = sphi 0, %s48
      %s50 = sphi 0, %s48
      %s51 = sphi 0, %s50
      %s65 = sphi 0, %s51
      %s69 = sphi 0, %s69
      %s71 = sphi 0, %s69
      %s72 = sphi 0, %s71
      %s86 = sphi 0, %s72
      %s90 = sphi 0, %s90
      %s92 = sphi 0, %s90
      %s93 = sphi 0, %s92
      %s107 = sphi 0, %s93
      %s111 = sphi 0, %s111
      %s113 = sphi 0, %s111
      %s114 = sphi 0, %s113
      %s128 = sphi 0, %s114
      %s134 = sphi 0, %s136
      %s137 = sphi 0, %s134
      %s138 = sphi 0, %s137
      %s154 = sphi 0, %s138
    $region4: #{forward.9} parent=1 // loop_header_branch
      %17 = sbr.rel (%p15) target = $region8
    $region5: #{forward.9} parent=1 // loop_body
      %s19 = ssub.s32 %s14, 1
      %s20 = ssub.s32 %s14, 2
      %s21 = sadd.s32 %s14, 1
      %s22 = ssub.s32 %s14, %s21
      %p23 = scmp.eq.s32.totalorder %s22, 0
      %s25 = sadd.s32 %s24, 1
      %s26 = scalar_select %p23, %s24, %s25
      %p29 = pneg %p23
      %p30 = scmp.eq.s32.totalorder %s14, 1
      %p31 = por %p29, %p30
      %p32 = scmp.ne.s32.totalorder %s24, %s27
      %p33 = scmp.eq.s32.totalorder %s14, 0
      %p34 = por %p32, %p33
      %p35 = scmp.ne.s32.totalorder %s24, %s27
      %p36 = scmp.eq.s32.totalorder %s19, 1
      %p37 = por %p35, %p36
      %p38 = scmp.ne.s32.totalorder %s27, %s28
      %p39 = scmp.eq.s32.totalorder %s19, 0
      %p40 = por %p38, %p39
      %p41 = scmp.ne.s32.totalorder %s27, %s28
      %p42 = scmp.eq.s32.totalorder %s20, 1
      %p43 = por %p41, %p42
      %p45 = scmp.ne.s32.totalorder %s28, %s44
      %p46 = scmp.eq.s32.totalorder %s20, 0
      %p47 = por %p45, %p46
      %s49 = sadd.s32 %s48, 1
      %p52 = scmp.eq.s32.totalorder %s14, 1
      %p53 = scmp.ne.s32.totalorder %s48, %s50
      %p54 = scmp.eq.s32.totalorder %s14, 0
      %p55 = por %p53, %p54
      %p56 = scmp.ne.s32.totalorder %s48, %s50
      %p57 = scmp.eq.s32.totalorder %s19, 1
      %p58 = por %p56, %p57
      %p59 = scmp.ne.s32.totalorder %s50, %s51
      %p60 = scmp.eq.s32.totalorder %s19, 0
      %p61 = por %p59, %p60
      %p62 = scmp.ne.s32.totalorder %s50, %s51
      %p63 = scmp.eq.s32.totalorder %s20, 1
      %p64 = por %p62, %p63
      %p66 = scmp.ne.s32.totalorder %s51, %s65
      %p67 = scmp.eq.s32.totalorder %s20, 0
      %p68 = por %p66, %p67
      %s70 = sadd.s32 %s69, 1
      %p73 = scmp.eq.s32.totalorder %s14, 1
      %p74 = scmp.ne.s32.totalorder %s69, %s71
      %p75 = scmp.eq.s32.totalorder %s14, 0
      %p76 = por %p74, %p75
      %p77 = scmp.ne.s32.totalorder %s69, %s71
      %p78 = scmp.eq.s32.totalorder %s19, 1
      %p79 = por %p77, %p78
      %p80 = scmp.ne.s32.totalorder %s71, %s72
      %p81 = scmp.eq.s32.totalorder %s19, 0
      %p82 = por %p80, %p81
      %p83 = scmp.ne.s32.totalorder %s71, %s72
      %p84 = scmp.eq.s32.totalorder %s20, 1
      %p85 = por %p83, %p84
      %p87 = scmp.ne.s32.totalorder %s72, %s86
      %p88 = scmp.eq.s32.totalorder %s20, 0
      %p89 = por %p87, %p88
      %s91 = sadd.s32 %s90, 1
      %p94 = scmp.eq.s32.totalorder %s14, 1
      %p95 = scmp.ne.s32.totalorder %s90, %s92
      %p96 = scmp.eq.s32.totalorder %s14, 0
      %p97 = por %p95, %p96
      %p98 = scmp.ne.s32.totalorder %s90, %s92
      %p99 = scmp.eq.s32.totalorder %s19, 1
      %p100 = por %p98, %p99
      %p101 = scmp.ne.s32.totalorder %s92, %s93
      %p102 = scmp.eq.s32.totalorder %s19, 0
      %p103 = por %p101, %p102
      %p104 = scmp.ne.s32.totalorder %s92, %s93
      %p105 = scmp.eq.s32.totalorder %s20, 1
      %p106 = por %p104, %p105
      %p108 = scmp.ne.s32.totalorder %s93, %s107
      %p109 = scmp.eq.s32.totalorder %s20, 0
      %p110 = por %p108, %p109
      %s112 = sadd.s32 %s111, 1
      %p115 = scmp.eq.s32.totalorder %s14, 1
      %p116 = scmp.ne.s32.totalorder %s111, %s113
      %p117 = scmp.eq.s32.totalorder %s14, 0
      %p118 = por %p116, %p117
      %p119 = scmp.ne.s32.totalorder %s111, %s113
      %p120 = scmp.eq.s32.totalorder %s19, 1
      %p121 = por %p119, %p120
      %p122 = scmp.ne.s32.totalorder %s113, %s114
      %p123 = scmp.eq.s32.totalorder %s19, 0
      %p124 = por %p122, %p123
      %p125 = scmp.ne.s32.totalorder %s113, %s114
      %p126 = scmp.eq.s32.totalorder %s20, 1
      %p127 = por %p125, %p126
      %p129 = scmp.ne.s32.totalorder %s114, %s128
      %p130 = scmp.eq.s32.totalorder %s20, 0
      %p131 = por %p129, %p130
      %s132 = ssub.s32 %s14, %s21
      %p133 = scmp.eq.s32.totalorder %s132, 0
      %s135 = sadd.s32 %s134, 1
      %s136 = scalar_select %p133, %s134, %s135
      %p139 = pneg %p133
      %p140 = scmp.eq.s32.totalorder %s14, 1
      %p141 = por %p139, %p140
      %p142 = scmp.ne.s32.totalorder %s134, %s137
      %p143 = scmp.eq.s32.totalorder %s14, 0
      %p144 = por %p142, %p143
      %p145 = scmp.ne.s32.totalorder %s134, %s137
      %p146 = scmp.eq.s32.totalorder %s19, 1
      %p147 = por %p145, %p146
      %p148 = scmp.ne.s32.totalorder %s137, %s138
      %p149 = scmp.eq.s32.totalorder %s19, 0
      %p150 = por %p148, %p149
      %p151 = scmp.ne.s32.totalorder %s137, %s138
      %p152 = scmp.eq.s32.totalorder %s20, 1
      %p153 = por %p151, %p152
      %p155 = scmp.ne.s32.totalorder %s138, %s154
      %p156 = scmp.eq.s32.totalorder %s20, 0
      %p157 = por %p155, %p156
      %p158 = scmp.le.s32.totalorder 1, %s14
      %p159 = scmp.lt.s32.totalorder %s14, 3
      %p160 = pnand %p158, %p159
      %p161 = pneg %p160
      // Predicated region
      $region9: #{forward.9} parent=5 // pred_check
        _
      $region10: #{forward.9} parent=5 // pred_check_branch
        %163 = sbr.rel (%p160) target = $region12
      $region11: #{forward.9} parent=5 // pred_region
        %s164 = ssub.s32 %s14, 1
        // Predicated region
        $region13: #{forward.9} parent=11 // pred_check
          %p165 = pneg %p61
        $region14: #{forward.9} parent=11 // pred_check_branch
          %167 = sbr.rel (%p165) target = $region16
        $region15: #{forward.9} parent=11 // pred_region
          _
        $region16: #{forward.9} parent=11 // pred_fallthru
          _
        // Predicated region
        $region17: #{forward.9} parent=11 // pred_check
          %p168 = pneg %p82
        $region18: #{forward.9} parent=11 // pred_check_branch
          %170 = sbr.rel (%p168) target = $region20
        $region19: #{forward.9} parent=11 // pred_region
          _
        $region20: #{forward.9} parent=11 // pred_fallthru
          _
        // Predicated region
        $region21: #{forward.9} parent=11 // pred_check
          %p171 = pneg %p103
        $region22: #{forward.9} parent=11 // pred_check_branch
          %173 = sbr.rel (%p171) target = $region24
        $region23: #{forward.9} parent=11 // pred_region
          _
        $region24: #{forward.9} parent=11 // pred_fallthru
          _
        // Predicated region
        $region25: #{forward.9} parent=11 // pred_check
          %p174 = pneg %p124
        $region26: #{forward.9} parent=11 // pred_check_branch
          %176 = sbr.rel (%p174) target = $region28
        $region27: #{forward.9} parent=11 // pred_region
          _
        $region28: #{forward.9} parent=11 // pred_fallthru
          _
      $region12: #{forward.9} parent=5 // pred_fallthru
        _
      %p177 = scmp.lt.s32.totalorder %s14, 2
      // Predicated region
      $region29: #{forward.9} parent=5 // pred_check
        %p178 = pneg %p177
      $region30: #{forward.9} parent=5 // pred_check_branch
        %180 = sbr.rel (%p178) target = $region32
      $region31: #{forward.9} parent=5 // pred_region
        // Predicated region
        $region33: #{forward.9} parent=31 // pred_check
          %p181 = pneg %p34
        $region34: #{forward.9} parent=31 // pred_check_branch
          %183 = sbr.rel (%p181) target = $region36
        $region35: #{forward.9} parent=31 // pred_region
          %p184 = scmp.lt.s32.totalorder %s14, 1
          %s185 = scalar_select %p184, %s14, 1
          %s186 = smul.addr %s185, 8
          %s187 = scalar_lea.vmem %s0, %s186
        $region36: #{forward.9} parent=31 // pred_fallthru
          _
      $region32: #{forward.9} parent=5 // pred_fallthru
        _
      %p188 = scmp.le.s32.totalorder 1, %s14
      %p189 = scmp.lt.s32.totalorder %s14, 3
      %p190 = pnand %p188, %p189
      %p191 = pneg %p190
      // Predicated region
      $region37: #{forward.9} parent=5 // pred_check
        _
      $region38: #{forward.9} parent=5 // pred_check_branch
        %193 = sbr.rel (%p190) target = $region40
      $region39: #{forward.9} parent=5 // pred_region
        %s194 = ssub.s32 %s14, 1
        %p195 = scmp.lt.s32.totalorder %s19, 1
        %s196 = scalar_select %p195, %s19, 1
        %s197 = smul.addr %s196, 8
        %s198 = scalar_lea.vmem %s0, %s197
        %p199 = pneg %p40
        %p200 = pneg %p37
        %p201 = pneg %p61
        %p202 = pneg %p58
        %p203 = pneg %p82
        %p204 = pneg %p79
        %p205 = pneg %p103
        %p206 = pneg %p100
        %p207 = pneg %p124
        %p208 = pneg %p121
        %p209 = pneg %p150
        %p210 = pneg %p147
        %s211 = sand.u32 %s137, 1
        %s212 = scalar_lea.sflag [#allocation3], %s211
        %s213 = sand.u32 %s137, 1
        %s214 = smul.addr %s213, 8
        %s215 = scalar_lea.vmem [#allocation2], %s214
        %p216 = scmp.lt.s32.totalorder %s19, 1
        %s217 = scalar_select %p216, %s19, 1
        %s218 = smul.addr %s217, 8
        %s219 = scalar_lea.vmem %s0, %s218
        %v221 = vld [vmem:[%s219] sm:$0xff]
        %v222 = vld [vmem:[%s1] sm:$0x1]
        %v223 = vld [vmem:[%s2] sm:$0x1]
        %vm224 = vcmask 261120
        %v225 = vsel %vm224, %v221, 0.0
        %226 = vadd.xlane.f32.xlu0 %v225
        %v227 = vpop.xlane.xlu0 %226
        %v228 = vrcp.pop 32.0
        %v229 = vmul.f32 %v227, %v228
        %v230 = vsub.f32 %v221, %v229
        %v231 = vmul.f32 %v230, %v230
        %v232 = vsel %vm224, %v231, 0.0
        %233 = vadd.xlane.f32.xlu0 %v232
        %v234 = vpop.xlane.xlu0 %233
        %v235 = vmul.f32 %v234, %v228
        %v236 = vadd.f32 %v235, 1e-05
        %v237 = vrsqrt.pop %v236
        %v238 = vmul.f32 %v230, %v237
        %v240 = vlaneseq
        %v241 = vshrl.u32 %v240, 7
        %v242 = vsub.s32 0, %v241
        %v243 = vrot.slane %v222, %v242
        %v245 = vmul.f32 %v238, %v243
        %v247 = vlaneseq
        %v248 = vshrl.u32 %v247, 7
        %v249 = vsub.s32 0, %v248
        %v250 = vrot.slane %v223, %v249
        %v252 = vadd.f32 %v245, %v250
        %v253 = vpack.c.bf16 %v252, %v252
        %v254 = vld [vmem:[%s3] sm:$0xf]
        %v255 = vld [vmem:[%s3 + $0x4] sm:$0xf]
        %v256 = vld [vmem:[%s3 + $0x8] sm:$0xf]
        %v257 = vld [vmem:[%s3 + $0xc] sm:$0xf]
        %v258 = vld [vmem:[%s4] sm:$0x1]
        %v260 = vlaneseq
        %v261 = vshrl.u32 %v260, 7
        %v262 = vsub.s32 0, %v261
        %v263 = vrot.slane %v258, %v262
        %v269 = vunpack.c.l.b16 %v254
        %v270 = vunpack.c.l.b16 %v255
        %v271 = vunpack.c.l.b16 %v256
        %v272 = vunpack.c.l.b16 %v257
        %v273 = vpack.c.b16 %v270, %v269
        %v274 = vpack.c.b16 %v272, %v271
        %v278 = vsel %vm224, %v253, 0
        %280 = vmatprep.subr.bf16.mxu0 0
        %281 = vmatpush1.bf16.msra.mxu0 0
        %282 = vmatprep.subr.bf16.mxu0 0
        %283 = vmatpush1.bf16.msra.mxu0 0
        %284 = vmatprep.subr.bf16.mxu0 0
        %285 = vmatpush1.bf16.msra.mxu0 0
        %286 = vmatprep.subr.bf16.mxu0 0
        %287 = vmatpush1.bf16.msra.mxu0 0
        %288 = vmatprep.subr.bf16.mxu0 0
        %289 = vmatpush1.bf16.msra.mxu0 0
        %290 = vmatprep.subr.bf16.mxu0 0
        %291 = vmatpush1.bf16.msra.mxu0 0
        %292 = vmatprep.subr.bf16.mxu0 0
        %293 = vmatpush1.bf16.msra.mxu0 %v274
        %294 = vmatprep.subr.bf16.mxu0 0
        %295 = vmatpush1.bf16.msra.mxu0 %v273
        %296 = vmatprep.subr.bf16.mxu0 0
        %297 = vmatpush2.bf16.msra.mxu0 0
        %298 = vmatprep.subr.bf16.mxu0 0
        %299 = vmatpush2.bf16.msra.mxu0 0
        %300 = vmatprep.subr.bf16.mxu0 0
        %301 = vmatpush2.bf16.msra.mxu0 0
        %302 = vmatprep.subr.bf16.mxu0 0
        %303 = vmatpush2.bf16.msra.mxu0 0
        %304 = vmatprep.subr.bf16.mxu0 0
        %305 = vmatpush2.bf16.msra.mxu0 0
        %306 = vmatprep.subr.bf16.mxu0 0
        %307 = vmatpush2.bf16.msra.mxu0 0
        %308 = vmatprep.subr.bf16.mxu0 0
        %309 = vmatpush2.bf16.msra.mxu0 0
        %310 = vmatprep.subr.bf16.mxu0 0
        %311 = vmatpush2.bf16.msra.mxu0 0
        %312 = vmatprep.mubr.bf16.mxu0 0
        %313 = vmatmul.mubr.bf16.gmra.mxu0 %v278
        %v314 = vpop.f32.mrf.mxu0
        %v315 = vadd.f32 %v263, %v314
        %v316 = vpop.f32.mrf.mxu0
        %v317 = vpop.f32.mrf.mxu0
        %v318 = vpop.f32.mrf.mxu0
        %319 = vdwg.mxu0
        %vm320 = vcmask 392192
        %321 = vst.msk [vmem:[%s215] sm:$0xff] %vm320, %v315
        %s322 = sand.u32 %s137, 1
        %s323 = scalar_lea.sflag [#allocation3], %s322
        %s324 = sand.u32 %s137, 1
        %s325 = smul.addr %s324, 8
        %s326 = scalar_lea.vmem [#allocation2], %s325
        // Predicated region
        $region41: #{forward.9} parent=39 // pred_check
          %p327 = pneg %p147
        $region42: #{forward.9} parent=39 // pred_check_branch
          %329 = sbr.rel (%p327) target = $region44
        $region43: #{forward.9} parent=39 // pred_region
          %s331 = ssub.s32 128, 128
          %332 = vsyncadd %s323, %s331
          %s333 = smul.addr %s19, 128
          %s334 = scalar_lea.hbm %s5, %s333
          %s336 = sshll.u32 %s326, 4
          %s337 = int_to_ptr.vmem [resolvable:$true] %s336
          %339 = dma.vmem_to_hbm [thread:$0]  %s337, 128, %s334, %s323
        $region44: #{forward.9} parent=39 // pred_fallthru
          _
      $region40: #{forward.9} parent=5 // pred_fallthru
        _
      %p340 = scmp.le.s32.totalorder 2, %s14
      // Predicated region
      $region45: #{forward.9} parent=5 // pred_check
        %p341 = pneg %p340
      $region46: #{forward.9} parent=5 // pred_check_branch
        %343 = sbr.rel (%p341) target = $region48
      $region47: #{forward.9} parent=5 // pred_region
        %s344 = ssub.s32 %s14, 2
        // Predicated region
        $region49: #{forward.9} parent=47 // pred_check
          %p345 = pneg %p153
        $region50: #{forward.9} parent=47 // pred_check_branch
          %347 = sbr.rel (%p345) target = $region52
        $region51: #{forward.9} parent=47 // pred_region
          %s348 = sand.u32 %s138, 1
          %s349 = scalar_lea.sflag [#allocation3], %s348
          %s350 = sand.u32 %s138, 1
          %s351 = smul.addr %s350, 8
          %s352 = scalar_lea.vmem [#allocation2], %s351
          %353 = dma.done %s349, 128
        $region52: #{forward.9} parent=47 // pred_fallthru
          _
      $region48: #{forward.9} parent=5 // pred_fallthru
        _
    $region6: #{forward.9} parent=1 // loop_footer
      %s18 = sadd.s32 1, %s14
    $region7: #{forward.9} parent=1 // loop_footer_branch
      %13 = sbr.rel target = $region3
    $region8: #{forward.9} parent=1 // loop_exit
      _
    %354 = vsyncpa [#allocation3], 1
    %s355 = scalar_lea.sflag [#allocation3], 1
    %356 = vsyncpa %s355, 1

// kernel: forward.5
$region0: #{forward.5}
  #allocation0 [shape = 'u32[]', space=smem, size = 0x4, offset = 0x4, fixed_abs, tag = 'smem constant byte address 0x4 - core index']
  #allocation1 [shape = 'u32[144,128]{1,0:T(1,128)}', space=vmem, size = 0x12000, scoped, tag = 'internal scratch']
  %s0 = inlined_call_operand.vmem [shape: f32[2,8,32], index: 0, kind: input, shape index: {}]
  %s1 = inlined_call_operand.vmem [shape: bf16[3,2,32,16], index: 1, kind: input, shape index: {}]
  %s2 = inlined_call_operand.vmem [shape: f32[3,2,1,16], index: 2, kind: input, shape index: {}]
  %s3 = inlined_call_operand.vmem [shape: bf16[2,16,32], index: 3, kind: input, shape index: {}]
  %s4 = inlined_call_operand.vmem [shape: f32[1,32], index: 4, kind: input, shape index: {}]
  %s5 = inlined_call_operand.vmem [shape: f32[1,32], index: 5, kind: input, shape index: {}]
  %s6 = inlined_call_operand.vmem [shape: f32[1,32], index: 6, kind: input, shape index: {}]
  %s7 = inlined_call_operand.vmem [shape: bf16[32,64], index: 7, kind: input, shape index: {}]
  %s8 = inlined_call_operand.vmem [shape: f32[1,64], index: 8, kind: input, shape index: {}]
  %s9 = inlined_call_operand.vmem [shape: bf16[64,32], index: 9, kind: input, shape index: {}]
  %s10 = inlined_call_operand.vmem [shape: f32[1,32], index: 10, kind: input, shape index: {}]
  %s11 = inlined_call_operand.vmem [shape: f32[1,32], index: 11, kind: input, shape index: {}]
  %s12 = inlined_call_operand.vmem [shape: f32[1,32], index: 12, kind: input, shape index: {}]
  %s13 = inlined_call_operand.vmem [shape: f32[1,32], index: 13, kind: input, shape index: {}]
  %s14 = inlined_call_operand.vmem [shape: f32[1,32], index: 14, kind: input, shape index: {}]
  %s15 = inlined_call_operand.vmem [shape: f32[2,8,32], index: 15, kind: output, shape index: {}]
  %s16 = sld [smem:[#allocation0]]
  $region93: #{forward.5} parent=0
    _
  %s18 = ssub.s32 1, %s16
  %s19 = scalar_select 0, %s18, %s16
  loop: start=0, step=1, limit=4
  $region2: #{forward.5} parent=0 // loop_pre_header
    _
  $region3: #{forward.5} parent=0 // loop_header
    %s21 = sphi 0, %s25
    %p22 = scmp.ge.s32.totalorder %s21, 4
    %s31 = sphi 0, %s33
    %s34 = sphi 0, %s31
    %s35 = sphi 0, %s34
    %s51 = sphi 0, %s35
    %s55 = sphi 0, %s55
    %s57 = sphi 0, %s55
    %s58 = sphi 0, %s57
    %s72 = sphi 0, %s58
    %s76 = sphi 0, %s76
    %s78 = sphi 0, %s76
    %s79 = sphi 0, %s78
    %s93 = sphi 0, %s79
    %s97 = sphi 0, %s97
    %s99 = sphi 0, %s97
    %s100 = sphi 0, %s99
    %s114 = sphi 0, %s100
    %s118 = sphi 0, %s118
    %s120 = sphi 0, %s118
    %s121 = sphi 0, %s120
    %s135 = sphi 0, %s121
    %s139 = sphi 0, %s139
    %s141 = sphi 0, %s139
    %s142 = sphi 0, %s141
    %s156 = sphi 0, %s142
    %s160 = sphi 0, %s160
    %s162 = sphi 0, %s160
    %s163 = sphi 0, %s162
    %s177 = sphi 0, %s163
    %s181 = sphi 0, %s181
    %s183 = sphi 0, %s181
    %s184 = sphi 0, %s183
    %s198 = sphi 0, %s184
    %s202 = sphi 0, %s202
    %s204 = sphi 0, %s202
    %s205 = sphi 0, %s204
    %s219 = sphi 0, %s205
    %s223 = sphi 0, %s223
    %s225 = sphi 0, %s223
    %s226 = sphi 0, %s225
    %s240 = sphi 0, %s226
    %s244 = sphi 0, %s244
    %s246 = sphi 0, %s244
    %s247 = sphi 0, %s246
    %s261 = sphi 0, %s247
    %s265 = sphi 0, %s265
    %s267 = sphi 0, %s265
    %s268 = sphi 0, %s267
    %s282 = sphi 0, %s268
    %s286 = sphi 0, %s286
    %s288 = sphi 0, %s286
    %s289 = sphi 0, %s288
    %s303 = sphi 0, %s289
    %s307 = sphi 0, %s307
    %s309 = sphi 0, %s307
    %s310 = sphi 0, %s309
    %s324 = sphi 0, %s310
    %s328 = sphi 0, %s328
    %s330 = sphi 0, %s328
    %s331 = sphi 0, %s330
    %s345 = sphi 0, %s331
    %s351 = sphi 0, %s353
    %s354 = sphi 0, %s351
    %s355 = sphi 0, %s354
    %s371 = sphi 0, %s355
  $region4: #{forward.5} parent=0 // loop_header_branch
    %24 = sbr.rel (%p22) target = $region8
  $region5: #{forward.5} parent=0 // loop_body
    %s26 = ssub.s32 %s21, 1
    %s27 = ssub.s32 %s21, 2
    %s28 = sadd.s32 %s21, 1
    %s29 = ssub.s32 %s21, %s28
    %p30 = scmp.eq.s32.totalorder %s29, 0
    %s32 = sadd.s32 %s31, 1
    %s33 = scalar_select %p30, %s31, %s32
    %p36 = pneg %p30
    %p37 = scmp.eq.s32.totalorder %s21, 1
    %p38 = por %p36, %p37
    %p39 = scmp.ne.s32.totalorder %s31, %s34
    %p40 = scmp.eq.s32.totalorder %s21, 0
    %p41 = por %p39, %p40
    %p42 = scmp.ne.s32.totalorder %s31, %s34
    %p43 = scmp.eq.s32.totalorder %s26, 1
    %p44 = por %p42, %p43
    %p45 = scmp.ne.s32.totalorder %s34, %s35
    %p46 = scmp.eq.s32.totalorder %s26, 0
    %p47 = por %p45, %p46
    %p48 = scmp.ne.s32.totalorder %s34, %s35
    %p49 = scmp.eq.s32.totalorder %s27, 1
    %p50 = por %p48, %p49
    %p52 = scmp.ne.s32.totalorder %s35, %s51
    %p53 = scmp.eq.s32.totalorder %s27, 0
    %p54 = por %p52, %p53
    %s56 = sadd.s32 %s55, 1
    %p59 = scmp.eq.s32.totalorder %s21, 1
    %p60 = scmp.ne.s32.totalorder %s55, %s57
    %p61 = scmp.eq.s32.totalorder %s21, 0
    %p62 = por %p60, %p61
    %p63 = scmp.ne.s32.totalorder %s55, %s57
    %p64 = scmp.eq.s32.totalorder %s26, 1
    %p65 = por %p63, %p64
    %p66 = scmp.ne.s32.totalorder %s57, %s58
    %p67 = scmp.eq.s32.totalorder %s26, 0
    %p68 = por %p66, %p67
    %p69 = scmp.ne.s32.totalorder %s57, %s58
    %p70 = scmp.eq.s32.totalorder %s27, 1
    %p71 = por %p69, %p70
    %p73 = scmp.ne.s32.totalorder %s58, %s72
    %p74 = scmp.eq.s32.totalorder %s27, 0
    %p75 = por %p73, %p74
    %s77 = sadd.s32 %s76, 1
    %p80 = scmp.eq.s32.totalorder %s21, 1
    %p81 = scmp.ne.s32.totalorder %s76, %s78
    %p82 = scmp.eq.s32.totalorder %s21, 0
    %p83 = por %p81, %p82
    %p84 = scmp.ne.s32.totalorder %s76, %s78
    %p85 = scmp.eq.s32.totalorder %s26, 1
    %p86 = por %p84, %p85
    %p87 = scmp.ne.s32.totalorder %s78, %s79
    %p88 = scmp.eq.s32.totalorder %s26, 0
    %p89 = por %p87, %p88
    %p90 = scmp.ne.s32.totalorder %s78, %s79
    %p91 = scmp.eq.s32.totalorder %s27, 1
    %p92 = por %p90, %p91
    %p94 = scmp.ne.s32.totalorder %s79, %s93
    %p95 = scmp.eq.s32.totalorder %s27, 0
    %p96 = por %p94, %p95
    %s98 = sadd.s32 %s97, 1
    %p101 = scmp.eq.s32.totalorder %s21, 1
    %p102 = scmp.ne.s32.totalorder %s97, %s99
    %p103 = scmp.eq.s32.totalorder %s21, 0
    %p104 = por %p102, %p103
    %p105 = scmp.ne.s32.totalorder %s97, %s99
    %p106 = scmp.eq.s32.totalorder %s26, 1
    %p107 = por %p105, %p106
    %p108 = scmp.ne.s32.totalorder %s99, %s100
    %p109 = scmp.eq.s32.totalorder %s26, 0
    %p110 = por %p108, %p109
    %p111 = scmp.ne.s32.totalorder %s99, %s100
    %p112 = scmp.eq.s32.totalorder %s27, 1
    %p113 = por %p111, %p112
    %p115 = scmp.ne.s32.totalorder %s100, %s114
    %p116 = scmp.eq.s32.totalorder %s27, 0
    %p117 = por %p115, %p116
    %s119 = sadd.s32 %s118, 1
    %p122 = scmp.eq.s32.totalorder %s21, 1
    %p123 = scmp.ne.s32.totalorder %s118, %s120
    %p124 = scmp.eq.s32.totalorder %s21, 0
    %p125 = por %p123, %p124
    %p126 = scmp.ne.s32.totalorder %s118, %s120
    %p127 = scmp.eq.s32.totalorder %s26, 1
    %p128 = por %p126, %p127
    %p129 = scmp.ne.s32.totalorder %s120, %s121
    %p130 = scmp.eq.s32.totalorder %s26, 0
    %p131 = por %p129, %p130
    %p132 = scmp.ne.s32.totalorder %s120, %s121
    %p133 = scmp.eq.s32.totalorder %s27, 1
    %p134 = por %p132, %p133
    %p136 = scmp.ne.s32.totalorder %s121, %s135
    %p137 = scmp.eq.s32.totalorder %s27, 0
    %p138 = por %p136, %p137
    %s140 = sadd.s32 %s139, 1
    %p143 = scmp.eq.s32.totalorder %s21, 1
    %p144 = scmp.ne.s32.totalorder %s139, %s141
    %p145 = scmp.eq.s32.totalorder %s21, 0
    %p146 = por %p144, %p145
    %p147 = scmp.ne.s32.totalorder %s139, %s141
    %p148 = scmp.eq.s32.totalorder %s26, 1
    %p149 = por %p147, %p148
    %p150 = scmp.ne.s32.totalorder %s141, %s142
    %p151 = scmp.eq.s32.totalorder %s26, 0
    %p152 = por %p150, %p151
    %p153 = scmp.ne.s32.totalorder %s141, %s142
    %p154 = scmp.eq.s32.totalorder %s27, 1
    %p155 = por %p153, %p154
    %p157 = scmp.ne.s32.totalorder %s142, %s156
    %p158 = scmp.eq.s32.totalorder %s27, 0
    %p159 = por %p157, %p158
    %s161 = sadd.s32 %s160, 1
    %p164 = scmp.eq.s32.totalorder %s21, 1
    %p165 = scmp.ne.s32.totalorder %s160, %s162
    %p166 = scmp.eq.s32.totalorder %s21, 0
    %p167 = por %p165, %p166
    %p168 = scmp.ne.s32.totalorder %s160, %s162
    %p169 = scmp.eq.s32.totalorder %s26, 1
    %p170 = por %p168, %p169
    %p171 = scmp.ne.s32.totalorder %s162, %s163
    %p172 = scmp.eq.s32.totalorder %s26, 0
    %p173 = por %p171, %p172
    %p174 = scmp.ne.s32.totalorder %s162, %s163
    %p175 = scmp.eq.s32.totalorder %s27, 1
    %p176 = por %p174, %p175
    %p178 = scmp.ne.s32.totalorder %s163, %s177
    %p179 = scmp.eq.s32.totalorder %s27, 0
    %p180 = por %p178, %p179
    %s182 = sadd.s32 %s181, 1
    %p185 = scmp.eq.s32.totalorder %s21, 1
    %p186 = scmp.ne.s32.totalorder %s181, %s183
    %p187 = scmp.eq.s32.totalorder %s21, 0
    %p188 = por %p186, %p187
    %p189 = scmp.ne.s32.totalorder %s181, %s183
    %p190 = scmp.eq.s32.totalorder %s26, 1
    %p191 = por %p189, %p190
    %p192 = scmp.ne.s32.totalorder %s183, %s184
    %p193 = scmp.eq.s32.totalorder %s26, 0
    %p194 = por %p192, %p193
    %p195 = scmp.ne.s32.totalorder %s183, %s184
    %p196 = scmp.eq.s32.totalorder %s27, 1
    %p197 = por %p195, %p196
    %p199 = scmp.ne.s32.totalorder %s184, %s198
    %p200 = scmp.eq.s32.totalorder %s27, 0
    %p201 = por %p199, %p200
    %s203 = sadd.s32 %s202, 1
    %p206 = scmp.eq.s32.totalorder %s21, 1
    %p207 = scmp.ne.s32.totalorder %s202, %s204
    %p208 = scmp.eq.s32.totalorder %s21, 0
    %p209 = por %p207, %p208
    %p210 = scmp.ne.s32.totalorder %s202, %s204
    %p211 = scmp.eq.s32.totalorder %s26, 1
    %p212 = por %p210, %p211
    %p213 = scmp.ne.s32.totalorder %s204, %s205
    %p214 = scmp.eq.s32.totalorder %s26, 0
    %p215 = por %p213, %p214
    %p216 = scmp.ne.s32.totalorder %s204, %s205
    %p217 = scmp.eq.s32.totalorder %s27, 1
    %p218 = por %p216, %p217
    %p220 = scmp.ne.s32.totalorder %s205, %s219
    %p221 = scmp.eq.s32.totalorder %s27, 0
    %p222 = por %p220, %p221
    %s224 = sadd.s32 %s223, 1
    %p227 = scmp.eq.s32.totalorder %s21, 1
    %p228 = scmp.ne.s32.totalorder %s223, %s225
    %p229 = scmp.eq.s32.totalorder %s21, 0
    %p230 = por %p228, %p229
    %p231 = scmp.ne.s32.totalorder %s223, %s225
    %p232 = scmp.eq.s32.totalorder %s26, 1
    %p233 = por %p231, %p232
    %p234 = scmp.ne.s32.totalorder %s225, %s226
    %p235 = scmp.eq.s32.totalorder %s26, 0
    %p236 = por %p234, %p235
    %p237 = scmp.ne.s32.totalorder %s225, %s226
    %p238 = scmp.eq.s32.totalorder %s27, 1
    %p239 = por %p237, %p238
    %p241 = scmp.ne.s32.totalorder %s226, %s240
    %p242 = scmp.eq.s32.totalorder %s27, 0
    %p243 = por %p241, %p242
    %s245 = sadd.s32 %s244, 1
    %p248 = scmp.eq.s32.totalorder %s21, 1
    %p249 = scmp.ne.s32.totalorder %s244, %s246
    %p250 = scmp.eq.s32.totalorder %s21, 0
    %p251 = por %p249, %p250
    %p252 = scmp.ne.s32.totalorder %s244, %s246
    %p253 = scmp.eq.s32.totalorder %s26, 1
    %p254 = por %p252, %p253
    %p255 = scmp.ne.s32.totalorder %s246, %s247
    %p256 = scmp.eq.s32.totalorder %s26, 0
    %p257 = por %p255, %p256
    %p258 = scmp.ne.s32.totalorder %s246, %s247
    %p259 = scmp.eq.s32.totalorder %s27, 1
    %p260 = por %p258, %p259
    %p262 = scmp.ne.s32.totalorder %s247, %s261
    %p263 = scmp.eq.s32.totalorder %s27, 0
    %p264 = por %p262, %p263
    %s266 = sadd.s32 %s265, 1
    %p269 = scmp.eq.s32.totalorder %s21, 1
    %p270 = scmp.ne.s32.totalorder %s265, %s267
    %p271 = scmp.eq.s32.totalorder %s21, 0
    %p272 = por %p270, %p271
    %p273 = scmp.ne.s32.totalorder %s265, %s267
    %p274 = scmp.eq.s32.totalorder %s26, 1
    %p275 = por %p273, %p274
    %p276 = scmp.ne.s32.totalorder %s267, %s268
    %p277 = scmp.eq.s32.totalorder %s26, 0
    %p278 = por %p276, %p277
    %p279 = scmp.ne.s32.totalorder %s267, %s268
    %p280 = scmp.eq.s32.totalorder %s27, 1
    %p281 = por %p279, %p280
    %p283 = scmp.ne.s32.totalorder %s268, %s282
    %p284 = scmp.eq.s32.totalorder %s27, 0
    %p285 = por %p283, %p284
    %s287 = sadd.s32 %s286, 1
    %p290 = scmp.eq.s32.totalorder %s21, 1
    %p291 = scmp.ne.s32.totalorder %s286, %s288
    %p292 = scmp.eq.s32.totalorder %s21, 0
    %p293 = por %p291, %p292
    %p294 = scmp.ne.s32.totalorder %s286, %s288
    %p295 = scmp.eq.s32.totalorder %s26, 1
    %p296 = por %p294, %p295
    %p297 = scmp.ne.s32.totalorder %s288, %s289
    %p298 = scmp.eq.s32.totalorder %s26, 0
    %p299 = por %p297, %p298
    %p300 = scmp.ne.s32.totalorder %s288, %s289
    %p301 = scmp.eq.s32.totalorder %s27, 1
    %p302 = por %p300, %p301
    %p304 = scmp.ne.s32.totalorder %s289, %s303
    %p305 = scmp.eq.s32.totalorder %s27, 0
    %p306 = por %p304, %p305
    %s308 = sadd.s32 %s307, 1
    %p311 = scmp.eq.s32.totalorder %s21, 1
    %p312 = scmp.ne.s32.totalorder %s307, %s309
    %p313 = scmp.eq.s32.totalorder %s21, 0
    %p314 = por %p312, %p313
    %p315 = scmp.ne.s32.totalorder %s307, %s309
    %p316 = scmp.eq.s32.totalorder %s26, 1
    %p317 = por %p315, %p316
    %p318 = scmp.ne.s32.totalorder %s309, %s310
    %p319 = scmp.eq.s32.totalorder %s26, 0
    %p320 = por %p318, %p319
    %p321 = scmp.ne.s32.totalorder %s309, %s310
    %p322 = scmp.eq.s32.totalorder %s27, 1
    %p323 = por %p321, %p322
    %p325 = scmp.ne.s32.totalorder %s310, %s324
    %p326 = scmp.eq.s32.totalorder %s27, 0
    %p327 = por %p325, %p326
    %s329 = sadd.s32 %s328, 1
    %p332 = scmp.eq.s32.totalorder %s21, 1
    %p333 = scmp.ne.s32.totalorder %s328, %s330
    %p334 = scmp.eq.s32.totalorder %s21, 0
    %p335 = por %p333, %p334
    %p336 = scmp.ne.s32.totalorder %s328, %s330
    %p337 = scmp.eq.s32.totalorder %s26, 1
    %p338 = por %p336, %p337
    %p339 = scmp.ne.s32.totalorder %s330, %s331
    %p340 = scmp.eq.s32.totalorder %s26, 0
    %p341 = por %p339, %p340
    %p342 = scmp.ne.s32.totalorder %s330, %s331
    %p343 = scmp.eq.s32.totalorder %s27, 1
    %p344 = por %p342, %p343
    %p346 = scmp.ne.s32.totalorder %s331, %s345
    %p347 = scmp.eq.s32.totalorder %s27, 0
    %p348 = por %p346, %p347
    %s349 = ssub.s32 %s21, %s28
    %p350 = scmp.eq.s32.totalorder %s349, 0
    %s352 = sadd.s32 %s351, 1
    %s353 = scalar_select %p350, %s351, %s352
    %p356 = pneg %p350
    %p357 = scmp.eq.s32.totalorder %s21, 1
    %p358 = por %p356, %p357
    %p359 = scmp.ne.s32.totalorder %s351, %s354
    %p360 = scmp.eq.s32.totalorder %s21, 0
    %p361 = por %p359, %p360
    %p362 = scmp.ne.s32.totalorder %s351, %s354
    %p363 = scmp.eq.s32.totalorder %s26, 1
    %p364 = por %p362, %p363
    %p365 = scmp.ne.s32.totalorder %s354, %s355
    %p366 = scmp.eq.s32.totalorder %s26, 0
    %p367 = por %p365, %p366
    %p368 = scmp.ne.s32.totalorder %s354, %s355
    %p369 = scmp.eq.s32.totalorder %s27, 1
    %p370 = por %p368, %p369
    %p372 = scmp.ne.s32.totalorder %s355, %s371
    %p373 = scmp.eq.s32.totalorder %s27, 0
    %p374 = por %p372, %p373
    %p375 = scmp.le.s32.totalorder 1, %s21
    %p376 = scmp.lt.s32.totalorder %s21, 3
    %p377 = pnand %p375, %p376
    %p378 = pneg %p377
    // Predicated region
    $region9: #{forward.5} parent=5 // pred_check
      _
    $region10: #{forward.5} parent=5 // pred_check_branch
      %380 = sbr.rel (%p377) target = $region12
    $region11: #{forward.5} parent=5 // pred_region
      %s381 = ssub.s32 %s21, 1
      // Predicated region
      $region13: #{forward.5} parent=11 // pred_check
        %p382 = pneg %p68
      $region14: #{forward.5} parent=11 // pred_check_branch
        %384 = sbr.rel (%p382) target = $region16
      $region15: #{forward.5} parent=11 // pred_region
        _
      $region16: #{forward.5} parent=11 // pred_fallthru
        _
      // Predicated region
      $region17: #{forward.5} parent=11 // pred_check
        %p385 = pneg %p89
      $region18: #{forward.5} parent=11 // pred_check_branch
        %387 = sbr.rel (%p385) target = $region20
      $region19: #{forward.5} parent=11 // pred_region
        _
      $region20: #{forward.5} parent=11 // pred_fallthru
        _
      // Predicated region
      $region21: #{forward.5} parent=11 // pred_check
        %p388 = pneg %p110
      $region22: #{forward.5} parent=11 // pred_check_branch
        %390 = sbr.rel (%p388) target = $region24
      $region23: #{forward.5} parent=11 // pred_region
        _
      $region24: #{forward.5} parent=11 // pred_fallthru
        _
      // Predicated region
      $region25: #{forward.5} parent=11 // pred_check
        %p391 = pneg %p131
      $region26: #{forward.5} parent=11 // pred_check_branch
        %393 = sbr.rel (%p391) target = $region28
      $region27: #{forward.5} parent=11 // pred_region
        _
      $region28: #{forward.5} parent=11 // pred_fallthru
        _
      // Predicated region
      $region29: #{forward.5} parent=11 // pred_check
        %p394 = pneg %p152
      $region30: #{forward.5} parent=11 // pred_check_branch
        %396 = sbr.rel (%p394) target = $region32
      $region31: #{forward.5} parent=11 // pred_region
        _
      $region32: #{forward.5} parent=11 // pred_fallthru
        _
      // Predicated region
      $region33: #{forward.5} parent=11 // pred_check
        %p397 = pneg %p173
      $region34: #{forward.5} parent=11 // pred_check_branch
        %399 = sbr.rel (%p397) target = $region36
      $region35: #{forward.5} parent=11 // pred_region
        _
      $region36: #{forward.5} parent=11 // pred_fallthru
        _
      // Predicated region
      $region37: #{forward.5} parent=11 // pred_check
        %p400 = pneg %p194
      $region38: #{forward.5} parent=11 // pred_check_branch
        %402 = sbr.rel (%p400) target = $region40
      $region39: #{forward.5} parent=11 // pred_region
        _
      $region40: #{forward.5} parent=11 // pred_fallthru
        _
      // Predicated region
      $region41: #{forward.5} parent=11 // pred_check
        %p403 = pneg %p215
      $region42: #{forward.5} parent=11 // pred_check_branch
        %405 = sbr.rel (%p403) target = $region44
      $region43: #{forward.5} parent=11 // pred_region
        _
      $region44: #{forward.5} parent=11 // pred_fallthru
        _
      // Predicated region
      $region45: #{forward.5} parent=11 // pred_check
        %p406 = pneg %p236
      $region46: #{forward.5} parent=11 // pred_check_branch
        %408 = sbr.rel (%p406) target = $region48
      $region47: #{forward.5} parent=11 // pred_region
        _
      $region48: #{forward.5} parent=11 // pred_fallthru
        _
      // Predicated region
      $region49: #{forward.5} parent=11 // pred_check
        %p409 = pneg %p257
      $region50: #{forward.5} parent=11 // pred_check_branch
        %411 = sbr.rel (%p409) target = $region52
      $region51: #{forward.5} parent=11 // pred_region
        _
      $region52: #{forward.5} parent=11 // pred_fallthru
        _
      // Predicated region
      $region53: #{forward.5} parent=11 // pred_check
        %p412 = pneg %p278
      $region54: #{forward.5} parent=11 // pred_check_branch
        %414 = sbr.rel (%p412) target = $region56
      $region55: #{forward.5} parent=11 // pred_region
        _
      $region56: #{forward.5} parent=11 // pred_fallthru
        _
      // Predicated region
      $region57: #{forward.5} parent=11 // pred_check
        %p415 = pneg %p299
      $region58: #{forward.5} parent=11 // pred_check_branch
        %417 = sbr.rel (%p415) target = $region60
      $region59: #{forward.5} parent=11 // pred_region
        _
      $region60: #{forward.5} parent=11 // pred_fallthru
        _
      // Predicated region
      $region61: #{forward.5} parent=11 // pred_check
        %p418 = pneg %p320
      $region62: #{forward.5} parent=11 // pred_check_branch
        %420 = sbr.rel (%p418) target = $region64
      $region63: #{forward.5} parent=11 // pred_region
        _
      $region64: #{forward.5} parent=11 // pred_fallthru
        _
      // Predicated region
      $region65: #{forward.5} parent=11 // pred_check
        %p421 = pneg %p341
      $region66: #{forward.5} parent=11 // pred_check_branch
        %423 = sbr.rel (%p421) target = $region68
      $region67: #{forward.5} parent=11 // pred_region
        _
      $region68: #{forward.5} parent=11 // pred_fallthru
        _
    $region12: #{forward.5} parent=5 // pred_fallthru
      _
    %p424 = scmp.lt.s32.totalorder %s21, 2
    // Predicated region
    $region69: #{forward.5} parent=5 // pred_check
      %p425 = pneg %p424
    $region70: #{forward.5} parent=5 // pred_check_branch
      %427 = sbr.rel (%p425) target = $region72
    $region71: #{forward.5} parent=5 // pred_region
      // Predicated region
      $region73: #{forward.5} parent=71 // pred_check
        %p428 = pneg %p41
      $region74: #{forward.5} parent=71 // pred_check_branch
        %430 = sbr.rel (%p428) target = $region76
      $region75: #{forward.5} parent=71 // pred_region
        %p431 = scmp.lt.s32.totalorder %s21, 1
        %s432 = scalar_select %p431, %s21, 1
        %s433 = smul.addr %s432, 8
        %s434 = scalar_lea.vmem %s0, %s433
      $region76: #{forward.5} parent=71 // pred_fallthru
        _
    $region72: #{forward.5} parent=5 // pred_fallthru
      _
    %p435 = scmp.le.s32.totalorder 1, %s21
    %p436 = scmp.lt.s32.totalorder %s21, 3
    %p437 = pnand %p435, %p436
    %p438 = pneg %p437
    // Predicated region
    $region77: #{forward.5} parent=5 // pred_check
      _
    $region78: #{forward.5} parent=5 // pred_check_branch
      %440 = sbr.rel (%p437) target = $region80
    $region79: #{forward.5} parent=5 // pred_region
      %s441 = ssub.s32 %s21, 1
      %p442 = scmp.lt.s32.totalorder %s26, 1
      %s443 = scalar_select %p442, %s26, 1
      %s444 = smul.addr %s443, 8
      %s445 = scalar_lea.vmem %s0, %s444
      %p446 = pneg %p47
      %p447 = pneg %p44
      %p448 = pneg %p68
      %p449 = pneg %p65
      %p450 = pneg %p89
      %p451 = pneg %p86
      %p452 = pneg %p110
      %p453 = pneg %p107
      %p454 = pneg %p131
      %p455 = pneg %p128
      %p456 = pneg %p152
      %p457 = pneg %p149
      %p458 = pneg %p173
      %p459 = pneg %p170
      %p460 = pneg %p194
      %p461 = pneg %p191
      %p462 = pneg %p215
      %p463 = pneg %p212
      %p464 = pneg %p236
      %p465 = pneg %p233
      %p466 = pneg %p257
      %p467 = pneg %p254
      %p468 = pneg %p278
      %p469 = pneg %p275
      %p470 = pneg %p299
      %p471 = pneg %p296
      %p472 = pneg %p320
      %p473 = pneg %p317
      %p474 = pneg %p341
      %p475 = pneg %p338
      %p476 = pneg %p367
      %p477 = pneg %p364
      %p478 = scmp.lt.s32.totalorder %s26, 1
      %s479 = scalar_select %p478, %s26, 1
      %s480 = smul.addr %s479, 8
      %s481 = scalar_lea.vmem %s15, %s480
      %p482 = scmp.lt.s32.totalorder %s26, 1
      %s483 = scalar_select %p482, %s26, 1
      %s484 = smul.addr %s483, 8
      %s485 = scalar_lea.vmem %s0, %s484
      %p486 = scmp.lt.s32.totalorder %s26, 1
      %s487 = scalar_select %p486, %s26, 1
      %s488 = smul.addr %s487, 8
      %s489 = scalar_lea.vmem %s15, %s488
      %v491 = vld [vmem:[%s485] sm:$0xff]
      %v492 = vpack.c.bf16 %v491, %v491
      %v493 = vld [vmem:[%s1] sm:$0xf]
      %v494 = vld [vmem:[%s1 + $0x4] sm:$0xf]
      %v495 = vld [vmem:[%s1 + $0x8] sm:$0xf]
      %v496 = vld [vmem:[%s1 + $0xc] sm:$0xf]
      %v497 = vld [vmem:[%s2] sm:$0x1]
      %v499 = vlaneseq
      %v500 = vshrl.u32 %v499, 7
      %v501 = vsub.s32 0, %v500
      %v502 = vrot.slane %v497, %v501
      %v508 = vunpack.c.l.b16 %v493
      %v509 = vunpack.c.l.b16 %v494
      %v510 = vunpack.c.l.b16 %v495
      %v511 = vunpack.c.l.b16 %v496
      %v512 = vpack.c.b16 %v509, %v508
      %v513 = vpack.c.b16 %v511, %v510
      %vm516 = vcmask 261120
      %v518 = vsel %vm516, %v492, 0
      %520 = vmatprep.subr.bf16.mxu0 0
      %521 = vmatpush1.bf16.msra.mxu0 0
      %522 = vmatprep.subr.bf16.mxu0 0
      %523 = vmatpush1.bf16.msra.mxu0 0
      %524 = vmatprep.subr.bf16.mxu0 0
      %525 = vmatpush1.bf16.msra.mxu0 0
      %526 = vmatprep.subr.bf16.mxu0 0
      %527 = vmatpush1.bf16.msra.mxu0 0
      %528 = vmatprep.subr.bf16.mxu0 0
      %529 = vmatpush1.bf16.msra.mxu0 0
      %530 = vmatprep.subr.bf16.mxu0 0
      %531 = vmatpush1.bf16.msra.mxu0 0
      %532 = vmatprep.subr.bf16.mxu0 0
      %533 = vmatpush1.bf16.msra.mxu0 %v513
      %534 = vmatprep.subr.bf16.mxu0 0
      %535 = vmatpush1.bf16.msra.mxu0 %v512
      %536 = vmatprep.subr.bf16.mxu0 0
      %537 = vmatpush2.bf16.msra.mxu0 0
      %538 = vmatprep.subr.bf16.mxu0 0
      %539 = vmatpush2.bf16.msra.mxu0 0
      %540 = vmatprep.subr.bf16.mxu0 0
      %541 = vmatpush2.bf16.msra.mxu0 0
      %542 = vmatprep.subr.bf16.mxu0 0
      %543 = vmatpush2.bf16.msra.mxu0 0
      %544 = vmatprep.subr.bf16.mxu0 0
      %545 = vmatpush2.bf16.msra.mxu0 0
      %546 = vmatprep.subr.bf16.mxu0 0
      %547 = vmatpush2.bf16.msra.mxu0 0
      %548 = vmatprep.subr.bf16.mxu0 0
      %549 = vmatpush2.bf16.msra.mxu0 0
      %550 = vmatprep.subr.bf16.mxu0 0
      %551 = vmatpush2.bf16.msra.mxu0 0
      %552 = vmatprep.mubr.bf16.mxu0 0
      %553 = vmatmul.mubr.bf16.gmra.mxu0 %v518
      %v554 = vpop.f32.mrf.mxu0
      %v555 = vadd.f32 %v502, %v554
      %v556 = vpop.f32.mrf.mxu0
      %v557 = vpop.f32.mrf.mxu0
      %v558 = vpop.f32.mrf.mxu0
      %559 = vdwg.mxu0
      %s560 = scalar_lea.vmem %s1, 32
      %v561 = vld [vmem:[%s560] sm:$0xf]
      %v562 = vld [vmem:[%s560 + $0x4] sm:$0xf]
      %v563 = vld [vmem:[%s560 + $0x8] sm:$0xf]
      %v564 = vld [vmem:[%s560 + $0xc] sm:$0xf]
      %s565 = scalar_lea.vmem %s2, 2
      %v566 = vld [vmem:[%s565] sm:$0x1]
      %v568 = vlaneseq
      %v569 = vshrl.u32 %v568, 7
      %v570 = vsub.s32 0, %v569
      %v571 = vrot.slane %v566, %v570
      %v577 = vunpack.c.l.b16 %v561
      %v578 = vunpack.c.l.b16 %v562
      %v579 = vunpack.c.l.b16 %v563
      %v580 = vunpack.c.l.b16 %v564
      %v581 = vpack.c.b16 %v578, %v577
      %v582 = vpack.c.b16 %v580, %v579
      %585 = vmatprep.subr.bf16.mxu0 0
      %586 = vmatpush1.bf16.msra.mxu0 0
      %587 = vmatprep.subr.bf16.mxu0 0
      %588 = vmatpush1.bf16.msra.mxu0 0
      %589 = vmatprep.subr.bf16.mxu0 0
      %590 = vmatpush1.bf16.msra.mxu0 0
      %591 = vmatprep.subr.bf16.mxu0 0
      %592 = vmatpush1.bf16.msra.mxu0 0
      %593 = vmatprep.subr.bf16.mxu0 0
      %594 = vmatpush1.bf16.msra.mxu0 0
      %595 = vmatprep.subr.bf16.mxu0 0
      %596 = vmatpush1.bf16.msra.mxu0 0
      %597 = vmatprep.subr.bf16.mxu0 0
      %598 = vmatpush1.bf16.msra.mxu0 %v582
      %599 = vmatprep.subr.bf16.mxu0 0
      %600 = vmatpush1.bf16.msra.mxu0 %v581
      %601 = vmatprep.subr.bf16.mxu0 0
      %602 = vmatpush2.bf16.msra.mxu0 0
      %603 = vmatprep.subr.bf16.mxu0 0
      %604 = vmatpush2.bf16.msra.mxu0 0
      %605 = vmatprep.subr.bf16.mxu0 0
      %606 = vmatpush2.bf16.msra.mxu0 0
      %607 = vmatprep.subr.bf16.mxu0 0
      %608 = vmatpush2.bf16.msra.mxu0 0
      %609 = vmatprep.subr.bf16.mxu0 0
      %610 = vmatpush2.bf16.msra.mxu0 0
      %611 = vmatprep.subr.bf16.mxu0 0
      %612 = vmatpush2.bf16.msra.mxu0 0
      %613 = vmatprep.subr.bf16.mxu0 0
      %614 = vmatpush2.bf16.msra.mxu0 0
      %615 = vmatprep.subr.bf16.mxu0 0
      %616 = vmatpush2.bf16.msra.mxu0 0
      %617 = vmatprep.mubr.bf16.mxu0 0
      %618 = vmatmul.mubr.bf16.gmra.mxu0 %v518
      %v619 = vpop.f32.mrf.mxu0
      %v620 = vadd.f32 %v571, %v619
      %v621 = vpop.f32.mrf.mxu0
      %v622 = vpop.f32.mrf.mxu0
      %v623 = vpop.f32.mrf.mxu0
      %624 = vdwg.mxu0
      %s625 = scalar_lea.vmem %s1, 64
      %v626 = vld [vmem:[%s625] sm:$0xf]
      %v627 = vld [vmem:[%s625 + $0x4] sm:$0xf]
      %v628 = vld [vmem:[%s625 + $0x8] sm:$0xf]
      %v629 = vld [vmem:[%s625 + $0xc] sm:$0xf]
      %s630 = scalar_lea.vmem %s2, 4
      %v631 = vld [vmem:[%s630] sm:$0x1]
      %v633 = vlaneseq
      %v634 = vshrl.u32 %v633, 7
      %v635 = vsub.s32 0, %v634
      %v636 = vrot.slane %v631, %v635
      %v642 = vunpack.c.l.b16 %v626
      %v643 = vunpack.c.l.b16 %v627
      %v644 = vunpack.c.l.b16 %v628
      %v645 = vunpack.c.l.b16 %v629
      %v646 = vpack.c.b16 %v643, %v642
      %v647 = vpack.c.b16 %v645, %v644
      %650 = vmatprep.subr.bf16.mxu0 0
      %651 = vmatpush1.bf16.msra.mxu0 0
      %652 = vmatprep.subr.bf16.mxu0 0
      %653 = vmatpush1.bf16.msra.mxu0 0
      %654 = vmatprep.subr.bf16.mxu0 0
      %655 = vmatpush1.bf16.msra.mxu0 0
      %656 = vmatprep.subr.bf16.mxu0 0
      %657 = vmatpush1.bf16.msra.mxu0 0
      %658 = vmatprep.subr.bf16.mxu0 0
      %659 = vmatpush1.bf16.msra.mxu0 0
      %660 = vmatprep.subr.bf16.mxu0 0
      %661 = vmatpush1.bf16.msra.mxu0 0
      %662 = vmatprep.subr.bf16.mxu0 0
      %663 = vmatpush1.bf16.msra.mxu0 %v647
      %664 = vmatprep.subr.bf16.mxu0 0
      %665 = vmatpush1.bf16.msra.mxu0 %v646
      %666 = vmatprep.subr.bf16.mxu0 0
      %667 = vmatpush2.bf16.msra.mxu0 0
      %668 = vmatprep.subr.bf16.mxu0 0
      %669 = vmatpush2.bf16.msra.mxu0 0
      %670 = vmatprep.subr.bf16.mxu0 0
      %671 = vmatpush2.bf16.msra.mxu0 0
      %672 = vmatprep.subr.bf16.mxu0 0
      %673 = vmatpush2.bf16.msra.mxu0 0
      %674 = vmatprep.subr.bf16.mxu0 0
      %675 = vmatpush2.bf16.msra.mxu0 0
      %676 = vmatprep.subr.bf16.mxu0 0
      %677 = vmatpush2.bf16.msra.mxu0 0
      %678 = vmatprep.subr.bf16.mxu0 0
      %679 = vmatpush2.bf16.msra.mxu0 0
      %680 = vmatprep.subr.bf16.mxu0 0
      %681 = vmatpush2.bf16.msra.mxu0 0
      %682 = vmatprep.mubr.bf16.mxu0 0
      %683 = vmatmul.mubr.bf16.gmra.mxu0 %v518
      %v684 = vpop.f32.mrf.mxu0
      %v685 = vadd.f32 %v636, %v684
      %v686 = vpop.f32.mrf.mxu0
      %v687 = vpop.f32.mrf.mxu0
      %v688 = vpop.f32.mrf.mxu0
      %689 = vdwg.mxu0
      %v690 = vpack.c.bf16 %v555, %v555
      %v691 = vpack.c.bf16 %v620, %v620
      %vm692 = vcmask 130048
      %v694 = vsel %vm692, %v690, 0
      %v697 = vsel %vm692, %v691, 0
      %699 = vmatprep.subr.bf16.mxu0 0
      %700 = vmatpush1.bf16.xpose.msra.mxu0 0
      %701 = vmatprep.subr.bf16.mxu0 0
      %702 = vmatpush1.bf16.xpose.msra.mxu0 0
      %703 = vmatprep.subr.bf16.mxu0 0
      %704 = vmatpush1.bf16.xpose.msra.mxu0 0
      %705 = vmatprep.subr.bf16.mxu0 0
      %706 = vmatpush1.bf16.xpose.msra.mxu0 0
      %707 = vmatprep.subr.bf16.mxu0 0
      %708 = vmatpush1.bf16.xpose.msra.mxu0 0
      %709 = vmatprep.subr.bf16.mxu0 0
      %710 = vmatpush1.bf16.xpose.msra.mxu0 0
      %711 = vmatprep.subr.bf16.mxu0 0
      %712 = vmatpush1.bf16.xpose.msra.mxu0 0
      %713 = vmatprep.subr.bf16.mxu0 0
      %714 = vmatpush1.bf16.xpose.msra.mxu0 %v697
      %715 = vmatprep.subr.bf16.mxu0 0
      %716 = vmatpush2.bf16.xpose.msra.mxu0 0
      %717 = vmatprep.subr.bf16.mxu0 0
      %718 = vmatpush2.bf16.xpose.msra.mxu0 0
      %719 = vmatprep.subr.bf16.mxu0 0
      %720 = vmatpush2.bf16.xpose.msra.mxu0 0
      %721 = vmatprep.subr.bf16.mxu0 0
      %722 = vmatpush2.bf16.xpose.msra.mxu0 0
      %723 = vmatprep.subr.bf16.mxu0 0
      %724 = vmatpush2.bf16.xpose.msra.mxu0 0
      %725 = vmatprep.subr.bf16.mxu0 0
      %726 = vmatpush2.bf16.xpose.msra.mxu0 0
      %727 = vmatprep.subr.bf16.mxu0 0
      %728 = vmatpush2.bf16.xpose.msra.mxu0 0
      %729 = vmatprep.subr.bf16.mxu0 0
      %730 = vmatpush2.bf16.xpose.msra.mxu0 0
      %731 = vmatprep.mubr.bf16.mxu0 0
      %732 = vmatmul.mubr.bf16.gmra.mxu0 %v694
      %v733 = vpop.f32.mrf.mxu0
      %v734 = vadd.f32 0.0, %v733
      %v735 = vpop.f32.mrf.mxu0
      %v736 = vpop.f32.mrf.mxu0
      %v737 = vpop.f32.mrf.mxu0
      %738 = vdwg.mxu0
      %v739 = vmul.f32 %v734, 0.25
      %vm740 = vcmask 64512
      %v741 = vsel %vm740, %v739, -inf
      %742 = vmax.xlane.f32.xlu0 %v741
      %v743 = vpop.xlane.xlu0 %742
      %v744 = vsub.f32 %v739, %v743
      %v745 = vmul.f32 %v744, 1.442695
      %v746 = vpow.pop %v745
      %v747 = vsel %vm740, %v746, 0.0
      %748 = vadd.xlane.f32.xlu0 %v747
      %v749 = vpop.xlane.xlu0 %748
      %v750 = vrcp.pop %v749
      %v751 = vmul.f32 %v746, %v750
      %v752 = vpack.c.bf16 %v751, %v751
      %v753 = vpack.c.bf16 %v685, %v685
      %v755 = vsel %vm740, %v752, 0
      %vm757 = vcmask 1043456
      %v759 = vsel %vm757, %v753, 0
      %761 = vmatprep.subr.bf16.mxu0 0
      %762 = vmatpush1.bf16.msra.mxu0 0
      %763 = vmatprep.subr.bf16.mxu0 0
      %764 = vmatpush1.bf16.msra.mxu0 0
      %765 = vmatprep.subr.bf16.mxu0 0
      %766 = vmatpush1.bf16.msra.mxu0 0
      %767 = vmatprep.subr.bf16.mxu0 0
      %768 = vmatpush1.bf16.msra.mxu0 0
      %769 = vmatprep.subr.bf16.mxu0 0
      %770 = vmatpush1.bf16.msra.mxu0 0
      %771 = vmatprep.subr.bf16.mxu0 0
      %772 = vmatpush1.bf16.msra.mxu0 0
      %773 = vmatprep.subr.bf16.mxu0 0
      %774 = vmatpush1.bf16.msra.mxu0 0
      %775 = vmatprep.subr.bf16.mxu0 0
      %776 = vmatpush1.bf16.msra.mxu0 %v759
      %777 = vmatprep.subr.bf16.mxu0 0
      %778 = vmatpush2.bf16.msra.mxu0 0
      %779 = vmatprep.subr.bf16.mxu0 0
      %780 = vmatpush2.bf16.msra.mxu0 0
      %781 = vmatprep.subr.bf16.mxu0 0
      %782 = vmatpush2.bf16.msra.mxu0 0
      %783 = vmatprep.subr.bf16.mxu0 0
      %784 = vmatpush2.bf16.msra.mxu0 0
      %785 = vmatprep.subr.bf16.mxu0 0
      %786 = vmatpush2.bf16.msra.mxu0 0
      %787 = vmatprep.subr.bf16.mxu0 0
      %788 = vmatpush2.bf16.msra.mxu0 0
      %789 = vmatprep.subr.bf16.mxu0 0
      %790 = vmatpush2.bf16.msra.mxu0 0
      %791 = vmatprep.subr.bf16.mxu0 0
      %792 = vmatpush2.bf16.msra.mxu0 0
      %793 = vmatprep.mubr.bf16.mxu0 0
      %794 = vmatmul.mubr.bf16.gmra.mxu0 %v755
      %v795 = vpop.f32.mrf.mxu0
      %v796 = vadd.f32 0.0, %v795
      %v797 = vpop.f32.mrf.mxu0
      %v798 = vpop.f32.mrf.mxu0
      %v799 = vpop.f32.mrf.mxu0
      %800 = vdwg.mxu0
      %v801 = vpack.c.bf16 %v796, %v796
      %v802 = vld [vmem:[%s3] sm:$0xf]
      %v803 = vld [vmem:[%s3 + $0x4] sm:$0xf]
      %s804 = scalar_lea.vmem %s1, 16
      %v805 = vld [vmem:[%s804] sm:$0xf]
      %v806 = vld [vmem:[%s804 + $0x4] sm:$0xf]
      %v807 = vld [vmem:[%s804 + $0x8] sm:$0xf]
      %v808 = vld [vmem:[%s804 + $0xc] sm:$0xf]
      %s809 = scalar_lea.vmem %s2, 1
      %v810 = vld [vmem:[%s809] sm:$0x1]
      %v812 = vlaneseq
      %v813 = vshrl.u32 %v812, 7
      %v814 = vsub.s32 0, %v813
      %v815 = vrot.slane %v810, %v814
      %v821 = vunpack.c.l.b16 %v805
      %v822 = vunpack.c.l.b16 %v806
      %v823 = vunpack.c.l.b16 %v807
      %v824 = vunpack.c.l.b16 %v808
      %v825 = vpack.c.b16 %v822, %v821
      %v826 = vpack.c.b16 %v824, %v823
      %829 = vmatprep.subr.bf16.mxu0 0
      %830 = vmatpush1.bf16.msra.mxu0 0
      %831 = vmatprep.subr.bf16.mxu0 0
      %832 = vmatpush1.bf16.msra.mxu0 0
      %833 = vmatprep.subr.bf16.mxu0 0
      %834 = vmatpush1.bf16.msra.mxu0 0
      %835 = vmatprep.subr.bf16.mxu0 0
      %836 = vmatpush1.bf16.msra.mxu0 0
      %837 = vmatprep.subr.bf16.mxu0 0
      %838 = vmatpush1.bf16.msra.mxu0 0
      %839 = vmatprep.subr.bf16.mxu0 0
      %840 = vmatpush1.bf16.msra.mxu0 0
      %841 = vmatprep.subr.bf16.mxu0 0
      %842 = vmatpush1.bf16.msra.mxu0 %v826
      %843 = vmatprep.subr.bf16.mxu0 0
      %844 = vmatpush1.bf16.msra.mxu0 %v825
      %845 = vmatprep.subr.bf16.mxu0 0
      %846 = vmatpush2.bf16.msra.mxu0 0
      %847 = vmatprep.subr.bf16.mxu0 0
      %848 = vmatpush2.bf16.msra.mxu0 0
      %849 = vmatprep.subr.bf16.mxu0 0
      %850 = vmatpush2.bf16.msra.mxu0 0
      %851 = vmatprep.subr.bf16.mxu0 0
      %852 = vmatpush2.bf16.msra.mxu0 0
      %853 = vmatprep.subr.bf16.mxu0 0
      %854 = vmatpush2.bf16.msra.mxu0 0
      %855 = vmatprep.subr.bf16.mxu0 0
      %856 = vmatpush2.bf16.msra.mxu0 0
      %857 = vmatprep.subr.bf16.mxu0 0
      %858 = vmatpush2.bf16.msra.mxu0 0
      %859 = vmatprep.subr.bf16.mxu0 0
      %860 = vmatpush2.bf16.msra.mxu0 0
      %861 = vmatprep.mubr.bf16.mxu0 0
      %862 = vmatmul.mubr.bf16.gmra.mxu0 %v518
      %v863 = vpop.f32.mrf.mxu0
      %v864 = vadd.f32 %v815, %v863
      %v865 = vpop.f32.mrf.mxu0
      %v866 = vpop.f32.mrf.mxu0
      %v867 = vpop.f32.mrf.mxu0
      %868 = vdwg.mxu0
      %s869 = scalar_lea.vmem %s1, 48
      %v870 = vld [vmem:[%s869] sm:$0xf]
      %v871 = vld [vmem:[%s869 + $0x4] sm:$0xf]
      %v872 = vld [vmem:[%s869 + $0x8] sm:$0xf]
      %v873 = vld [vmem:[%s869 + $0xc] sm:$0xf]
      %s874 = scalar_lea.vmem %s2, 3
      %v875 = vld [vmem:[%s874] sm:$0x1]
      %v877 = vlaneseq
      %v878 = vshrl.u32 %v877, 7
      %v879 = vsub.s32 0, %v878
      %v880 = vrot.slane %v875, %v879
      %v886 = vunpack.c.l.b16 %v870
      %v887 = vunpack.c.l.b16 %v871
      %v888 = vunpack.c.l.b16 %v872
      %v889 = vunpack.c.l.b16 %v873
      %v890 = vpack.c.b16 %v887, %v886
      %v891 = vpack.c.b16 %v889, %v888
      %894 = vmatprep.subr.bf16.mxu0 0
      %895 = vmatpush1.bf16.msra.mxu0 0
      %896 = vmatprep.subr.bf16.mxu0 0
      %897 = vmatpush1.bf16.msra.mxu0 0
      %898 = vmatprep.subr.bf16.mxu0 0
      %899 = vmatpush1.bf16.msra.mxu0 0
      %900 = vmatprep.subr.bf16.mxu0 0
      %901 = vmatpush1.bf16.msra.mxu0 0
      %902 = vmatprep.subr.bf16.mxu0 0
      %903 = vmatpush1.bf16.msra.mxu0 0
      %904 = vmatprep.subr.bf16.mxu0 0
      %905 = vmatpush1.bf16.msra.mxu0 0
      %906 = vmatprep.subr.bf16.mxu0 0
      %907 = vmatpush1.bf16.msra.mxu0 %v891
      %908 = vmatprep.subr.bf16.mxu0 0
      %909 = vmatpush1.bf16.msra.mxu0 %v890
      %910 = vmatprep.subr.bf16.mxu0 0
      %911 = vmatpush2.bf16.msra.mxu0 0
      %912 = vmatprep.subr.bf16.mxu0 0
      %913 = vmatpush2.bf16.msra.mxu0 0
      %914 = vmatprep.subr.bf16.mxu0 0
      %915 = vmatpush2.bf16.msra.mxu0 0
      %916 = vmatprep.subr.bf16.mxu0 0
      %917 = vmatpush2.bf16.msra.mxu0 0
      %918 = vmatprep.subr.bf16.mxu0 0
      %919 = vmatpush2.bf16.msra.mxu0 0
      %920 = vmatprep.subr.bf16.mxu0 0
      %921 = vmatpush2.bf16.msra.mxu0 0
      %922 = vmatprep.subr.bf16.mxu0 0
      %923 = vmatpush2.bf16.msra.mxu0 0
      %924 = vmatprep.subr.bf16.mxu0 0
      %925 = vmatpush2.bf16.msra.mxu0 0
      %926 = vmatprep.mubr.bf16.mxu0 0
      %927 = vmatmul.mubr.bf16.gmra.mxu0 %v518
      %v928 = vpop.f32.mrf.mxu0
      %v929 = vadd.f32 %v880, %v928
      %v930 = vpop.f32.mrf.mxu0
      %v931 = vpop.f32.mrf.mxu0
      %v932 = vpop.f32.mrf.mxu0
      %933 = vdwg.mxu0
      %s934 = scalar_lea.vmem %s1, 80
      %v935 = vld [vmem:[%s934] sm:$0xf]
      %v936 = vld [vmem:[%s934 + $0x4] sm:$0xf]
      %v937 = vld [vmem:[%s934 + $0x8] sm:$0xf]
      %v938 = vld [vmem:[%s934 + $0xc] sm:$0xf]
      %s939 = scalar_lea.vmem %s2, 5
      %v940 = vld [vmem:[%s939] sm:$0x1]
      %v942 = vlaneseq
      %v943 = vshrl.u32 %v942, 7
      %v944 = vsub.s32 0, %v943
      %v945 = vrot.slane %v940, %v944
      %v951 = vunpack.c.l.b16 %v935
      %v952 = vunpack.c.l.b16 %v936
      %v953 = vunpack.c.l.b16 %v937
      %v954 = vunpack.c.l.b16 %v938
      %v955 = vpack.c.b16 %v952, %v951
      %v956 = vpack.c.b16 %v954, %v953
      %959 = vmatprep.subr.bf16.mxu0 0
      %960 = vmatpush1.bf16.msra.mxu0 0
      %961 = vmatprep.subr.bf16.mxu0 0
      %962 = vmatpush1.bf16.msra.mxu0 0
      %963 = vmatprep.subr.bf16.mxu0 0
      %964 = vmatpush1.bf16.msra.mxu0 0
      %965 = vmatprep.subr.bf16.mxu0 0
      %966 = vmatpush1.bf16.msra.mxu0 0
      %967 = vmatprep.subr.bf16.mxu0 0
      %968 = vmatpush1.bf16.msra.mxu0 0
      %969 = vmatprep.subr.bf16.mxu0 0
      %970 = vmatpush1.bf16.msra.mxu0 0
      %971 = vmatprep.subr.bf16.mxu0 0
      %972 = vmatpush1.bf16.msra.mxu0 %v956
      %973 = vmatprep.subr.bf16.mxu0 0
      %974 = vmatpush1.bf16.msra.mxu0 %v955
      %975 = vmatprep.subr.bf16.mxu0 0
      %976 = vmatpush2.bf16.msra.mxu0 0
      %977 = vmatprep.subr.bf16.mxu0 0
      %978 = vmatpush2.bf16.msra.mxu0 0
      %979 = vmatprep.subr.bf16.mxu0 0
      %980 = vmatpush2.bf16.msra.mxu0 0
      %981 = vmatprep.subr.bf16.mxu0 0
      %982 = vmatpush2.bf16.msra.mxu0 0
      %983 = vmatprep.subr.bf16.mxu0 0
      %984 = vmatpush2.bf16.msra.mxu0 0
      %985 = vmatprep.subr.bf16.mxu0 0
      %986 = vmatpush2.bf16.msra.mxu0 0
      %987 = vmatprep.subr.bf16.mxu0 0
      %988 = vmatpush2.bf16.msra.mxu0 0
      %989 = vmatprep.subr.bf16.mxu0 0
      %990 = vmatpush2.bf16.msra.mxu0 0
      %991 = vmatprep.mubr.bf16.mxu0 0
      %992 = vmatmul.mubr.bf16.gmra.mxu0 %v518
      %v993 = vpop.f32.mrf.mxu0
      %v994 = vadd.f32 %v945, %v993
      %v995 = vpop.f32.mrf.mxu0
      %v996 = vpop.f32.mrf.mxu0
      %v997 = vpop.f32.mrf.mxu0
      %998 = vdwg.mxu0
      %v999 = vpack.c.bf16 %v864, %v864
      %v1000 = vpack.c.bf16 %v929, %v929
      %v1002 = vsel %vm692, %v999, 0
      %v1005 = vsel %vm692, %v1000, 0
      %1007 = vmatprep.subr.bf16.mxu0 0
      %1008 = vmatpush1.bf16.xpose.msra.mxu0 0
      %1009 = vmatprep.subr.bf16.mxu0 0
      %1010 = vmatpush1.bf16.xpose.msra.mxu0 0
      %1011 = vmatprep.subr.bf16.mxu0 0
      %1012 = vmatpush1.bf16.xpose.msra.mxu0 0
      %1013 = vmatprep.subr.bf16.mxu0 0
      %1014 = vmatpush1.bf16.xpose.msra.mxu0 0
      %1015 = vmatprep.subr.bf16.mxu0 0
      %1016 = vmatpush1.bf16.xpose.msra.mxu0 0
      %1017 = vmatprep.subr.bf16.mxu0 0
      %1018 = vmatpush1.bf16.xpose.msra.mxu0 0
      %1019 = vmatprep.subr.bf16.mxu0 0
      %1020 = vmatpush1.bf16.xpose.msra.mxu0 0
      %1021 = vmatprep.subr.bf16.mxu0 0
      %1022 = vmatpush1.bf16.xpose.msra.mxu0 %v1005
      %1023 = vmatprep.subr.bf16.mxu0 0
      %1024 = vmatpush2.bf16.xpose.msra.mxu0 0
      %1025 = vmatprep.subr.bf16.mxu0 0
      %1026 = vmatpush2.bf16.xpose.msra.mxu0 0
      %1027 = vmatprep.subr.bf16.mxu0 0
      %1028 = vmatpush2.bf16.xpose.msra.mxu0 0
      %1029 = vmatprep.subr.bf16.mxu0 0
      %1030 = vmatpush2.bf16.xpose.msra.mxu0 0
      %1031 = vmatprep.subr.bf16.mxu0 0
      %1032 = vmatpush2.bf16.xpose.msra.mxu0 0
      %1033 = vmatprep.subr.bf16.mxu0 0
      %1034 = vmatpush2.bf16.xpose.msra.mxu0 0
      %1035 = vmatprep.subr.bf16.mxu0 0
      %1036 = vmatpush2.bf16.xpose.msra.mxu0 0
      %1037 = vmatprep.subr.bf16.mxu0 0
      %1038 = vmatpush2.bf16.xpose.msra.mxu0 0
      %1039 = vmatprep.mubr.bf16.mxu0 0
      %1040 = vmatmul.mubr.bf16.gmra.mxu0 %v1002
      %v1041 = vpop.f32.mrf.mxu0
      %v1042 = vadd.f32 0.0, %v1041
      %v1043 = vpop.f32.mrf.mxu0
      %v1044 = vpop.f32.mrf.mxu0
      %v1045 = vpop.f32.mrf.mxu0
      %1046 = vdwg.mxu0
      %v1047 = vmul.f32 %v1042, 0.25
      %v1048 = vsel %vm740, %v1047, -inf
      %1049 = vmax.xlane.f32.xlu0 %v1048
      %v1050 = vpop.xlane.xlu0 %1049
      %v1051 = vsub.f32 %v1047, %v1050
      %v1052 = vmul.f32 %v1051, 1.442695
      %v1053 = vpow.pop %v1052
      %v1054 = vsel %vm740, %v1053, 0.0
      %1055 = vadd.xlane.f32.xlu0 %v1054
      %v1056 = vpop.xlane.xlu0 %1055
      %v1057 = vrcp.pop %v1056
      %v1058 = vmul.f32 %v1053, %v1057
      %v1059 = vpack.c.bf16 %v1058, %v1058
      %v1060 = vpack.c.bf16 %v994, %v994
      %v1062 = vsel %vm740, %v1059, 0
      %v1065 = vsel %vm757, %v1060, 0
      %1067 = vmatprep.subr.bf16.mxu0 0
      %1068 = vmatpush1.bf16.msra.mxu0 0
      %1069 = vmatprep.subr.bf16.mxu0 0
      %1070 = vmatpush1.bf16.msra.mxu0 0
      %1071 = vmatprep.subr.bf16.mxu0 0
      %1072 = vmatpush1.bf16.msra.mxu0 0
      %1073 = vmatprep.subr.bf16.mxu0 0
      %1074 = vmatpush1.bf16.msra.mxu0 0
      %1075 = vmatprep.subr.bf16.mxu0 0
      %1076 = vmatpush1.bf16.msra.mxu0 0
      %1077 = vmatprep.subr.bf16.mxu0 0
      %1078 = vmatpush1.bf16.msra.mxu0 0
      %1079 = vmatprep.subr.bf16.mxu0 0
      %1080 = vmatpush1.bf16.msra.mxu0 0
      %1081 = vmatprep.subr.bf16.mxu0 0
      %1082 = vmatpush1.bf16.msra.mxu0 %v1065
      %1083 = vmatprep.subr.bf16.mxu0 0
      %1084 = vmatpush2.bf16.msra.mxu0 0
      %1085 = vmatprep.subr.bf16.mxu0 0
      %1086 = vmatpush2.bf16.msra.mxu0 0
      %1087 = vmatprep.subr.bf16.mxu0 0
      %1088 = vmatpush2.bf16.msra.mxu0 0
      %1089 = vmatprep.subr.bf16.mxu0 0
      %1090 = vmatpush2.bf16.msra.mxu0 0
      %1091 = vmatprep.subr.bf16.mxu0 0
      %1092 = vmatpush2.bf16.msra.mxu0 0
      %1093 = vmatprep.subr.bf16.mxu0 0
      %1094 = vmatpush2.bf16.msra.mxu0 0
      %1095 = vmatprep.subr.bf16.mxu0 0
      %1096 = vmatpush2.bf16.msra.mxu0 0
      %1097 = vmatprep.subr.bf16.mxu0 0
      %1098 = vmatpush2.bf16.msra.mxu0 0
      %1099 = vmatprep.mubr.bf16.mxu0 0
      %1100 = vmatmul.mubr.bf16.gmra.mxu0 %v1062
      %v1101 = vpop.f32.mrf.mxu0
      %v1102 = vadd.f32 0.0, %v1101
      %v1103 = vpop.f32.mrf.mxu0
      %v1104 = vpop.f32.mrf.mxu0
      %v1105 = vpop.f32.mrf.mxu0
      %1106 = vdwg.mxu0
      %v1107 = vpack.c.bf16 %v1102, %v1102
      %s1108 = scalar_lea.vmem %s3, 8
      %v1109 = vld [vmem:[%s1108] sm:$0xf]
      %v1110 = vld [vmem:[%s1108 + $0x4] sm:$0xf]
      %v1113 = vunpack.c.l.b16 %v1109
      %v1114 = vunpack.c.l.b16 %v1110
      %v1115 = vpack.c.b16 %v1114, %v1113
      %v1118 = vsel %vm692, %v1107, 0
      %1120 = vmatprep.subr.bf16.mxu0 0
      %1121 = vmatpush1.bf16.msra.mxu0 0
      %1122 = vmatprep.subr.bf16.mxu0 0
      %1123 = vmatpush1.bf16.msra.mxu0 0
      %1124 = vmatprep.subr.bf16.mxu0 0
      %1125 = vmatpush1.bf16.msra.mxu0 0
      %1126 = vmatprep.subr.bf16.mxu0 0
      %1127 = vmatpush1.bf16.msra.mxu0 0
      %1128 = vmatprep.subr.bf16.mxu0 0
      %1129 = vmatpush1.bf16.msra.mxu0 0
      %1130 = vmatprep.subr.bf16.mxu0 0
      %1131 = vmatpush1.bf16.msra.mxu0 0
      %1132 = vmatprep.subr.bf16.mxu0 0
      %1133 = vmatpush1.bf16.msra.mxu0 0
      %1134 = vmatprep.subr.bf16.mxu0 0
      %1135 = vmatpush1.bf16.msra.mxu0 %v1115
      %1136 = vmatprep.subr.bf16.mxu0 0
      %1137 = vmatpush2.bf16.msra.mxu0 0
      %1138 = vmatprep.subr.bf16.mxu0 0
      %1139 = vmatpush2.bf16.msra.mxu0 0
      %1140 = vmatprep.subr.bf16.mxu0 0
      %1141 = vmatpush2.bf16.msra.mxu0 0
      %1142 = vmatprep.subr.bf16.mxu0 0
      %1143 = vmatpush2.bf16.msra.mxu0 0
      %1144 = vmatprep.subr.bf16.mxu0 0
      %1145 = vmatpush2.bf16.msra.mxu0 0
      %1146 = vmatprep.subr.bf16.mxu0 0
      %1147 = vmatpush2.bf16.msra.mxu0 0
      %1148 = vmatprep.subr.bf16.mxu0 0
      %1149 = vmatpush2.bf16.msra.mxu0 0
      %1150 = vmatprep.subr.bf16.mxu0 0
      %1151 = vmatpush2.bf16.msra.mxu0 0
      %1152 = vmatprep.mubr.bf16.mxu0 0
      %1153 = vmatmul.mubr.bf16.gmra.mxu0 %v1118
      %v1154 = vpop.f32.mrf.mxu0
      %v1155 = vadd.f32 0.0, %v1154
      %v1156 = vpop.f32.mrf.mxu0
      %v1157 = vpop.f32.mrf.mxu0
      %v1158 = vpop.f32.mrf.mxu0
      %1159 = vdwg.mxu0
      %v1162 = vunpack.c.l.b16 %v802
      %v1163 = vunpack.c.l.b16 %v803
      %v1164 = vpack.c.b16 %v1163, %v1162
      %v1167 = vsel %vm692, %v801, 0
      %1169 = vmatprep.subr.bf16.mxu0 0
      %1170 = vmatpush1.bf16.msra.mxu0 0
      %1171 = vmatprep.subr.bf16.mxu0 0
      %1172 = vmatpush1.bf16.msra.mxu0 0
      %1173 = vmatprep.subr.bf16.mxu0 0
      %1174 = vmatpush1.bf16.msra.mxu0 0
      %1175 = vmatprep.subr.bf16.mxu0 0
      %1176 = vmatpush1.bf16.msra.mxu0 0
      %1177 = vmatprep.subr.bf16.mxu0 0
      %1178 = vmatpush1.bf16.msra.mxu0 0
      %1179 = vmatprep.subr.bf16.mxu0 0
      %1180 = vmatpush1.bf16.msra.mxu0 0
      %1181 = vmatprep.subr.bf16.mxu0 0
      %1182 = vmatpush1.bf16.msra.mxu0 0
      %1183 = vmatprep.subr.bf16.mxu0 0
      %1184 = vmatpush1.bf16.msra.mxu0 %v1164
      %1185 = vmatprep.subr.bf16.mxu0 0
      %1186 = vmatpush2.bf16.msra.mxu0 0
      %1187 = vmatprep.subr.bf16.mxu0 0
      %1188 = vmatpush2.bf16.msra.mxu0 0
      %1189 = vmatprep.subr.bf16.mxu0 0
      %1190 = vmatpush2.bf16.msra.mxu0 0
      %1191 = vmatprep.subr.bf16.mxu0 0
      %1192 = vmatpush2.bf16.msra.mxu0 0
      %1193 = vmatprep.subr.bf16.mxu0 0
      %1194 = vmatpush2.bf16.msra.mxu0 0
      %1195 = vmatprep.subr.bf16.mxu0 0
      %1196 = vmatpush2.bf16.msra.mxu0 0
      %1197 = vmatprep.subr.bf16.mxu0 0
      %1198 = vmatpush2.bf16.msra.mxu0 0
      %1199 = vmatprep.subr.bf16.mxu0 0
      %1200 = vmatpush2.bf16.msra.mxu0 0
      %1201 = vmatprep.mubr.bf16.mxu0 0
      %1202 = vmatmul.mubr.bf16.gmra.mxu0 %v1167
      %v1203 = vpop.f32.mrf.mxu0
      %v1204 = vadd.f32 %v1155, %v1203
      %v1205 = vpop.f32.mrf.mxu0
      %v1206 = vpop.f32.mrf.mxu0
      %v1207 = vpop.f32.mrf.mxu0
      %1208 = vdwg.mxu0
      %v1209 = vld [vmem:[%s4] sm:$0x1]
      %v1211 = vlaneseq
      %v1212 = vshrl.u32 %v1211, 7
      %v1213 = vsub.s32 0, %v1212
      %v1214 = vrot.slane %v1209, %v1213
      %v1216 = vadd.f32 %v1204, %v1214
      %v1217 = vadd.f32 %v491, %v1216
      %v1218 = vld [vmem:[%s5] sm:$0x1]
      %v1219 = vld [vmem:[%s6] sm:$0x1]
      %v1220 = vsel %vm516, %v1217, 0.0
      %1221 = vadd.xlane.f32.xlu0 %v1220
      %v1222 = vpop.xlane.xlu0 %1221
      %v1223 = vrcp.pop 32.0
      %v1224 = vmul.f32 %v1222, %v1223
      %v1225 = vsub.f32 %v1217, %v1224
      %v1226 = vmul.f32 %v1225, %v1225
      %v1227 = vsel %vm516, %v1226, 0.0
      %1228 = vadd.xlane.f32.xlu0 %v1227
      %v1229 = vpop.xlane.xlu0 %1228
      %v1230 = vmul.f32 %v1229, %v1223
      %v1231 = vadd.f32 %v1230, 1e-05
      %v1232 = vrsqrt.pop %v1231
      %v1233 = vmul.f32 %v1225, %v1232
      %v1235 = vlaneseq
      %v1236 = vshrl.u32 %v1235, 7
      %v1237 = vsub.s32 0, %v1236
      %v1238 = vrot.slane %v1218, %v1237
      %v1240 = vmul.f32 %v1233, %v1238
      %v1242 = vlaneseq
      %v1243 = vshrl.u32 %v1242, 7
      %v1244 = vsub.s32 0, %v1243
      %v1245 = vrot.slane %v1219, %v1244
      %v1247 = vadd.f32 %v1240, %v1245
      %v1248 = vld [vmem:[%s7] sm:$0xf]
      %v1249 = vld [vmem:[%s7 + $0x4] sm:$0xf]
      %v1250 = vld [vmem:[%s7 + $0x8] sm:$0xf]
      %v1251 = vld [vmem:[%s7 + $0xc] sm:$0xf]
      %v1252 = vld [vmem:[%s8] sm:$0x1]
      %v1253 = vld [vmem:[%s9] sm:$0xf]
      %v1254 = vld [vmem:[%s9 + $0x4] sm:$0xf]
      %v1255 = vld [vmem:[%s9 + $0x8] sm:$0xf]
      %v1256 = vld [vmem:[%s9 + $0xc] sm:$0xf]
      %v1257 = vld [vmem:[%s9 + $0x10] sm:$0xf]
      %v1258 = vld [vmem:[%s9 + $0x14] sm:$0xf]
      %v1259 = vld [vmem:[%s9 + $0x18] sm:$0xf]
      %v1260 = vld [vmem:[%s9 + $0x1c] sm:$0xf]
      %v1261 = vld [vmem:[%s10] sm:$0x1]
      %v1262 = vpack.c.bf16 %v1247, %v1247
      %v1264 = vlaneseq
      %v1265 = vshrl.u32 %v1264, 7
      %v1266 = vsub.s32 0, %v1265
      %v1267 = vrot.slane %v1252, %v1266
      %v1273 = vunpack.c.l.b16 %v1248
      %v1274 = vunpack.c.l.b16 %v1249
      %v1275 = vunpack.c.l.b16 %v1250
      %v1276 = vunpack.c.l.b16 %v1251
      %v1277 = vpack.c.b16 %v1274, %v1273
      %v1278 = vpack.c.b16 %v1276, %v1275
      %v1282 = vsel %vm516, %v1262, 0
      %1284 = vmatprep.subr.bf16.mxu0 0
      %1285 = vmatpush1.bf16.msra.mxu0 0
      %1286 = vmatprep.subr.bf16.mxu0 0
      %1287 = vmatpush1.bf16.msra.mxu0 0
      %1288 = vmatprep.subr.bf16.mxu0 0
      %1289 = vmatpush1.bf16.msra.mxu0 0
      %1290 = vmatprep.subr.bf16.mxu0 0
      %1291 = vmatpush1.bf16.msra.mxu0 0
      %1292 = vmatprep.subr.bf16.mxu0 0
      %1293 = vmatpush1.bf16.msra.mxu0 0
      %1294 = vmatprep.subr.bf16.mxu0 0
      %1295 = vmatpush1.bf16.msra.mxu0 0
      %1296 = vmatprep.subr.bf16.mxu0 0
      %1297 = vmatpush1.bf16.msra.mxu0 %v1278
      %1298 = vmatprep.subr.bf16.mxu0 0
      %1299 = vmatpush1.bf16.msra.mxu0 %v1277
      %1300 = vmatprep.subr.bf16.mxu0 0
      %1301 = vmatpush2.bf16.msra.mxu0 0
      %1302 = vmatprep.subr.bf16.mxu0 0
      %1303 = vmatpush2.bf16.msra.mxu0 0
      %1304 = vmatprep.subr.bf16.mxu0 0
      %1305 = vmatpush2.bf16.msra.mxu0 0
      %1306 = vmatprep.subr.bf16.mxu0 0
      %1307 = vmatpush2.bf16.msra.mxu0 0
      %1308 = vmatprep.subr.bf16.mxu0 0
      %1309 = vmatpush2.bf16.msra.mxu0 0
      %1310 = vmatprep.subr.bf16.mxu0 0
      %1311 = vmatpush2.bf16.msra.mxu0 0
      %1312 = vmatprep.subr.bf16.mxu0 0
      %1313 = vmatpush2.bf16.msra.mxu0 0
      %1314 = vmatprep.subr.bf16.mxu0 0
      %1315 = vmatpush2.bf16.msra.mxu0 0
      %1316 = vmatprep.mubr.bf16.mxu0 0
      %1317 = vmatmul.mubr.bf16.gmra.mxu0 %v1282
      %v1318 = vpop.f32.mrf.mxu0
      %v1319 = vadd.f32 %v1267, %v1318
      %v1320 = vpop.f32.mrf.mxu0
      %v1321 = vpop.f32.mrf.mxu0
      %v1322 = vpop.f32.mrf.mxu0
      %1323 = vdwg.mxu0
      %v1324 = vmax.f32 %v1319, 0.0
      %v1325 = vpack.c.bf16 %v1324, %v1324
      %v1327 = vlaneseq
      %v1328 = vshrl.u32 %v1327, 7
      %v1329 = vsub.s32 0, %v1328
      %v1330 = vrot.slane %v1261, %v1329
      %v1340 = vunpack.c.l.b16 %v1253
      %v1341 = vunpack.c.l.b16 %v1254
      %v1342 = vunpack.c.l.b16 %v1255
      %v1343 = vunpack.c.l.b16 %v1256
      %v1344 = vunpack.c.l.b16 %v1257
      %v1345 = vunpack.c.l.b16 %v1258
      %v1346 = vunpack.c.l.b16 %v1259
      %v1347 = vunpack.c.l.b16 %v1260
      %v1348 = vpack.c.b16 %v1341, %v1340
      %v1349 = vpack.c.b16 %v1343, %v1342
      %v1350 = vpack.c.b16 %v1345, %v1344
      %v1351 = vpack.c.b16 %v1347, %v1346
      %vm1356 = vcmask 523264
      %v1358 = vsel %vm1356, %v1325, 0
      %1360 = vmatprep.subr.bf16.mxu0 0
      %1361 = vmatpush1.bf16.msra.mxu0 0
      %1362 = vmatprep.subr.bf16.mxu0 0
      %1363 = vmatpush1.bf16.msra.mxu0 0
      %1364 = vmatprep.subr.bf16.mxu0 0
      %1365 = vmatpush1.bf16.msra.mxu0 0
      %1366 = vmatprep.subr.bf16.mxu0 0
      %1367 = vmatpush1.bf16.msra.mxu0 0
      %1368 = vmatprep.subr.bf16.mxu0 0
      %1369 = vmatpush1.bf16.msra.mxu0 %v1351
      %1370 = vmatprep.subr.bf16.mxu0 0
      %1371 = vmatpush1.bf16.msra.mxu0 %v1350
      %1372 = vmatprep.subr.bf16.mxu0 0
      %1373 = vmatpush1.bf16.msra.mxu0 %v1349
      %1374 = vmatprep.subr.bf16.mxu0 0
      %1375 = vmatpush1.bf16.msra.mxu0 %v1348
      %1376 = vmatprep.subr.bf16.mxu0 0
      %1377 = vmatpush2.bf16.msra.mxu0 0
      %1378 = vmatprep.subr.bf16.mxu0 0
      %1379 = vmatpush2.bf16.msra.mxu0 0
      %1380 = vmatprep.subr.bf16.mxu0 0
      %1381 = vmatpush2.bf16.msra.mxu0 0
      %1382 = vmatprep.subr.bf16.mxu0 0
      %1383 = vmatpush2.bf16.msra.mxu0 0
      %1384 = vmatprep.subr.bf16.mxu0 0
      %1385 = vmatpush2.bf16.msra.mxu0 0
      %1386 = vmatprep.subr.bf16.mxu0 0
      %1387 = vmatpush2.bf16.msra.mxu0 0
      %1388 = vmatprep.subr.bf16.mxu0 0
      %1389 = vmatpush2.bf16.msra.mxu0 0
      %1390 = vmatprep.subr.bf16.mxu0 0
      %1391 = vmatpush2.bf16.msra.mxu0 0
      %1392 = vmatprep.mubr.bf16.mxu0 0
      %1393 = vmatmul.mubr.bf16.gmra.mxu0 %v1358
      %v1394 = vpop.f32.mrf.mxu0
      %v1395 = vadd.f32 %v1330, %v1394
      %v1396 = vpop.f32.mrf.mxu0
      %v1397 = vpop.f32.mrf.mxu0
      %v1398 = vpop.f32.mrf.mxu0
      %1399 = vdwg.mxu0
      %v1400 = vadd.f32 %v1247, %v1395
      %v1401 = vld [vmem:[%s11] sm:$0x1]
      %v1402 = vld [vmem:[%s12] sm:$0x1]
      %v1403 = vsel %vm516, %v1400, 0.0
      %1404 = vadd.xlane.f32.xlu0 %v1403
      %v1405 = vpop.xlane.xlu0 %1404
      %v1406 = vmul.f32 %v1405, %v1223
      %v1407 = vsub.f32 %v1400, %v1406
      %v1408 = vmul.f32 %v1407, %v1407
      %v1409 = vsel %vm516, %v1408, 0.0
      %1410 = vadd.xlane.f32.xlu0 %v1409
      %v1411 = vpop.xlane.xlu0 %1410
      %v1412 = vmul.f32 %v1411, %v1223
      %v1413 = vadd.f32 %v1412, 1e-05
      %v1414 = vrsqrt.pop %v1413
      %v1415 = vmul.f32 %v1407, %v1414
      %v1417 = vlaneseq
      %v1418 = vshrl.u32 %v1417, 7
      %v1419 = vsub.s32 0, %v1418
      %v1420 = vrot.slane %v1401, %v1419
      %v1422 = vmul.f32 %v1415, %v1420
      %v1424 = vlaneseq
      %v1425 = vshrl.u32 %v1424, 7
      %v1426 = vsub.s32 0, %v1425
      %v1427 = vrot.slane %v1402, %v1426
      %v1429 = vadd.f32 %v1422, %v1427
      %1430 = vst.msk [vmem:[%s489] sm:$0xff] %vm516, %v1429
      %p1431 = scmp.lt.s32.totalorder %s26, 1
      %s1432 = scalar_select %p1431, %s26, 1
      %s1433 = smul.addr %s1432, 8
      %s1434 = scalar_lea.vmem %s15, %s1433
      // Predicated region
      $region81: #{forward.5} parent=79 // pred_check
        %p1435 = pneg %p364
      $region82: #{forward.5} parent=79 // pred_check_branch
        %1437 = sbr.rel (%p1435) target = $region84
      $region83: #{forward.5} parent=79 // pred_region
        _
      $region84: #{forward.5} parent=79 // pred_fallthru
        _
    $region80: #{forward.5} parent=5 // pred_fallthru
      _
    %p1438 = scmp.le.s32.totalorder 2, %s21
    // Predicated region
    $region85: #{forward.5} parent=5 // pred_check
      %p1439 = pneg %p1438
    $region86: #{forward.5} parent=5 // pred_check_branch
      %1441 = sbr.rel (%p1439) target = $region88
    $region87: #{forward.5} parent=5 // pred_region
      %s1442 = ssub.s32 %s21, 2
      // Predicated region
      $region89: #{forward.5} parent=87 // pred_check
        %p1443 = pneg %p370
      $region90: #{forward.5} parent=87 // pred_check_branch
        %1445 = sbr.rel (%p1443) target = $region92
      $region91: #{forward.5} parent=87 // pred_region
        %p1446 = scmp.lt.s32.totalorder %s27, 1
        %s1447 = scalar_select %p1446, %s27, 1
        %s1448 = smul.addr %s1447, 8
        %s1449 = scalar_lea.vmem %s15, %s1448
      $region92: #{forward.5} parent=87 // pred_fallthru
        _
    $region88: #{forward.5} parent=5 // pred_fallthru
      _
  $region6: #{forward.5} parent=0 // loop_footer
    %s25 = sadd.s32 1, %s21
  $region7: #{forward.5} parent=0 // loop_footer_branch
    %20 = sbr.rel target = $region3
  $region8: #{forward.5} parent=0 // loop_exit
    _

// kernel: forward.6
$region0: #{forward.6}
  #allocation0 [shape = 'u32[]', space=smem, size = 0x4, offset = 0x4, fixed_abs, tag = 'smem constant byte address 0x4 - core index']
  #allocation1 [shape = 'u32[144,128]{1,0:T(1,128)}', space=vmem, size = 0x12000, scoped, tag = 'internal scratch']
  %s0 = inlined_call_operand.vmem [shape: f32[2,8,32], index: 0, kind: input, shape index: {}]
  %s1 = inlined_call_operand.vmem [shape: bf16[3,2,32,16], index: 1, kind: input, shape index: {}]
  %s2 = inlined_call_operand.vmem [shape: f32[3,2,1,16], index: 2, kind: input, shape index: {}]
  %s3 = inlined_call_operand.vmem [shape: bf16[2,16,32], index: 3, kind: input, shape index: {}]
  %s4 = inlined_call_operand.vmem [shape: f32[1,32], index: 4, kind: input, shape index: {}]
  %s5 = inlined_call_operand.vmem [shape: f32[1,32], index: 5, kind: input, shape index: {}]
  %s6 = inlined_call_operand.vmem [shape: f32[1,32], index: 6, kind: input, shape index: {}]
  %s7 = inlined_call_operand.vmem [shape: bf16[32,64], index: 7, kind: input, shape index: {}]
  %s8 = inlined_call_operand.vmem [shape: f32[1,64], index: 8, kind: input, shape index: {}]
  %s9 = inlined_call_operand.vmem [shape: bf16[64,32], index: 9, kind: input, shape index: {}]
  %s10 = inlined_call_operand.vmem [shape: f32[1,32], index: 10, kind: input, shape index: {}]
  %s11 = inlined_call_operand.vmem [shape: f32[1,32], index: 11, kind: input, shape index: {}]
  %s12 = inlined_call_operand.vmem [shape: f32[1,32], index: 12, kind: input, shape index: {}]
  %s13 = inlined_call_operand.vmem [shape: f32[1,32], index: 13, kind: input, shape index: {}]
  %s14 = inlined_call_operand.vmem [shape: f32[1,32], index: 14, kind: input, shape index: {}]
  %s15 = inlined_call_operand.vmem [shape: f32[2,8,32], index: 15, kind: output, shape index: {}]
  %s16 = sld [smem:[#allocation0]]
  $region93: #{forward.6} parent=0
    _
  %s18 = ssub.s32 1, %s16
  %s19 = scalar_select 0, %s18, %s16
  loop: start=0, step=1, limit=4
  $region2: #{forward.6} parent=0 // loop_pre_header
    _
  $region3: #{forward.6} parent=0 // loop_header
    %s21 = sphi 0, %s25
    %p22 = scmp.ge.s32.totalorder %s21, 4
    %s31 = sphi 0, %s33
    %s34 = sphi 0, %s31
    %s35 = sphi 0, %s34
    %s51 = sphi 0, %s35
    %s55 = sphi 0, %s55
    %s57 = sphi 0, %s55
    %s58 = sphi 0, %s57
    %s72 = sphi 0, %s58
    %s76 = sphi 0, %s76
    %s78 = sphi 0, %s76
    %s79 = sphi 0, %s78
    %s93 = sphi 0, %s79
    %s97 = sphi 0, %s97
    %s99 = sphi 0, %s97
    %s100 = sphi 0, %s99
    %s114 = sphi 0, %s100
    %s118 = sphi 0, %s118
    %s120 = sphi 0, %s118
    %s121 = sphi 0, %s120
    %s135 = sphi 0, %s121
    %s139 = sphi 0, %s139
    %s141 = sphi 0, %s139
    %s142 = sphi 0, %s141
    %s156 = sphi 0, %s142
    %s160 = sphi 0, %s160
    %s162 = sphi 0, %s160
    %s163 = sphi 0, %s162
    %s177 = sphi 0, %s163
    %s181 = sphi 0, %s181
    %s183 = sphi 0, %s181
    %s184 = sphi 0, %s183
    %s198 = sphi 0, %s184
    %s202 = sphi 0, %s202
    %s204 = sphi 0, %s202
    %s205 = sphi 0, %s204
    %s219 = sphi 0, %s205
    %s223 = sphi 0, %s223
    %s225 = sphi 0, %s223
    %s226 = sphi 0, %s225
    %s240 = sphi 0, %s226
    %s244 = sphi 0, %s244
    %s246 = sphi 0, %s244
    %s247 = sphi 0, %s246
    %s261 = sphi 0, %s247
    %s265 = sphi 0, %s265
    %s267 = sphi 0, %s265
    %s268 = sphi 0, %s267
    %s282 = sphi 0, %s268
    %s286 = sphi 0, %s286
    %s288 = sphi 0, %s286
    %s289 = sphi 0, %s288
    %s303 = sphi 0, %s289
    %s307 = sphi 0, %s307
    %s309 = sphi 0, %s307
    %s310 = sphi 0, %s309
    %s324 = sphi 0, %s310
    %s328 = sphi 0, %s328
    %s330 = sphi 0, %s328
    %s331 = sphi 0, %s330
    %s345 = sphi 0, %s331
    %s351 = sphi 0, %s353
    %s354 = sphi 0, %s351
    %s355 = sphi 0, %s354
    %s371 = sphi 0, %s355
  $region4: #{forward.6} parent=0 // loop_header_branch
    %24 = sbr.rel (%p22) target = $region8
  $region5: #{forward.6} parent=0 // loop_body
    %s26 = ssub.s32 %s21, 1
    %s27 = ssub.s32 %s21, 2
    %s28 = sadd.s32 %s21, 1
    %s29 = ssub.s32 %s21, %s28
    %p30 = scmp.eq.s32.totalorder %s29, 0
    %s32 = sadd.s32 %s31, 1
    %s33 = scalar_select %p30, %s31, %s32
    %p36 = pneg %p30
    %p37 = scmp.eq.s32.totalorder %s21, 1
    %p38 = por %p36, %p37
    %p39 = scmp.ne.s32.totalorder %s31, %s34
    %p40 = scmp.eq.s32.totalorder %s21, 0
    %p41 = por %p39, %p40
    %p42 = scmp.ne.s32.totalorder %s31, %s34
    %p43 = scmp.eq.s32.totalorder %s26, 1
    %p44 = por %p42, %p43
    %p45 = scmp.ne.s32.totalorder %s34, %s35
    %p46 = scmp.eq.s32.totalorder %s26, 0
    %p47 = por %p45, %p46
    %p48 = scmp.ne.s32.totalorder %s34, %s35
    %p49 = scmp.eq.s32.totalorder %s27, 1
    %p50 = por %p48, %p49
    %p52 = scmp.ne.s32.totalorder %s35, %s51
    %p53 = scmp.eq.s32.totalorder %s27, 0
    %p54 = por %p52, %p53
    %s56 = sadd.s32 %s55, 1
    %p59 = scmp.eq.s32.totalorder %s21, 1
    %p60 = scmp.ne.s32.totalorder %s55, %s57
    %p61 = scmp.eq.s32.totalorder %s21, 0
    %p62 = por %p60, %p61
    %p63 = scmp.ne.s32.totalorder %s55, %s57
    %p64 = scmp.eq.s32.totalorder %s26, 1
    %p65 = por %p63, %p64
    %p66 = scmp.ne.s32.totalorder %s57, %s58
    %p67 = scmp.eq.s32.totalorder %s26, 0
    %p68 = por %p66, %p67
    %p69 = scmp.ne.s32.totalorder %s57, %s58
    %p70 = scmp.eq.s32.totalorder %s27, 1
    %p71 = por %p69, %p70
    %p73 = scmp.ne.s32.totalorder %s58, %s72
    %p74 = scmp.eq.s32.totalorder %s27, 0
    %p75 = por %p73, %p74
    %s77 = sadd.s32 %s76, 1
    %p80 = scmp.eq.s32.totalorder %s21, 1
    %p81 = scmp.ne.s32.totalorder %s76, %s78
    %p82 = scmp.eq.s32.totalorder %s21, 0
    %p83 = por %p81, %p82
    %p84 = scmp.ne.s32.totalorder %s76, %s78
    %p85 = scmp.eq.s32.totalorder %s26, 1
    %p86 = por %p84, %p85
    %p87 = scmp.ne.s32.totalorder %s78, %s79
    %p88 = scmp.eq.s32.totalorder %s26, 0
    %p89 = por %p87, %p88
    %p90 = scmp.ne.s32.totalorder %s78, %s79
    %p91 = scmp.eq.s32.totalorder %s27, 1
    %p92 = por %p90, %p91
    %p94 = scmp.ne.s32.totalorder %s79, %s93
    %p95 = scmp.eq.s32.totalorder %s27, 0
    %p96 = por %p94, %p95
    %s98 = sadd.s32 %s97, 1
    %p101 = scmp.eq.s32.totalorder %s21, 1
    %p102 = scmp.ne.s32.totalorder %s97, %s99
    %p103 = scmp.eq.s32.totalorder %s21, 0
    %p104 = por %p102, %p103
    %p105 = scmp.ne.s32.totalorder %s97, %s99
    %p106 = scmp.eq.s32.totalorder %s26, 1
    %p107 = por %p105, %p106
    %p108 = scmp.ne.s32.totalorder %s99, %s100
    %p109 = scmp.eq.s32.totalorder %s26, 0
    %p110 = por %p108, %p109
    %p111 = scmp.ne.s32.totalorder %s99, %s100
    %p112 = scmp.eq.s32.totalorder %s27, 1
    %p113 = por %p111, %p112
    %p115 = scmp.ne.s32.totalorder %s100, %s114
    %p116 = scmp.eq.s32.totalorder %s27, 0
    %p117 = por %p115, %p116
    %s119 = sadd.s32 %s118, 1
    %p122 = scmp.eq.s32.totalorder %s21, 1
    %p123 = scmp.ne.s32.totalorder %s118, %s120
    %p124 = scmp.eq.s32.totalorder %s21, 0
    %p125 = por %p123, %p124
    %p126 = scmp.ne.s32.totalorder %s118, %s120
    %p127 = scmp.eq.s32.totalorder %s26, 1
    %p128 = por %p126, %p127
    %p129 = scmp.ne.s32.totalorder %s120, %s121
    %p130 = scmp.eq.s32.totalorder %s26, 0
    %p131 = por %p129, %p130
    %p132 = scmp.ne.s32.totalorder %s120, %s121
    %p133 = scmp.eq.s32.totalorder %s27, 1
    %p134 = por %p132, %p133
    %p136 = scmp.ne.s32.totalorder %s121, %s135
    %p137 = scmp.eq.s32.totalorder %s27, 0
    %p138 = por %p136, %p137
    %s140 = sadd.s32 %s139, 1
    %p143 = scmp.eq.s32.totalorder %s21, 1
    %p144 = scmp.ne.s32.totalorder %s139, %s141
    %p145 = scmp.eq.s32.totalorder %s21, 0
    %p146 = por %p144, %p145
    %p147 = scmp.ne.s32.totalorder %s139, %s141
    %p148 = scmp.eq.s32.totalorder %s26, 1
    %p149 = por %p147, %p148
    %p150 = scmp.ne.s32.totalorder %s141, %s142
    %p151 = scmp.eq.s32.totalorder %s26, 0
    %p152 = por %p150, %p151
    %p153 = scmp.ne.s32.totalorder %s141, %s142
    %p154 = scmp.eq.s32.totalorder %s27, 1
    %p155 = por %p153, %p154
    %p157 = scmp.ne.s32.totalorder %s142, %s156
    %p158 = scmp.eq.s32.totalorder %s27, 0
    %p159 = por %p157, %p158
    %s161 = sadd.s32 %s160, 1
    %p164 = scmp.eq.s32.totalorder %s21, 1
    %p165 = scmp.ne.s32.totalorder %s160, %s162
    %p166 = scmp.eq.s32.totalorder %s21, 0
    %p167 = por %p165, %p166
    %p168 = scmp.ne.s32.totalorder %s160, %s162
    %p169 = scmp.eq.s32.totalorder %s26, 1
    %p170 = por %p168, %p169
    %p171 = scmp.ne.s32.totalorder %s162, %s163
    %p172 = scmp.eq.s32.totalorder %s26, 0
    %p173 = por %p171, %p172
    %p174 = scmp.ne.s32.totalorder %s162, %s163
    %p175 = scmp.eq.s32.totalorder %s27, 1
    %p176 = por %p174, %p175
    %p178 = scmp.ne.s32.totalorder %s163, %s177
    %p179 = scmp.eq.s32.totalorder %s27, 0
    %p180 = por %p178, %p179
    %s182 = sadd.s32 %s181, 1
    %p185 = scmp.eq.s32.totalorder %s21, 1
    %p186 = scmp.ne.s32.totalorder %s181, %s183
    %p187 = scmp.eq.s32.totalorder %s21, 0
    %p188 = por %p186, %p187
    %p189 = scmp.ne.s32.totalorder %s181, %s183
    %p190 = scmp.eq.s32.totalorder %s26, 1
    %p191 = por %p189, %p190
    %p192 = scmp.ne.s32.totalorder %s183, %s184
    %p193 = scmp.eq.s32.totalorder %s26, 0
    %p194 = por %p192, %p193
    %p195 = scmp.ne.s32.totalorder %s183, %s184
    %p196 = scmp.eq.s32.totalorder %s27, 1
    %p197 = por %p195, %p196
    %p199 = scmp.ne.s32.totalorder %s184, %s198
    %p200 = scmp.eq.s32.totalorder %s27, 0
    %p201 = por %p199, %p200
    %s203 = sadd.s32 %s202, 1
    %p206 = scmp.eq.s32.totalorder %s21, 1
    %p207 = scmp.ne.s32.totalorder %s202, %s204
    %p208 = scmp.eq.s32.totalorder %s21, 0
    %p209 = por %p207, %p208
    %p210 = scmp.ne.s32.totalorder %s202, %s204
    %p211 = scmp.eq.s32.totalorder %s26, 1
    %p212 = por %p210, %p211
    %p213 = scmp.ne.s32.totalorder %s204, %s205
    %p214 = scmp.eq.s32.totalorder %s26, 0
    %p215 = por %p213, %p214
    %p216 = scmp.ne.s32.totalorder %s204, %s205
    %p217 = scmp.eq.s32.totalorder %s27, 1
    %p218 = por %p216, %p217
    %p220 = scmp.ne.s32.totalorder %s205, %s219
    %p221 = scmp.eq.s32.totalorder %s27, 0
    %p222 = por %p220, %p221
    %s224 = sadd.s32 %s223, 1
    %p227 = scmp.eq.s32.totalorder %s21, 1
    %p228 = scmp.ne.s32.totalorder %s223, %s225
    %p229 = scmp.eq.s32.totalorder %s21, 0
    %p230 = por %p228, %p229
    %p231 = scmp.ne.s32.totalorder %s223, %s225
    %p232 = scmp.eq.s32.totalorder %s26, 1
    %p233 = por %p231, %p232
    %p234 = scmp.ne.s32.totalorder %s225, %s226
    %p235 = scmp.eq.s32.totalorder %s26, 0
    %p236 = por %p234, %p235
    %p237 = scmp.ne.s32.totalorder %s225, %s226
    %p238 = scmp.eq.s32.totalorder %s27, 1
    %p239 = por %p237, %p238
    %p241 = scmp.ne.s32.totalorder %s226, %s240
    %p242 = scmp.eq.s32.totalorder %s27, 0
    %p243 = por %p241, %p242
    %s245 = sadd.s32 %s244, 1
    %p248 = scmp.eq.s32.totalorder %s21, 1
    %p249 = scmp.ne.s32.totalorder %s244, %s246
    %p250 = scmp.eq.s32.totalorder %s21, 0
    %p251 = por %p249, %p250
    %p252 = scmp.ne.s32.totalorder %s244, %s246
    %p253 = scmp.eq.s32.totalorder %s26, 1
    %p254 = por %p252, %p253
    %p255 = scmp.ne.s32.totalorder %s246, %s247
    %p256 = scmp.eq.s32.totalorder %s26, 0
    %p257 = por %p255, %p256
    %p258 = scmp.ne.s32.totalorder %s246, %s247
    %p259 = scmp.eq.s32.totalorder %s27, 1
    %p260 = por %p258, %p259
    %p262 = scmp.ne.s32.totalorder %s247, %s261
    %p263 = scmp.eq.s32.totalorder %s27, 0
    %p264 = por %p262, %p263
    %s266 = sadd.s32 %s265, 1
    %p269 = scmp.eq.s32.totalorder %s21, 1
    %p270 = scmp.ne.s32.totalorder %s265, %s267
    %p271 = scmp.eq.s32.totalorder %s21, 0
    %p272 = por %p270, %p271
    %p273 = scmp.ne.s32.totalorder %s265, %s267
    %p274 = scmp.eq.s32.totalorder %s26, 1
    %p275 = por %p273, %p274
    %p276 = scmp.ne.s32.totalorder %s267, %s268
    %p277 = scmp.eq.s32.totalorder %s26, 0
    %p278 = por %p276, %p277
    %p279 = scmp.ne.s32.totalorder %s267, %s268
    %p280 = scmp.eq.s32.totalorder %s27, 1
    %p281 = por %p279, %p280
    %p283 = scmp.ne.s32.totalorder %s268, %s282
    %p284 = scmp.eq.s32.totalorder %s27, 0
    %p285 = por %p283, %p284
    %s287 = sadd.s32 %s286, 1
    %p290 = scmp.eq.s32.totalorder %s21, 1
    %p291 = scmp.ne.s32.totalorder %s286, %s288
    %p292 = scmp.eq.s32.totalorder %s21, 0
    %p293 = por %p291, %p292
    %p294 = scmp.ne.s32.totalorder %s286, %s288
    %p295 = scmp.eq.s32.totalorder %s26, 1
    %p296 = por %p294, %p295
    %p297 = scmp.ne.s32.totalorder %s288, %s289
    %p298 = scmp.eq.s32.totalorder %s26, 0
    %p299 = por %p297, %p298
    %p300 = scmp.ne.s32.totalorder %s288, %s289
    %p301 = scmp.eq.s32.totalorder %s27, 1
    %p302 = por %p300, %p301
    %p304 = scmp.ne.s32.totalorder %s289, %s303
    %p305 = scmp.eq.s32.totalorder %s27, 0
    %p306 = por %p304, %p305
    %s308 = sadd.s32 %s307, 1
    %p311 = scmp.eq.s32.totalorder %s21, 1
    %p312 = scmp.ne.s32.totalorder %s307, %s309
    %p313 = scmp.eq.s32.totalorder %s21, 0
    %p314 = por %p312, %p313
    %p315 = scmp.ne.s32.totalorder %s307, %s309
    %p316 = scmp.eq.s32.totalorder %s26, 1
    %p317 = por %p315, %p316
    %p318 = scmp.ne.s32.totalorder %s309, %s310
    %p319 = scmp.eq.s32.totalorder %s26, 0
    %p320 = por %p318, %p319
    %p321 = scmp.ne.s32.totalorder %s309, %s310
    %p322 = scmp.eq.s32.totalorder %s27, 1
    %p323 = por %p321, %p322
    %p325 = scmp.ne.s32.totalorder %s310, %s324
    %p326 = scmp.eq.s32.totalorder %s27, 0
    %p327 = por %p325, %p326
    %s329 = sadd.s32 %s328, 1
    %p332 = scmp.eq.s32.totalorder %s21, 1
    %p333 = scmp.ne.s32.totalorder %s328, %s330
    %p334 = scmp.eq.s32.totalorder %s21, 0
    %p335 = por %p333, %p334
    %p336 = scmp.ne.s32.totalorder %s328, %s330
    %p337 = scmp.eq.s32.totalorder %s26, 1
    %p338 = por %p336, %p337
    %p339 = scmp.ne.s32.totalorder %s330, %s331
    %p340 = scmp.eq.s32.totalorder %s26, 0
    %p341 = por %p339, %p340
    %p342 = scmp.ne.s32.totalorder %s330, %s331
    %p343 = scmp.eq.s32.totalorder %s27, 1
    %p344 = por %p342, %p343
    %p346 = scmp.ne.s32.totalorder %s331, %s345
    %p347 = scmp.eq.s32.totalorder %s27, 0
    %p348 = por %p346, %p347
    %s349 = ssub.s32 %s21, %s28
    %p350 = scmp.eq.s32.totalorder %s349, 0
    %s352 = sadd.s32 %s351, 1
    %s353 = scalar_select %p350, %s351, %s352
    %p356 = pneg %p350
    %p357 = scmp.eq.s32.totalorder %s21, 1
    %p358 = por %p356, %p357
    %p359 = scmp.ne.s32.totalorder %s351, %s354
    %p360 = scmp.eq.s32.totalorder %s21, 0
    %p361 = por %p359, %p360
    %p362 = scmp.ne.s32.totalorder %s351, %s354
    %p363 = scmp.eq.s32.totalorder %s26, 1
    %p364 = por %p362, %p363
    %p365 = scmp.ne.s32.totalorder %s354, %s355
    %p366 = scmp.eq.s32.totalorder %s26, 0
    %p367 = por %p365, %p366
    %p368 = scmp.ne.s32.totalorder %s354, %s355
    %p369 = scmp.eq.s32.totalorder %s27, 1
    %p370 = por %p368, %p369
    %p372 = scmp.ne.s32.totalorder %s355, %s371
    %p373 = scmp.eq.s32.totalorder %s27, 0
    %p374 = por %p372, %p373
    %p375 = scmp.le.s32.totalorder 1, %s21
    %p376 = scmp.lt.s32.totalorder %s21, 3
    %p377 = pnand %p375, %p376
    %p378 = pneg %p377
    // Predicated region
    $region9: #{forward.6} parent=5 // pred_check
      _
    $region10: #{forward.6} parent=5 // pred_check_branch
      %380 = sbr.rel (%p377) target = $region12
    $region11: #{forward.6} parent=5 // pred_region
      %s381 = ssub.s32 %s21, 1
      // Predicated region
      $region13: #{forward.6} parent=11 // pred_check
        %p382 = pneg %p68
      $region14: #{forward.6} parent=11 // pred_check_branch
        %384 = sbr.rel (%p382) target = $region16
      $region15: #{forward.6} parent=11 // pred_region
        _
      $region16: #{forward.6} parent=11 // pred_fallthru
        _
      // Predicated region
      $region17: #{forward.6} parent=11 // pred_check
        %p385 = pneg %p89
      $region18: #{forward.6} parent=11 // pred_check_branch
        %387 = sbr.rel (%p385) target = $region20
      $region19: #{forward.6} parent=11 // pred_region
        _
      $region20: #{forward.6} parent=11 // pred_fallthru
        _
      // Predicated region
      $region21: #{forward.6} parent=11 // pred_check
        %p388 = pneg %p110
      $region22: #{forward.6} parent=11 // pred_check_branch
        %390 = sbr.rel (%p388) target = $region24
      $region23: #{forward.6} parent=11 // pred_region
        _
      $region24: #{forward.6} parent=11 // pred_fallthru
        _
      // Predicated region
      $region25: #{forward.6} parent=11 // pred_check
        %p391 = pneg %p131
      $region26: #{forward.6} parent=11 // pred_check_branch
        %393 = sbr.rel (%p391) target = $region28
      $region27: #{forward.6} parent=11 // pred_region
        _
      $region28: #{forward.6} parent=11 // pred_fallthru
        _
      // Predicated region
      $region29: #{forward.6} parent=11 // pred_check
        %p394 = pneg %p152
      $region30: #{forward.6} parent=11 // pred_check_branch
        %396 = sbr.rel (%p394) target = $region32
      $region31: #{forward.6} parent=11 // pred_region
        _
      $region32: #{forward.6} parent=11 // pred_fallthru
        _
      // Predicated region
      $region33: #{forward.6} parent=11 // pred_check
        %p397 = pneg %p173
      $region34: #{forward.6} parent=11 // pred_check_branch
        %399 = sbr.rel (%p397) target = $region36
      $region35: #{forward.6} parent=11 // pred_region
        _
      $region36: #{forward.6} parent=11 // pred_fallthru
        _
      // Predicated region
      $region37: #{forward.6} parent=11 // pred_check
        %p400 = pneg %p194
      $region38: #{forward.6} parent=11 // pred_check_branch
        %402 = sbr.rel (%p400) target = $region40
      $region39: #{forward.6} parent=11 // pred_region
        _
      $region40: #{forward.6} parent=11 // pred_fallthru
        _
      // Predicated region
      $region41: #{forward.6} parent=11 // pred_check
        %p403 = pneg %p215
      $region42: #{forward.6} parent=11 // pred_check_branch
        %405 = sbr.rel (%p403) target = $region44
      $region43: #{forward.6} parent=11 // pred_region
        _
      $region44: #{forward.6} parent=11 // pred_fallthru
        _
      // Predicated region
      $region45: #{forward.6} parent=11 // pred_check
        %p406 = pneg %p236
      $region46: #{forward.6} parent=11 // pred_check_branch
        %408 = sbr.rel (%p406) target = $region48
      $region47: #{forward.6} parent=11 // pred_region
        _
      $region48: #{forward.6} parent=11 // pred_fallthru
        _
      // Predicated region
      $region49: #{forward.6} parent=11 // pred_check
        %p409 = pneg %p257
      $region50: #{forward.6} parent=11 // pred_check_branch
        %411 = sbr.rel (%p409) target = $region52
      $region51: #{forward.6} parent=11 // pred_region
        _
      $region52: #{forward.6} parent=11 // pred_fallthru
        _
      // Predicated region
      $region53: #{forward.6} parent=11 // pred_check
        %p412 = pneg %p278
      $region54: #{forward.6} parent=11 // pred_check_branch
        %414 = sbr.rel (%p412) target = $region56
      $region55: #{forward.6} parent=11 // pred_region
        _
      $region56: #{forward.6} parent=11 // pred_fallthru
        _
      // Predicated region
      $region57: #{forward.6} parent=11 // pred_check
        %p415 = pneg %p299
      $region58: #{forward.6} parent=11 // pred_check_branch
        %417 = sbr.rel (%p415) target = $region60
      $region59: #{forward.6} parent=11 // pred_region
        _
      $region60: #{forward.6} parent=11 // pred_fallthru
        _
      // Predicated region
      $region61: #{forward.6} parent=11 // pred_check
        %p418 = pneg %p320
      $region62: #{forward.6} parent=11 // pred_check_branch
        %420 = sbr.rel (%p418) target = $region64
      $region63: #{forward.6} parent=11 // pred_region
        _
      $region64: #{forward.6} parent=11 // pred_fallthru
        _
      // Predicated region
      $region65: #{forward.6} parent=11 // pred_check
        %p421 = pneg %p341
      $region66: #{forward.6} parent=11 // pred_check_branch
        %423 = sbr.rel (%p421) target = $region68
      $region67: #{forward.6} parent=11 // pred_region
        _
      $region68: #{forward.6} parent=11 // pred_fallthru
        _
    $region12: #{forward.6} parent=5 // pred_fallthru
      _
    %p424 = scmp.lt.s32.totalorder %s21, 2
    // Predicated region
    $region69: #{forward.6} parent=5 // pred_check
      %p425 = pneg %p424
    $region70: #{forward.6} parent=5 // pred_check_branch
      %427 = sbr.rel (%p425) target = $region72
    $region71: #{forward.6} parent=5 // pred_region
      // Predicated region
      $region73: #{forward.6} parent=71 // pred_check
        %p428 = pneg %p41
      $region74: #{forward.6} parent=71 // pred_check_branch
        %430 = sbr.rel (%p428) target = $region76
      $region75: #{forward.6} parent=71 // pred_region
        %p431 = scmp.lt.s32.totalorder %s21, 1
        %s432 = scalar_select %p431, %s21, 1
        %s433 = smul.addr %s432, 8
        %s434 = scalar_lea.vmem %s0, %s433
      $region76: #{forward.6} parent=71 // pred_fallthru
        _
    $region72: #{forward.6} parent=5 // pred_fallthru
      _
    %p435 = scmp.le.s32.totalorder 1, %s21
    %p436 = scmp.lt.s32.totalorder %s21, 3
    %p437 = pnand %p435, %p436
    %p438 = pneg %p437
    // Predicated region
    $region77: #{forward.6} parent=5 // pred_check
      _
    $region78: #{forward.6} parent=5 // pred_check_branch
      %440 = sbr.rel (%p437) target = $region80
    $region79: #{forward.6} parent=5 // pred_region
      %s441 = ssub.s32 %s21, 1
      %p442 = scmp.lt.s32.totalorder %s26, 1
      %s443 = scalar_select %p442, %s26, 1
      %s444 = smul.addr %s443, 8
      %s445 = scalar_lea.vmem %s0, %s444
      %p446 = pneg %p47
      %p447 = pneg %p44
      %p448 = pneg %p68
      %p449 = pneg %p65
      %p450 = pneg %p89
      %p451 = pneg %p86
      %p452 = pneg %p110
      %p453 = pneg %p107
      %p454 = pneg %p131
      %p455 = pneg %p128
      %p456 = pneg %p152
      %p457 = pneg %p149
      %p458 = pneg %p173
      %p459 = pneg %p170
      %p460 = pneg %p194
      %p461 = pneg %p191
      %p462 = pneg %p215
      %p463 = pneg %p212
      %p464 = pneg %p236
      %p465 = pneg %p233
      %p466 = pneg %p257
      %p467 = pneg %p254
      %p468 = pneg %p278
      %p469 = pneg %p275
      %p470 = pneg %p299
      %p471 = pneg %p296
      %p472 = pneg %p320
      %p473 = pneg %p317
      %p474 = pneg %p341
      %p475 = pneg %p338
      %p476 = pneg %p367
      %p477 = pneg %p364
      %p478 = scmp.lt.s32.totalorder %s26, 1
      %s479 = scalar_select %p478, %s26, 1
      %s480 = smul.addr %s479, 8
      %s481 = scalar_lea.vmem %s15, %s480
      %p482 = scmp.lt.s32.totalorder %s26, 1
      %s483 = scalar_select %p482, %s26, 1
      %s484 = smul.addr %s483, 8
      %s485 = scalar_lea.vmem %s0, %s484
      %p486 = scmp.lt.s32.totalorder %s26, 1
      %s487 = scalar_select %p486, %s26, 1
      %s488 = smul.addr %s487, 8
      %s489 = scalar_lea.vmem %s15, %s488
      %v491 = vld [vmem:[%s485] sm:$0xff]
      %v492 = vpack.c.bf16 %v491, %v491
      %v493 = vld [vmem:[%s1] sm:$0xf]
      %v494 = vld [vmem:[%s1 + $0x4] sm:$0xf]
      %v495 = vld [vmem:[%s1 + $0x8] sm:$0xf]
      %v496 = vld [vmem:[%s1 + $0xc] sm:$0xf]
      %v497 = vld [vmem:[%s2] sm:$0x1]
      %v499 = vlaneseq
      %v500 = vshrl.u32 %v499, 7
      %v501 = vsub.s32 0, %v500
      %v502 = vrot.slane %v497, %v501
      %v508 = vunpack.c.l.b16 %v493
      %v509 = vunpack.c.l.b16 %v494
      %v510 = vunpack.c.l.b16 %v495
      %v511 = vunpack.c.l.b16 %v496
      %v512 = vpack.c.b16 %v509, %v508
      %v513 = vpack.c.b16 %v511, %v510
      %vm516 = vcmask 261120
      %v518 = vsel %vm516, %v492, 0
      %520 = vmatprep.subr.bf16.mxu0 0
      %521 = vmatpush1.bf16.msra.mxu0 0
      %522 = vmatprep.subr.bf16.mxu0 0
      %523 = vmatpush1.bf16.msra.mxu0 0
      %524 = vmatprep.subr.bf16.mxu0 0
      %525 = vmatpush1.bf16.msra.mxu0 0
      %526 = vmatprep.subr.bf16.mxu0 0
      %527 = vmatpush1.bf16.msra.mxu0 0
      %528 = vmatprep.subr.bf16.mxu0 0
      %529 = vmatpush1.bf16.msra.mxu0 0
      %530 = vmatprep.subr.bf16.mxu0 0
      %531 = vmatpush1.bf16.msra.mxu0 0
      %532 = vmatprep.subr.bf16.mxu0 0
      %533 = vmatpush1.bf16.msra.mxu0 %v513
      %534 = vmatprep.subr.bf16.mxu0 0
      %535 = vmatpush1.bf16.msra.mxu0 %v512
      %536 = vmatprep.subr.bf16.mxu0 0
      %537 = vmatpush2.bf16.msra.mxu0 0
      %538 = vmatprep.subr.bf16.mxu0 0
      %539 = vmatpush2.bf16.msra.mxu0 0
      %540 = vmatprep.subr.bf16.mxu0 0
      %541 = vmatpush2.bf16.msra.mxu0 0
      %542 = vmatprep.subr.bf16.mxu0 0
      %543 = vmatpush2.bf16.msra.mxu0 0
      %544 = vmatprep.subr.bf16.mxu0 0
      %545 = vmatpush2.bf16.msra.mxu0 0
      %546 = vmatprep.subr.bf16.mxu0 0
      %547 = vmatpush2.bf16.msra.mxu0 0
      %548 = vmatprep.subr.bf16.mxu0 0
      %549 = vmatpush2.bf16.msra.mxu0 0
      %550 = vmatprep.subr.bf16.mxu0 0
      %551 = vmatpush2.bf16.msra.mxu0 0
      %552 = vmatprep.mubr.bf16.mxu0 0
      %553 = vmatmul.mubr.bf16.gmra.mxu0 %v518
      %v554 = vpop.f32.mrf.mxu0
      %v555 = vadd.f32 %v502, %v554
      %v556 = vpop.f32.mrf.mxu0
      %v557 = vpop.f32.mrf.mxu0
      %v558 = vpop.f32.mrf.mxu0
      %559 = vdwg.mxu0
      %s560 = scalar_lea.vmem %s1, 32
      %v561 = vld [vmem:[%s560] sm:$0xf]
      %v562 = vld [vmem:[%s560 + $0x4] sm:$0xf]
      %v563 = vld [vmem:[%s560 + $0x8] sm:$0xf]
      %v564 = vld [vmem:[%s560 + $0xc] sm:$0xf]
      %s565 = scalar_lea.vmem %s2, 2
      %v566 = vld [vmem:[%s565] sm:$0x1]
      %v568 = vlaneseq
      %v569 = vshrl.u32 %v568, 7
      %v570 = vsub.s32 0, %v569
      %v571 = vrot.slane %v566, %v570
      %v577 = vunpack.c.l.b16 %v561
      %v578 = vunpack.c.l.b16 %v562
      %v579 = vunpack.c.l.b16 %v563
      %v580 = vunpack.c.l.b16 %v564
      %v581 = vpack.c.b16 %v578, %v577
      %v582 = vpack.c.b16 %v580, %v579
      %585 = vmatprep.subr.bf16.mxu0 0
      %586 = vmatpush1.bf16.msra.mxu0 0
      %587 = vmatprep.subr.bf16.mxu0 0
      %588 = vmatpush1.bf16.msra.mxu0 0
      %589 = vmatprep.subr.bf16.mxu0 0
      %590 = vmatpush1.bf16.msra.mxu0 0
      %591 = vmatprep.subr.bf16.mxu0 0
      %592 = vmatpush1.bf16.msra.mxu0 0
      %593 = vmatprep.subr.bf16.mxu0 0
      %594 = vmatpush1.bf16.msra.mxu0 0
      %595 = vmatprep.subr.bf16.mxu0 0
      %596 = vmatpush1.bf16.msra.mxu0 0
      %597 = vmatprep.subr.bf16.mxu0 0
      %598 = vmatpush1.bf16.msra.mxu0 %v582
      %599 = vmatprep.subr.bf16.mxu0 0
      %600 = vmatpush1.bf16.msra.mxu0 %v581
      %601 = vmatprep.subr.bf16.mxu0 0
      %602 = vmatpush2.bf16.msra.mxu0 0
      %603 = vmatprep.subr.bf16.mxu0 0
      %604 = vmatpush2.bf16.msra.mxu0 0
      %605 = vmatprep.subr.bf16.mxu0 0
      %606 = vmatpush2.bf16.msra.mxu0 0
      %607 = vmatprep.subr.bf16.mxu0 0
      %608 = vmatpush2.bf16.msra.mxu0 0
      %609 = vmatprep.subr.bf16.mxu0 0
      %610 = vmatpush2.bf16.msra.mxu0 0
      %611 = vmatprep.subr.bf16.mxu0 0
      %612 = vmatpush2.bf16.msra.mxu0 0
      %613 = vmatprep.subr.bf16.mxu0 0
      %614 = vmatpush2.bf16.msra.mxu0 0
      %615 = vmatprep.subr.bf16.mxu0 0
      %616 = vmatpush2.bf16.msra.mxu0 0
      %617 = vmatprep.mubr.bf16.mxu0 0
      %618 = vmatmul.mubr.bf16.gmra.mxu0 %v518
      %v619 = vpop.f32.mrf.mxu0
      %v620 = vadd.f32 %v571, %v619
      %v621 = vpop.f32.mrf.mxu0
      %v622 = vpop.f32.mrf.mxu0
      %v623 = vpop.f32.mrf.mxu0
      %624 = vdwg.mxu0
      %s625 = scalar_lea.vmem %s1, 64
      %v626 = vld [vmem:[%s625] sm:$0xf]
      %v627 = vld [vmem:[%s625 + $0x4] sm:$0xf]
      %v628 = vld [vmem:[%s625 + $0x8] sm:$0xf]
      %v629 = vld [vmem:[%s625 + $0xc] sm:$0xf]
      %s630 = scalar_lea.vmem %s2, 4
      %v631 = vld [vmem:[%s630] sm:$0x1]
      %v633 = vlaneseq
      %v634 = vshrl.u32 %v633, 7
      %v635 = vsub.s32 0, %v634
      %v636 = vrot.slane %v631, %v635
      %v642 = vunpack.c.l.b16 %v626
      %v643 = vunpack.c.l.b16 %v627
      %v644 = vunpack.c.l.b16 %v628
      %v645 = vunpack.c.l.b16 %v629
      %v646 = vpack.c.b16 %v643, %v642
      %v647 = vpack.c.b16 %v645, %v644
      %650 = vmatprep.subr.bf16.mxu0 0
      %651 = vmatpush1.bf16.msra.mxu0 0
      %652 = vmatprep.subr.bf16.mxu0 0
      %653 = vmatpush1.bf16.msra.mxu0 0
      %654 = vmatprep.subr.bf16.mxu0 0
      %655 = vmatpush1.bf16.msra.mxu0 0
      %656 = vmatprep.subr.bf16.mxu0 0
      %657 = vmatpush1.bf16.msra.mxu0 0
      %658 = vmatprep.subr.bf16.mxu0 0
      %659 = vmatpush1.bf16.msra.mxu0 0
      %660 = vmatprep.subr.bf16.mxu0 0
      %661 = vmatpush1.bf16.msra.mxu0 0
      %662 = vmatprep.subr.bf16.mxu0 0
      %663 = vmatpush1.bf16.msra.mxu0 %v647
      %664 = vmatprep.subr.bf16.mxu0 0
      %665 = vmatpush1.bf16.msra.mxu0 %v646
      %666 = vmatprep.subr.bf16.mxu0 0
      %667 = vmatpush2.bf16.msra.mxu0 0
      %668 = vmatprep.subr.bf16.mxu0 0
      %669 = vmatpush2.bf16.msra.mxu0 0
      %670 = vmatprep.subr.bf16.mxu0 0
      %671 = vmatpush2.bf16.msra.mxu0 0
      %672 = vmatprep.subr.bf16.mxu0 0
      %673 = vmatpush2.bf16.msra.mxu0 0
      %674 = vmatprep.subr.bf16.mxu0 0
      %675 = vmatpush2.bf16.msra.mxu0 0
      %676 = vmatprep.subr.bf16.mxu0 0
      %677 = vmatpush2.bf16.msra.mxu0 0
      %678 = vmatprep.subr.bf16.mxu0 0
      %679 = vmatpush2.bf16.msra.mxu0 0
      %680 = vmatprep.subr.bf16.mxu0 0
      %681 = vmatpush2.bf16.msra.mxu0 0
      %682 = vmatprep.mubr.bf16.mxu0 0
      %683 = vmatmul.mubr.bf16.gmra.mxu0 %v518
      %v684 = vpop.f32.mrf.mxu0
      %v685 = vadd.f32 %v636, %v684
      %v686 = vpop.f32.mrf.mxu0
      %v687 = vpop.f32.mrf.mxu0
      %v688 = vpop.f32.mrf.mxu0
      %689 = vdwg.mxu0
      %v690 = vpack.c.bf16 %v555, %v555
      %v691 = vpack.c.bf16 %v620, %v620
      %vm692 = vcmask 130048
      %v694 = vsel %vm692, %v690, 0
      %v697 = vsel %vm692, %v691, 0
      %699 = vmatprep.subr.bf16.mxu0 0
      %700 = vmatpush1.bf16.xpose.msra.mxu0 0
      %701 = vmatprep.subr.bf16.mxu0 0
      %702 = vmatpush1.bf16.xpose.msra.mxu0 0
      %703 = vmatprep.subr.bf16.mxu0 0
      %704 = vmatpush1.bf16.xpose.msra.mxu0 0
      %705 = vmatprep.subr.bf16.mxu0 0
      %706 = vmatpush1.bf16.xpose.msra.mxu0 0
      %707 = vmatprep.subr.bf16.mxu0 0
      %708 = vmatpush1.bf16.xpose.msra.mxu0 0
      %709 = vmatprep.subr.bf16.mxu0 0
      %710 = vmatpush1.bf16.xpose.msra.mxu0 0
      %711 = vmatprep.subr.bf16.mxu0 0
      %712 = vmatpush1.bf16.xpose.msra.mxu0 0
      %713 = vmatprep.subr.bf16.mxu0 0
      %714 = vmatpush1.bf16.xpose.msra.mxu0 %v697
      %715 = vmatprep.subr.bf16.mxu0 0
      %716 = vmatpush2.bf16.xpose.msra.mxu0 0
      %717 = vmatprep.subr.bf16.mxu0 0
      %718 = vmatpush2.bf16.xpose.msra.mxu0 0
      %719 = vmatprep.subr.bf16.mxu0 0
      %720 = vmatpush2.bf16.xpose.msra.mxu0 0
      %721 = vmatprep.subr.bf16.mxu0 0
      %722 = vmatpush2.bf16.xpose.msra.mxu0 0
      %723 = vmatprep.subr.bf16.mxu0 0
      %724 = vmatpush2.bf16.xpose.msra.mxu0 0
      %725 = vmatprep.subr.bf16.mxu0 0
      %726 = vmatpush2.bf16.xpose.msra.mxu0 0
      %727 = vmatprep.subr.bf16.mxu0 0
      %728 = vmatpush2.bf16.xpose.msra.mxu0 0
      %729 = vmatprep.subr.bf16.mxu0 0
      %730 = vmatpush2.bf16.xpose.msra.mxu0 0
      %731 = vmatprep.mubr.bf16.mxu0 0
      %732 = vmatmul.mubr.bf16.gmra.mxu0 %v694
      %v733 = vpop.f32.mrf.mxu0
      %v734 = vadd.f32 0.0, %v733
      %v735 = vpop.f32.mrf.mxu0
      %v736 = vpop.f32.mrf.mxu0
      %v737 = vpop.f32.mrf.mxu0
      %738 = vdwg.mxu0
      %v739 = vmul.f32 %v734, 0.25
      %vm740 = vcmask 64512
      %v741 = vsel %vm740, %v739, -inf
      %742 = vmax.xlane.f32.xlu0 %v741
      %v743 = vpop.xlane.xlu0 %742
      %v744 = vsub.f32 %v739, %v743
      %v745 = vmul.f32 %v744, 1.442695
      %v746 = vpow.pop %v745
      %v747 = vsel %vm740, %v746, 0.0
      %748 = vadd.xlane.f32.xlu0 %v747
      %v749 = vpop.xlane.xlu0 %748
      %v750 = vrcp.pop %v749
      %v751 = vmul.f32 %v746, %v750
      %v752 = vpack.c.bf16 %v751, %v751
      %v753 = vpack.c.bf16 %v685, %v685
      %v755 = vsel %vm740, %v752, 0
      %vm757 = vcmask 1043456
      %v759 = vsel %vm757, %v753, 0
      %761 = vmatprep.subr.bf16.mxu0 0
      %762 = vmatpush1.bf16.msra.mxu0 0
      %763 = vmatprep.subr.bf16.mxu0 0
      %764 = vmatpush1.bf16.msra.mxu0 0
      %765 = vmatprep.subr.bf16.mxu0 0
      %766 = vmatpush1.bf16.msra.mxu0 0
      %767 = vmatprep.subr.bf16.mxu0 0
      %768 = vmatpush1.bf16.msra.mxu0 0
      %769 = vmatprep.subr.bf16.mxu0 0
      %770 = vmatpush1.bf16.msra.mxu0 0
      %771 = vmatprep.subr.bf16.mxu0 0
      %772 = vmatpush1.bf16.msra.mxu0 0
      %773 = vmatprep.subr.bf16.mxu0 0
      %774 = vmatpush1.bf16.msra.mxu0 0
      %775 = vmatprep.subr.bf16.mxu0 0
      %776 = vmatpush1.bf16.msra.mxu0 %v759
      %777 = vmatprep.subr.bf16.mxu0 0
      %778 = vmatpush2.bf16.msra.mxu0 0
      %779 = vmatprep.subr.bf16.mxu0 0
      %780 = vmatpush2.bf16.msra.mxu0 0
      %781 = vmatprep.subr.bf16.mxu0 0
      %782 = vmatpush2.bf16.msra.mxu0 0
      %783 = vmatprep.subr.bf16.mxu0 0
      %784 = vmatpush2.bf16.msra.mxu0 0
      %785 = vmatprep.subr.bf16.mxu0 0
      %786 = vmatpush2.bf16.msra.mxu0 0
      %787 = vmatprep.subr.bf16.mxu0 0
      %788 = vmatpush2.bf16.msra.mxu0 0
      %789 = vmatprep.subr.bf16.mxu0 0
      %790 = vmatpush2.bf16.msra.mxu0 0
      %791 = vmatprep.subr.bf16.mxu0 0
      %792 = vmatpush2.bf16.msra.mxu0 0
      %793 = vmatprep.mubr.bf16.mxu0 0
      %794 = vmatmul.mubr.bf16.gmra.mxu0 %v755
      %v795 = vpop.f32.mrf.mxu0
      %v796 = vadd.f32 0.0, %v795
      %v797 = vpop.f32.mrf.mxu0
      %v798 = vpop.f32.mrf.mxu0
      %v799 = vpop.f32.mrf.mxu0
      %800 = vdwg.mxu0
      %v801 = vpack.c.bf16 %v796, %v796
      %v802 = vld [vmem:[%s3] sm:$0xf]
      %v803 = vld [vmem:[%s3 + $0x4] sm:$0xf]
      %s804 = scalar_lea.vmem %s1, 16
      %v805 = vld [vmem:[%s804] sm:$0xf]
      %v806 = vld [vmem:[%s804 + $0x4] sm:$0xf]
      %v807 = vld [vmem:[%s804 + $0x8] sm:$0xf]
      %v808 = vld [vmem:[%s804 + $0xc] sm:$0xf]
      %s809 = scalar_lea.vmem %s2, 1
      %v810 = vld [vmem:[%s809] sm:$0x1]
      %v812 = vlaneseq
      %v813 = vshrl.u32 %v812, 7
      %v814 = vsub.s32 0, %v813
      %v815 = vrot.slane %v810, %v814
      %v821 = vunpack.c.l.b16 %v805
      %v822 = vunpack.c.l.b16 %v806
      %v823 = vunpack.c.l.b16 %v807
      %v824 = vunpack.c.l.b16 %v808
      %v825 = vpack.c.b16 %v822, %v821
      %v826 = vpack.c.b16 %v824, %v823
      %829 = vmatprep.subr.bf16.mxu0 0
      %830 = vmatpush1.bf16.msra.mxu0 0
      %831 = vmatprep.subr.bf16.mxu0 0
      %832 = vmatpush1.bf16.msra.mxu0 0
      %833 = vmatprep.subr.bf16.mxu0 0
      %834 = vmatpush1.bf16.msra.mxu0 0
      %835 = vmatprep.subr.bf16.mxu0 0
      %836 = vmatpush1.bf16.msra.mxu0 0
      %837 = vmatprep.subr.bf16.mxu0 0
      %838 = vmatpush1.bf16.msra.mxu0 0
      %839 = vmatprep.subr.bf16.mxu0 0
      %840 = vmatpush1.bf16.msra.mxu0 0
      %841 = vmatprep.subr.bf16.mxu0 0
      %842 = vmatpush1.bf16.msra.mxu0 %v826
      %843 = vmatprep.subr.bf16.mxu0 0
      %844 = vmatpush1.bf16.msra.mxu0 %v825
      %845 = vmatprep.subr.bf16.mxu0 0
      %846 = vmatpush2.bf16.msra.mxu0 0
      %847 = vmatprep.subr.bf16.mxu0 0
      %848 = vmatpush2.bf16.msra.mxu0 0
      %849 = vmatprep.subr.bf16.mxu0 0
      %850 = vmatpush2.bf16.msra.mxu0 0
      %851 = vmatprep.subr.bf16.mxu0 0
      %852 = vmatpush2.bf16.msra.mxu0 0
      %853 = vmatprep.subr.bf16.mxu0 0
      %854 = vmatpush2.bf16.msra.mxu0 0
      %855 = vmatprep.subr.bf16.mxu0 0
      %856 = vmatpush2.bf16.msra.mxu0 0
      %857 = vmatprep.subr.bf16.mxu0 0
      %858 = vmatpush2.bf16.msra.mxu0 0
      %859 = vmatprep.subr.bf16.mxu0 0
      %860 = vmatpush2.bf16.msra.mxu0 0
      %861 = vmatprep.mubr.bf16.mxu0 0
      %862 = vmatmul.mubr.bf16.gmra.mxu0 %v518
      %v863 = vpop.f32.mrf.mxu0
      %v864 = vadd.f32 %v815, %v863
      %v865 = vpop.f32.mrf.mxu0
      %v866 = vpop.f32.mrf.mxu0
      %v867 = vpop.f32.mrf.mxu0
      %868 = vdwg.mxu0
      %s869 = scalar_lea.vmem %s1, 48
      %v870 = vld [vmem:[%s869] sm:$0xf]
      %v871 = vld [vmem:[%s869 + $0x4] sm:$0xf]
      %v872 = vld [vmem:[%s869 + $0x8] sm:$0xf]
      %v873 = vld [vmem:[%s869 + $0xc] sm:$0xf]
      %s874 = scalar_lea.vmem %s2, 3
      %v875 = vld [vmem:[%s874] sm:$0x1]
      %v877 = vlaneseq
      %v878 = vshrl.u32 %v877, 7
      %v879 = vsub.s32 0, %v878
      %v880 = vrot.slane %v875, %v879
      %v886 = vunpack.c.l.b16 %v870
      %v887 = vunpack.c.l.b16 %v871
      %v888 = vunpack.c.l.b16 %v872
      %v889 = vunpack.c.l.b16 %v873
      %v890 = vpack.c.b16 %v887, %v886
      %v891 = vpack.c.b16 %v889, %v888
      %894 = vmatprep.subr.bf16.mxu0 0
      %895 = vmatpush1.bf16.msra.mxu0 0
      %896 = vmatprep.subr.bf16.mxu0 0
      %897 = vmatpush1.bf16.msra.mxu0 0
      %898 = vmatprep.subr.bf16.mxu0 0
      %899 = vmatpush1.bf16.msra.mxu0 0
      %900 = vmatprep.subr.bf16.mxu0 0
      %901 = vmatpush1.bf16.msra.mxu0 0
      %902 = vmatprep.subr.bf16.mxu0 0
      %903 = vmatpush1.bf16.msra.mxu0 0
      %904 = vmatprep.subr.bf16.mxu0 0
      %905 = vmatpush1.bf16.msra.mxu0 0
      %906 = vmatprep.subr.bf16.mxu0 0
      %907 = vmatpush1.bf16.msra.mxu0 %v891
      %908 = vmatprep.subr.bf16.mxu0 0
      %909 = vmatpush1.bf16.msra.mxu0 %v890
      %910 = vmatprep.subr.bf16.mxu0 0
      %911 = vmatpush2.bf16.msra.mxu0 0
      %912 = vmatprep.subr.bf16.mxu0 0
      %913 = vmatpush2.bf16.msra.mxu0 0
      %914 = vmatprep.subr.bf16.mxu0 0
      %915 = vmatpush2.bf16.msra.mxu0 0
      %916 = vmatprep.subr.bf16.mxu0 0
      %917 = vmatpush2.bf16.msra.mxu0 0
      %918 = vmatprep.subr.bf16.mxu0 0
      %919 = vmatpush2.bf16.msra.mxu0 0
      %920 = vmatprep.subr.bf16.mxu0 0
      %921 = vmatpush2.bf16.msra.mxu0 0
      %922 = vmatprep.subr.bf16.mxu0 0
      %923 = vmatpush2.bf16.msra.mxu0 0
      %924 = vmatprep.subr.bf16.mxu0 0
      %925 = vmatpush2.bf16.msra.mxu0 0
      %926 = vmatprep.mubr.bf16.mxu0 0
      %927 = vmatmul.mubr.bf16.gmra.mxu0 %v518
      %v928 = vpop.f32.mrf.mxu0
      %v929 = vadd.f32 %v880, %v928
      %v930 = vpop.f32.mrf.mxu0
      %v931 = vpop.f32.mrf.mxu0
      %v932 = vpop.f32.mrf.mxu0
      %933 = vdwg.mxu0
      %s934 = scalar_lea.vmem %s1, 80
      %v935 = vld [vmem:[%s934] sm:$0xf]
      %v936 = vld [vmem:[%s934 + $0x4] sm:$0xf]
      %v937 = vld [vmem:[%s934 + $0x8] sm:$0xf]
      %v938 = vld [vmem:[%s934 + $0xc] sm:$0xf]
      %s939 = scalar_lea.vmem %s2, 5
      %v940 = vld [vmem:[%s939] sm:$0x1]
      %v942 = vlaneseq
      %v943 = vshrl.u32 %v942, 7
      %v944 = vsub.s32 0, %v943
      %v945 = vrot.slane %v940, %v944
      %v951 = vunpack.c.l.b16 %v935
      %v952 = vunpack.c.l.b16 %v936
      %v953 = vunpack.c.l.b16 %v937
      %v954 = vunpack.c.l.b16 %v938
      %v955 = vpack.c.b16 %v952, %v951
      %v956 = vpack.c.b16 %v954, %v953
      %959 = vmatprep.subr.bf16.mxu0 0
      %960 = vmatpush1.bf16.msra.mxu0 0
      %961 = vmatprep.subr.bf16.mxu0 0
      %962 = vmatpush1.bf16.msra.mxu0 0
      %963 = vmatprep.subr.bf16.mxu0 0
      %964 = vmatpush1.bf16.msra.mxu0 0
      %965 = vmatprep.subr.bf16.mxu0 0
      %966 = vmatpush1.bf16.msra.mxu0 0
      %967 = vmatprep.subr.bf16.mxu0 0
      %968 = vmatpush1.bf16.msra.mxu0 0
      %969 = vmatprep.subr.bf16.mxu0 0
      %970 = vmatpush1.bf16.msra.mxu0 0
      %971 = vmatprep.subr.bf16.mxu0 0
      %972 = vmatpush1.bf16.msra.mxu0 %v956
      %973 = vmatprep.subr.bf16.mxu0 0
      %974 = vmatpush1.bf16.msra.mxu0 %v955
      %975 = vmatprep.subr.bf16.mxu0 0
      %976 = vmatpush2.bf16.msra.mxu0 0
      %977 = vmatprep.subr.bf16.mxu0 0
      %978 = vmatpush2.bf16.msra.mxu0 0
      %979 = vmatprep.subr.bf16.mxu0 0
      %980 = vmatpush2.bf16.msra.mxu0 0
      %981 = vmatprep.subr.bf16.mxu0 0
      %982 = vmatpush2.bf16.msra.mxu0 0
      %983 = vmatprep.subr.bf16.mxu0 0
      %984 = vmatpush2.bf16.msra.mxu0 0
      %985 = vmatprep.subr.bf16.mxu0 0
      %986 = vmatpush2.bf16.msra.mxu0 0
      %987 = vmatprep.subr.bf16.mxu0 0
      %988 = vmatpush2.bf16.msra.mxu0 0
      %989 = vmatprep.subr.bf16.mxu0 0
      %990 = vmatpush2.bf16.msra.mxu0 0
      %991 = vmatprep.mubr.bf16.mxu0 0
      %992 = vmatmul.mubr.bf16.gmra.mxu0 %v518
      %v993 = vpop.f32.mrf.mxu0
      %v994 = vadd.f32 %v945, %v993
      %v995 = vpop.f32.mrf.mxu0
      %v996 = vpop.f32.mrf.mxu0
      %v997 = vpop.f32.mrf.mxu0
      %998 = vdwg.mxu0
      %v999 = vpack.c.bf16 %v864, %v864
      %v1000 = vpack.c.bf16 %v929, %v929
      %v1002 = vsel %vm692, %v999, 0
      %v1005 = vsel %vm692, %v1000, 0
      %1007 = vmatprep.subr.bf16.mxu0 0
      %1008 = vmatpush1.bf16.xpose.msra.mxu0 0
      %1009 = vmatprep.subr.bf16.mxu0 0
      %1010 = vmatpush1.bf16.xpose.msra.mxu0 0
      %1011 = vmatprep.subr.bf16.mxu0 0
      %1012 = vmatpush1.bf16.xpose.msra.mxu0 0
      %1013 = vmatprep.subr.bf16.mxu0 0
      %1014 = vmatpush1.bf16.xpose.msra.mxu0 0
      %1015 = vmatprep.subr.bf16.mxu0 0
      %1016 = vmatpush1.bf16.xpose.msra.mxu0 0
      %1017 = vmatprep.subr.bf16.mxu0 0
      %1018 = vmatpush1.bf16.xpose.msra.mxu0 0
      %1019 = vmatprep.subr.bf16.mxu0 0
      %1020 = vmatpush1.bf16.xpose.msra.mxu0 0
      %1021 = vmatprep.subr.bf16.mxu0 0
      %1022 = vmatpush1.bf16.xpose.msra.mxu0 %v1005
      %1023 = vmatprep.subr.bf16.mxu0 0
      %1024 = vmatpush2.bf16.xpose.msra.mxu0 0
      %1025 = vmatprep.subr.bf16.mxu0 0
      %1026 = vmatpush2.bf16.xpose.msra.mxu0 0
      %1027 = vmatprep.subr.bf16.mxu0 0
      %1028 = vmatpush2.bf16.xpose.msra.mxu0 0
      %1029 = vmatprep.subr.bf16.mxu0 0
      %1030 = vmatpush2.bf16.xpose.msra.mxu0 0
      %1031 = vmatprep.subr.bf16.mxu0 0
      %1032 = vmatpush2.bf16.xpose.msra.mxu0 0
      %1033 = vmatprep.subr.bf16.mxu0 0
      %1034 = vmatpush2.bf16.xpose.msra.mxu0 0
      %1035 = vmatprep.subr.bf16.mxu0 0
      %1036 = vmatpush2.bf16.xpose.msra.mxu0 0
      %1037 = vmatprep.subr.bf16.mxu0 0
      %1038 = vmatpush2.bf16.xpose.msra.mxu0 0
      %1039 = vmatprep.mubr.bf16.mxu0 0
      %1040 = vmatmul.mubr.bf16.gmra.mxu0 %v1002
      %v1041 = vpop.f32.mrf.mxu0
      %v1042 = vadd.f32 0.0, %v1041
      %v1043 = vpop.f32.mrf.mxu0
      %v1044 = vpop.f32.mrf.mxu0
      %v1045 = vpop.f32.mrf.mxu0
      %1046 = vdwg.mxu0
      %v1047 = vmul.f32 %v1042, 0.25
      %v1048 = vsel %vm740, %v1047, -inf
      %1049 = vmax.xlane.f32.xlu0 %v1048
      %v1050 = vpop.xlane.xlu0 %1049
      %v1051 = vsub.f32 %v1047, %v1050
      %v1052 = vmul.f32 %v1051, 1.442695
      %v1053 = vpow.pop %v1052
      %v1054 = vsel %vm740, %v1053, 0.0
      %1055 = vadd.xlane.f32.xlu0 %v1054
      %v1056 = vpop.xlane.xlu0 %1055
      %v1057 = vrcp.pop %v1056
      %v1058 = vmul.f32 %v1053, %v1057
      %v1059 = vpack.c.bf16 %v1058, %v1058
      %v1060 = vpack.c.bf16 %v994, %v994
      %v1062 = vsel %vm740, %v1059, 0
      %v1065 = vsel %vm757, %v1060, 0
      %1067 = vmatprep.subr.bf16.mxu0 0
      %1068 = vmatpush1.bf16.msra.mxu0 0
      %1069 = vmatprep.subr.bf16.mxu0 0
      %1070 = vmatpush1.bf16.msra.mxu0 0
      %1071 = vmatprep.subr.bf16.mxu0 0
      %1072 = vmatpush1.bf16.msra.mxu0 0
      %1073 = vmatprep.subr.bf16.mxu0 0
      %1074 = vmatpush1.bf16.msra.mxu0 0
      %1075 = vmatprep.subr.bf16.mxu0 0
      %1076 = vmatpush1.bf16.msra.mxu0 0
      %1077 = vmatprep.subr.bf16.mxu0 0
      %1078 = vmatpush1.bf16.msra.mxu0 0
      %1079 = vmatprep.subr.bf16.mxu0 0
      %1080 = vmatpush1.bf16.msra.mxu0 0
      %1081 = vmatprep.subr.bf16.mxu0 0
      %1082 = vmatpush1.bf16.msra.mxu0 %v1065
      %1083 = vmatprep.subr.bf16.mxu0 0
      %1084 = vmatpush2.bf16.msra.mxu0 0
      %1085 = vmatprep.subr.bf16.mxu0 0
      %1086 = vmatpush2.bf16.msra.mxu0 0
      %1087 = vmatprep.subr.bf16.mxu0 0
      %1088 = vmatpush2.bf16.msra.mxu0 0
      %1089 = vmatprep.subr.bf16.mxu0 0
      %1090 = vmatpush2.bf16.msra.mxu0 0
      %1091 = vmatprep.subr.bf16.mxu0 0
      %1092 = vmatpush2.bf16.msra.mxu0 0
      %1093 = vmatprep.subr.bf16.mxu0 0
      %1094 = vmatpush2.bf16.msra.mxu0 0
      %1095 = vmatprep.subr.bf16.mxu0 0
      %1096 = vmatpush2.bf16.msra.mxu0 0
      %1097 = vmatprep.subr.bf16.mxu0 0
      %1098 = vmatpush2.bf16.msra.mxu0 0
      %1099 = vmatprep.mubr.bf16.mxu0 0
      %1100 = vmatmul.mubr.bf16.gmra.mxu0 %v1062
      %v1101 = vpop.f32.mrf.mxu0
      %v1102 = vadd.f32 0.0, %v1101
      %v1103 = vpop.f32.mrf.mxu0
      %v1104 = vpop.f32.mrf.mxu0
      %v1105 = vpop.f32.mrf.mxu0
      %1106 = vdwg.mxu0
      %v1107 = vpack.c.bf16 %v1102, %v1102
      %s1108 = scalar_lea.vmem %s3, 8
      %v1109 = vld [vmem:[%s1108] sm:$0xf]
      %v1110 = vld [vmem:[%s1108 + $0x4] sm:$0xf]
      %v1113 = vunpack.c.l.b16 %v1109
      %v1114 = vunpack.c.l.b16 %v1110
      %v1115 = vpack.c.b16 %v1114, %v1113
      %v1118 = vsel %vm692, %v1107, 0
      %1120 = vmatprep.subr.bf16.mxu0 0
      %1121 = vmatpush1.bf16.msra.mxu0 0
      %1122 = vmatprep.subr.bf16.mxu0 0
      %1123 = vmatpush1.bf16.msra.mxu0 0
      %1124 = vmatprep.subr.bf16.mxu0 0
      %1125 = vmatpush1.bf16.msra.mxu0 0
      %1126 = vmatprep.subr.bf16.mxu0 0
      %1127 = vmatpush1.bf16.msra.mxu0 0
      %1128 = vmatprep.subr.bf16.mxu0 0
      %1129 = vmatpush1.bf16.msra.mxu0 0
      %1130 = vmatprep.subr.bf16.mxu0 0
      %1131 = vmatpush1.bf16.msra.mxu0 0
      %1132 = vmatprep.subr.bf16.mxu0 0
      %1133 = vmatpush1.bf16.msra.mxu0 0
      %1134 = vmatprep.subr.bf16.mxu0 0
      %1135 = vmatpush1.bf16.msra.mxu0 %v1115
      %1136 = vmatprep.subr.bf16.mxu0 0
      %1137 = vmatpush2.bf16.msra.mxu0 0
      %1138 = vmatprep.subr.bf16.mxu0 0
      %1139 = vmatpush2.bf16.msra.mxu0 0
      %1140 = vmatprep.subr.bf16.mxu0 0
      %1141 = vmatpush2.bf16.msra.mxu0 0
      %1142 = vmatprep.subr.bf16.mxu0 0
      %1143 = vmatpush2.bf16.msra.mxu0 0
      %1144 = vmatprep.subr.bf16.mxu0 0
      %1145 = vmatpush2.bf16.msra.mxu0 0
      %1146 = vmatprep.subr.bf16.mxu0 0
      %1147 = vmatpush2.bf16.msra.mxu0 0
      %1148 = vmatprep.subr.bf16.mxu0 0
      %1149 = vmatpush2.bf16.msra.mxu0 0
      %1150 = vmatprep.subr.bf16.mxu0 0
      %1151 = vmatpush2.bf16.msra.mxu0 0
      %1152 = vmatprep.mubr.bf16.mxu0 0
      %1153 = vmatmul.mubr.bf16.gmra.mxu0 %v1118
      %v1154 = vpop.f32.mrf.mxu0
      %v1155 = vadd.f32 0.0, %v1154
      %v1156 = vpop.f32.mrf.mxu0
      %v1157 = vpop.f32.mrf.mxu0
      %v1158 = vpop.f32.mrf.mxu0
      %1159 = vdwg.mxu0
      %v1162 = vunpack.c.l.b16 %v802
      %v1163 = vunpack.c.l.b16 %v803
      %v1164 = vpack.c.b16 %v1163, %v1162
      %v1167 = vsel %vm692, %v801, 0
      %1169 = vmatprep.subr.bf16.mxu0 0
      %1170 = vmatpush1.bf16.msra.mxu0 0
      %1171 = vmatprep.subr.bf16.mxu0 0
      %1172 = vmatpush1.bf16.msra.mxu0 0
      %1173 = vmatprep.subr.bf16.mxu0 0
      %1174 = vmatpush1.bf16.msra.mxu0 0
      %1175 = vmatprep.subr.bf16.mxu0 0
      %1176 = vmatpush1.bf16.msra.mxu0 0
      %1177 = vmatprep.subr.bf16.mxu0 0
      %1178 = vmatpush1.bf16.msra.mxu0 0
      %1179 = vmatprep.subr.bf16.mxu0 0
      %1180 = vmatpush1.bf16.msra.mxu0 0
      %1181 = vmatprep.subr.bf16.mxu0 0
      %1182 = vmatpush1.bf16.msra.mxu0 0
      %1183 = vmatprep.subr.bf16.mxu0 0
      %1184 = vmatpush1.bf16.msra.mxu0 %v1164
      %1185 = vmatprep.subr.bf16.mxu0 0
      %1186 = vmatpush2.bf16.msra.mxu0 0
      %1187 = vmatprep.subr.bf16.mxu0 0
      %1188 = vmatpush2.bf16.msra.mxu0 0
      %1189 = vmatprep.subr.bf16.mxu0 0
      %1190 = vmatpush2.bf16.msra.mxu0 0
      %1191 = vmatprep.subr.bf16.mxu0 0
      %1192 = vmatpush2.bf16.msra.mxu0 0
      %1193 = vmatprep.subr.bf16.mxu0 0
      %1194 = vmatpush2.bf16.msra.mxu0 0
      %1195 = vmatprep.subr.bf16.mxu0 0
      %1196 = vmatpush2.bf16.msra.mxu0 0
      %1197 = vmatprep.subr.bf16.mxu0 0
      %1198 = vmatpush2.bf16.msra.mxu0 0
      %1199 = vmatprep.subr.bf16.mxu0 0
      %1200 = vmatpush2.bf16.msra.mxu0 0
      %1201 = vmatprep.mubr.bf16.mxu0 0
      %1202 = vmatmul.mubr.bf16.gmra.mxu0 %v1167
      %v1203 = vpop.f32.mrf.mxu0
      %v1204 = vadd.f32 %v1155, %v1203
      %v1205 = vpop.f32.mrf.mxu0
      %v1206 = vpop.f32.mrf.mxu0
      %v1207 = vpop.f32.mrf.mxu0
      %1208 = vdwg.mxu0
      %v1209 = vld [vmem:[%s4] sm:$0x1]
      %v1211 = vlaneseq
      %v1212 = vshrl.u32 %v1211, 7
      %v1213 = vsub.s32 0, %v1212
      %v1214 = vrot.slane %v1209, %v1213
      %v1216 = vadd.f32 %v1204, %v1214
      %v1217 = vadd.f32 %v491, %v1216
      %v1218 = vld [vmem:[%s5] sm:$0x1]
      %v1219 = vld [vmem:[%s6] sm:$0x1]
      %v1220 = vsel %vm516, %v1217, 0.0
      %1221 = vadd.xlane.f32.xlu0 %v1220
      %v1222 = vpop.xlane.xlu0 %1221
      %v1223 = vrcp.pop 32.0
      %v1224 = vmul.f32 %v1222, %v1223
      %v1225 = vsub.f32 %v1217, %v1224
      %v1226 = vmul.f32 %v1225, %v1225
      %v1227 = vsel %vm516, %v1226, 0.0
      %1228 = vadd.xlane.f32.xlu0 %v1227
      %v1229 = vpop.xlane.xlu0 %1228
      %v1230 = vmul.f32 %v1229, %v1223
      %v1231 = vadd.f32 %v1230, 1e-05
      %v1232 = vrsqrt.pop %v1231
      %v1233 = vmul.f32 %v1225, %v1232
      %v1235 = vlaneseq
      %v1236 = vshrl.u32 %v1235, 7
      %v1237 = vsub.s32 0, %v1236
      %v1238 = vrot.slane %v1218, %v1237
      %v1240 = vmul.f32 %v1233, %v1238
      %v1242 = vlaneseq
      %v1243 = vshrl.u32 %v1242, 7
      %v1244 = vsub.s32 0, %v1243
      %v1245 = vrot.slane %v1219, %v1244
      %v1247 = vadd.f32 %v1240, %v1245
      %v1248 = vld [vmem:[%s7] sm:$0xf]
      %v1249 = vld [vmem:[%s7 + $0x4] sm:$0xf]
      %v1250 = vld [vmem:[%s7 + $0x8] sm:$0xf]
      %v1251 = vld [vmem:[%s7 + $0xc] sm:$0xf]
      %v1252 = vld [vmem:[%s8] sm:$0x1]
      %v1253 = vld [vmem:[%s9] sm:$0xf]
      %v1254 = vld [vmem:[%s9 + $0x4] sm:$0xf]
      %v1255 = vld [vmem:[%s9 + $0x8] sm:$0xf]
      %v1256 = vld [vmem:[%s9 + $0xc] sm:$0xf]
      %v1257 = vld [vmem:[%s9 + $0x10] sm:$0xf]
      %v1258 = vld [vmem:[%s9 + $0x14] sm:$0xf]
      %v1259 = vld [vmem:[%s9 + $0x18] sm:$0xf]
      %v1260 = vld [vmem:[%s9 + $0x1c] sm:$0xf]
      %v1261 = vld [vmem:[%s10] sm:$0x1]
      %v1262 = vpack.c.bf16 %v1247, %v1247
      %v1264 = vlaneseq
      %v1265 = vshrl.u32 %v1264, 7
      %v1266 = vsub.s32 0, %v1265
      %v1267 = vrot.slane %v1252, %v1266
      %v1273 = vunpack.c.l.b16 %v1248
      %v1274 = vunpack.c.l.b16 %v1249
      %v1275 = vunpack.c.l.b16 %v1250
      %v1276 = vunpack.c.l.b16 %v1251
      %v1277 = vpack.c.b16 %v1274, %v1273
      %v1278 = vpack.c.b16 %v1276, %v1275
      %v1282 = vsel %vm516, %v1262, 0
      %1284 = vmatprep.subr.bf16.mxu0 0
      %1285 = vmatpush1.bf16.msra.mxu0 0
      %1286 = vmatprep.subr.bf16.mxu0 0
      %1287 = vmatpush1.bf16.msra.mxu0 0
      %1288 = vmatprep.subr.bf16.mxu0 0
      %1289 = vmatpush1.bf16.msra.mxu0 0
      %1290 = vmatprep.subr.bf16.mxu0 0
      %1291 = vmatpush1.bf16.msra.mxu0 0
      %1292 = vmatprep.subr.bf16.mxu0 0
      %1293 = vmatpush1.bf16.msra.mxu0 0
      %1294 = vmatprep.subr.bf16.mxu0 0
      %1295 = vmatpush1.bf16.msra.mxu0 0
      %1296 = vmatprep.subr.bf16.mxu0 0
      %1297 = vmatpush1.bf16.msra.mxu0 %v1278
      %1298 = vmatprep.subr.bf16.mxu0 0
      %1299 = vmatpush1.bf16.msra.mxu0 %v1277
      %1300 = vmatprep.subr.bf16.mxu0 0
      %1301 = vmatpush2.bf16.msra.mxu0 0
      %1302 = vmatprep.subr.bf16.mxu0 0
      %1303 = vmatpush2.bf16.msra.mxu0 0
      %1304 = vmatprep.subr.bf16.mxu0 0
      %1305 = vmatpush2.bf16.msra.mxu0 0
      %1306 = vmatprep.subr.bf16.mxu0 0
      %1307 = vmatpush2.bf16.msra.mxu0 0
      %1308 = vmatprep.subr.bf16.mxu0 0
      %1309 = vmatpush2.bf16.msra.mxu0 0
      %1310 = vmatprep.subr.bf16.mxu0 0
      %1311 = vmatpush2.bf16.msra.mxu0 0
      %1312 = vmatprep.subr.bf16.mxu0 0
      %1313 = vmatpush2.bf16.msra.mxu0 0
      %1314 = vmatprep.subr.bf16.mxu0 0
      %1315 = vmatpush2.bf16.msra.mxu0 0
      %1316 = vmatprep.mubr.bf16.mxu0 0
      %1317 = vmatmul.mubr.bf16.gmra.mxu0 %v1282
      %v1318 = vpop.f32.mrf.mxu0
      %v1319 = vadd.f32 %v1267, %v1318
      %v1320 = vpop.f32.mrf.mxu0
      %v1321 = vpop.f32.mrf.mxu0
      %v1322 = vpop.f32.mrf.mxu0
      %1323 = vdwg.mxu0
      %v1324 = vmax.f32 %v1319, 0.0
      %v1325 = vpack.c.bf16 %v1324, %v1324
      %v1327 = vlaneseq
      %v1328 = vshrl.u32 %v1327, 7
      %v1329 = vsub.s32 0, %v1328
      %v1330 = vrot.slane %v1261, %v1329
      %v1340 = vunpack.c.l.b16 %v1253
      %v1341 = vunpack.c.l.b16 %v1254
      %v1342 = vunpack.c.l.b16 %v1255
      %v1343 = vunpack.c.l.b16 %v1256
      %v1344 = vunpack.c.l.b16 %v1257
      %v1345 = vunpack.c.l.b16 %v1258
      %v1346 = vunpack.c.l.b16 %v1259
      %v1347 = vunpack.c.l.b16 %v1260
      %v1348 = vpack.c.b16 %v1341, %v1340
      %v1349 = vpack.c.b16 %v1343, %v1342
      %v1350 = vpack.c.b16 %v1345, %v1344
      %v1351 = vpack.c.b16 %v1347, %v1346
      %vm1356 = vcmask 523264
      %v1358 = vsel %vm1356, %v1325, 0
      %1360 = vmatprep.subr.bf16.mxu0 0
      %1361 = vmatpush1.bf16.msra.mxu0 0
      %1362 = vmatprep.subr.bf16.mxu0 0
      %1363 = vmatpush1.bf16.msra.mxu0 0
      %1364 = vmatprep.subr.bf16.mxu0 0
      %1365 = vmatpush1.bf16.msra.mxu0 0
      %1366 = vmatprep.subr.bf16.mxu0 0
      %1367 = vmatpush1.bf16.msra.mxu0 0
      %1368 = vmatprep.subr.bf16.mxu0 0
      %1369 = vmatpush1.bf16.msra.mxu0 %v1351
      %1370 = vmatprep.subr.bf16.mxu0 0
      %1371 = vmatpush1.bf16.msra.mxu0 %v1350
      %1372 = vmatprep.subr.bf16.mxu0 0
      %1373 = vmatpush1.bf16.msra.mxu0 %v1349
      %1374 = vmatprep.subr.bf16.mxu0 0
      %1375 = vmatpush1.bf16.msra.mxu0 %v1348
      %1376 = vmatprep.subr.bf16.mxu0 0
      %1377 = vmatpush2.bf16.msra.mxu0 0
      %1378 = vmatprep.subr.bf16.mxu0 0
      %1379 = vmatpush2.bf16.msra.mxu0 0
      %1380 = vmatprep.subr.bf16.mxu0 0
      %1381 = vmatpush2.bf16.msra.mxu0 0
      %1382 = vmatprep.subr.bf16.mxu0 0
      %1383 = vmatpush2.bf16.msra.mxu0 0
      %1384 = vmatprep.subr.bf16.mxu0 0
      %1385 = vmatpush2.bf16.msra.mxu0 0
      %1386 = vmatprep.subr.bf16.mxu0 0
      %1387 = vmatpush2.bf16.msra.mxu0 0
      %1388 = vmatprep.subr.bf16.mxu0 0
      %1389 = vmatpush2.bf16.msra.mxu0 0
      %1390 = vmatprep.subr.bf16.mxu0 0
      %1391 = vmatpush2.bf16.msra.mxu0 0
      %1392 = vmatprep.mubr.bf16.mxu0 0
      %1393 = vmatmul.mubr.bf16.gmra.mxu0 %v1358
      %v1394 = vpop.f32.mrf.mxu0
      %v1395 = vadd.f32 %v1330, %v1394
      %v1396 = vpop.f32.mrf.mxu0
      %v1397 = vpop.f32.mrf.mxu0
      %v1398 = vpop.f32.mrf.mxu0
      %1399 = vdwg.mxu0
      %v1400 = vadd.f32 %v1247, %v1395
      %v1401 = vld [vmem:[%s11] sm:$0x1]
      %v1402 = vld [vmem:[%s12] sm:$0x1]
      %v1403 = vsel %vm516, %v1400, 0.0
      %1404 = vadd.xlane.f32.xlu0 %v1403
      %v1405 = vpop.xlane.xlu0 %1404
      %v1406 = vmul.f32 %v1405, %v1223
      %v1407 = vsub.f32 %v1400, %v1406
      %v1408 = vmul.f32 %v1407, %v1407
      %v1409 = vsel %vm516, %v1408, 0.0
      %1410 = vadd.xlane.f32.xlu0 %v1409
      %v1411 = vpop.xlane.xlu0 %1410
      %v1412 = vmul.f32 %v1411, %v1223
      %v1413 = vadd.f32 %v1412, 1e-05
      %v1414 = vrsqrt.pop %v1413
      %v1415 = vmul.f32 %v1407, %v1414
      %v1417 = vlaneseq
      %v1418 = vshrl.u32 %v1417, 7
      %v1419 = vsub.s32 0, %v1418
      %v1420 = vrot.slane %v1401, %v1419
      %v1422 = vmul.f32 %v1415, %v1420
      %v1424 = vlaneseq
      %v1425 = vshrl.u32 %v1424, 7
      %v1426 = vsub.s32 0, %v1425
      %v1427 = vrot.slane %v1402, %v1426
      %v1429 = vadd.f32 %v1422, %v1427
      %v1430 = vld [vmem:[%s13] sm:$0x1]
      %v1431 = vld [vmem:[%s14] sm:$0x1]
      %v1432 = vsel %vm516, %v1429, 0.0
      %1433 = vadd.xlane.f32.xlu0 %v1432
      %v1434 = vpop.xlane.xlu0 %1433
      %v1435 = vmul.f32 %v1434, %v1223
      %v1436 = vsub.f32 %v1429, %v1435
      %v1437 = vmul.f32 %v1436, %v1436
      %v1438 = vsel %vm516, %v1437, 0.0
      %1439 = vadd.xlane.f32.xlu0 %v1438
      %v1440 = vpop.xlane.xlu0 %1439
      %v1441 = vmul.f32 %v1440, %v1223
      %v1442 = vadd.f32 %v1441, 1e-05
      %v1443 = vrsqrt.pop %v1442
      %v1444 = vmul.f32 %v1436, %v1443
      %v1446 = vlaneseq
      %v1447 = vshrl.u32 %v1446, 7
      %v1448 = vsub.s32 0, %v1447
      %v1449 = vrot.slane %v1430, %v1448
      %v1451 = vmul.f32 %v1444, %v1449
      %v1453 = vlaneseq
      %v1454 = vshrl.u32 %v1453, 7
      %v1455 = vsub.s32 0, %v1454
      %v1456 = vrot.slane %v1431, %v1455
      %v1458 = vadd.f32 %v1451, %v1456
      %1459 = vst.msk [vmem:[%s489] sm:$0xff] %vm516, %v1458
      %p1460 = scmp.lt.s32.totalorder %s26, 1
      %s1461 = scalar_select %p1460, %s26, 1
      %s1462 = smul.addr %s1461, 8
      %s1463 = scalar_lea.vmem %s15, %s1462
      // Predicated region
      $region81: #{forward.6} parent=79 // pred_check
        %p1464 = pneg %p364
      $region82: #{forward.6} parent=79 // pred_check_branch
        %1466 = sbr.rel (%p1464) target = $region84
      $region83: #{forward.6} parent=79 // pred_region
        _
      $region84: #{forward.6} parent=79 // pred_fallthru
        _
    $region80: #{forward.6} parent=5 // pred_fallthru
      _
    %p1467 = scmp.le.s32.totalorder 2, %s21
    // Predicated region
    $region85: #{forward.6} parent=5 // pred_check
      %p1468 = pneg %p1467
    $region86: #{forward.6} parent=5 // pred_check_branch
      %1470 = sbr.rel (%p1468) target = $region88
    $region87: #{forward.6} parent=5 // pred_region
      %s1471 = ssub.s32 %s21, 2
      // Predicated region
      $region89: #{forward.6} parent=87 // pred_check
        %p1472 = pneg %p370
      $region90: #{forward.6} parent=87 // pred_check_branch
        %1474 = sbr.rel (%p1472) target = $region92
      $region91: #{forward.6} parent=87 // pred_region
        %p1475 = scmp.lt.s32.totalorder %s27, 1
        %s1476 = scalar_select %p1475, %s27, 1
        %s1477 = smul.addr %s1476, 8
        %s1478 = scalar_lea.vmem %s15, %s1477
      $region92: #{forward.6} parent=87 // pred_fallthru
        _
    $region88: #{forward.6} parent=5 // pred_fallthru
      _
  $region6: #{forward.6} parent=0 // loop_footer
    %s25 = sadd.s32 1, %s21
  $region7: #{forward.6} parent=0 // loop_footer_branch
    %20 = sbr.rel target = $region3
  $region8: #{forward.6} parent=0 // loop_exit
    _

// kernel: forward.7
$region0: #{forward.7}
  #allocation0 [shape = 'u32[]', space=smem, size = 0x4, offset = 0x4, fixed_abs, tag = 'smem constant byte address 0x4 - core index']
  #allocation1 [shape = 'u32[144,128]{1,0:T(1,128)}', space=vmem, size = 0x12000, scoped, tag = 'internal scratch']
  %s0 = inlined_call_operand.vmem [shape: f32[2,8,32], index: 0, kind: input, shape index: {}]
  %s1 = inlined_call_operand.vmem [shape: f32[2,8,32], index: 1, kind: input, shape index: {}]
  %s2 = inlined_call_operand.vmem [shape: f32[2,1,8], index: 2, kind: input, shape index: {}]
  %s3 = inlined_call_operand.vmem [shape: bf16[3,2,32,16], index: 3, kind: input, shape index: {}]
  %s4 = inlined_call_operand.vmem [shape: f32[3,2,1,16], index: 4, kind: input, shape index: {}]
  %s5 = inlined_call_operand.vmem [shape: bf16[2,16,32], index: 5, kind: input, shape index: {}]
  %s6 = inlined_call_operand.vmem [shape: f32[1,32], index: 6, kind: input, shape index: {}]
  %s7 = inlined_call_operand.vmem [shape: f32[1,32], index: 7, kind: input, shape index: {}]
  %s8 = inlined_call_operand.vmem [shape: f32[1,32], index: 8, kind: input, shape index: {}]
  %s9 = inlined_call_operand.vmem [shape: bf16[3,2,32,16], index: 9, kind: input, shape index: {}]
  %s10 = inlined_call_operand.vmem [shape: f32[3,2,1,16], index: 10, kind: input, shape index: {}]
  %s11 = inlined_call_operand.vmem [shape: bf16[2,16,32], index: 11, kind: input, shape index: {}]
  %s12 = inlined_call_operand.vmem [shape: f32[1,32], index: 12, kind: input, shape index: {}]
  %s13 = inlined_call_operand.vmem [shape: f32[1,32], index: 13, kind: input, shape index: {}]
  %s14 = inlined_call_operand.vmem [shape: f32[1,32], index: 14, kind: input, shape index: {}]
  %s15 = inlined_call_operand.vmem [shape: bf16[32,64], index: 15, kind: input, shape index: {}]
  %s16 = inlined_call_operand.vmem [shape: f32[1,64], index: 16, kind: input, shape index: {}]
  %s17 = inlined_call_operand.vmem [shape: bf16[64,32], index: 17, kind: input, shape index: {}]
  %s18 = inlined_call_operand.vmem [shape: f32[1,32], index: 18, kind: input, shape index: {}]
  %s19 = inlined_call_operand.vmem [shape: f32[1,32], index: 19, kind: input, shape index: {}]
  %s20 = inlined_call_operand.vmem [shape: f32[1,32], index: 20, kind: input, shape index: {}]
  %s21 = inlined_call_operand.vmem [shape: f32[2,8,32], index: 21, kind: output, shape index: {}]
  %s22 = sld [smem:[#allocation0]]
  $region117: #{forward.7} parent=0
    _
  %s24 = ssub.s32 1, %s22
  %s25 = scalar_select 0, %s24, %s22
  loop: start=0, step=1, limit=4
  $region2: #{forward.7} parent=0 // loop_pre_header
    _
  $region3: #{forward.7} parent=0 // loop_header
    %s27 = sphi 0, %s31
    %p28 = scmp.ge.s32.totalorder %s27, 4
    %s37 = sphi 0, %s39
    %s40 = sphi 0, %s37
    %s41 = sphi 0, %s40
    %s57 = sphi 0, %s41
    %s63 = sphi 0, %s65
    %s66 = sphi 0, %s63
    %s67 = sphi 0, %s66
    %s83 = sphi 0, %s67
    %s89 = sphi 0, %s91
    %s92 = sphi 0, %s89
    %s93 = sphi 0, %s92
    %s109 = sphi 0, %s93
    %s113 = sphi 0, %s113
    %s115 = sphi 0, %s113
    %s116 = sphi 0, %s115
    %s130 = sphi 0, %s116
    %s134 = sphi 0, %s134
    %s136 = sphi 0, %s134
    %s137 = sphi 0, %s136
    %s151 = sphi 0, %s137
    %s155 = sphi 0, %s155
    %s157 = sphi 0, %s155
    %s158 = sphi 0, %s157
    %s172 = sphi 0, %s158
    %s176 = sphi 0, %s176
    %s178 = sphi 0, %s176
    %s179 = sphi 0, %s178
    %s193 = sphi 0, %s179
    %s197 = sphi 0, %s197
    %s199 = sphi 0, %s197
    %s200 = sphi 0, %s199
    %s214 = sphi 0, %s200
    %s218 = sphi 0, %s218
    %s220 = sphi 0, %s218
    %s221 = sphi 0, %s220
    %s235 = sphi 0, %s221
    %s239 = sphi 0, %s239
    %s241 = sphi 0, %s239
    %s242 = sphi 0, %s241
    %s256 = sphi 0, %s242
    %s260 = sphi 0, %s260
    %s262 = sphi 0, %s260
    %s263 = sphi 0, %s262
    %s277 = sphi 0, %s263
    %s281 = sphi 0, %s281
    %s283 = sphi 0, %s281
    %s284 = sphi 0, %s283
    %s298 = sphi 0, %s284
    %s302 = sphi 0, %s302
    %s304 = sphi 0, %s302
    %s305 = sphi 0, %s304
    %s319 = sphi 0, %s305
    %s323 = sphi 0, %s323
    %s325 = sphi 0, %s323
    %s326 = sphi 0, %s325
    %s340 = sphi 0, %s326
    %s344 = sphi 0, %s344
    %s346 = sphi 0, %s344
    %s347 = sphi 0, %s346
    %s361 = sphi 0, %s347
    %s365 = sphi 0, %s365
    %s367 = sphi 0, %s365
    %s368 = sphi 0, %s367
    %s382 = sphi 0, %s368
    %s386 = sphi 0, %s386
    %s388 = sphi 0, %s386
    %s389 = sphi 0, %s388
    %s403 = sphi 0, %s389
    %s407 = sphi 0, %s407
    %s409 = sphi 0, %s407
    %s410 = sphi 0, %s409
    %s424 = sphi 0, %s410
    %s428 = sphi 0, %s428
    %s430 = sphi 0, %s428
    %s431 = sphi 0, %s430
    %s445 = sphi 0, %s431
    %s449 = sphi 0, %s449
    %s451 = sphi 0, %s449
    %s452 = sphi 0, %s451
    %s466 = sphi 0, %s452
    %s470 = sphi 0, %s470
    %s472 = sphi 0, %s470
    %s473 = sphi 0, %s472
    %s487 = sphi 0, %s473
    %s493 = sphi 0, %s495
    %s496 = sphi 0, %s493
    %s497 = sphi 0, %s496
    %s513 = sphi 0, %s497
  $region4: #{forward.7} parent=0 // loop_header_branch
    %30 = sbr.rel (%p28) target = $region8
  $region5: #{forward.7} parent=0 // loop_body
    %s32 = ssub.s32 %s27, 1
    %s33 = ssub.s32 %s27, 2
    %s34 = sadd.s32 %s27, 1
    %s35 = ssub.s32 %s27, %s34
    %p36 = scmp.eq.s32.totalorder %s35, 0
    %s38 = sadd.s32 %s37, 1
    %s39 = scalar_select %p36, %s37, %s38
    %p42 = pneg %p36
    %p43 = scmp.eq.s32.totalorder %s27, 1
    %p44 = por %p42, %p43
    %p45 = scmp.ne.s32.totalorder %s37, %s40
    %p46 = scmp.eq.s32.totalorder %s27, 0
    %p47 = por %p45, %p46
    %p48 = scmp.ne.s32.totalorder %s37, %s40
    %p49 = scmp.eq.s32.totalorder %s32, 1
    %p50 = por %p48, %p49
    %p51 = scmp.ne.s32.totalorder %s40, %s41
    %p52 = scmp.eq.s32.totalorder %s32, 0
    %p53 = por %p51, %p52
    %p54 = scmp.ne.s32.totalorder %s40, %s41
    %p55 = scmp.eq.s32.totalorder %s33, 1
    %p56 = por %p54, %p55
    %p58 = scmp.ne.s32.totalorder %s41, %s57
    %p59 = scmp.eq.s32.totalorder %s33, 0
    %p60 = por %p58, %p59
    %s61 = ssub.s32 %s27, %s34
    %p62 = scmp.eq.s32.totalorder %s61, 0
    %s64 = sadd.s32 %s63, 1
    %s65 = scalar_select %p62, %s63, %s64
    %p68 = pneg %p62
    %p69 = scmp.eq.s32.totalorder %s27, 1
    %p70 = por %p68, %p69
    %p71 = scmp.ne.s32.totalorder %s63, %s66
    %p72 = scmp.eq.s32.totalorder %s27, 0
    %p73 = por %p71, %p72
    %p74 = scmp.ne.s32.totalorder %s63, %s66
    %p75 = scmp.eq.s32.totalorder %s32, 1
    %p76 = por %p74, %p75
    %p77 = scmp.ne.s32.totalorder %s66, %s67
    %p78 = scmp.eq.s32.totalorder %s32, 0
    %p79 = por %p77, %p78
    %p80 = scmp.ne.s32.totalorder %s66, %s67
    %p81 = scmp.eq.s32.totalorder %s33, 1
    %p82 = por %p80, %p81
    %p84 = scmp.ne.s32.totalorder %s67, %s83
    %p85 = scmp.eq.s32.totalorder %s33, 0
    %p86 = por %p84, %p85
    %s87 = ssub.s32 %s27, %s34
    %p88 = scmp.eq.s32.totalorder %s87, 0
    %s90 = sadd.s32 %s89, 1
    %s91 = scalar_select %p88, %s89, %s90
    %p94 = pneg %p88
    %p95 = scmp.eq.s32.totalorder %s27, 1
    %p96 = por %p94, %p95
    %p97 = scmp.ne.s32.totalorder %s89, %s92
    %p98 = scmp.eq.s32.totalorder %s27, 0
    %p99 = por %p97, %p98
    %p100 = scmp.ne.s32.totalorder %s89, %s92
    %p101 = scmp.eq.s32.totalorder %s32, 1
    %p102 = por %p100, %p101
    %p103 = scmp.ne.s32.totalorder %s92, %s93
    %p104 = scmp.eq.s32.totalorder %s32, 0
    %p105 = por %p103, %p104
    %p106 = scmp.ne.s32.totalorder %s92, %s93
    %p107 = scmp.eq.s32.totalorder %s33, 1
    %p108 = por %p106, %p107
    %p110 = scmp.ne.s32.totalorder %s93, %s109
    %p111 = scmp.eq.s32.totalorder %s33, 0
    %p112 = por %p110, %p111
    %s114 = sadd.s32 %s113, 1
    %p117 = scmp.eq.s32.totalorder %s27, 1
    %p118 = scmp.ne.s32.totalorder %s113, %s115
    %p119 = scmp.eq.s32.totalorder %s27, 0
    %p120 = por %p118, %p119
    %p121 = scmp.ne.s32.totalorder %s113, %s115
    %p122 = scmp.eq.s32.totalorder %s32, 1
    %p123 = por %p121, %p122
    %p124 = scmp.ne.s32.totalorder %s115, %s116
    %p125 = scmp.eq.s32.totalorder %s32, 0
    %p126 = por %p124, %p125
    %p127 = scmp.ne.s32.totalorder %s115, %s116
    %p128 = scmp.eq.s32.totalorder %s33, 1
    %p129 = por %p127, %p128
    %p131 = scmp.ne.s32.totalorder %s116, %s130
    %p132 = scmp.eq.s32.totalorder %s33, 0
    %p133 = por %p131, %p132
    %s135 = sadd.s32 %s134, 1
    %p138 = scmp.eq.s32.totalorder %s27, 1
    %p139 = scmp.ne.s32.totalorder %s134, %s136
    %p140 = scmp.eq.s32.totalorder %s27, 0
    %p141 = por %p139, %p140
    %p142 = scmp.ne.s32.totalorder %s134, %s136
    %p143 = scmp.eq.s32.totalorder %s32, 1
    %p144 = por %p142, %p143
    %p145 = scmp.ne.s32.totalorder %s136, %s137
    %p146 = scmp.eq.s32.totalorder %s32, 0
    %p147 = por %p145, %p146
    %p148 = scmp.ne.s32.totalorder %s136, %s137
    %p149 = scmp.eq.s32.totalorder %s33, 1
    %p150 = por %p148, %p149
    %p152 = scmp.ne.s32.totalorder %s137, %s151
    %p153 = scmp.eq.s32.totalorder %s33, 0
    %p154 = por %p152, %p153
    %s156 = sadd.s32 %s155, 1
    %p159 = scmp.eq.s32.totalorder %s27, 1
    %p160 = scmp.ne.s32.totalorder %s155, %s157
    %p161 = scmp.eq.s32.totalorder %s27, 0
    %p162 = por %p160, %p161
    %p163 = scmp.ne.s32.totalorder %s155, %s157
    %p164 = scmp.eq.s32.totalorder %s32, 1
    %p165 = por %p163, %p164
    %p166 = scmp.ne.s32.totalorder %s157, %s158
    %p167 = scmp.eq.s32.totalorder %s32, 0
    %p168 = por %p166, %p167
    %p169 = scmp.ne.s32.totalorder %s157, %s158
    %p170 = scmp.eq.s32.totalorder %s33, 1
    %p171 = por %p169, %p170
    %p173 = scmp.ne.s32.totalorder %s158, %s172
    %p174 = scmp.eq.s32.totalorder %s33, 0
    %p175 = por %p173, %p174
    %s177 = sadd.s32 %s176, 1
    %p180 = scmp.eq.s32.totalorder %s27, 1
    %p181 = scmp.ne.s32.totalorder %s176, %s178
    %p182 = scmp.eq.s32.totalorder %s27, 0
    %p183 = por %p181, %p182
    %p184 = scmp.ne.s32.totalorder %s176, %s178
    %p185 = scmp.eq.s32.totalorder %s32, 1
    %p186 = por %p184, %p185
    %p187 = scmp.ne.s32.totalorder %s178, %s179
    %p188 = scmp.eq.s32.totalorder %s32, 0
    %p189 = por %p187, %p188
    %p190 = scmp.ne.s32.totalorder %s178, %s179
    %p191 = scmp.eq.s32.totalorder %s33, 1
    %p192 = por %p190, %p191
    %p194 = scmp.ne.s32.totalorder %s179, %s193
    %p195 = scmp.eq.s32.totalorder %s33, 0
    %p196 = por %p194, %p195
    %s198 = sadd.s32 %s197, 1
    %p201 = scmp.eq.s32.totalorder %s27, 1
    %p202 = scmp.ne.s32.totalorder %s197, %s199
    %p203 = scmp.eq.s32.totalorder %s27, 0
    %p204 = por %p202, %p203
    %p205 = scmp.ne.s32.totalorder %s197, %s199
    %p206 = scmp.eq.s32.totalorder %s32, 1
    %p207 = por %p205, %p206
    %p208 = scmp.ne.s32.totalorder %s199, %s200
    %p209 = scmp.eq.s32.totalorder %s32, 0
    %p210 = por %p208, %p209
    %p211 = scmp.ne.s32.totalorder %s199, %s200
    %p212 = scmp.eq.s32.totalorder %s33, 1
    %p213 = por %p211, %p212
    %p215 = scmp.ne.s32.totalorder %s200, %s214
    %p216 = scmp.eq.s32.totalorder %s33, 0
    %p217 = por %p215, %p216
    %s219 = sadd.s32 %s218, 1
    %p222 = scmp.eq.s32.totalorder %s27, 1
    %p223 = scmp.ne.s32.totalorder %s218, %s220
    %p224 = scmp.eq.s32.totalorder %s27, 0
    %p225 = por %p223, %p224
    %p226 = scmp.ne.s32.totalorder %s218, %s220
    %p227 = scmp.eq.s32.totalorder %s32, 1
    %p228 = por %p226, %p227
    %p229 = scmp.ne.s32.totalorder %s220, %s221
    %p230 = scmp.eq.s32.totalorder %s32, 0
    %p231 = por %p229, %p230
    %p232 = scmp.ne.s32.totalorder %s220, %s221
    %p233 = scmp.eq.s32.totalorder %s33, 1
    %p234 = por %p232, %p233
    %p236 = scmp.ne.s32.totalorder %s221, %s235
    %p237 = scmp.eq.s32.totalorder %s33, 0
    %p238 = por %p236, %p237
    %s240 = sadd.s32 %s239, 1
    %p243 = scmp.eq.s32.totalorder %s27, 1
    %p244 = scmp.ne.s32.totalorder %s239, %s241
    %p245 = scmp.eq.s32.totalorder %s27, 0
    %p246 = por %p244, %p245
    %p247 = scmp.ne.s32.totalorder %s239, %s241
    %p248 = scmp.eq.s32.totalorder %s32, 1
    %p249 = por %p247, %p248
    %p250 = scmp.ne.s32.totalorder %s241, %s242
    %p251 = scmp.eq.s32.totalorder %s32, 0
    %p252 = por %p250, %p251
    %p253 = scmp.ne.s32.totalorder %s241, %s242
    %p254 = scmp.eq.s32.totalorder %s33, 1
    %p255 = por %p253, %p254
    %p257 = scmp.ne.s32.totalorder %s242, %s256
    %p258 = scmp.eq.s32.totalorder %s33, 0
    %p259 = por %p257, %p258
    %s261 = sadd.s32 %s260, 1
    %p264 = scmp.eq.s32.totalorder %s27, 1
    %p265 = scmp.ne.s32.totalorder %s260, %s262
    %p266 = scmp.eq.s32.totalorder %s27, 0
    %p267 = por %p265, %p266
    %p268 = scmp.ne.s32.totalorder %s260, %s262
    %p269 = scmp.eq.s32.totalorder %s32, 1
    %p270 = por %p268, %p269
    %p271 = scmp.ne.s32.totalorder %s262, %s263
    %p272 = scmp.eq.s32.totalorder %s32, 0
    %p273 = por %p271, %p272
    %p274 = scmp.ne.s32.totalorder %s262, %s263
    %p275 = scmp.eq.s32.totalorder %s33, 1
    %p276 = por %p274, %p275
    %p278 = scmp.ne.s32.totalorder %s263, %s277
    %p279 = scmp.eq.s32.totalorder %s33, 0
    %p280 = por %p278, %p279
    %s282 = sadd.s32 %s281, 1
    %p285 = scmp.eq.s32.totalorder %s27, 1
    %p286 = scmp.ne.s32.totalorder %s281, %s283
    %p287 = scmp.eq.s32.totalorder %s27, 0
    %p288 = por %p286, %p287
    %p289 = scmp.ne.s32.totalorder %s281, %s283
    %p290 = scmp.eq.s32.totalorder %s32, 1
    %p291 = por %p289, %p290
    %p292 = scmp.ne.s32.totalorder %s283, %s284
    %p293 = scmp.eq.s32.totalorder %s32, 0
    %p294 = por %p292, %p293
    %p295 = scmp.ne.s32.totalorder %s283, %s284
    %p296 = scmp.eq.s32.totalorder %s33, 1
    %p297 = por %p295, %p296
    %p299 = scmp.ne.s32.totalorder %s284, %s298
    %p300 = scmp.eq.s32.totalorder %s33, 0
    %p301 = por %p299, %p300
    %s303 = sadd.s32 %s302, 1
    %p306 = scmp.eq.s32.totalorder %s27, 1
    %p307 = scmp.ne.s32.totalorder %s302, %s304
    %p308 = scmp.eq.s32.totalorder %s27, 0
    %p309 = por %p307, %p308
    %p310 = scmp.ne.s32.totalorder %s302, %s304
    %p311 = scmp.eq.s32.totalorder %s32, 1
    %p312 = por %p310, %p311
    %p313 = scmp.ne.s32.totalorder %s304, %s305
    %p314 = scmp.eq.s32.totalorder %s32, 0
    %p315 = por %p313, %p314
    %p316 = scmp.ne.s32.totalorder %s304, %s305
    %p317 = scmp.eq.s32.totalorder %s33, 1
    %p318 = por %p316, %p317
    %p320 = scmp.ne.s32.totalorder %s305, %s319
    %p321 = scmp.eq.s32.totalorder %s33, 0
    %p322 = por %p320, %p321
    %s324 = sadd.s32 %s323, 1
    %p327 = scmp.eq.s32.totalorder %s27, 1
    %p328 = scmp.ne.s32.totalorder %s323, %s325
    %p329 = scmp.eq.s32.totalorder %s27, 0
    %p330 = por %p328, %p329
    %p331 = scmp.ne.s32.totalorder %s323, %s325
    %p332 = scmp.eq.s32.totalorder %s32, 1
    %p333 = por %p331, %p332
    %p334 = scmp.ne.s32.totalorder %s325, %s326
    %p335 = scmp.eq.s32.totalorder %s32, 0
    %p336 = por %p334, %p335
    %p337 = scmp.ne.s32.totalorder %s325, %s326
    %p338 = scmp.eq.s32.totalorder %s33, 1
    %p339 = por %p337, %p338
    %p341 = scmp.ne.s32.totalorder %s326, %s340
    %p342 = scmp.eq.s32.totalorder %s33, 0
    %p343 = por %p341, %p342
    %s345 = sadd.s32 %s344, 1
    %p348 = scmp.eq.s32.totalorder %s27, 1
    %p349 = scmp.ne.s32.totalorder %s344, %s346
    %p350 = scmp.eq.s32.totalorder %s27, 0
    %p351 = por %p349, %p350
    %p352 = scmp.ne.s32.totalorder %s344, %s346
    %p353 = scmp.eq.s32.totalorder %s32, 1
    %p354 = por %p352, %p353
    %p355 = scmp.ne.s32.totalorder %s346, %s347
    %p356 = scmp.eq.s32.totalorder %s32, 0
    %p357 = por %p355, %p356
    %p358 = scmp.ne.s32.totalorder %s346, %s347
    %p359 = scmp.eq.s32.totalorder %s33, 1
    %p360 = por %p358, %p359
    %p362 = scmp.ne.s32.totalorder %s347, %s361
    %p363 = scmp.eq.s32.totalorder %s33, 0
    %p364 = por %p362, %p363
    %s366 = sadd.s32 %s365, 1
    %p369 = scmp.eq.s32.totalorder %s27, 1
    %p370 = scmp.ne.s32.totalorder %s365, %s367
    %p371 = scmp.eq.s32.totalorder %s27, 0
    %p372 = por %p370, %p371
    %p373 = scmp.ne.s32.totalorder %s365, %s367
    %p374 = scmp.eq.s32.totalorder %s32, 1
    %p375 = por %p373, %p374
    %p376 = scmp.ne.s32.totalorder %s367, %s368
    %p377 = scmp.eq.s32.totalorder %s32, 0
    %p378 = por %p376, %p377
    %p379 = scmp.ne.s32.totalorder %s367, %s368
    %p380 = scmp.eq.s32.totalorder %s33, 1
    %p381 = por %p379, %p380
    %p383 = scmp.ne.s32.totalorder %s368, %s382
    %p384 = scmp.eq.s32.totalorder %s33, 0
    %p385 = por %p383, %p384
    %s387 = sadd.s32 %s386, 1
    %p390 = scmp.eq.s32.totalorder %s27, 1
    %p391 = scmp.ne.s32.totalorder %s386, %s388
    %p392 = scmp.eq.s32.totalorder %s27, 0
    %p393 = por %p391, %p392
    %p394 = scmp.ne.s32.totalorder %s386, %s388
    %p395 = scmp.eq.s32.totalorder %s32, 1
    %p396 = por %p394, %p395
    %p397 = scmp.ne.s32.totalorder %s388, %s389
    %p398 = scmp.eq.s32.totalorder %s32, 0
    %p399 = por %p397, %p398
    %p400 = scmp.ne.s32.totalorder %s388, %s389
    %p401 = scmp.eq.s32.totalorder %s33, 1
    %p402 = por %p400, %p401
    %p404 = scmp.ne.s32.totalorder %s389, %s403
    %p405 = scmp.eq.s32.totalorder %s33, 0
    %p406 = por %p404, %p405
    %s408 = sadd.s32 %s407, 1
    %p411 = scmp.eq.s32.totalorder %s27, 1
    %p412 = scmp.ne.s32.totalorder %s407, %s409
    %p413 = scmp.eq.s32.totalorder %s27, 0
    %p414 = por %p412, %p413
    %p415 = scmp.ne.s32.totalorder %s407, %s409
    %p416 = scmp.eq.s32.totalorder %s32, 1
    %p417 = por %p415, %p416
    %p418 = scmp.ne.s32.totalorder %s409, %s410
    %p419 = scmp.eq.s32.totalorder %s32, 0
    %p420 = por %p418, %p419
    %p421 = scmp.ne.s32.totalorder %s409, %s410
    %p422 = scmp.eq.s32.totalorder %s33, 1
    %p423 = por %p421, %p422
    %p425 = scmp.ne.s32.totalorder %s410, %s424
    %p426 = scmp.eq.s32.totalorder %s33, 0
    %p427 = por %p425, %p426
    %s429 = sadd.s32 %s428, 1
    %p432 = scmp.eq.s32.totalorder %s27, 1
    %p433 = scmp.ne.s32.totalorder %s428, %s430
    %p434 = scmp.eq.s32.totalorder %s27, 0
    %p435 = por %p433, %p434
    %p436 = scmp.ne.s32.totalorder %s428, %s430
    %p437 = scmp.eq.s32.totalorder %s32, 1
    %p438 = por %p436, %p437
    %p439 = scmp.ne.s32.totalorder %s430, %s431
    %p440 = scmp.eq.s32.totalorder %s32, 0
    %p441 = por %p439, %p440
    %p442 = scmp.ne.s32.totalorder %s430, %s431
    %p443 = scmp.eq.s32.totalorder %s33, 1
    %p444 = por %p442, %p443
    %p446 = scmp.ne.s32.totalorder %s431, %s445
    %p447 = scmp.eq.s32.totalorder %s33, 0
    %p448 = por %p446, %p447
    %s450 = sadd.s32 %s449, 1
    %p453 = scmp.eq.s32.totalorder %s27, 1
    %p454 = scmp.ne.s32.totalorder %s449, %s451
    %p455 = scmp.eq.s32.totalorder %s27, 0
    %p456 = por %p454, %p455
    %p457 = scmp.ne.s32.totalorder %s449, %s451
    %p458 = scmp.eq.s32.totalorder %s32, 1
    %p459 = por %p457, %p458
    %p460 = scmp.ne.s32.totalorder %s451, %s452
    %p461 = scmp.eq.s32.totalorder %s32, 0
    %p462 = por %p460, %p461
    %p463 = scmp.ne.s32.totalorder %s451, %s452
    %p464 = scmp.eq.s32.totalorder %s33, 1
    %p465 = por %p463, %p464
    %p467 = scmp.ne.s32.totalorder %s452, %s466
    %p468 = scmp.eq.s32.totalorder %s33, 0
    %p469 = por %p467, %p468
    %s471 = sadd.s32 %s470, 1
    %p474 = scmp.eq.s32.totalorder %s27, 1
    %p475 = scmp.ne.s32.totalorder %s470, %s472
    %p476 = scmp.eq.s32.totalorder %s27, 0
    %p477 = por %p475, %p476
    %p478 = scmp.ne.s32.totalorder %s470, %s472
    %p479 = scmp.eq.s32.totalorder %s32, 1
    %p480 = por %p478, %p479
    %p481 = scmp.ne.s32.totalorder %s472, %s473
    %p482 = scmp.eq.s32.totalorder %s32, 0
    %p483 = por %p481, %p482
    %p484 = scmp.ne.s32.totalorder %s472, %s473
    %p485 = scmp.eq.s32.totalorder %s33, 1
    %p486 = por %p484, %p485
    %p488 = scmp.ne.s32.totalorder %s473, %s487
    %p489 = scmp.eq.s32.totalorder %s33, 0
    %p490 = por %p488, %p489
    %s491 = ssub.s32 %s27, %s34
    %p492 = scmp.eq.s32.totalorder %s491, 0
    %s494 = sadd.s32 %s493, 1
    %s495 = scalar_select %p492, %s493, %s494
    %p498 = pneg %p492
    %p499 = scmp.eq.s32.totalorder %s27, 1
    %p500 = por %p498, %p499
    %p501 = scmp.ne.s32.totalorder %s493, %s496
    %p502 = scmp.eq.s32.totalorder %s27, 0
    %p503 = por %p501, %p502
    %p504 = scmp.ne.s32.totalorder %s493, %s496
    %p505 = scmp.eq.s32.totalorder %s32, 1
    %p506 = por %p504, %p505
    %p507 = scmp.ne.s32.totalorder %s496, %s497
    %p508 = scmp.eq.s32.totalorder %s32, 0
    %p509 = por %p507, %p508
    %p510 = scmp.ne.s32.totalorder %s496, %s497
    %p511 = scmp.eq.s32.totalorder %s33, 1
    %p512 = por %p510, %p511
    %p514 = scmp.ne.s32.totalorder %s497, %s513
    %p515 = scmp.eq.s32.totalorder %s33, 0
    %p516 = por %p514, %p515
    %p517 = scmp.le.s32.totalorder 1, %s27
    %p518 = scmp.lt.s32.totalorder %s27, 3
    %p519 = pnand %p517, %p518
    %p520 = pneg %p519
    // Predicated region
    $region9: #{forward.7} parent=5 // pred_check
      _
    $region10: #{forward.7} parent=5 // pred_check_branch
      %522 = sbr.rel (%p519) target = $region12
    $region11: #{forward.7} parent=5 // pred_region
      %s523 = ssub.s32 %s27, 1
      // Predicated region
      $region13: #{forward.7} parent=11 // pred_check
        %p524 = pneg %p126
      $region14: #{forward.7} parent=11 // pred_check_branch
        %526 = sbr.rel (%p524) target = $region16
      $region15: #{forward.7} parent=11 // pred_region
        _
      $region16: #{forward.7} parent=11 // pred_fallthru
        _
      // Predicated region
      $region17: #{forward.7} parent=11 // pred_check
        %p527 = pneg %p147
      $region18: #{forward.7} parent=11 // pred_check_branch
        %529 = sbr.rel (%p527) target = $region20
      $region19: #{forward.7} parent=11 // pred_region
        _
      $region20: #{forward.7} parent=11 // pred_fallthru
        _
      // Predicated region
      $region21: #{forward.7} parent=11 // pred_check
        %p530 = pneg %p168
      $region22: #{forward.7} parent=11 // pred_check_branch
        %532 = sbr.rel (%p530) target = $region24
      $region23: #{forward.7} parent=11 // pred_region
        _
      $region24: #{forward.7} parent=11 // pred_fallthru
        _
      // Predicated region
      $region25: #{forward.7} parent=11 // pred_check
        %p533 = pneg %p189
      $region26: #{forward.7} parent=11 // pred_check_branch
        %535 = sbr.rel (%p533) target = $region28
      $region27: #{forward.7} parent=11 // pred_region
        _
      $region28: #{forward.7} parent=11 // pred_fallthru
        _
      // Predicated region
      $region29: #{forward.7} parent=11 // pred_check
        %p536 = pneg %p210
      $region30: #{forward.7} parent=11 // pred_check_branch
        %538 = sbr.rel (%p536) target = $region32
      $region31: #{forward.7} parent=11 // pred_region
        _
      $region32: #{forward.7} parent=11 // pred_fallthru
        _
      // Predicated region
      $region33: #{forward.7} parent=11 // pred_check
        %p539 = pneg %p231
      $region34: #{forward.7} parent=11 // pred_check_branch
        %541 = sbr.rel (%p539) target = $region36
      $region35: #{forward.7} parent=11 // pred_region
        _
      $region36: #{forward.7} parent=11 // pred_fallthru
        _
      // Predicated region
      $region37: #{forward.7} parent=11 // pred_check
        %p542 = pneg %p252
      $region38: #{forward.7} parent=11 // pred_check_branch
        %544 = sbr.rel (%p542) target = $region40
      $region39: #{forward.7} parent=11 // pred_region
        _
      $region40: #{forward.7} parent=11 // pred_fallthru
        _
      // Predicated region
      $region41: #{forward.7} parent=11 // pred_check
        %p545 = pneg %p273
      $region42: #{forward.7} parent=11 // pred_check_branch
        %547 = sbr.rel (%p545) target = $region44
      $region43: #{forward.7} parent=11 // pred_region
        _
      $region44: #{forward.7} parent=11 // pred_fallthru
        _
      // Predicated region
      $region45: #{forward.7} parent=11 // pred_check
        %p548 = pneg %p294
      $region46: #{forward.7} parent=11 // pred_check_branch
        %550 = sbr.rel (%p548) target = $region48
      $region47: #{forward.7} parent=11 // pred_region
        _
      $region48: #{forward.7} parent=11 // pred_fallthru
        _
      // Predicated region
      $region49: #{forward.7} parent=11 // pred_check
        %p551 = pneg %p315
      $region50: #{forward.7} parent=11 // pred_check_branch
        %553 = sbr.rel (%p551) target = $region52
      $region51: #{forward.7} parent=11 // pred_region
        _
      $region52: #{forward.7} parent=11 // pred_fallthru
        _
      // Predicated region
      $region53: #{forward.7} parent=11 // pred_check
        %p554 = pneg %p336
      $region54: #{forward.7} parent=11 // pred_check_branch
        %556 = sbr.rel (%p554) target = $region56
      $region55: #{forward.7} parent=11 // pred_region
        _
      $region56: #{forward.7} parent=11 // pred_fallthru
        _
      // Predicated region
      $region57: #{forward.7} parent=11 // pred_check
        %p557 = pneg %p357
      $region58: #{forward.7} parent=11 // pred_check_branch
        %559 = sbr.rel (%p557) target = $region60
      $region59: #{forward.7} parent=11 // pred_region
        _
      $region60: #{forward.7} parent=11 // pred_fallthru
        _
      // Predicated region
      $region61: #{forward.7} parent=11 // pred_check
        %p560 = pneg %p378
      $region62: #{forward.7} parent=11 // pred_check_branch
        %562 = sbr.rel (%p560) target = $region64
      $region63: #{forward.7} parent=11 // pred_region
        _
      $region64: #{forward.7} parent=11 // pred_fallthru
        _
      // Predicated region
      $region65: #{forward.7} parent=11 // pred_check
        %p563 = pneg %p399
      $region66: #{forward.7} parent=11 // pred_check_branch
        %565 = sbr.rel (%p563) target = $region68
      $region67: #{forward.7} parent=11 // pred_region
        _
      $region68: #{forward.7} parent=11 // pred_fallthru
        _
      // Predicated region
      $region69: #{forward.7} parent=11 // pred_check
        %p566 = pneg %p420
      $region70: #{forward.7} parent=11 // pred_check_branch
        %568 = sbr.rel (%p566) target = $region72
      $region71: #{forward.7} parent=11 // pred_region
        _
      $region72: #{forward.7} parent=11 // pred_fallthru
        _
      // Predicated region
      $region73: #{forward.7} parent=11 // pred_check
        %p569 = pneg %p441
      $region74: #{forward.7} parent=11 // pred_check_branch
        %571 = sbr.rel (%p569) target = $region76
      $region75: #{forward.7} parent=11 // pred_region
        _
      $region76: #{forward.7} parent=11 // pred_fallthru
        _
      // Predicated region
      $region77: #{forward.7} parent=11 // pred_check
        %p572 = pneg %p462
      $region78: #{forward.7} parent=11 // pred_check_branch
        %574 = sbr.rel (%p572) target = $region80
      $region79: #{forward.7} parent=11 // pred_region
        _
      $region80: #{forward.7} parent=11 // pred_fallthru
        _
      // Predicated region
      $region81: #{forward.7} parent=11 // pred_check
        %p575 = pneg %p483
      $region82: #{forward.7} parent=11 // pred_check_branch
        %577 = sbr.rel (%p575) target = $region84
      $region83: #{forward.7} parent=11 // pred_region
        _
      $region84: #{forward.7} parent=11 // pred_fallthru
        _
    $region12: #{forward.7} parent=5 // pred_fallthru
      _
    %p578 = scmp.lt.s32.totalorder %s27, 2
    // Predicated region
    $region85: #{forward.7} parent=5 // pred_check
      %p579 = pneg %p578
    $region86: #{forward.7} parent=5 // pred_check_branch
      %581 = sbr.rel (%p579) target = $region88
    $region87: #{forward.7} parent=5 // pred_region
      // Predicated region
      $region89: #{forward.7} parent=87 // pred_check
        %p582 = pneg %p47
      $region90: #{forward.7} parent=87 // pred_check_branch
        %584 = sbr.rel (%p582) target = $region92
      $region91: #{forward.7} parent=87 // pred_region
        %p585 = scmp.lt.s32.totalorder %s27, 1
        %s586 = scalar_select %p585, %s27, 1
        %s587 = smul.addr %s586, 8
        %s588 = scalar_lea.vmem %s0, %s587
      $region92: #{forward.7} parent=87 // pred_fallthru
        _
      // Predicated region
      $region93: #{forward.7} parent=87 // pred_check
        %p589 = pneg %p73
      $region94: #{forward.7} parent=87 // pred_check_branch
        %591 = sbr.rel (%p589) target = $region96
      $region95: #{forward.7} parent=87 // pred_region
        %p592 = scmp.lt.s32.totalorder %s27, 1
        %s593 = scalar_select %p592, %s27, 1
        %s594 = smul.addr %s593, 8
        %s595 = scalar_lea.vmem %s1, %s594
      $region96: #{forward.7} parent=87 // pred_fallthru
        _
      // Predicated region
      $region97: #{forward.7} parent=87 // pred_check
        %p596 = pneg %p99
      $region98: #{forward.7} parent=87 // pred_check_branch
        %598 = sbr.rel (%p596) target = $region100
      $region99: #{forward.7} parent=87 // pred_region
        %p599 = scmp.lt.s32.totalorder %s27, 1
        %s600 = scalar_select %p599, %s27, 1
        %s601 = scalar_lea.vmem %s2, %s600
      $region100: #{forward.7} parent=87 // pred_fallthru
        _
    $region88: #{forward.7} parent=5 // pred_fallthru
      _
    %p602 = scmp.le.s32.totalorder 1, %s27
    %p603 = scmp.lt.s32.totalorder %s27, 3
    %p604 = pnand %p602, %p603
    %p605 = pneg %p604
    // Predicated region
    $region101: #{forward.7} parent=5 // pred_check
      _
    $region102: #{forward.7} parent=5 // pred_check_branch
      %607 = sbr.rel (%p604) target = $region104
    $region103: #{forward.7} parent=5 // pred_region
      %s608 = ssub.s32 %s27, 1
      %p609 = scmp.lt.s32.totalorder %s32, 1
      %s610 = scalar_select %p609, %s32, 1
      %s611 = smul.addr %s610, 8
      %s612 = scalar_lea.vmem %s0, %s611
      %p613 = pneg %p53
      %p614 = pneg %p50
      %p615 = scmp.lt.s32.totalorder %s32, 1
      %s616 = scalar_select %p615, %s32, 1
      %s617 = smul.addr %s616, 8
      %s618 = scalar_lea.vmem %s1, %s617
      %p619 = pneg %p79
      %p620 = pneg %p76
      %p621 = scmp.lt.s32.totalorder %s32, 1
      %s622 = scalar_select %p621, %s32, 1
      %s623 = scalar_lea.vmem %s2, %s622
      %p624 = pneg %p105
      %p625 = pneg %p102
      %p626 = pneg %p126
      %p627 = pneg %p123
      %p628 = pneg %p147
      %p629 = pneg %p144
      %p630 = pneg %p168
      %p631 = pneg %p165
      %p632 = pneg %p189
      %p633 = pneg %p186
      %p634 = pneg %p210
      %p635 = pneg %p207
      %p636 = pneg %p231
      %p637 = pneg %p228
      %p638 = pneg %p252
      %p639 = pneg %p249
      %p640 = pneg %p273
      %p641 = pneg %p270
      %p642 = pneg %p294
      %p643 = pneg %p291
      %p644 = pneg %p315
      %p645 = pneg %p312
      %p646 = pneg %p336
      %p647 = pneg %p333
      %p648 = pneg %p357
      %p649 = pneg %p354
      %p650 = pneg %p378
      %p651 = pneg %p375
      %p652 = pneg %p399
      %p653 = pneg %p396
      %p654 = pneg %p420
      %p655 = pneg %p417
      %p656 = pneg %p441
      %p657 = pneg %p438
      %p658 = pneg %p462
      %p659 = pneg %p459
      %p660 = pneg %p483
      %p661 = pneg %p480
      %p662 = pneg %p509
      %p663 = pneg %p506
      %p664 = scmp.lt.s32.totalorder %s32, 1
      %s665 = scalar_select %p664, %s32, 1
      %s666 = smul.addr %s665, 8
      %s667 = scalar_lea.vmem %s21, %s666
      %p668 = scmp.lt.s32.totalorder %s32, 1
      %s669 = scalar_select %p668, %s32, 1
      %s670 = smul.addr %s669, 8
      %s671 = scalar_lea.vmem %s0, %s670
      %p672 = scmp.lt.s32.totalorder %s32, 1
      %s673 = scalar_select %p672, %s32, 1
      %s674 = smul.addr %s673, 8
      %s675 = scalar_lea.vmem %s1, %s674
      %p676 = scmp.lt.s32.totalorder %s32, 1
      %s677 = scalar_select %p676, %s32, 1
      %s678 = scalar_lea.vmem %s2, %s677
      %p679 = scmp.lt.s32.totalorder %s32, 1
      %s680 = scalar_select %p679, %s32, 1
      %s681 = smul.addr %s680, 8
      %s682 = scalar_lea.vmem %s21, %s681
      %v684 = vld [vmem:[%s671] sm:$0xff]
      %v685 = vld [vmem:[%s675] sm:$0xff]
      %v686 = vld [vmem:[%s678] sm:$0x1]
      %v687 = vlaneseq
      %v688 = vshrl.u32 %v687, 7
      %v689 = vlaneseq
      %v690 = vand.u32 %v689, 127
      %vm691 = vcmp.gt.s32.totalorder %v690, %v688
      %v692 = vsel %vm691, -1e+09, 0.0
      %v693 = vmul.f32 %v686, -1e+09
      %v695 = vlaneseq
      %v696 = vshrl.u32 %v695, 7
      %v697 = vsub.s32 0, %v696
      %v698 = vrot.slane %v693, %v697
      %v700 = vadd.f32 %v692, %v698
      %v701 = vpack.c.bf16 %v684, %v684
      %v702 = vld [vmem:[%s3] sm:$0xf]
      %v703 = vld [vmem:[%s3 + $0x4] sm:$0xf]
      %v704 = vld [vmem:[%s3 + $0x8] sm:$0xf]
      %v705 = vld [vmem:[%s3 + $0xc] sm:$0xf]
      %v706 = vld [vmem:[%s4] sm:$0x1]
      %v708 = vlaneseq
      %v709 = vshrl.u32 %v708, 7
      %v710 = vsub.s32 0, %v709
      %v711 = vrot.slane %v706, %v710
      %v717 = vunpack.c.l.b16 %v702
      %v718 = vunpack.c.l.b16 %v703
      %v719 = vunpack.c.l.b16 %v704
      %v720 = vunpack.c.l.b16 %v705
      %v721 = vpack.c.b16 %v718, %v717
      %v722 = vpack.c.b16 %v720, %v719
      %vm725 = vcmask 261120
      %v727 = vsel %vm725, %v701, 0
      %729 = vmatprep.subr.bf16.mxu0 0
      %730 = vmatpush1.bf16.msra.mxu0 0
      %731 = vmatprep.subr.bf16.mxu0 0
      %732 = vmatpush1.bf16.msra.mxu0 0
      %733 = vmatprep.subr.bf16.mxu0 0
      %734 = vmatpush1.bf16.msra.mxu0 0
      %735 = vmatprep.subr.bf16.mxu0 0
      %736 = vmatpush1.bf16.msra.mxu0 0
      %737 = vmatprep.subr.bf16.mxu0 0
      %738 = vmatpush1.bf16.msra.mxu0 0
      %739 = vmatprep.subr.bf16.mxu0 0
      %740 = vmatpush1.bf16.msra.mxu0 0
      %741 = vmatprep.subr.bf16.mxu0 0
      %742 = vmatpush1.bf16.msra.mxu0 %v722
      %743 = vmatprep.subr.bf16.mxu0 0
      %744 = vmatpush1.bf16.msra.mxu0 %v721
      %745 = vmatprep.subr.bf16.mxu0 0
      %746 = vmatpush2.bf16.msra.mxu0 0
      %747 = vmatprep.subr.bf16.mxu0 0
      %748 = vmatpush2.bf16.msra.mxu0 0
      %749 = vmatprep.subr.bf16.mxu0 0
      %750 = vmatpush2.bf16.msra.mxu0 0
      %751 = vmatprep.subr.bf16.mxu0 0
      %752 = vmatpush2.bf16.msra.mxu0 0
      %753 = vmatprep.subr.bf16.mxu0 0
      %754 = vmatpush2.bf16.msra.mxu0 0
      %755 = vmatprep.subr.bf16.mxu0 0
      %756 = vmatpush2.bf16.msra.mxu0 0
      %757 = vmatprep.subr.bf16.mxu0 0
      %758 = vmatpush2.bf16.msra.mxu0 0
      %759 = vmatprep.subr.bf16.mxu0 0
      %760 = vmatpush2.bf16.msra.mxu0 0
      %761 = vmatprep.mubr.bf16.mxu0 0
      %762 = vmatmul.mubr.bf16.gmra.mxu0 %v727
      %v763 = vpop.f32.mrf.mxu0
      %v764 = vadd.f32 %v711, %v763
      %v765 = vpop.f32.mrf.mxu0
      %v766 = vpop.f32.mrf.mxu0
      %v767 = vpop.f32.mrf.mxu0
      %768 = vdwg.mxu0
      %s769 = scalar_lea.vmem %s3, 32
      %v770 = vld [vmem:[%s769] sm:$0xf]
      %v771 = vld [vmem:[%s769 + $0x4] sm:$0xf]
      %v772 = vld [vmem:[%s769 + $0x8] sm:$0xf]
      %v773 = vld [vmem:[%s769 + $0xc] sm:$0xf]
      %s774 = scalar_lea.vmem %s4, 2
      %v775 = vld [vmem:[%s774] sm:$0x1]
      %v777 = vlaneseq
      %v778 = vshrl.u32 %v777, 7
      %v779 = vsub.s32 0, %v778
      %v780 = vrot.slane %v775, %v779
      %v786 = vunpack.c.l.b16 %v770
      %v787 = vunpack.c.l.b16 %v771
      %v788 = vunpack.c.l.b16 %v772
      %v789 = vunpack.c.l.b16 %v773
      %v790 = vpack.c.b16 %v787, %v786
      %v791 = vpack.c.b16 %v789, %v788
      %794 = vmatprep.subr.bf16.mxu0 0
      %795 = vmatpush1.bf16.msra.mxu0 0
      %796 = vmatprep.subr.bf16.mxu0 0
      %797 = vmatpush1.bf16.msra.mxu0 0
      %798 = vmatprep.subr.bf16.mxu0 0
      %799 = vmatpush1.bf16.msra.mxu0 0
      %800 = vmatprep.subr.bf16.mxu0 0
      %801 = vmatpush1.bf16.msra.mxu0 0
      %802 = vmatprep.subr.bf16.mxu0 0
      %803 = vmatpush1.bf16.msra.mxu0 0
      %804 = vmatprep.subr.bf16.mxu0 0
      %805 = vmatpush1.bf16.msra.mxu0 0
      %806 = vmatprep.subr.bf16.mxu0 0
      %807 = vmatpush1.bf16.msra.mxu0 %v791
      %808 = vmatprep.subr.bf16.mxu0 0
      %809 = vmatpush1.bf16.msra.mxu0 %v790
      %810 = vmatprep.subr.bf16.mxu0 0
      %811 = vmatpush2.bf16.msra.mxu0 0
      %812 = vmatprep.subr.bf16.mxu0 0
      %813 = vmatpush2.bf16.msra.mxu0 0
      %814 = vmatprep.subr.bf16.mxu0 0
      %815 = vmatpush2.bf16.msra.mxu0 0
      %816 = vmatprep.subr.bf16.mxu0 0
      %817 = vmatpush2.bf16.msra.mxu0 0
      %818 = vmatprep.subr.bf16.mxu0 0
      %819 = vmatpush2.bf16.msra.mxu0 0
      %820 = vmatprep.subr.bf16.mxu0 0
      %821 = vmatpush2.bf16.msra.mxu0 0
      %822 = vmatprep.subr.bf16.mxu0 0
      %823 = vmatpush2.bf16.msra.mxu0 0
      %824 = vmatprep.subr.bf16.mxu0 0
      %825 = vmatpush2.bf16.msra.mxu0 0
      %826 = vmatprep.mubr.bf16.mxu0 0
      %827 = vmatmul.mubr.bf16.gmra.mxu0 %v727
      %v828 = vpop.f32.mrf.mxu0
      %v829 = vadd.f32 %v780, %v828
      %v830 = vpop.f32.mrf.mxu0
      %v831 = vpop.f32.mrf.mxu0
      %v832 = vpop.f32.mrf.mxu0
      %833 = vdwg.mxu0
      %s834 = scalar_lea.vmem %s3, 64
      %v835 = vld [vmem:[%s834] sm:$0xf]
      %v836 = vld [vmem:[%s834 + $0x4] sm:$0xf]
      %v837 = vld [vmem:[%s834 + $0x8] sm:$0xf]
      %v838 = vld [vmem:[%s834 + $0xc] sm:$0xf]
      %s839 = scalar_lea.vmem %s4, 4
      %v840 = vld [vmem:[%s839] sm:$0x1]
      %v842 = vlaneseq
      %v843 = vshrl.u32 %v842, 7
      %v844 = vsub.s32 0, %v843
      %v845 = vrot.slane %v840, %v844
      %v851 = vunpack.c.l.b16 %v835
      %v852 = vunpack.c.l.b16 %v836
      %v853 = vunpack.c.l.b16 %v837
      %v854 = vunpack.c.l.b16 %v838
      %v855 = vpack.c.b16 %v852, %v851
      %v856 = vpack.c.b16 %v854, %v853
      %859 = vmatprep.subr.bf16.mxu0 0
      %860 = vmatpush1.bf16.msra.mxu0 0
      %861 = vmatprep.subr.bf16.mxu0 0
      %862 = vmatpush1.bf16.msra.mxu0 0
      %863 = vmatprep.subr.bf16.mxu0 0
      %864 = vmatpush1.bf16.msra.mxu0 0
      %865 = vmatprep.subr.bf16.mxu0 0
      %866 = vmatpush1.bf16.msra.mxu0 0
      %867 = vmatprep.subr.bf16.mxu0 0
      %868 = vmatpush1.bf16.msra.mxu0 0
      %869 = vmatprep.subr.bf16.mxu0 0
      %870 = vmatpush1.bf16.msra.mxu0 0
      %871 = vmatprep.subr.bf16.mxu0 0
      %872 = vmatpush1.bf16.msra.mxu0 %v856
      %873 = vmatprep.subr.bf16.mxu0 0
      %874 = vmatpush1.bf16.msra.mxu0 %v855
      %875 = vmatprep.subr.bf16.mxu0 0
      %876 = vmatpush2.bf16.msra.mxu0 0
      %877 = vmatprep.subr.bf16.mxu0 0
      %878 = vmatpush2.bf16.msra.mxu0 0
      %879 = vmatprep.subr.bf16.mxu0 0
      %880 = vmatpush2.bf16.msra.mxu0 0
      %881 = vmatprep.subr.bf16.mxu0 0
      %882 = vmatpush2.bf16.msra.mxu0 0
      %883 = vmatprep.subr.bf16.mxu0 0
      %884 = vmatpush2.bf16.msra.mxu0 0
      %885 = vmatprep.subr.bf16.mxu0 0
      %886 = vmatpush2.bf16.msra.mxu0 0
      %887 = vmatprep.subr.bf16.mxu0 0
      %888 = vmatpush2.bf16.msra.mxu0 0
      %889 = vmatprep.subr.bf16.mxu0 0
      %890 = vmatpush2.bf16.msra.mxu0 0
      %891 = vmatprep.mubr.bf16.mxu0 0
      %892 = vmatmul.mubr.bf16.gmra.mxu0 %v727
      %v893 = vpop.f32.mrf.mxu0
      %v894 = vadd.f32 %v845, %v893
      %v895 = vpop.f32.mrf.mxu0
      %v896 = vpop.f32.mrf.mxu0
      %v897 = vpop.f32.mrf.mxu0
      %898 = vdwg.mxu0
      %v899 = vpack.c.bf16 %v764, %v764
      %v900 = vpack.c.bf16 %v829, %v829
      %vm901 = vcmask 130048
      %v903 = vsel %vm901, %v899, 0
      %v906 = vsel %vm901, %v900, 0
      %908 = vmatprep.subr.bf16.mxu0 0
      %909 = vmatpush1.bf16.xpose.msra.mxu0 0
      %910 = vmatprep.subr.bf16.mxu0 0
      %911 = vmatpush1.bf16.xpose.msra.mxu0 0
      %912 = vmatprep.subr.bf16.mxu0 0
      %913 = vmatpush1.bf16.xpose.msra.mxu0 0
      %914 = vmatprep.subr.bf16.mxu0 0
      %915 = vmatpush1.bf16.xpose.msra.mxu0 0
      %916 = vmatprep.subr.bf16.mxu0 0
      %917 = vmatpush1.bf16.xpose.msra.mxu0 0
      %918 = vmatprep.subr.bf16.mxu0 0
      %919 = vmatpush1.bf16.xpose.msra.mxu0 0
      %920 = vmatprep.subr.bf16.mxu0 0
      %921 = vmatpush1.bf16.xpose.msra.mxu0 0
      %922 = vmatprep.subr.bf16.mxu0 0
      %923 = vmatpush1.bf16.xpose.msra.mxu0 %v906
      %924 = vmatprep.subr.bf16.mxu0 0
      %925 = vmatpush2.bf16.xpose.msra.mxu0 0
      %926 = vmatprep.subr.bf16.mxu0 0
      %927 = vmatpush2.bf16.xpose.msra.mxu0 0
      %928 = vmatprep.subr.bf16.mxu0 0
      %929 = vmatpush2.bf16.xpose.msra.mxu0 0
      %930 = vmatprep.subr.bf16.mxu0 0
      %931 = vmatpush2.bf16.xpose.msra.mxu0 0
      %932 = vmatprep.subr.bf16.mxu0 0
      %933 = vmatpush2.bf16.xpose.msra.mxu0 0
      %934 = vmatprep.subr.bf16.mxu0 0
      %935 = vmatpush2.bf16.xpose.msra.mxu0 0
      %936 = vmatprep.subr.bf16.mxu0 0
      %937 = vmatpush2.bf16.xpose.msra.mxu0 0
      %938 = vmatprep.subr.bf16.mxu0 0
      %939 = vmatpush2.bf16.xpose.msra.mxu0 0
      %940 = vmatprep.mubr.bf16.mxu0 0
      %941 = vmatmul.mubr.bf16.gmra.mxu0 %v903
      %v942 = vpop.f32.mrf.mxu0
      %v943 = vadd.f32 0.0, %v942
      %v944 = vpop.f32.mrf.mxu0
      %v945 = vpop.f32.mrf.mxu0
      %v946 = vpop.f32.mrf.mxu0
      %947 = vdwg.mxu0
      %v948 = vmul.f32 %v943, 0.25
      %v949 = vadd.f32 %v948, %v700
      %vm950 = vcmask 64512
      %v951 = vsel %vm950, %v949, -inf
      %952 = vmax.xlane.f32.xlu0 %v951
      %v953 = vpop.xlane.xlu0 %952
      %v954 = vsub.f32 %v949, %v953
      %v955 = vmul.f32 %v954, 1.442695
      %v956 = vpow.pop %v955
      %v957 = vsel %vm950, %v956, 0.0
      %958 = vadd.xlane.f32.xlu0 %v957
      %v959 = vpop.xlane.xlu0 %958
      %v960 = vrcp.pop %v959
      %v961 = vmul.f32 %v956, %v960
      %v962 = vpack.c.bf16 %v961, %v961
      %v963 = vpack.c.bf16 %v894, %v894
      %v965 = vsel %vm950, %v962, 0
      %vm967 = vcmask 1043456
      %v969 = vsel %vm967, %v963, 0
      %971 = vmatprep.subr.bf16.mxu0 0
      %972 = vmatpush1.bf16.msra.mxu0 0
      %973 = vmatprep.subr.bf16.mxu0 0
      %974 = vmatpush1.bf16.msra.mxu0 0
      %975 = vmatprep.subr.bf16.mxu0 0
      %976 = vmatpush1.bf16.msra.mxu0 0
      %977 = vmatprep.subr.bf16.mxu0 0
      %978 = vmatpush1.bf16.msra.mxu0 0
      %979 = vmatprep.subr.bf16.mxu0 0
      %980 = vmatpush1.bf16.msra.mxu0 0
      %981 = vmatprep.subr.bf16.mxu0 0
      %982 = vmatpush1.bf16.msra.mxu0 0
      %983 = vmatprep.subr.bf16.mxu0 0
      %984 = vmatpush1.bf16.msra.mxu0 0
      %985 = vmatprep.subr.bf16.mxu0 0
      %986 = vmatpush1.bf16.msra.mxu0 %v969
      %987 = vmatprep.subr.bf16.mxu0 0
      %988 = vmatpush2.bf16.msra.mxu0 0
      %989 = vmatprep.subr.bf16.mxu0 0
      %990 = vmatpush2.bf16.msra.mxu0 0
      %991 = vmatprep.subr.bf16.mxu0 0
      %992 = vmatpush2.bf16.msra.mxu0 0
      %993 = vmatprep.subr.bf16.mxu0 0
      %994 = vmatpush2.bf16.msra.mxu0 0
      %995 = vmatprep.subr.bf16.mxu0 0
      %996 = vmatpush2.bf16.msra.mxu0 0
      %997 = vmatprep.subr.bf16.mxu0 0
      %998 = vmatpush2.bf16.msra.mxu0 0
      %999 = vmatprep.subr.bf16.mxu0 0
      %1000 = vmatpush2.bf16.msra.mxu0 0
      %1001 = vmatprep.subr.bf16.mxu0 0
      %1002 = vmatpush2.bf16.msra.mxu0 0
      %1003 = vmatprep.mubr.bf16.mxu0 0
      %1004 = vmatmul.mubr.bf16.gmra.mxu0 %v965
      %v1005 = vpop.f32.mrf.mxu0
      %v1006 = vadd.f32 0.0, %v1005
      %v1007 = vpop.f32.mrf.mxu0
      %v1008 = vpop.f32.mrf.mxu0
      %v1009 = vpop.f32.mrf.mxu0
      %1010 = vdwg.mxu0
      %v1011 = vpack.c.bf16 %v1006, %v1006
      %v1012 = vld [vmem:[%s5] sm:$0xf]
      %v1013 = vld [vmem:[%s5 + $0x4] sm:$0xf]
      %s1014 = scalar_lea.vmem %s3, 16
      %v1015 = vld [vmem:[%s1014] sm:$0xf]
      %v1016 = vld [vmem:[%s1014 + $0x4] sm:$0xf]
      %v1017 = vld [vmem:[%s1014 + $0x8] sm:$0xf]
      %v1018 = vld [vmem:[%s1014 + $0xc] sm:$0xf]
      %s1019 = scalar_lea.vmem %s4, 1
      %v1020 = vld [vmem:[%s1019] sm:$0x1]
      %v1022 = vlaneseq
      %v1023 = vshrl.u32 %v1022, 7
      %v1024 = vsub.s32 0, %v1023
      %v1025 = vrot.slane %v1020, %v1024
      %v1031 = vunpack.c.l.b16 %v1015
      %v1032 = vunpack.c.l.b16 %v1016
      %v1033 = vunpack.c.l.b16 %v1017
      %v1034 = vunpack.c.l.b16 %v1018
      %v1035 = vpack.c.b16 %v1032, %v1031
      %v1036 = vpack.c.b16 %v1034, %v1033
      %1039 = vmatprep.subr.bf16.mxu0 0
      %1040 = vmatpush1.bf16.msra.mxu0 0
      %1041 = vmatprep.subr.bf16.mxu0 0
      %1042 = vmatpush1.bf16.msra.mxu0 0
      %1043 = vmatprep.subr.bf16.mxu0 0
      %1044 = vmatpush1.bf16.msra.mxu0 0
      %1045 = vmatprep.subr.bf16.mxu0 0
      %1046 = vmatpush1.bf16.msra.mxu0 0
      %1047 = vmatprep.subr.bf16.mxu0 0
      %1048 = vmatpush1.bf16.msra.mxu0 0
      %1049 = vmatprep.subr.bf16.mxu0 0
      %1050 = vmatpush1.bf16.msra.mxu0 0
      %1051 = vmatprep.subr.bf16.mxu0 0
      %1052 = vmatpush1.bf16.msra.mxu0 %v1036
      %1053 = vmatprep.subr.bf16.mxu0 0
      %1054 = vmatpush1.bf16.msra.mxu0 %v1035
      %1055 = vmatprep.subr.bf16.mxu0 0
      %1056 = vmatpush2.bf16.msra.mxu0 0
      %1057 = vmatprep.subr.bf16.mxu0 0
      %1058 = vmatpush2.bf16.msra.mxu0 0
      %1059 = vmatprep.subr.bf16.mxu0 0
      %1060 = vmatpush2.bf16.msra.mxu0 0
      %1061 = vmatprep.subr.bf16.mxu0 0
      %1062 = vmatpush2.bf16.msra.mxu0 0
      %1063 = vmatprep.subr.bf16.mxu0 0
      %1064 = vmatpush2.bf16.msra.mxu0 0
      %1065 = vmatprep.subr.bf16.mxu0 0
      %1066 = vmatpush2.bf16.msra.mxu0 0
      %1067 = vmatprep.subr.bf16.mxu0 0
      %1068 = vmatpush2.bf16.msra.mxu0 0
      %1069 = vmatprep.subr.bf16.mxu0 0
      %1070 = vmatpush2.bf16.msra.mxu0 0
      %1071 = vmatprep.mubr.bf16.mxu0 0
      %1072 = vmatmul.mubr.bf16.gmra.mxu0 %v727
      %v1073 = vpop.f32.mrf.mxu0
      %v1074 = vadd.f32 %v1025, %v1073
      %v1075 = vpop.f32.mrf.mxu0
      %v1076 = vpop.f32.mrf.mxu0
      %v1077 = vpop.f32.mrf.mxu0
      %1078 = vdwg.mxu0
      %s1079 = scalar_lea.vmem %s3, 48
      %v1080 = vld [vmem:[%s1079] sm:$0xf]
      %v1081 = vld [vmem:[%s1079 + $0x4] sm:$0xf]
      %v1082 = vld [vmem:[%s1079 + $0x8] sm:$0xf]
      %v1083 = vld [vmem:[%s1079 + $0xc] sm:$0xf]
      %s1084 = scalar_lea.vmem %s4, 3
      %v1085 = vld [vmem:[%s1084] sm:$0x1]
      %v1087 = vlaneseq
      %v1088 = vshrl.u32 %v1087, 7
      %v1089 = vsub.s32 0, %v1088
      %v1090 = vrot.slane %v1085, %v1089
      %v1096 = vunpack.c.l.b16 %v1080
      %v1097 = vunpack.c.l.b16 %v1081
      %v1098 = vunpack.c.l.b16 %v1082
      %v1099 = vunpack.c.l.b16 %v1083
      %v1100 = vpack.c.b16 %v1097, %v1096
      %v1101 = vpack.c.b16 %v1099, %v1098
      %1104 = vmatprep.subr.bf16.mxu0 0
      %1105 = vmatpush1.bf16.msra.mxu0 0
      %1106 = vmatprep.subr.bf16.mxu0 0
      %1107 = vmatpush1.bf16.msra.mxu0 0
      %1108 = vmatprep.subr.bf16.mxu0 0
      %1109 = vmatpush1.bf16.msra.mxu0 0
      %1110 = vmatprep.subr.bf16.mxu0 0
      %1111 = vmatpush1.bf16.msra.mxu0 0
      %1112 = vmatprep.subr.bf16.mxu0 0
      %1113 = vmatpush1.bf16.msra.mxu0 0
      %1114 = vmatprep.subr.bf16.mxu0 0
      %1115 = vmatpush1.bf16.msra.mxu0 0
      %1116 = vmatprep.subr.bf16.mxu0 0
      %1117 = vmatpush1.bf16.msra.mxu0 %v1101
      %1118 = vmatprep.subr.bf16.mxu0 0
      %1119 = vmatpush1.bf16.msra.mxu0 %v1100
      %1120 = vmatprep.subr.bf16.mxu0 0
      %1121 = vmatpush2.bf16.msra.mxu0 0
      %1122 = vmatprep.subr.bf16.mxu0 0
      %1123 = vmatpush2.bf16.msra.mxu0 0
      %1124 = vmatprep.subr.bf16.mxu0 0
      %1125 = vmatpush2.bf16.msra.mxu0 0
      %1126 = vmatprep.subr.bf16.mxu0 0
      %1127 = vmatpush2.bf16.msra.mxu0 0
      %1128 = vmatprep.subr.bf16.mxu0 0
      %1129 = vmatpush2.bf16.msra.mxu0 0
      %1130 = vmatprep.subr.bf16.mxu0 0
      %1131 = vmatpush2.bf16.msra.mxu0 0
      %1132 = vmatprep.subr.bf16.mxu0 0
      %1133 = vmatpush2.bf16.msra.mxu0 0
      %1134 = vmatprep.subr.bf16.mxu0 0
      %1135 = vmatpush2.bf16.msra.mxu0 0
      %1136 = vmatprep.mubr.bf16.mxu0 0
      %1137 = vmatmul.mubr.bf16.gmra.mxu0 %v727
      %v1138 = vpop.f32.mrf.mxu0
      %v1139 = vadd.f32 %v1090, %v1138
      %v1140 = vpop.f32.mrf.mxu0
      %v1141 = vpop.f32.mrf.mxu0
      %v1142 = vpop.f32.mrf.mxu0
      %1143 = vdwg.mxu0
      %s1144 = scalar_lea.vmem %s3, 80
      %v1145 = vld [vmem:[%s1144] sm:$0xf]
      %v1146 = vld [vmem:[%s1144 + $0x4] sm:$0xf]
      %v1147 = vld [vmem:[%s1144 + $0x8] sm:$0xf]
      %v1148 = vld [vmem:[%s1144 + $0xc] sm:$0xf]
      %s1149 = scalar_lea.vmem %s4, 5
      %v1150 = vld [vmem:[%s1149] sm:$0x1]
      %v1152 = vlaneseq
      %v1153 = vshrl.u32 %v1152, 7
      %v1154 = vsub.s32 0, %v1153
      %v1155 = vrot.slane %v1150, %v1154
      %v1161 = vunpack.c.l.b16 %v1145
      %v1162 = vunpack.c.l.b16 %v1146
      %v1163 = vunpack.c.l.b16 %v1147
      %v1164 = vunpack.c.l.b16 %v1148
      %v1165 = vpack.c.b16 %v1162, %v1161
      %v1166 = vpack.c.b16 %v1164, %v1163
      %1169 = vmatprep.subr.bf16.mxu0 0
      %1170 = vmatpush1.bf16.msra.mxu0 0
      %1171 = vmatprep.subr.bf16.mxu0 0
      %1172 = vmatpush1.bf16.msra.mxu0 0
      %1173 = vmatprep.subr.bf16.mxu0 0
      %1174 = vmatpush1.bf16.msra.mxu0 0
      %1175 = vmatprep.subr.bf16.mxu0 0
      %1176 = vmatpush1.bf16.msra.mxu0 0
      %1177 = vmatprep.subr.bf16.mxu0 0
      %1178 = vmatpush1.bf16.msra.mxu0 0
      %1179 = vmatprep.subr.bf16.mxu0 0
      %1180 = vmatpush1.bf16.msra.mxu0 0
      %1181 = vmatprep.subr.bf16.mxu0 0
      %1182 = vmatpush1.bf16.msra.mxu0 %v1166
      %1183 = vmatprep.subr.bf16.mxu0 0
      %1184 = vmatpush1.bf16.msra.mxu0 %v1165
      %1185 = vmatprep.subr.bf16.mxu0 0
      %1186 = vmatpush2.bf16.msra.mxu0 0
      %1187 = vmatprep.subr.bf16.mxu0 0
      %1188 = vmatpush2.bf16.msra.mxu0 0
      %1189 = vmatprep.subr.bf16.mxu0 0
      %1190 = vmatpush2.bf16.msra.mxu0 0
      %1191 = vmatprep.subr.bf16.mxu0 0
      %1192 = vmatpush2.bf16.msra.mxu0 0
      %1193 = vmatprep.subr.bf16.mxu0 0
      %1194 = vmatpush2.bf16.msra.mxu0 0
      %1195 = vmatprep.subr.bf16.mxu0 0
      %1196 = vmatpush2.bf16.msra.mxu0 0
      %1197 = vmatprep.subr.bf16.mxu0 0
      %1198 = vmatpush2.bf16.msra.mxu0 0
      %1199 = vmatprep.subr.bf16.mxu0 0
      %1200 = vmatpush2.bf16.msra.mxu0 0
      %1201 = vmatprep.mubr.bf16.mxu0 0
      %1202 = vmatmul.mubr.bf16.gmra.mxu0 %v727
      %v1203 = vpop.f32.mrf.mxu0
      %v1204 = vadd.f32 %v1155, %v1203
      %v1205 = vpop.f32.mrf.mxu0
      %v1206 = vpop.f32.mrf.mxu0
      %v1207 = vpop.f32.mrf.mxu0
      %1208 = vdwg.mxu0
      %v1209 = vpack.c.bf16 %v1074, %v1074
      %v1210 = vpack.c.bf16 %v1139, %v1139
      %v1212 = vsel %vm901, %v1209, 0
      %v1215 = vsel %vm901, %v1210, 0
      %1217 = vmatprep.subr.bf16.mxu0 0
      %1218 = vmatpush1.bf16.xpose.msra.mxu0 0
      %1219 = vmatprep.subr.bf16.mxu0 0
      %1220 = vmatpush1.bf16.xpose.msra.mxu0 0
      %1221 = vmatprep.subr.bf16.mxu0 0
      %1222 = vmatpush1.bf16.xpose.msra.mxu0 0
      %1223 = vmatprep.subr.bf16.mxu0 0
      %1224 = vmatpush1.bf16.xpose.msra.mxu0 0
      %1225 = vmatprep.subr.bf16.mxu0 0
      %1226 = vmatpush1.bf16.xpose.msra.mxu0 0
      %1227 = vmatprep.subr.bf16.mxu0 0
      %1228 = vmatpush1.bf16.xpose.msra.mxu0 0
      %1229 = vmatprep.subr.bf16.mxu0 0
      %1230 = vmatpush1.bf16.xpose.msra.mxu0 0
      %1231 = vmatprep.subr.bf16.mxu0 0
      %1232 = vmatpush1.bf16.xpose.msra.mxu0 %v1215
      %1233 = vmatprep.subr.bf16.mxu0 0
      %1234 = vmatpush2.bf16.xpose.msra.mxu0 0
      %1235 = vmatprep.subr.bf16.mxu0 0
      %1236 = vmatpush2.bf16.xpose.msra.mxu0 0
      %1237 = vmatprep.subr.bf16.mxu0 0
      %1238 = vmatpush2.bf16.xpose.msra.mxu0 0
      %1239 = vmatprep.subr.bf16.mxu0 0
      %1240 = vmatpush2.bf16.xpose.msra.mxu0 0
      %1241 = vmatprep.subr.bf16.mxu0 0
      %1242 = vmatpush2.bf16.xpose.msra.mxu0 0
      %1243 = vmatprep.subr.bf16.mxu0 0
      %1244 = vmatpush2.bf16.xpose.msra.mxu0 0
      %1245 = vmatprep.subr.bf16.mxu0 0
      %1246 = vmatpush2.bf16.xpose.msra.mxu0 0
      %1247 = vmatprep.subr.bf16.mxu0 0
      %1248 = vmatpush2.bf16.xpose.msra.mxu0 0
      %1249 = vmatprep.mubr.bf16.mxu0 0
      %1250 = vmatmul.mubr.bf16.gmra.mxu0 %v1212
      %v1251 = vpop.f32.mrf.mxu0
      %v1252 = vadd.f32 0.0, %v1251
      %v1253 = vpop.f32.mrf.mxu0
      %v1254 = vpop.f32.mrf.mxu0
      %v1255 = vpop.f32.mrf.mxu0
      %1256 = vdwg.mxu0
      %v1257 = vmul.f32 %v1252, 0.25
      %v1258 = vadd.f32 %v1257, %v700
      %v1259 = vsel %vm950, %v1258, -inf
      %1260 = vmax.xlane.f32.xlu0 %v1259
      %v1261 = vpop.xlane.xlu0 %1260
      %v1262 = vsub.f32 %v1258, %v1261
      %v1263 = vmul.f32 %v1262, 1.442695
      %v1264 = vpow.pop %v1263
      %v1265 = vsel %vm950, %v1264, 0.0
      %1266 = vadd.xlane.f32.xlu0 %v1265
      %v1267 = vpop.xlane.xlu0 %1266
      %v1268 = vrcp.pop %v1267
      %v1269 = vmul.f32 %v1264, %v1268
      %v1270 = vpack.c.bf16 %v1269, %v1269
      %v1271 = vpack.c.bf16 %v1204, %v1204
      %v1273 = vsel %vm950, %v1270, 0
      %v1276 = vsel %vm967, %v1271, 0
      %1278 = vmatprep.subr.bf16.mxu0 0
      %1279 = vmatpush1.bf16.msra.mxu0 0
      %1280 = vmatprep.subr.bf16.mxu0 0
      %1281 = vmatpush1.bf16.msra.mxu0 0
      %1282 = vmatprep.subr.bf16.mxu0 0
      %1283 = vmatpush1.bf16.msra.mxu0 0
      %1284 = vmatprep.subr.bf16.mxu0 0
      %1285 = vmatpush1.bf16.msra.mxu0 0
      %1286 = vmatprep.subr.bf16.mxu0 0
      %1287 = vmatpush1.bf16.msra.mxu0 0
      %1288 = vmatprep.subr.bf16.mxu0 0
      %1289 = vmatpush1.bf16.msra.mxu0 0
      %1290 = vmatprep.subr.bf16.mxu0 0
      %1291 = vmatpush1.bf16.msra.mxu0 0
      %1292 = vmatprep.subr.bf16.mxu0 0
      %1293 = vmatpush1.bf16.msra.mxu0 %v1276
      %1294 = vmatprep.subr.bf16.mxu0 0
      %1295 = vmatpush2.bf16.msra.mxu0 0
      %1296 = vmatprep.subr.bf16.mxu0 0
      %1297 = vmatpush2.bf16.msra.mxu0 0
      %1298 = vmatprep.subr.bf16.mxu0 0
      %1299 = vmatpush2.bf16.msra.mxu0 0
      %1300 = vmatprep.subr.bf16.mxu0 0
      %1301 = vmatpush2.bf16.msra.mxu0 0
      %1302 = vmatprep.subr.bf16.mxu0 0
      %1303 = vmatpush2.bf16.msra.mxu0 0
      %1304 = vmatprep.subr.bf16.mxu0 0
      %1305 = vmatpush2.bf16.msra.mxu0 0
      %1306 = vmatprep.subr.bf16.mxu0 0
      %1307 = vmatpush2.bf16.msra.mxu0 0
      %1308 = vmatprep.subr.bf16.mxu0 0
      %1309 = vmatpush2.bf16.msra.mxu0 0
      %1310 = vmatprep.mubr.bf16.mxu0 0
      %1311 = vmatmul.mubr.bf16.gmra.mxu0 %v1273
      %v1312 = vpop.f32.mrf.mxu0
      %v1313 = vadd.f32 0.0, %v1312
      %v1314 = vpop.f32.mrf.mxu0
      %v1315 = vpop.f32.mrf.mxu0
      %v1316 = vpop.f32.mrf.mxu0
      %1317 = vdwg.mxu0
      %v1318 = vpack.c.bf16 %v1313, %v1313
      %s1319 = scalar_lea.vmem %s5, 8
      %v1320 = vld [vmem:[%s1319] sm:$0xf]
      %v1321 = vld [vmem:[%s1319 + $0x4] sm:$0xf]
      %v1324 = vunpack.c.l.b16 %v1320
      %v1325 = vunpack.c.l.b16 %v1321
      %v1326 = vpack.c.b16 %v1325, %v1324
      %v1329 = vsel %vm901, %v1318, 0
      %1331 = vmatprep.subr.bf16.mxu0 0
      %1332 = vmatpush1.bf16.msra.mxu0 0
      %1333 = vmatprep.subr.bf16.mxu0 0
      %1334 = vmatpush1.bf16.msra.mxu0 0
      %1335 = vmatprep.subr.bf16.mxu0 0
      %1336 = vmatpush1.bf16.msra.mxu0 0
      %1337 = vmatprep.subr.bf16.mxu0 0
      %1338 = vmatpush1.bf16.msra.mxu0 0
      %1339 = vmatprep.subr.bf16.mxu0 0
      %1340 = vmatpush1.bf16.msra.mxu0 0
      %1341 = vmatprep.subr.bf16.mxu0 0
      %1342 = vmatpush1.bf16.msra.mxu0 0
      %1343 = vmatprep.subr.bf16.mxu0 0
      %1344 = vmatpush1.bf16.msra.mxu0 0
      %1345 = vmatprep.subr.bf16.mxu0 0
      %1346 = vmatpush1.bf16.msra.mxu0 %v1326
      %1347 = vmatprep.subr.bf16.mxu0 0
      %1348 = vmatpush2.bf16.msra.mxu0 0
      %1349 = vmatprep.subr.bf16.mxu0 0
      %1350 = vmatpush2.bf16.msra.mxu0 0
      %1351 = vmatprep.subr.bf16.mxu0 0
      %1352 = vmatpush2.bf16.msra.mxu0 0
      %1353 = vmatprep.subr.bf16.mxu0 0
      %1354 = vmatpush2.bf16.msra.mxu0 0
      %1355 = vmatprep.subr.bf16.mxu0 0
      %1356 = vmatpush2.bf16.msra.mxu0 0
      %1357 = vmatprep.subr.bf16.mxu0 0
      %1358 = vmatpush2.bf16.msra.mxu0 0
      %1359 = vmatprep.subr.bf16.mxu0 0
      %1360 = vmatpush2.bf16.msra.mxu0 0
      %1361 = vmatprep.subr.bf16.mxu0 0
      %1362 = vmatpush2.bf16.msra.mxu0 0
      %1363 = vmatprep.mubr.bf16.mxu0 0
      %1364 = vmatmul.mubr.bf16.gmra.mxu0 %v1329
      %v1365 = vpop.f32.mrf.mxu0
      %v1366 = vadd.f32 0.0, %v1365
      %v1367 = vpop.f32.mrf.mxu0
      %v1368 = vpop.f32.mrf.mxu0
      %v1369 = vpop.f32.mrf.mxu0
      %1370 = vdwg.mxu0
      %v1373 = vunpack.c.l.b16 %v1012
      %v1374 = vunpack.c.l.b16 %v1013
      %v1375 = vpack.c.b16 %v1374, %v1373
      %v1378 = vsel %vm901, %v1011, 0
      %1380 = vmatprep.subr.bf16.mxu0 0
      %1381 = vmatpush1.bf16.msra.mxu0 0
      %1382 = vmatprep.subr.bf16.mxu0 0
      %1383 = vmatpush1.bf16.msra.mxu0 0
      %1384 = vmatprep.subr.bf16.mxu0 0
      %1385 = vmatpush1.bf16.msra.mxu0 0
      %1386 = vmatprep.subr.bf16.mxu0 0
      %1387 = vmatpush1.bf16.msra.mxu0 0
      %1388 = vmatprep.subr.bf16.mxu0 0
      %1389 = vmatpush1.bf16.msra.mxu0 0
      %1390 = vmatprep.subr.bf16.mxu0 0
      %1391 = vmatpush1.bf16.msra.mxu0 0
      %1392 = vmatprep.subr.bf16.mxu0 0
      %1393 = vmatpush1.bf16.msra.mxu0 0
      %1394 = vmatprep.subr.bf16.mxu0 0
      %1395 = vmatpush1.bf16.msra.mxu0 %v1375
      %1396 = vmatprep.subr.bf16.mxu0 0
      %1397 = vmatpush2.bf16.msra.mxu0 0
      %1398 = vmatprep.subr.bf16.mxu0 0
      %1399 = vmatpush2.bf16.msra.mxu0 0
      %1400 = vmatprep.subr.bf16.mxu0 0
      %1401 = vmatpush2.bf16.msra.mxu0 0
      %1402 = vmatprep.subr.bf16.mxu0 0
      %1403 = vmatpush2.bf16.msra.mxu0 0
      %1404 = vmatprep.subr.bf16.mxu0 0
      %1405 = vmatpush2.bf16.msra.mxu0 0
      %1406 = vmatprep.subr.bf16.mxu0 0
      %1407 = vmatpush2.bf16.msra.mxu0 0
      %1408 = vmatprep.subr.bf16.mxu0 0
      %1409 = vmatpush2.bf16.msra.mxu0 0
      %1410 = vmatprep.subr.bf16.mxu0 0
      %1411 = vmatpush2.bf16.msra.mxu0 0
      %1412 = vmatprep.mubr.bf16.mxu0 0
      %1413 = vmatmul.mubr.bf16.gmra.mxu0 %v1378
      %v1414 = vpop.f32.mrf.mxu0
      %v1415 = vadd.f32 %v1366, %v1414
      %v1416 = vpop.f32.mrf.mxu0
      %v1417 = vpop.f32.mrf.mxu0
      %v1418 = vpop.f32.mrf.mxu0
      %1419 = vdwg.mxu0
      %v1420 = vld [vmem:[%s6] sm:$0x1]
      %v1422 = vlaneseq
      %v1423 = vshrl.u32 %v1422, 7
      %v1424 = vsub.s32 0, %v1423
      %v1425 = vrot.slane %v1420, %v1424
      %v1427 = vadd.f32 %v1415, %v1425
      %v1428 = vadd.f32 %v684, %v1427
      %v1429 = vld [vmem:[%s7] sm:$0x1]
      %v1430 = vld [vmem:[%s8] sm:$0x1]
      %v1431 = vsel %vm725, %v1428, 0.0
      %1432 = vadd.xlane.f32.xlu0 %v1431
      %v1433 = vpop.xlane.xlu0 %1432
      %v1434 = vrcp.pop 32.0
      %v1435 = vmul.f32 %v1433, %v1434
      %v1436 = vsub.f32 %v1428, %v1435
      %v1437 = vmul.f32 %v1436, %v1436
      %v1438 = vsel %vm725, %v1437, 0.0
      %1439 = vadd.xlane.f32.xlu0 %v1438
      %v1440 = vpop.xlane.xlu0 %1439
      %v1441 = vmul.f32 %v1440, %v1434
      %v1442 = vadd.f32 %v1441, 1e-05
      %v1443 = vrsqrt.pop %v1442
      %v1444 = vmul.f32 %v1436, %v1443
      %v1446 = vlaneseq
      %v1447 = vshrl.u32 %v1446, 7
      %v1448 = vsub.s32 0, %v1447
      %v1449 = vrot.slane %v1429, %v1448
      %v1451 = vmul.f32 %v1444, %v1449
      %v1453 = vlaneseq
      %v1454 = vshrl.u32 %v1453, 7
      %v1455 = vsub.s32 0, %v1454
      %v1456 = vrot.slane %v1430, %v1455
      %v1458 = vadd.f32 %v1451, %v1456
      %v1459 = vpack.c.bf16 %v1458, %v1458
      %v1460 = vpack.c.bf16 %v685, %v685
      %v1461 = vld [vmem:[%s9] sm:$0xf]
      %v1462 = vld [vmem:[%s9 + $0x4] sm:$0xf]
      %v1463 = vld [vmem:[%s9 + $0x8] sm:$0xf]
      %v1464 = vld [vmem:[%s9 + $0xc] sm:$0xf]
      %v1465 = vld [vmem:[%s10] sm:$0x1]
      %v1467 = vlaneseq
      %v1468 = vshrl.u32 %v1467, 7
      %v1469 = vsub.s32 0, %v1468
      %v1470 = vrot.slane %v1465, %v1469
      %v1476 = vunpack.c.l.b16 %v1461
      %v1477 = vunpack.c.l.b16 %v1462
      %v1478 = vunpack.c.l.b16 %v1463
      %v1479 = vunpack.c.l.b16 %v1464
      %v1480 = vpack.c.b16 %v1477, %v1476
      %v1481 = vpack.c.b16 %v1479, %v1478
      %v1485 = vsel %vm725, %v1459, 0
      %1487 = vmatprep.subr.bf16.mxu0 0
      %1488 = vmatpush1.bf16.msra.mxu0 0
      %1489 = vmatprep.subr.bf16.mxu0 0
      %1490 = vmatpush1.bf16.msra.mxu0 0
      %1491 = vmatprep.subr.bf16.mxu0 0
      %1492 = vmatpush1.bf16.msra.mxu0 0
      %1493 = vmatprep.subr.bf16.mxu0 0
      %1494 = vmatpush1.bf16.msra.mxu0 0
      %1495 = vmatprep.subr.bf16.mxu0 0
      %1496 = vmatpush1.bf16.msra.mxu0 0
      %1497 = vmatprep.subr.bf16.mxu0 0
      %1498 = vmatpush1.bf16.msra.mxu0 0
      %1499 = vmatprep.subr.bf16.mxu0 0
      %1500 = vmatpush1.bf16.msra.mxu0 %v1481
      %1501 = vmatprep.subr.bf16.mxu0 0
      %1502 = vmatpush1.bf16.msra.mxu0 %v1480
      %1503 = vmatprep.subr.bf16.mxu0 0
      %1504 = vmatpush2.bf16.msra.mxu0 0
      %1505 = vmatprep.subr.bf16.mxu0 0
      %1506 = vmatpush2.bf16.msra.mxu0 0
      %1507 = vmatprep.subr.bf16.mxu0 0
      %1508 = vmatpush2.bf16.msra.mxu0 0
      %1509 = vmatprep.subr.bf16.mxu0 0
      %1510 = vmatpush2.bf16.msra.mxu0 0
      %1511 = vmatprep.subr.bf16.mxu0 0
      %1512 = vmatpush2.bf16.msra.mxu0 0
      %1513 = vmatprep.subr.bf16.mxu0 0
      %1514 = vmatpush2.bf16.msra.mxu0 0
      %1515 = vmatprep.subr.bf16.mxu0 0
      %1516 = vmatpush2.bf16.msra.mxu0 0
      %1517 = vmatprep.subr.bf16.mxu0 0
      %1518 = vmatpush2.bf16.msra.mxu0 0
      %1519 = vmatprep.mubr.bf16.mxu0 0
      %1520 = vmatmul.mubr.bf16.gmra.mxu0 %v1485
      %v1521 = vpop.f32.mrf.mxu0
      %v1522 = vadd.f32 %v1470, %v1521
      %v1523 = vpop.f32.mrf.mxu0
      %v1524 = vpop.f32.mrf.mxu0
      %v1525 = vpop.f32.mrf.mxu0
      %1526 = vdwg.mxu0
      %s1527 = scalar_lea.vmem %s9, 32
      %v1528 = vld [vmem:[%s1527] sm:$0xf]
      %v1529 = vld [vmem:[%s1527 + $0x4] sm:$0xf]
      %v1530 = vld [vmem:[%s1527 + $0x8] sm:$0xf]
      %v1531 = vld [vmem:[%s1527 + $0xc] sm:$0xf]
      %s1532 = scalar_lea.vmem %s10, 2
      %v1533 = vld [vmem:[%s1532] sm:$0x1]
      %v1535 = vlaneseq
      %v1536 = vshrl.u32 %v1535, 7
      %v1537 = vsub.s32 0, %v1536
      %v1538 = vrot.slane %v1533, %v1537
      %v1544 = vunpack.c.l.b16 %v1528
      %v1545 = vunpack.c.l.b16 %v1529
      %v1546 = vunpack.c.l.b16 %v1530
      %v1547 = vunpack.c.l.b16 %v1531
      %v1548 = vpack.c.b16 %v1545, %v1544
      %v1549 = vpack.c.b16 %v1547, %v1546
      %v1553 = vsel %vm725, %v1460, 0
      %1555 = vmatprep.subr.bf16.mxu0 0
      %1556 = vmatpush1.bf16.msra.mxu0 0
      %1557 = vmatprep.subr.bf16.mxu0 0
      %1558 = vmatpush1.bf16.msra.mxu0 0
      %1559 = vmatprep.subr.bf16.mxu0 0
      %1560 = vmatpush1.bf16.msra.mxu0 0
      %1561 = vmatprep.subr.bf16.mxu0 0
      %1562 = vmatpush1.bf16.msra.mxu0 0
      %1563 = vmatprep.subr.bf16.mxu0 0
      %1564 = vmatpush1.bf16.msra.mxu0 0
      %1565 = vmatprep.subr.bf16.mxu0 0
      %1566 = vmatpush1.bf16.msra.mxu0 0
      %1567 = vmatprep.subr.bf16.mxu0 0
      %1568 = vmatpush1.bf16.msra.mxu0 %v1549
      %1569 = vmatprep.subr.bf16.mxu0 0
      %1570 = vmatpush1.bf16.msra.mxu0 %v1548
      %1571 = vmatprep.subr.bf16.mxu0 0
      %1572 = vmatpush2.bf16.msra.mxu0 0
      %1573 = vmatprep.subr.bf16.mxu0 0
      %1574 = vmatpush2.bf16.msra.mxu0 0
      %1575 = vmatprep.subr.bf16.mxu0 0
      %1576 = vmatpush2.bf16.msra.mxu0 0
      %1577 = vmatprep.subr.bf16.mxu0 0
      %1578 = vmatpush2.bf16.msra.mxu0 0
      %1579 = vmatprep.subr.bf16.mxu0 0
      %1580 = vmatpush2.bf16.msra.mxu0 0
      %1581 = vmatprep.subr.bf16.mxu0 0
      %1582 = vmatpush2.bf16.msra.mxu0 0
      %1583 = vmatprep.subr.bf16.mxu0 0
      %1584 = vmatpush2.bf16.msra.mxu0 0
      %1585 = vmatprep.subr.bf16.mxu0 0
      %1586 = vmatpush2.bf16.msra.mxu0 0
      %1587 = vmatprep.mubr.bf16.mxu0 0
      %1588 = vmatmul.mubr.bf16.gmra.mxu0 %v1553
      %v1589 = vpop.f32.mrf.mxu0
      %v1590 = vadd.f32 %v1538, %v1589
      %v1591 = vpop.f32.mrf.mxu0
      %v1592 = vpop.f32.mrf.mxu0
      %v1593 = vpop.f32.mrf.mxu0
      %1594 = vdwg.mxu0
      %s1595 = scalar_lea.vmem %s9, 64
      %v1596 = vld [vmem:[%s1595] sm:$0xf]
      %v1597 = vld [vmem:[%s1595 + $0x4] sm:$0xf]
      %v1598 = vld [vmem:[%s1595 + $0x8] sm:$0xf]
      %v1599 = vld [vmem:[%s1595 + $0xc] sm:$0xf]
      %s1600 = scalar_lea.vmem %s10, 4
      %v1601 = vld [vmem:[%s1600] sm:$0x1]
      %v1603 = vlaneseq
      %v1604 = vshrl.u32 %v1603, 7
      %v1605 = vsub.s32 0, %v1604
      %v1606 = vrot.slane %v1601, %v1605
      %v1612 = vunpack.c.l.b16 %v1596
      %v1613 = vunpack.c.l.b16 %v1597
      %v1614 = vunpack.c.l.b16 %v1598
      %v1615 = vunpack.c.l.b16 %v1599
      %v1616 = vpack.c.b16 %v1613, %v1612
      %v1617 = vpack.c.b16 %v1615, %v1614
      %1620 = vmatprep.subr.bf16.mxu0 0
      %1621 = vmatpush1.bf16.msra.mxu0 0
      %1622 = vmatprep.subr.bf16.mxu0 0
      %1623 = vmatpush1.bf16.msra.mxu0 0
      %1624 = vmatprep.subr.bf16.mxu0 0
      %1625 = vmatpush1.bf16.msra.mxu0 0
      %1626 = vmatprep.subr.bf16.mxu0 0
      %1627 = vmatpush1.bf16.msra.mxu0 0
      %1628 = vmatprep.subr.bf16.mxu0 0
      %1629 = vmatpush1.bf16.msra.mxu0 0
      %1630 = vmatprep.subr.bf16.mxu0 0
      %1631 = vmatpush1.bf16.msra.mxu0 0
      %1632 = vmatprep.subr.bf16.mxu0 0
      %1633 = vmatpush1.bf16.msra.mxu0 %v1617
      %1634 = vmatprep.subr.bf16.mxu0 0
      %1635 = vmatpush1.bf16.msra.mxu0 %v1616
      %1636 = vmatprep.subr.bf16.mxu0 0
      %1637 = vmatpush2.bf16.msra.mxu0 0
      %1638 = vmatprep.subr.bf16.mxu0 0
      %1639 = vmatpush2.bf16.msra.mxu0 0
      %1640 = vmatprep.subr.bf16.mxu0 0
      %1641 = vmatpush2.bf16.msra.mxu0 0
      %1642 = vmatprep.subr.bf16.mxu0 0
      %1643 = vmatpush2.bf16.msra.mxu0 0
      %1644 = vmatprep.subr.bf16.mxu0 0
      %1645 = vmatpush2.bf16.msra.mxu0 0
      %1646 = vmatprep.subr.bf16.mxu0 0
      %1647 = vmatpush2.bf16.msra.mxu0 0
      %1648 = vmatprep.subr.bf16.mxu0 0
      %1649 = vmatpush2.bf16.msra.mxu0 0
      %1650 = vmatprep.subr.bf16.mxu0 0
      %1651 = vmatpush2.bf16.msra.mxu0 0
      %1652 = vmatprep.mubr.bf16.mxu0 0
      %1653 = vmatmul.mubr.bf16.gmra.mxu0 %v1553
      %v1654 = vpop.f32.mrf.mxu0
      %v1655 = vadd.f32 %v1606, %v1654
      %v1656 = vpop.f32.mrf.mxu0
      %v1657 = vpop.f32.mrf.mxu0
      %v1658 = vpop.f32.mrf.mxu0
      %1659 = vdwg.mxu0
      %v1660 = vpack.c.bf16 %v1522, %v1522
      %v1661 = vpack.c.bf16 %v1590, %v1590
      %v1663 = vsel %vm901, %v1660, 0
      %v1666 = vsel %vm901, %v1661, 0
      %1668 = vmatprep.subr.bf16.mxu0 0
      %1669 = vmatpush1.bf16.xpose.msra.mxu0 0
      %1670 = vmatprep.subr.bf16.mxu0 0
      %1671 = vmatpush1.bf16.xpose.msra.mxu0 0
      %1672 = vmatprep.subr.bf16.mxu0 0
      %1673 = vmatpush1.bf16.xpose.msra.mxu0 0
      %1674 = vmatprep.subr.bf16.mxu0 0
      %1675 = vmatpush1.bf16.xpose.msra.mxu0 0
      %1676 = vmatprep.subr.bf16.mxu0 0
      %1677 = vmatpush1.bf16.xpose.msra.mxu0 0
      %1678 = vmatprep.subr.bf16.mxu0 0
      %1679 = vmatpush1.bf16.xpose.msra.mxu0 0
      %1680 = vmatprep.subr.bf16.mxu0 0
      %1681 = vmatpush1.bf16.xpose.msra.mxu0 0
      %1682 = vmatprep.subr.bf16.mxu0 0
      %1683 = vmatpush1.bf16.xpose.msra.mxu0 %v1666
      %1684 = vmatprep.subr.bf16.mxu0 0
      %1685 = vmatpush2.bf16.xpose.msra.mxu0 0
      %1686 = vmatprep.subr.bf16.mxu0 0
      %1687 = vmatpush2.bf16.xpose.msra.mxu0 0
      %1688 = vmatprep.subr.bf16.mxu0 0
      %1689 = vmatpush2.bf16.xpose.msra.mxu0 0
      %1690 = vmatprep.subr.bf16.mxu0 0
      %1691 = vmatpush2.bf16.xpose.msra.mxu0 0
      %1692 = vmatprep.subr.bf16.mxu0 0
      %1693 = vmatpush2.bf16.xpose.msra.mxu0 0
      %1694 = vmatprep.subr.bf16.mxu0 0
      %1695 = vmatpush2.bf16.xpose.msra.mxu0 0
      %1696 = vmatprep.subr.bf16.mxu0 0
      %1697 = vmatpush2.bf16.xpose.msra.mxu0 0
      %1698 = vmatprep.subr.bf16.mxu0 0
      %1699 = vmatpush2.bf16.xpose.msra.mxu0 0
      %1700 = vmatprep.mubr.bf16.mxu0 0
      %1701 = vmatmul.mubr.bf16.gmra.mxu0 %v1663
      %v1702 = vpop.f32.mrf.mxu0
      %v1703 = vadd.f32 0.0, %v1702
      %v1704 = vpop.f32.mrf.mxu0
      %v1705 = vpop.f32.mrf.mxu0
      %v1706 = vpop.f32.mrf.mxu0
      %1707 = vdwg.mxu0
      %v1708 = vmul.f32 %v1703, 0.25
      %v1709 = vsel %vm950, %v1708, -inf
      %1710 = vmax.xlane.f32.xlu0 %v1709
      %v1711 = vpop.xlane.xlu0 %1710
      %v1712 = vsub.f32 %v1708, %v1711
      %v1713 = vmul.f32 %v1712, 1.442695
      %v1714 = vpow.pop %v1713
      %v1715 = vsel %vm950, %v1714, 0.0
      %1716 = vadd.xlane.f32.xlu0 %v1715
      %v1717 = vpop.xlane.xlu0 %1716
      %v1718 = vrcp.pop %v1717
      %v1719 = vmul.f32 %v1714, %v1718
      %v1720 = vpack.c.bf16 %v1719, %v1719
      %v1721 = vpack.c.bf16 %v1655, %v1655
      %v1723 = vsel %vm950, %v1720, 0
      %v1726 = vsel %vm967, %v1721, 0
      %1728 = vmatprep.subr.bf16.mxu0 0
      %1729 = vmatpush1.bf16.msra.mxu0 0
      %1730 = vmatprep.subr.bf16.mxu0 0
      %1731 = vmatpush1.bf16.msra.mxu0 0
      %1732 = vmatprep.subr.bf16.mxu0 0
      %1733 = vmatpush1.bf16.msra.mxu0 0
      %1734 = vmatprep.subr.bf16.mxu0 0
      %1735 = vmatpush1.bf16.msra.mxu0 0
      %1736 = vmatprep.subr.bf16.mxu0 0
      %1737 = vmatpush1.bf16.msra.mxu0 0
      %1738 = vmatprep.subr.bf16.mxu0 0
      %1739 = vmatpush1.bf16.msra.mxu0 0
      %1740 = vmatprep.subr.bf16.mxu0 0
      %1741 = vmatpush1.bf16.msra.mxu0 0
      %1742 = vmatprep.subr.bf16.mxu0 0
      %1743 = vmatpush1.bf16.msra.mxu0 %v1726
      %1744 = vmatprep.subr.bf16.mxu0 0
      %1745 = vmatpush2.bf16.msra.mxu0 0
      %1746 = vmatprep.subr.bf16.mxu0 0
      %1747 = vmatpush2.bf16.msra.mxu0 0
      %1748 = vmatprep.subr.bf16.mxu0 0
      %1749 = vmatpush2.bf16.msra.mxu0 0
      %1750 = vmatprep.subr.bf16.mxu0 0
      %1751 = vmatpush2.bf16.msra.mxu0 0
      %1752 = vmatprep.subr.bf16.mxu0 0
      %1753 = vmatpush2.bf16.msra.mxu0 0
      %1754 = vmatprep.subr.bf16.mxu0 0
      %1755 = vmatpush2.bf16.msra.mxu0 0
      %1756 = vmatprep.subr.bf16.mxu0 0
      %1757 = vmatpush2.bf16.msra.mxu0 0
      %1758 = vmatprep.subr.bf16.mxu0 0
      %1759 = vmatpush2.bf16.msra.mxu0 0
      %1760 = vmatprep.mubr.bf16.mxu0 0
      %1761 = vmatmul.mubr.bf16.gmra.mxu0 %v1723
      %v1762 = vpop.f32.mrf.mxu0
      %v1763 = vadd.f32 0.0, %v1762
      %v1764 = vpop.f32.mrf.mxu0
      %v1765 = vpop.f32.mrf.mxu0
      %v1766 = vpop.f32.mrf.mxu0
      %1767 = vdwg.mxu0
      %v1768 = vpack.c.bf16 %v1763, %v1763
      %v1769 = vld [vmem:[%s11] sm:$0xf]
      %v1770 = vld [vmem:[%s11 + $0x4] sm:$0xf]
      %s1771 = scalar_lea.vmem %s9, 16
      %v1772 = vld [vmem:[%s1771] sm:$0xf]
      %v1773 = vld [vmem:[%s1771 + $0x4] sm:$0xf]
      %v1774 = vld [vmem:[%s1771 + $0x8] sm:$0xf]
      %v1775 = vld [vmem:[%s1771 + $0xc] sm:$0xf]
      %s1776 = scalar_lea.vmem %s10, 1
      %v1777 = vld [vmem:[%s1776] sm:$0x1]
      %v1779 = vlaneseq
      %v1780 = vshrl.u32 %v1779, 7
      %v1781 = vsub.s32 0, %v1780
      %v1782 = vrot.slane %v1777, %v1781
      %v1788 = vunpack.c.l.b16 %v1772
      %v1789 = vunpack.c.l.b16 %v1773
      %v1790 = vunpack.c.l.b16 %v1774
      %v1791 = vunpack.c.l.b16 %v1775
      %v1792 = vpack.c.b16 %v1789, %v1788
      %v1793 = vpack.c.b16 %v1791, %v1790
      %1796 = vmatprep.subr.bf16.mxu0 0
      %1797 = vmatpush1.bf16.msra.mxu0 0
      %1798 = vmatprep.subr.bf16.mxu0 0
      %1799 = vmatpush1.bf16.msra.mxu0 0
      %1800 = vmatprep.subr.bf16.mxu0 0
      %1801 = vmatpush1.bf16.msra.mxu0 0
      %1802 = vmatprep.subr.bf16.mxu0 0
      %1803 = vmatpush1.bf16.msra.mxu0 0
      %1804 = vmatprep.subr.bf16.mxu0 0
      %1805 = vmatpush1.bf16.msra.mxu0 0
      %1806 = vmatprep.subr.bf16.mxu0 0
      %1807 = vmatpush1.bf16.msra.mxu0 0
      %1808 = vmatprep.subr.bf16.mxu0 0
      %1809 = vmatpush1.bf16.msra.mxu0 %v1793
      %1810 = vmatprep.subr.bf16.mxu0 0
      %1811 = vmatpush1.bf16.msra.mxu0 %v1792
      %1812 = vmatprep.subr.bf16.mxu0 0
      %1813 = vmatpush2.bf16.msra.mxu0 0
      %1814 = vmatprep.subr.bf16.mxu0 0
      %1815 = vmatpush2.bf16.msra.mxu0 0
      %1816 = vmatprep.subr.bf16.mxu0 0
      %1817 = vmatpush2.bf16.msra.mxu0 0
      %1818 = vmatprep.subr.bf16.mxu0 0
      %1819 = vmatpush2.bf16.msra.mxu0 0
      %1820 = vmatprep.subr.bf16.mxu0 0
      %1821 = vmatpush2.bf16.msra.mxu0 0
      %1822 = vmatprep.subr.bf16.mxu0 0
      %1823 = vmatpush2.bf16.msra.mxu0 0
      %1824 = vmatprep.subr.bf16.mxu0 0
      %1825 = vmatpush2.bf16.msra.mxu0 0
      %1826 = vmatprep.subr.bf16.mxu0 0
      %1827 = vmatpush2.bf16.msra.mxu0 0
      %1828 = vmatprep.mubr.bf16.mxu0 0
      %1829 = vmatmul.mubr.bf16.gmra.mxu0 %v1485
      %v1830 = vpop.f32.mrf.mxu0
      %v1831 = vadd.f32 %v1782, %v1830
      %v1832 = vpop.f32.mrf.mxu0
      %v1833 = vpop.f32.mrf.mxu0
      %v1834 = vpop.f32.mrf.mxu0
      %1835 = vdwg.mxu0
      %s1836 = scalar_lea.vmem %s9, 48
      %v1837 = vld [vmem:[%s1836] sm:$0xf]
      %v1838 = vld [vmem:[%s1836 + $0x4] sm:$0xf]
      %v1839 = vld [vmem:[%s1836 + $0x8] sm:$0xf]
      %v1840 = vld [vmem:[%s1836 + $0xc] sm:$0xf]
      %s1841 = scalar_lea.vmem %s10, 3
      %v1842 = vld [vmem:[%s1841] sm:$0x1]
      %v1844 = vlaneseq
      %v1845 = vshrl.u32 %v1844, 7
      %v1846 = vsub.s32 0, %v1845
      %v1847 = vrot.slane %v1842, %v1846
      %v1853 = vunpack.c.l.b16 %v1837
      %v1854 = vunpack.c.l.b16 %v1838
      %v1855 = vunpack.c.l.b16 %v1839
      %v1856 = vunpack.c.l.b16 %v1840
      %v1857 = vpack.c.b16 %v1854, %v1853
      %v1858 = vpack.c.b16 %v1856, %v1855
      %1861 = vmatprep.subr.bf16.mxu0 0
      %1862 = vmatpush1.bf16.msra.mxu0 0
      %1863 = vmatprep.subr.bf16.mxu0 0
      %1864 = vmatpush1.bf16.msra.mxu0 0
      %1865 = vmatprep.subr.bf16.mxu0 0
      %1866 = vmatpush1.bf16.msra.mxu0 0
      %1867 = vmatprep.subr.bf16.mxu0 0
      %1868 = vmatpush1.bf16.msra.mxu0 0
      %1869 = vmatprep.subr.bf16.mxu0 0
      %1870 = vmatpush1.bf16.msra.mxu0 0
      %1871 = vmatprep.subr.bf16.mxu0 0
      %1872 = vmatpush1.bf16.msra.mxu0 0
      %1873 = vmatprep.subr.bf16.mxu0 0
      %1874 = vmatpush1.bf16.msra.mxu0 %v1858
      %1875 = vmatprep.subr.bf16.mxu0 0
      %1876 = vmatpush1.bf16.msra.mxu0 %v1857
      %1877 = vmatprep.subr.bf16.mxu0 0
      %1878 = vmatpush2.bf16.msra.mxu0 0
      %1879 = vmatprep.subr.bf16.mxu0 0
      %1880 = vmatpush2.bf16.msra.mxu0 0
      %1881 = vmatprep.subr.bf16.mxu0 0
      %1882 = vmatpush2.bf16.msra.mxu0 0
      %1883 = vmatprep.subr.bf16.mxu0 0
      %1884 = vmatpush2.bf16.msra.mxu0 0
      %1885 = vmatprep.subr.bf16.mxu0 0
      %1886 = vmatpush2.bf16.msra.mxu0 0
      %1887 = vmatprep.subr.bf16.mxu0 0
      %1888 = vmatpush2.bf16.msra.mxu0 0
      %1889 = vmatprep.subr.bf16.mxu0 0
      %1890 = vmatpush2.bf16.msra.mxu0 0
      %1891 = vmatprep.subr.bf16.mxu0 0
      %1892 = vmatpush2.bf16.msra.mxu0 0
      %1893 = vmatprep.mubr.bf16.mxu0 0
      %1894 = vmatmul.mubr.bf16.gmra.mxu0 %v1553
      %v1895 = vpop.f32.mrf.mxu0
      %v1896 = vadd.f32 %v1847, %v1895
      %v1897 = vpop.f32.mrf.mxu0
      %v1898 = vpop.f32.mrf.mxu0
      %v1899 = vpop.f32.mrf.mxu0
      %1900 = vdwg.mxu0
      %s1901 = scalar_lea.vmem %s9, 80
      %v1902 = vld [vmem:[%s1901] sm:$0xf]
      %v1903 = vld [vmem:[%s1901 + $0x4] sm:$0xf]
      %v1904 = vld [vmem:[%s1901 + $0x8] sm:$0xf]
      %v1905 = vld [vmem:[%s1901 + $0xc] sm:$0xf]
      %s1906 = scalar_lea.vmem %s10, 5
      %v1907 = vld [vmem:[%s1906] sm:$0x1]
      %v1909 = vlaneseq
      %v1910 = vshrl.u32 %v1909, 7
      %v1911 = vsub.s32 0, %v1910
      %v1912 = vrot.slane %v1907, %v1911
      %v1918 = vunpack.c.l.b16 %v1902
      %v1919 = vunpack.c.l.b16 %v1903
      %v1920 = vunpack.c.l.b16 %v1904
      %v1921 = vunpack.c.l.b16 %v1905
      %v1922 = vpack.c.b16 %v1919, %v1918
      %v1923 = vpack.c.b16 %v1921, %v1920
      %1926 = vmatprep.subr.bf16.mxu0 0
      %1927 = vmatpush1.bf16.msra.mxu0 0
      %1928 = vmatprep.subr.bf16.mxu0 0
      %1929 = vmatpush1.bf16.msra.mxu0 0
      %1930 = vmatprep.subr.bf16.mxu0 0
      %1931 = vmatpush1.bf16.msra.mxu0 0
      %1932 = vmatprep.subr.bf16.mxu0 0
      %1933 = vmatpush1.bf16.msra.mxu0 0
      %1934 = vmatprep.subr.bf16.mxu0 0
      %1935 = vmatpush1.bf16.msra.mxu0 0
      %1936 = vmatprep.subr.bf16.mxu0 0
      %1937 = vmatpush1.bf16.msra.mxu0 0
      %1938 = vmatprep.subr.bf16.mxu0 0
      %1939 = vmatpush1.bf16.msra.mxu0 %v1923
      %1940 = vmatprep.subr.bf16.mxu0 0
      %1941 = vmatpush1.bf16.msra.mxu0 %v1922
      %1942 = vmatprep.subr.bf16.mxu0 0
      %1943 = vmatpush2.bf16.msra.mxu0 0
      %1944 = vmatprep.subr.bf16.mxu0 0
      %1945 = vmatpush2.bf16.msra.mxu0 0
      %1946 = vmatprep.subr.bf16.mxu0 0
      %1947 = vmatpush2.bf16.msra.mxu0 0
      %1948 = vmatprep.subr.bf16.mxu0 0
      %1949 = vmatpush2.bf16.msra.mxu0 0
      %1950 = vmatprep.subr.bf16.mxu0 0
      %1951 = vmatpush2.bf16.msra.mxu0 0
      %1952 = vmatprep.subr.bf16.mxu0 0
      %1953 = vmatpush2.bf16.msra.mxu0 0
      %1954 = vmatprep.subr.bf16.mxu0 0
      %1955 = vmatpush2.bf16.msra.mxu0 0
      %1956 = vmatprep.subr.bf16.mxu0 0
      %1957 = vmatpush2.bf16.msra.mxu0 0
      %1958 = vmatprep.mubr.bf16.mxu0 0
      %1959 = vmatmul.mubr.bf16.gmra.mxu0 %v1553
      %v1960 = vpop.f32.mrf.mxu0
      %v1961 = vadd.f32 %v1912, %v1960
      %v1962 = vpop.f32.mrf.mxu0
      %v1963 = vpop.f32.mrf.mxu0
      %v1964 = vpop.f32.mrf.mxu0
      %1965 = vdwg.mxu0
      %v1966 = vpack.c.bf16 %v1831, %v1831
      %v1967 = vpack.c.bf16 %v1896, %v1896
      %v1969 = vsel %vm901, %v1966, 0
      %v1972 = vsel %vm901, %v1967, 0
      %1974 = vmatprep.subr.bf16.mxu0 0
      %1975 = vmatpush1.bf16.xpose.msra.mxu0 0
      %1976 = vmatprep.subr.bf16.mxu0 0
      %1977 = vmatpush1.bf16.xpose.msra.mxu0 0
      %1978 = vmatprep.subr.bf16.mxu0 0
      %1979 = vmatpush1.bf16.xpose.msra.mxu0 0
      %1980 = vmatprep.subr.bf16.mxu0 0
      %1981 = vmatpush1.bf16.xpose.msra.mxu0 0
      %1982 = vmatprep.subr.bf16.mxu0 0
      %1983 = vmatpush1.bf16.xpose.msra.mxu0 0
      %1984 = vmatprep.subr.bf16.mxu0 0
      %1985 = vmatpush1.bf16.xpose.msra.mxu0 0
      %1986 = vmatprep.subr.bf16.mxu0 0
      %1987 = vmatpush1.bf16.xpose.msra.mxu0 0
      %1988 = vmatprep.subr.bf16.mxu0 0
      %1989 = vmatpush1.bf16.xpose.msra.mxu0 %v1972
      %1990 = vmatprep.subr.bf16.mxu0 0
      %1991 = vmatpush2.bf16.xpose.msra.mxu0 0
      %1992 = vmatprep.subr.bf16.mxu0 0
      %1993 = vmatpush2.bf16.xpose.msra.mxu0 0
      %1994 = vmatprep.subr.bf16.mxu0 0
      %1995 = vmatpush2.bf16.xpose.msra.mxu0 0
      %1996 = vmatprep.subr.bf16.mxu0 0
      %1997 = vmatpush2.bf16.xpose.msra.mxu0 0
      %1998 = vmatprep.subr.bf16.mxu0 0
      %1999 = vmatpush2.bf16.xpose.msra.mxu0 0
      %2000 = vmatprep.subr.bf16.mxu0 0
      %2001 = vmatpush2.bf16.xpose.msra.mxu0 0
      %2002 = vmatprep.subr.bf16.mxu0 0
      %2003 = vmatpush2.bf16.xpose.msra.mxu0 0
      %2004 = vmatprep.subr.bf16.mxu0 0
      %2005 = vmatpush2.bf16.xpose.msra.mxu0 0
      %2006 = vmatprep.mubr.bf16.mxu0 0
      %2007 = vmatmul.mubr.bf16.gmra.mxu0 %v1969
      %v2008 = vpop.f32.mrf.mxu0
      %v2009 = vadd.f32 0.0, %v2008
      %v2010 = vpop.f32.mrf.mxu0
      %v2011 = vpop.f32.mrf.mxu0
      %v2012 = vpop.f32.mrf.mxu0
      %2013 = vdwg.mxu0
      %v2014 = vmul.f32 %v2009, 0.25
      %v2015 = vsel %vm950, %v2014, -inf
      %2016 = vmax.xlane.f32.xlu0 %v2015
      %v2017 = vpop.xlane.xlu0 %2016
      %v2018 = vsub.f32 %v2014, %v2017
      %v2019 = vmul.f32 %v2018, 1.442695
      %v2020 = vpow.pop %v2019
      %v2021 = vsel %vm950, %v2020, 0.0
      %2022 = vadd.xlane.f32.xlu0 %v2021
      %v2023 = vpop.xlane.xlu0 %2022
      %v2024 = vrcp.pop %v2023
      %v2025 = vmul.f32 %v2020, %v2024
      %v2026 = vpack.c.bf16 %v2025, %v2025
      %v2027 = vpack.c.bf16 %v1961, %v1961
      %v2029 = vsel %vm950, %v2026, 0
      %v2032 = vsel %vm967, %v2027, 0
      %2034 = vmatprep.subr.bf16.mxu0 0
      %2035 = vmatpush1.bf16.msra.mxu0 0
      %2036 = vmatprep.subr.bf16.mxu0 0
      %2037 = vmatpush1.bf16.msra.mxu0 0
      %2038 = vmatprep.subr.bf16.mxu0 0
      %2039 = vmatpush1.bf16.msra.mxu0 0
      %2040 = vmatprep.subr.bf16.mxu0 0
      %2041 = vmatpush1.bf16.msra.mxu0 0
      %2042 = vmatprep.subr.bf16.mxu0 0
      %2043 = vmatpush1.bf16.msra.mxu0 0
      %2044 = vmatprep.subr.bf16.mxu0 0
      %2045 = vmatpush1.bf16.msra.mxu0 0
      %2046 = vmatprep.subr.bf16.mxu0 0
      %2047 = vmatpush1.bf16.msra.mxu0 0
      %2048 = vmatprep.subr.bf16.mxu0 0
      %2049 = vmatpush1.bf16.msra.mxu0 %v2032
      %2050 = vmatprep.subr.bf16.mxu0 0
      %2051 = vmatpush2.bf16.msra.mxu0 0
      %2052 = vmatprep.subr.bf16.mxu0 0
      %2053 = vmatpush2.bf16.msra.mxu0 0
      %2054 = vmatprep.subr.bf16.mxu0 0
      %2055 = vmatpush2.bf16.msra.mxu0 0
      %2056 = vmatprep.subr.bf16.mxu0 0
      %2057 = vmatpush2.bf16.msra.mxu0 0
      %2058 = vmatprep.subr.bf16.mxu0 0
      %2059 = vmatpush2.bf16.msra.mxu0 0
      %2060 = vmatprep.subr.bf16.mxu0 0
      %2061 = vmatpush2.bf16.msra.mxu0 0
      %2062 = vmatprep.subr.bf16.mxu0 0
      %2063 = vmatpush2.bf16.msra.mxu0 0
      %2064 = vmatprep.subr.bf16.mxu0 0
      %2065 = vmatpush2.bf16.msra.mxu0 0
      %2066 = vmatprep.mubr.bf16.mxu0 0
      %2067 = vmatmul.mubr.bf16.gmra.mxu0 %v2029
      %v2068 = vpop.f32.mrf.mxu0
      %v2069 = vadd.f32 0.0, %v2068
      %v2070 = vpop.f32.mrf.mxu0
      %v2071 = vpop.f32.mrf.mxu0
      %v2072 = vpop.f32.mrf.mxu0
      %2073 = vdwg.mxu0
      %v2074 = vpack.c.bf16 %v2069, %v2069
      %s2075 = scalar_lea.vmem %s11, 8
      %v2076 = vld [vmem:[%s2075] sm:$0xf]
      %v2077 = vld [vmem:[%s2075 + $0x4] sm:$0xf]
      %v2080 = vunpack.c.l.b16 %v2076
      %v2081 = vunpack.c.l.b16 %v2077
      %v2082 = vpack.c.b16 %v2081, %v2080
      %v2085 = vsel %vm901, %v2074, 0
      %2087 = vmatprep.subr.bf16.mxu0 0
      %2088 = vmatpush1.bf16.msra.mxu0 0
      %2089 = vmatprep.subr.bf16.mxu0 0
      %2090 = vmatpush1.bf16.msra.mxu0 0
      %2091 = vmatprep.subr.bf16.mxu0 0
      %2092 = vmatpush1.bf16.msra.mxu0 0
      %2093 = vmatprep.subr.bf16.mxu0 0
      %2094 = vmatpush1.bf16.msra.mxu0 0
      %2095 = vmatprep.subr.bf16.mxu0 0
      %2096 = vmatpush1.bf16.msra.mxu0 0
      %2097 = vmatprep.subr.bf16.mxu0 0
      %2098 = vmatpush1.bf16.msra.mxu0 0
      %2099 = vmatprep.subr.bf16.mxu0 0
      %2100 = vmatpush1.bf16.msra.mxu0 0
      %2101 = vmatprep.subr.bf16.mxu0 0
      %2102 = vmatpush1.bf16.msra.mxu0 %v2082
      %2103 = vmatprep.subr.bf16.mxu0 0
      %2104 = vmatpush2.bf16.msra.mxu0 0
      %2105 = vmatprep.subr.bf16.mxu0 0
      %2106 = vmatpush2.bf16.msra.mxu0 0
      %2107 = vmatprep.subr.bf16.mxu0 0
      %2108 = vmatpush2.bf16.msra.mxu0 0
      %2109 = vmatprep.subr.bf16.mxu0 0
      %2110 = vmatpush2.bf16.msra.mxu0 0
      %2111 = vmatprep.subr.bf16.mxu0 0
      %2112 = vmatpush2.bf16.msra.mxu0 0
      %2113 = vmatprep.subr.bf16.mxu0 0
      %2114 = vmatpush2.bf16.msra.mxu0 0
      %2115 = vmatprep.subr.bf16.mxu0 0
      %2116 = vmatpush2.bf16.msra.mxu0 0
      %2117 = vmatprep.subr.bf16.mxu0 0
      %2118 = vmatpush2.bf16.msra.mxu0 0
      %2119 = vmatprep.mubr.bf16.mxu0 0
      %2120 = vmatmul.mubr.bf16.gmra.mxu0 %v2085
      %v2121 = vpop.f32.mrf.mxu0
      %v2122 = vadd.f32 0.0, %v2121
      %v2123 = vpop.f32.mrf.mxu0
      %v2124 = vpop.f32.mrf.mxu0
      %v2125 = vpop.f32.mrf.mxu0
      %2126 = vdwg.mxu0
      %v2129 = vunpack.c.l.b16 %v1769
      %v2130 = vunpack.c.l.b16 %v1770
      %v2131 = vpack.c.b16 %v2130, %v2129
      %v2134 = vsel %vm901, %v1768, 0
      %2136 = vmatprep.subr.bf16.mxu0 0
      %2137 = vmatpush1.bf16.msra.mxu0 0
      %2138 = vmatprep.subr.bf16.mxu0 0
      %2139 = vmatpush1.bf16.msra.mxu0 0
      %2140 = vmatprep.subr.bf16.mxu0 0
      %2141 = vmatpush1.bf16.msra.mxu0 0
      %2142 = vmatprep.subr.bf16.mxu0 0
      %2143 = vmatpush1.bf16.msra.mxu0 0
      %2144 = vmatprep.subr.bf16.mxu0 0
      %2145 = vmatpush1.bf16.msra.mxu0 0
      %2146 = vmatprep.subr.bf16.mxu0 0
      %2147 = vmatpush1.bf16.msra.mxu0 0
      %2148 = vmatprep.subr.bf16.mxu0 0
      %2149 = vmatpush1.bf16.msra.mxu0 0
      %2150 = vmatprep.subr.bf16.mxu0 0
      %2151 = vmatpush1.bf16.msra.mxu0 %v2131
      %2152 = vmatprep.subr.bf16.mxu0 0
      %2153 = vmatpush2.bf16.msra.mxu0 0
      %2154 = vmatprep.subr.bf16.mxu0 0
      %2155 = vmatpush2.bf16.msra.mxu0 0
      %2156 = vmatprep.subr.bf16.mxu0 0
      %2157 = vmatpush2.bf16.msra.mxu0 0
      %2158 = vmatprep.subr.bf16.mxu0 0
      %2159 = vmatpush2.bf16.msra.mxu0 0
      %2160 = vmatprep.subr.bf16.mxu0 0
      %2161 = vmatpush2.bf16.msra.mxu0 0
      %2162 = vmatprep.subr.bf16.mxu0 0
      %2163 = vmatpush2.bf16.msra.mxu0 0
      %2164 = vmatprep.subr.bf16.mxu0 0
      %2165 = vmatpush2.bf16.msra.mxu0 0
      %2166 = vmatprep.subr.bf16.mxu0 0
      %2167 = vmatpush2.bf16.msra.mxu0 0
      %2168 = vmatprep.mubr.bf16.mxu0 0
      %2169 = vmatmul.mubr.bf16.gmra.mxu0 %v2134
      %v2170 = vpop.f32.mrf.mxu0
      %v2171 = vadd.f32 %v2122, %v2170
      %v2172 = vpop.f32.mrf.mxu0
      %v2173 = vpop.f32.mrf.mxu0
      %v2174 = vpop.f32.mrf.mxu0
      %2175 = vdwg.mxu0
      %v2176 = vld [vmem:[%s12] sm:$0x1]
      %v2178 = vlaneseq
      %v2179 = vshrl.u32 %v2178, 7
      %v2180 = vsub.s32 0, %v2179
      %v2181 = vrot.slane %v2176, %v2180
      %v2183 = vadd.f32 %v2171, %v2181
      %v2184 = vadd.f32 %v1458, %v2183
      %v2185 = vld [vmem:[%s13] sm:$0x1]
      %v2186 = vld [vmem:[%s14] sm:$0x1]
      %v2187 = vsel %vm725, %v2184, 0.0
      %2188 = vadd.xlane.f32.xlu0 %v2187
      %v2189 = vpop.xlane.xlu0 %2188
      %v2190 = vmul.f32 %v2189, %v1434
      %v2191 = vsub.f32 %v2184, %v2190
      %v2192 = vmul.f32 %v2191, %v2191
      %v2193 = vsel %vm725, %v2192, 0.0
      %2194 = vadd.xlane.f32.xlu0 %v2193
      %v2195 = vpop.xlane.xlu0 %2194
      %v2196 = vmul.f32 %v2195, %v1434
      %v2197 = vadd.f32 %v2196, 1e-05
      %v2198 = vrsqrt.pop %v2197
      %v2199 = vmul.f32 %v2191, %v2198
      %v2201 = vlaneseq
      %v2202 = vshrl.u32 %v2201, 7
      %v2203 = vsub.s32 0, %v2202
      %v2204 = vrot.slane %v2185, %v2203
      %v2206 = vmul.f32 %v2199, %v2204
      %v2208 = vlaneseq
      %v2209 = vshrl.u32 %v2208, 7
      %v2210 = vsub.s32 0, %v2209
      %v2211 = vrot.slane %v2186, %v2210
      %v2213 = vadd.f32 %v2206, %v2211
      %v2214 = vld [vmem:[%s15] sm:$0xf]
      %v2215 = vld [vmem:[%s15 + $0x4] sm:$0xf]
      %v2216 = vld [vmem:[%s15 + $0x8] sm:$0xf]
      %v2217 = vld [vmem:[%s15 + $0xc] sm:$0xf]
      %v2218 = vld [vmem:[%s16] sm:$0x1]
      %v2219 = vld [vmem:[%s17] sm:$0xf]
      %v2220 = vld [vmem:[%s17 + $0x4] sm:$0xf]
      %v2221 = vld [vmem:[%s17 + $0x8] sm:$0xf]
      %v2222 = vld [vmem:[%s17 + $0xc] sm:$0xf]
      %v2223 = vld [vmem:[%s17 + $0x10] sm:$0xf]
      %v2224 = vld [vmem:[%s17 + $0x14] sm:$0xf]
      %v2225 = vld [vmem:[%s17 + $0x18] sm:$0xf]
      %v2226 = vld [vmem:[%s17 + $0x1c] sm:$0xf]
      %v2227 = vld [vmem:[%s18] sm:$0x1]
      %v2228 = vpack.c.bf16 %v2213, %v2213
      %v2230 = vlaneseq
      %v2231 = vshrl.u32 %v2230, 7
      %v2232 = vsub.s32 0, %v2231
      %v2233 = vrot.slane %v2218, %v2232
      %v2239 = vunpack.c.l.b16 %v2214
      %v2240 = vunpack.c.l.b16 %v2215
      %v2241 = vunpack.c.l.b16 %v2216
      %v2242 = vunpack.c.l.b16 %v2217
      %v2243 = vpack.c.b16 %v2240, %v2239
      %v2244 = vpack.c.b16 %v2242, %v2241
      %v2248 = vsel %vm725, %v2228, 0
      %2250 = vmatprep.subr.bf16.mxu0 0
      %2251 = vmatpush1.bf16.msra.mxu0 0
      %2252 = vmatprep.subr.bf16.mxu0 0
      %2253 = vmatpush1.bf16.msra.mxu0 0
      %2254 = vmatprep.subr.bf16.mxu0 0
      %2255 = vmatpush1.bf16.msra.mxu0 0
      %2256 = vmatprep.subr.bf16.mxu0 0
      %2257 = vmatpush1.bf16.msra.mxu0 0
      %2258 = vmatprep.subr.bf16.mxu0 0
      %2259 = vmatpush1.bf16.msra.mxu0 0
      %2260 = vmatprep.subr.bf16.mxu0 0
      %2261 = vmatpush1.bf16.msra.mxu0 0
      %2262 = vmatprep.subr.bf16.mxu0 0
      %2263 = vmatpush1.bf16.msra.mxu0 %v2244
      %2264 = vmatprep.subr.bf16.mxu0 0
      %2265 = vmatpush1.bf16.msra.mxu0 %v2243
      %2266 = vmatprep.subr.bf16.mxu0 0
      %2267 = vmatpush2.bf16.msra.mxu0 0
      %2268 = vmatprep.subr.bf16.mxu0 0
      %2269 = vmatpush2.bf16.msra.mxu0 0
      %2270 = vmatprep.subr.bf16.mxu0 0
      %2271 = vmatpush2.bf16.msra.mxu0 0
      %2272 = vmatprep.subr.bf16.mxu0 0
      %2273 = vmatpush2.bf16.msra.mxu0 0
      %2274 = vmatprep.subr.bf16.mxu0 0
      %2275 = vmatpush2.bf16.msra.mxu0 0
      %2276 = vmatprep.subr.bf16.mxu0 0
      %2277 = vmatpush2.bf16.msra.mxu0 0
      %2278 = vmatprep.subr.bf16.mxu0 0
      %2279 = vmatpush2.bf16.msra.mxu0 0
      %2280 = vmatprep.subr.bf16.mxu0 0
      %2281 = vmatpush2.bf16.msra.mxu0 0
      %2282 = vmatprep.mubr.bf16.mxu0 0
      %2283 = vmatmul.mubr.bf16.gmra.mxu0 %v2248
      %v2284 = vpop.f32.mrf.mxu0
      %v2285 = vadd.f32 %v2233, %v2284
      %v2286 = vpop.f32.mrf.mxu0
      %v2287 = vpop.f32.mrf.mxu0
      %v2288 = vpop.f32.mrf.mxu0
      %2289 = vdwg.mxu0
      %v2290 = vmax.f32 %v2285, 0.0
      %v2291 = vpack.c.bf16 %v2290, %v2290
      %v2293 = vlaneseq
      %v2294 = vshrl.u32 %v2293, 7
      %v2295 = vsub.s32 0, %v2294
      %v2296 = vrot.slane %v2227, %v2295
      %v2306 = vunpack.c.l.b16 %v2219
      %v2307 = vunpack.c.l.b16 %v2220
      %v2308 = vunpack.c.l.b16 %v2221
      %v2309 = vunpack.c.l.b16 %v2222
      %v2310 = vunpack.c.l.b16 %v2223
      %v2311 = vunpack.c.l.b16 %v2224
      %v2312 = vunpack.c.l.b16 %v2225
      %v2313 = vunpack.c.l.b16 %v2226
      %v2314 = vpack.c.b16 %v2307, %v2306
      %v2315 = vpack.c.b16 %v2309, %v2308
      %v2316 = vpack.c.b16 %v2311, %v2310
      %v2317 = vpack.c.b16 %v2313, %v2312
      %vm2322 = vcmask 523264
      %v2324 = vsel %vm2322, %v2291, 0
      %2326 = vmatprep.subr.bf16.mxu0 0
      %2327 = vmatpush1.bf16.msra.mxu0 0
      %2328 = vmatprep.subr.bf16.mxu0 0
      %2329 = vmatpush1.bf16.msra.mxu0 0
      %2330 = vmatprep.subr.bf16.mxu0 0
      %2331 = vmatpush1.bf16.msra.mxu0 0
      %2332 = vmatprep.subr.bf16.mxu0 0
      %2333 = vmatpush1.bf16.msra.mxu0 0
      %2334 = vmatprep.subr.bf16.mxu0 0
      %2335 = vmatpush1.bf16.msra.mxu0 %v2317
      %2336 = vmatprep.subr.bf16.mxu0 0
      %2337 = vmatpush1.bf16.msra.mxu0 %v2316
      %2338 = vmatprep.subr.bf16.mxu0 0
      %2339 = vmatpush1.bf16.msra.mxu0 %v2315
      %2340 = vmatprep.subr.bf16.mxu0 0
      %2341 = vmatpush1.bf16.msra.mxu0 %v2314
      %2342 = vmatprep.subr.bf16.mxu0 0
      %2343 = vmatpush2.bf16.msra.mxu0 0
      %2344 = vmatprep.subr.bf16.mxu0 0
      %2345 = vmatpush2.bf16.msra.mxu0 0
      %2346 = vmatprep.subr.bf16.mxu0 0
      %2347 = vmatpush2.bf16.msra.mxu0 0
      %2348 = vmatprep.subr.bf16.mxu0 0
      %2349 = vmatpush2.bf16.msra.mxu0 0
      %2350 = vmatprep.subr.bf16.mxu0 0
      %2351 = vmatpush2.bf16.msra.mxu0 0
      %2352 = vmatprep.subr.bf16.mxu0 0
      %2353 = vmatpush2.bf16.msra.mxu0 0
      %2354 = vmatprep.subr.bf16.mxu0 0
      %2355 = vmatpush2.bf16.msra.mxu0 0
      %2356 = vmatprep.subr.bf16.mxu0 0
      %2357 = vmatpush2.bf16.msra.mxu0 0
      %2358 = vmatprep.mubr.bf16.mxu0 0
      %2359 = vmatmul.mubr.bf16.gmra.mxu0 %v2324
      %v2360 = vpop.f32.mrf.mxu0
      %v2361 = vadd.f32 %v2296, %v2360
      %v2362 = vpop.f32.mrf.mxu0
      %v2363 = vpop.f32.mrf.mxu0
      %v2364 = vpop.f32.mrf.mxu0
      %2365 = vdwg.mxu0
      %v2366 = vadd.f32 %v2213, %v2361
      %v2367 = vld [vmem:[%s19] sm:$0x1]
      %v2368 = vld [vmem:[%s20] sm:$0x1]
      %v2369 = vsel %vm725, %v2366, 0.0
      %2370 = vadd.xlane.f32.xlu0 %v2369
      %v2371 = vpop.xlane.xlu0 %2370
      %v2372 = vmul.f32 %v2371, %v1434
      %v2373 = vsub.f32 %v2366, %v2372
      %v2374 = vmul.f32 %v2373, %v2373
      %v2375 = vsel %vm725, %v2374, 0.0
      %2376 = vadd.xlane.f32.xlu0 %v2375
      %v2377 = vpop.xlane.xlu0 %2376
      %v2378 = vmul.f32 %v2377, %v1434
      %v2379 = vadd.f32 %v2378, 1e-05
      %v2380 = vrsqrt.pop %v2379
      %v2381 = vmul.f32 %v2373, %v2380
      %v2383 = vlaneseq
      %v2384 = vshrl.u32 %v2383, 7
      %v2385 = vsub.s32 0, %v2384
      %v2386 = vrot.slane %v2367, %v2385
      %v2388 = vmul.f32 %v2381, %v2386
      %v2390 = vlaneseq
      %v2391 = vshrl.u32 %v2390, 7
      %v2392 = vsub.s32 0, %v2391
      %v2393 = vrot.slane %v2368, %v2392
      %v2395 = vadd.f32 %v2388, %v2393
      %2396 = vst.msk [vmem:[%s682] sm:$0xff] %vm725, %v2395
      %p2397 = scmp.lt.s32.totalorder %s32, 1
      %s2398 = scalar_select %p2397, %s32, 1
      %s2399 = smul.addr %s2398, 8
      %s2400 = scalar_lea.vmem %s21, %s2399
      // Predicated region
      $region105: #{forward.7} parent=103 // pred_check
        %p2401 = pneg %p506
      $region106: #{forward.7} parent=103 // pred_check_branch
        %2403 = sbr.rel (%p2401) target = $region108
      $region107: #{forward.7} parent=103 // pred_region
        _
      $region108: #{forward.7} parent=103 // pred_fallthru
        _
    $region104: #{forward.7} parent=5 // pred_fallthru
      _
    %p2404 = scmp.le.s32.totalorder 2, %s27
    // Predicated region
    $region109: #{forward.7} parent=5 // pred_check
      %p2405 = pneg %p2404
    $region110: #{forward.7} parent=5 // pred_check_branch
      %2407 = sbr.rel (%p2405) target = $region112
    $region111: #{forward.7} parent=5 // pred_region
      %s2408 = ssub.s32 %s27, 2
      // Predicated region
      $region113: #{forward.7} parent=111 // pred_check
        %p2409 = pneg %p512
      $region114: #{forward.7} parent=111 // pred_check_branch
        %2411 = sbr.rel (%p2409) target = $region116
      $region115: #{forward.7} parent=111 // pred_region
        %p2412 = scmp.lt.s32.totalorder %s33, 1
        %s2413 = scalar_select %p2412, %s33, 1
        %s2414 = smul.addr %s2413, 8
        %s2415 = scalar_lea.vmem %s21, %s2414
      $region116: #{forward.7} parent=111 // pred_fallthru
        _
    $region112: #{forward.7} parent=5 // pred_fallthru
      _
  $region6: #{forward.7} parent=0 // loop_footer
    %s31 = sadd.s32 1, %s27
  $region7: #{forward.7} parent=0 // loop_footer_branch
    %26 = sbr.rel target = $region3
  $region8: #{forward.7} parent=0 // loop_exit
    _

</llo_original>
